<compile_context>
chip_gen: v7x
topology: tpu7x:2x2x1
jax: 0.10.0
libtpu: 0.0.40
codegen_flags: <defaults>
</compile_context>

<pallas_src>
import math
from functools import partial

import jax
import jax.numpy as jnp
from jax.experimental import pallas as pl
from jax.experimental.pallas import tpu as pltpu


# ----------------------------------------------------------------------------
# 3x3 conv (stride 1, pad 1, no bias): shift-and-accumulate, NHWC in,
# token layout (B, H*W, Cout) out.  Weights are (3, 3, Cin, Cout) bf16.
# ----------------------------------------------------------------------------
def _conv3x3_kernel(x_ref, w_ref, o_ref, *, H, W):
    xp = x_ref[0].astype(jnp.bfloat16)            # (H+2, W+2, Cin)
    cin = xp.shape[-1]
    cout = o_ref.shape[-1]
    acc = jnp.zeros((H * W, cout), jnp.float32)
    for kh in range(3):
        for kw in range(3):
            win = xp[kh:kh + H, kw:kw + W, :].reshape(H * W, cin)
            acc = acc + jnp.dot(win, w_ref[kh, kw],
                                preferred_element_type=jnp.float32)
    o_ref[0] = acc.astype(o_ref.dtype)


def conv3x3_tokens(x_nhwc, wmat):
    """x_nhwc: (B, H, W, Cin) f32; wmat: (3, 3, Cin, Cout) bf16.
    Returns (B, H*W, Cout) f32."""
    b, h, w, cin = x_nhwc.shape
    cout = wmat.shape[-1]
    xp = jnp.pad(x_nhwc, ((0, 0), (1, 1), (1, 1), (0, 0)))

    # VMEM budget: double-buffered input/output blocks + weights + temps.
    in_bytes = (h + 2) * (w + 2) * cin * 4
    out_bytes = h * w * cout * 4
    w_bytes = 9 * cin * cout * 2
    est = 2 * (in_bytes + out_bytes + w_bytes) + 3 * out_bytes + 2 * in_bytes
    vmem_limit = int(min(max(2 * est, 16 * 2 ** 20), 64 * 2 ** 20))

    # TODO(synk): no spatial (row-halo) tiling; at toy image sizes the whole
    # padded image fits VMEM on all generations.
    return pl.pallas_call(
        partial(_conv3x3_kernel, H=h, W=w),
        out_shape=jax.ShapeDtypeStruct((b, h * w, cout), jnp.float32),
        grid=(b,),
        in_specs=[
            pl.BlockSpec((1, h + 2, w + 2, cin), lambda i: (i, 0, 0, 0)),
            pl.BlockSpec((3, 3, cin, cout), lambda i: (0, 0, 0, 0)),
        ],
        out_specs=pl.BlockSpec((1, h * w, cout), lambda i: (i, 0, 0)),
        compiler_params=pltpu.CompilerParams(
            dimension_semantics=("parallel",),
            vmem_limit_bytes=vmem_limit),
    )(xp, wmat)


# ----------------------------------------------------------------------------
# Whole decoder stack in one kernel: grid = (num_layers,), batch folded into
# the block.  Residual stream lives in the resident output block (f32).
# ----------------------------------------------------------------------------
def _decoder_kernel(x_ref, g1_ref, wqkv_ref, wo_ref, g2_ref, w1_ref, w2_ref,
                    gf_ref, o_ref, *, num_heads, head_size, t_valid, eps):
    l = pl.program_id(0)
    num_layers = pl.num_programs(0)
    nh, hs = num_heads, head_size
    B, Tp, hd = o_ref.shape

    @pl.when(l == 0)
    def _():
        o_ref[...] = x_ref[...].astype(jnp.float32)

    x = o_ref[...]                                       # (B, Tp, hd) f32

    def rms(v, g):
        var = jnp.mean(v * v, axis=-1, keepdims=True)
        return v * jax.lax.rsqrt(var + eps) * g

    # key-padding mask: keys >= t_valid are zero-padded tokens.
    kidx = jax.lax.broadcasted_iota(jnp.int32, (1, 1, Tp), 2)
    kbias = jnp.where(kidx < t_valid, 0.0, -1e30).astype(jnp.float32)

    # --- attention (fused QKV matmul; head loop keeps score memory bounded) ---
    h = rms(x, g1_ref[0]).astype(jnp.bfloat16)           # (B, Tp, hd)
    qkv = jnp.dot(h.reshape(B * Tp, hd), wqkv_ref[0],
                  preferred_element_type=jnp.float32)    # (B*Tp, 3*hd) f32 acc
    qkv = qkv.astype(jnp.bfloat16).reshape(B, Tp, 3 * hd)

    scale = 1.0 / math.sqrt(hs)
    wo = wo_ref[0]                                       # (hd, hd) bf16
    attn = jnp.zeros((B * Tp, hd), jnp.float32)
    for hh in range(nh):
        q_h = qkv[:, :, hh * hs:(hh + 1) * hs]                   # (B, Tp, hs)
        k_h = qkv[:, :, hd + hh * hs:hd + (hh + 1) * hs]
        v_h = qkv[:, :, 2 * hd + hh * hs:2 * hd + (hh + 1) * hs]
        s = jnp.einsum('bqd,bkd->bqk', q_h, k_h,
                       preferred_element_type=jnp.float32) * scale + kbias
        s = s - jnp.max(s, axis=-1, keepdims=True)
        p = jnp.exp(s)
        p = p * pl.reciprocal(jnp.sum(p, axis=-1, keepdims=True), approx=True)
        ctx = jnp.einsum('bqk,bkd->bqd', p.astype(jnp.bfloat16), v_h,
                         preferred_element_type=jnp.float32)     # (B, Tp, hs)
        attn = attn + jnp.dot(ctx.reshape(B * Tp, hs).astype(jnp.bfloat16),
                              wo[hh * hs:(hh + 1) * hs, :],
                              preferred_element_type=jnp.float32)

    x2 = x + attn.reshape(B, Tp, hd)

    # --- MLP ---
    h2 = rms(x2, g2_ref[0]).astype(jnp.bfloat16)
    u = jnp.dot(h2.reshape(B * Tp, hd), w1_ref[0],
                preferred_element_type=jnp.float32)
    # TODO(synk): reference `Transformer` class is undefined; using tanh-GELU
    # (PyTorch nn.GELU default is exact erf).
    u = jax.nn.gelu(u, approximate=True).astype(jnp.bfloat16)
    mlp = jnp.dot(u, w2_ref[0], preferred_element_type=jnp.float32)

    y = x2 + mlp.reshape(B, Tp, hd)
    o_ref[...] = y                                       # residual carry

    @pl.when(l == num_layers - 1)
    def _():
        o_ref[...] = rms(y, gf_ref[...]).astype(o_ref.dtype)


def decoder_forward(tokens, dp, *, num_heads, head_size, t_valid, eps):
    b, tp, hd = tokens.shape
    L = dp["wqkv"].shape[0]
    ff = dp["w1"].shape[-1]

    def wspec(shape):
        nd = len(shape)
        return pl.BlockSpec((1,) + tuple(shape[1:]),
                            lambda l, nd=nd: (l,) + (0,) * (nd - 1))

    # VMEM budget from actual block sizes: resident token/output blocks,
    # double-buffered per-layer weights, attention/MLP temporaries (+2x margin).
    act = b * tp * hd * 4
    wbytes = 2 * (3 * hd * hd + hd * hd + hd * ff + ff * hd) + 8 * hd
    tmp = b * tp * 3 * hd * 6 + b * tp * tp * 8 + b * tp * ff * 6 + 4 * act
    est = 4 * act + 2 * wbytes + tmp
    vmem_limit = int(min(max(2 * est, 32 * 2 ** 20), 64 * 2 ** 20))

    kern = partial(_decoder_kernel, num_heads=num_heads, head_size=head_size,
                   t_valid=t_valid, eps=eps)
    return pl.pallas_call(
        kern,
        out_shape=jax.ShapeDtypeStruct((b, tp, hd), jnp.float32),
        grid=(L,),
        in_specs=[
            pl.BlockSpec((b, tp, hd), lambda l: (0, 0, 0)),   # tokens (resident)
            wspec(dp["g1"].shape),                            # norm1 gamma
            wspec(dp["wqkv"].shape),                          # fused Wqkv
            wspec(dp["wo"].shape),                            # Wo
            wspec(dp["g2"].shape),                            # norm2 gamma
            wspec(dp["w1"].shape),                            # W1
            wspec(dp["w2"].shape),                            # W2
            pl.BlockSpec((1, hd), lambda l: (0, 0)),          # final gamma
        ],
        out_specs=pl.BlockSpec((b, tp, hd), lambda l: (0, 0, 0)),
        compiler_params=pltpu.CompilerParams(
            dimension_semantics=("arbitrary",),
            vmem_limit_bytes=vmem_limit),
    )(tokens, dp["g1"], dp["wqkv"], dp["wo"], dp["g2"], dp["w1"], dp["w2"],
      dp["gf"])


# ----------------------------------------------------------------------------
# Parameters + forward
# ----------------------------------------------------------------------------
def init_params(key, *, hidden_size, num_heads, head_size, num_layers,
                in_channels=12):
    hd, L = hidden_size, num_layers
    ks = jax.random.split(key, 9)
    std = 0.02
    emb = jax.random.normal(ks[0], (1000, hd), jnp.float32) * std
    emb = emb.at[0].set(0.0)                                   # padding_idx=0
    in_w = jax.random.normal(ks[1], (hd, in_channels, 3, 3), jnp.float32) * std
    out_w = jax.random.normal(ks[2], (in_channels, hd, 3, 3), jnp.float32) * std
    wq = jax.random.normal(ks[3], (L, hd, hd), jnp.float32) * std
    wk = jax.random.normal(ks[4], (L, hd, hd), jnp.float32) * std
    wv = jax.random.normal(ks[5], (L, hd, hd), jnp.float32) * std
    wo = jax.random.normal(ks[6], (L, hd, hd), jnp.float32) * std
    w1 = jax.random.normal(ks[7], (L, hd, 4 * hd), jnp.float32) * std
    w2 = jax.random.normal(ks[8], (L, 4 * hd, hd), jnp.float32) * std

    # Conv weights (Cout, Cin, 3, 3) -> (3, 3, Cin, Cout), bf16.
    in_conv_w = in_w.transpose(2, 3, 1, 0).astype(jnp.bfloat16)
    # out_conv: zero-pad Cout 12 -> 128 so output stores are lane-dense.
    ow = out_w.transpose(2, 3, 1, 0)                            # (3,3,hd,12)
    ow = jnp.pad(ow, ((0, 0), (0, 0), (0, 0), (0, 128 - in_channels)))
    out_conv_w = ow.astype(jnp.bfloat16)

    return {
        "timestep_embedding": emb,
        "in_conv_w": in_conv_w,
        "out_conv_w": out_conv_w,
        "decoder": {
            "g1": jnp.ones((L, 1, hd), jnp.float32),
            "wqkv": jnp.concatenate([wq, wk, wv], axis=-1).astype(jnp.bfloat16),
            "wo": wo.astype(jnp.bfloat16),
            "g2": jnp.ones((L, 1, hd), jnp.float32),
            "w1": w1.astype(jnp.bfloat16),
            "w2": w2.astype(jnp.bfloat16),
            "gf": jnp.ones((1, hd), jnp.float32),
        },
    }


def latent_diffusion_transformer_forward(params, image, text_embeds, timestep,
                                         *, num_heads, head_size, eps):
    """image: (B,12,H,W) NCHW; text_embeds: (B,hidden) (CLIP stand-in);
    timestep: (B,) int32.  Returns (B,12,H,W)."""
    b, cin, h, w = image.shape
    hidden = params["decoder"]["wqkv"].shape[1]

    # timestep_embedding(timestep.view(-1, 1)) -> (B, 1, hidden)
    ts = jnp.take(params["timestep_embedding"], timestep.reshape(-1), axis=0)
    ts = ts.reshape(b, 1, hidden)

    # in_conv + flatten(2).transpose(-1,-2): kernel emits (B, HW, hidden)
    img_nhwc = jnp.transpose(image, (0, 2, 3, 1))
    image_embeds = conv3x3_tokens(img_nhwc, params["in_conv_w"])

    # cat([image_embeds, text.unsqueeze(1), timestep], dim=1), then pad T to 128k
    tokens = jnp.concatenate([image_embeds, text_embeds[:, None, :], ts], axis=1)
    t_valid = h * w + 2
    tp = ((t_valid + 127) // 128) * 128
    tokens = jnp.pad(tokens, ((0, 0), (0, tp - t_valid), (0, 0)))

    # decoder: all layers + final norm in ONE pallas_call, grid over layers only
    dec = decoder_forward(tokens, params["decoder"], num_heads=num_heads,
                          head_size=head_size, t_valid=t_valid, eps=eps)

    # output_embeds[:, :HW] -> spatial NHWC -> out_conv (Cout padded to 128)
    out_nhwc = dec[:, :h * w].reshape(b, h, w, hidden)
    out_tok = conv3x3_tokens(out_nhwc, params["out_conv_w"])   # (B, HW, 128)
    out_tok = out_tok[..., :cin]                               # drop pad channels
    return jnp.transpose(out_tok.reshape(b, h, w, cin), (0, 3, 1, 2))


if __name__ == "__main__":
    # small config consistent with the module: hidden=32, head=8, heads=4, layers=2
    HIDDEN, HEAD, NHEADS, NLAYERS, EPS = 32, 8, 4, 2, 1e-8
    B, HH, WW = 2, 8, 8

    key = jax.random.PRNGKey(0)
    k_param, k_img, k_txt = jax.random.split(key, 3)

    params = init_params(k_param, hidden_size=HIDDEN, num_heads=NHEADS,
                         head_size=HEAD, num_layers=NLAYERS)

    image = jax.random.normal(k_img, (B, 12, HH, WW), jnp.float32)
    text_embeds = jax.random.normal(k_txt, (B, HIDDEN), jnp.float32)  # CLIP stand-in
    timestep = jnp.array([5, 123], jnp.int32)

    fwd = jax.jit(partial(latent_diffusion_transformer_forward,
                          num_heads=NHEADS, head_size=HEAD, eps=EPS))
    out = fwd(params, image, text_embeds, timestep)
    jax.block_until_ready(out)
    assert out.shape == (B, 12, HH, WW), out.shape
    assert bool(jnp.all(jnp.isfinite(out)))
    print("KERNEL_OK")
</pallas_src>

<mosaic_0001>
module attributes {stable_mosaic.version = 11 : i64} {
  func.func @_conv3x3_kernel(%arg0: i32, %arg1: memref<1x10x10x12xf32, #tpu.memory_space<vmem>>, %arg2: memref<3x3x12x32xbf16, #tpu.memory_space<vmem>>, %arg3: memref<1x64x32xf32, #tpu.memory_space<vmem>>) attributes {dimension_semantics = [#tpu.dimension_semantics<parallel>], iteration_bounds = array<i64: 2>, scalar_prefetch = 0 : i64, scratch_operands = 0 : i64, tpu.core_type = #tpu.core_type<tc>, window_params = [{transform_indices = @transform_0, window_bounds = array<i64: 1, 10, 10, 12>}, {pipeline_mode = #tpu.pipeline_mode<synchronous>, transform_indices = @transform_1, window_bounds = array<i64: 3, 3, 12, 32>}, {transform_indices = @transform_2, window_bounds = array<i64: 1, 64, 32>}]} {
    %c0 = arith.constant 0 : index
    %c0_0 = arith.constant 0 : index
    %c0_1 = arith.constant 0 : index
    %c0_2 = arith.constant 0 : index
    %0 = vector.load %arg1[%c0, %c0_0, %c0_1, %c0_2] : memref<1x10x10x12xf32, #tpu.memory_space<vmem>>, vector<1x10x10x12xf32>
    %1 = vector.shape_cast %0 : vector<1x10x10x12xf32> to vector<10x10x12xf32>
    %2 = arith.truncf %1 : vector<10x10x12xf32> to vector<10x10x12xbf16>
    %cst = arith.constant 0.000000e+00 : f32
    %3 = vector.broadcast %cst : f32 to vector<64x32xf32>
    %4 = vector.extract_strided_slice %2 {offsets = [0, 0, 0], sizes = [8, 8, 12], strides = [1, 1, 1]} : vector<10x10x12xbf16> to vector<8x8x12xbf16>
    %5 = vector.shape_cast %4 : vector<8x8x12xbf16> to vector<64x12xbf16>
    %c0_3 = arith.constant 0 : index
    %c0_4 = arith.constant 0 : index
    %c0_5 = arith.constant 0 : index
    %c0_6 = arith.constant 0 : index
    %6 = vector.load %arg2[%c0_3, %c0_4, %c0_5, %c0_6] : memref<3x3x12x32xbf16, #tpu.memory_space<vmem>>, vector<1x1x12x32xbf16>
    %7 = vector.shape_cast %6 : vector<1x1x12x32xbf16> to vector<12x32xbf16>
    %cst_7 = arith.constant dense<0.000000e+00> : vector<64x32xf32>
    %8 = tpu.matmul %5, %7, %cst_7 {dimension_numbers = #tpu.dot_dimension_numbers<[1], [0], [0], [1], [0, 0, 1, 1], [], []>} : vector<64x12xbf16>, vector<12x32xbf16>, vector<64x32xf32> -> vector<64x32xf32>
    %9 = arith.addf %3, %8 : vector<64x32xf32>
    %10 = vector.extract_strided_slice %2 {offsets = [0, 1, 0], sizes = [8, 8, 12], strides = [1, 1, 1]} : vector<10x10x12xbf16> to vector<8x8x12xbf16>
    %11 = vector.shape_cast %10 : vector<8x8x12xbf16> to vector<64x12xbf16>
    %c0_8 = arith.constant 0 : index
    %c1 = arith.constant 1 : index
    %c0_9 = arith.constant 0 : index
    %c0_10 = arith.constant 0 : index
    %12 = vector.load %arg2[%c0_8, %c1, %c0_9, %c0_10] : memref<3x3x12x32xbf16, #tpu.memory_space<vmem>>, vector<1x1x12x32xbf16>
    %13 = vector.shape_cast %12 : vector<1x1x12x32xbf16> to vector<12x32xbf16>
    %cst_11 = arith.constant dense<0.000000e+00> : vector<64x32xf32>
    %14 = tpu.matmul %11, %13, %cst_11 {dimension_numbers = #tpu.dot_dimension_numbers<[1], [0], [0], [1], [0, 0, 1, 1], [], []>} : vector<64x12xbf16>, vector<12x32xbf16>, vector<64x32xf32> -> vector<64x32xf32>
    %15 = arith.addf %9, %14 : vector<64x32xf32>
    %16 = vector.extract_strided_slice %2 {offsets = [0, 2, 0], sizes = [8, 8, 12], strides = [1, 1, 1]} : vector<10x10x12xbf16> to vector<8x8x12xbf16>
    %17 = vector.shape_cast %16 : vector<8x8x12xbf16> to vector<64x12xbf16>
    %c0_12 = arith.constant 0 : index
    %c2 = arith.constant 2 : index
    %c0_13 = arith.constant 0 : index
    %c0_14 = arith.constant 0 : index
    %18 = vector.load %arg2[%c0_12, %c2, %c0_13, %c0_14] : memref<3x3x12x32xbf16, #tpu.memory_space<vmem>>, vector<1x1x12x32xbf16>
    %19 = vector.shape_cast %18 : vector<1x1x12x32xbf16> to vector<12x32xbf16>
    %cst_15 = arith.constant dense<0.000000e+00> : vector<64x32xf32>
    %20 = tpu.matmul %17, %19, %cst_15 {dimension_numbers = #tpu.dot_dimension_numbers<[1], [0], [0], [1], [0, 0, 1, 1], [], []>} : vector<64x12xbf16>, vector<12x32xbf16>, vector<64x32xf32> -> vector<64x32xf32>
    %21 = arith.addf %15, %20 : vector<64x32xf32>
    %22 = vector.extract_strided_slice %2 {offsets = [1, 0, 0], sizes = [8, 8, 12], strides = [1, 1, 1]} : vector<10x10x12xbf16> to vector<8x8x12xbf16>
    %23 = vector.shape_cast %22 : vector<8x8x12xbf16> to vector<64x12xbf16>
    %c1_16 = arith.constant 1 : index
    %c0_17 = arith.constant 0 : index
    %c0_18 = arith.constant 0 : index
    %c0_19 = arith.constant 0 : index
    %24 = vector.load %arg2[%c1_16, %c0_17, %c0_18, %c0_19] : memref<3x3x12x32xbf16, #tpu.memory_space<vmem>>, vector<1x1x12x32xbf16>
    %25 = vector.shape_cast %24 : vector<1x1x12x32xbf16> to vector<12x32xbf16>
    %cst_20 = arith.constant dense<0.000000e+00> : vector<64x32xf32>
    %26 = tpu.matmul %23, %25, %cst_20 {dimension_numbers = #tpu.dot_dimension_numbers<[1], [0], [0], [1], [0, 0, 1, 1], [], []>} : vector<64x12xbf16>, vector<12x32xbf16>, vector<64x32xf32> -> vector<64x32xf32>
    %27 = arith.addf %21, %26 : vector<64x32xf32>
    %28 = vector.extract_strided_slice %2 {offsets = [1, 1, 0], sizes = [8, 8, 12], strides = [1, 1, 1]} : vector<10x10x12xbf16> to vector<8x8x12xbf16>
    %29 = vector.shape_cast %28 : vector<8x8x12xbf16> to vector<64x12xbf16>
    %c1_21 = arith.constant 1 : index
    %c1_22 = arith.constant 1 : index
    %c0_23 = arith.constant 0 : index
    %c0_24 = arith.constant 0 : index
    %30 = vector.load %arg2[%c1_21, %c1_22, %c0_23, %c0_24] : memref<3x3x12x32xbf16, #tpu.memory_space<vmem>>, vector<1x1x12x32xbf16>
    %31 = vector.shape_cast %30 : vector<1x1x12x32xbf16> to vector<12x32xbf16>
    %cst_25 = arith.constant dense<0.000000e+00> : vector<64x32xf32>
    %32 = tpu.matmul %29, %31, %cst_25 {dimension_numbers = #tpu.dot_dimension_numbers<[1], [0], [0], [1], [0, 0, 1, 1], [], []>} : vector<64x12xbf16>, vector<12x32xbf16>, vector<64x32xf32> -> vector<64x32xf32>
    %33 = arith.addf %27, %32 : vector<64x32xf32>
    %34 = vector.extract_strided_slice %2 {offsets = [1, 2, 0], sizes = [8, 8, 12], strides = [1, 1, 1]} : vector<10x10x12xbf16> to vector<8x8x12xbf16>
    %35 = vector.shape_cast %34 : vector<8x8x12xbf16> to vector<64x12xbf16>
    %c1_26 = arith.constant 1 : index
    %c2_27 = arith.constant 2 : index
    %c0_28 = arith.constant 0 : index
    %c0_29 = arith.constant 0 : index
    %36 = vector.load %arg2[%c1_26, %c2_27, %c0_28, %c0_29] : memref<3x3x12x32xbf16, #tpu.memory_space<vmem>>, vector<1x1x12x32xbf16>
    %37 = vector.shape_cast %36 : vector<1x1x12x32xbf16> to vector<12x32xbf16>
    %cst_30 = arith.constant dense<0.000000e+00> : vector<64x32xf32>
    %38 = tpu.matmul %35, %37, %cst_30 {dimension_numbers = #tpu.dot_dimension_numbers<[1], [0], [0], [1], [0, 0, 1, 1], [], []>} : vector<64x12xbf16>, vector<12x32xbf16>, vector<64x32xf32> -> vector<64x32xf32>
    %39 = arith.addf %33, %38 : vector<64x32xf32>
    %40 = vector.extract_strided_slice %2 {offsets = [2, 0, 0], sizes = [8, 8, 12], strides = [1, 1, 1]} : vector<10x10x12xbf16> to vector<8x8x12xbf16>
    %41 = vector.shape_cast %40 : vector<8x8x12xbf16> to vector<64x12xbf16>
    %c2_31 = arith.constant 2 : index
    %c0_32 = arith.constant 0 : index
    %c0_33 = arith.constant 0 : index
    %c0_34 = arith.constant 0 : index
    %42 = vector.load %arg2[%c2_31, %c0_32, %c0_33, %c0_34] : memref<3x3x12x32xbf16, #tpu.memory_space<vmem>>, vector<1x1x12x32xbf16>
    %43 = vector.shape_cast %42 : vector<1x1x12x32xbf16> to vector<12x32xbf16>
    %cst_35 = arith.constant dense<0.000000e+00> : vector<64x32xf32>
    %44 = tpu.matmul %41, %43, %cst_35 {dimension_numbers = #tpu.dot_dimension_numbers<[1], [0], [0], [1], [0, 0, 1, 1], [], []>} : vector<64x12xbf16>, vector<12x32xbf16>, vector<64x32xf32> -> vector<64x32xf32>
    %45 = arith.addf %39, %44 : vector<64x32xf32>
    %46 = vector.extract_strided_slice %2 {offsets = [2, 1, 0], sizes = [8, 8, 12], strides = [1, 1, 1]} : vector<10x10x12xbf16> to vector<8x8x12xbf16>
    %47 = vector.shape_cast %46 : vector<8x8x12xbf16> to vector<64x12xbf16>
    %c2_36 = arith.constant 2 : index
    %c1_37 = arith.constant 1 : index
    %c0_38 = arith.constant 0 : index
    %c0_39 = arith.constant 0 : index
    %48 = vector.load %arg2[%c2_36, %c1_37, %c0_38, %c0_39] : memref<3x3x12x32xbf16, #tpu.memory_space<vmem>>, vector<1x1x12x32xbf16>
    %49 = vector.shape_cast %48 : vector<1x1x12x32xbf16> to vector<12x32xbf16>
    %cst_40 = arith.constant dense<0.000000e+00> : vector<64x32xf32>
    %50 = tpu.matmul %47, %49, %cst_40 {dimension_numbers = #tpu.dot_dimension_numbers<[1], [0], [0], [1], [0, 0, 1, 1], [], []>} : vector<64x12xbf16>, vector<12x32xbf16>, vector<64x32xf32> -> vector<64x32xf32>
    %51 = arith.addf %45, %50 : vector<64x32xf32>
    %52 = vector.extract_strided_slice %2 {offsets = [2, 2, 0], sizes = [8, 8, 12], strides = [1, 1, 1]} : vector<10x10x12xbf16> to vector<8x8x12xbf16>
    %53 = vector.shape_cast %52 : vector<8x8x12xbf16> to vector<64x12xbf16>
    %c2_41 = arith.constant 2 : index
    %c2_42 = arith.constant 2 : index
    %c0_43 = arith.constant 0 : index
    %c0_44 = arith.constant 0 : index
    %54 = vector.load %arg2[%c2_41, %c2_42, %c0_43, %c0_44] : memref<3x3x12x32xbf16, #tpu.memory_space<vmem>>, vector<1x1x12x32xbf16>
    %55 = vector.shape_cast %54 : vector<1x1x12x32xbf16> to vector<12x32xbf16>
    %cst_45 = arith.constant dense<0.000000e+00> : vector<64x32xf32>
    %56 = tpu.matmul %53, %55, %cst_45 {dimension_numbers = #tpu.dot_dimension_numbers<[1], [0], [0], [1], [0, 0, 1, 1], [], []>} : vector<64x12xbf16>, vector<12x32xbf16>, vector<64x32xf32> -> vector<64x32xf32>
    %57 = arith.addf %51, %56 : vector<64x32xf32>
    %c0_46 = arith.constant 0 : index
    %c0_47 = arith.constant 0 : index
    %c0_48 = arith.constant 0 : index
    %58 = vector.load %arg3[%c0_46, %c0_47, %c0_48] : memref<1x64x32xf32, #tpu.memory_space<vmem>>, vector<1x64x32xf32>
    %59 = vector.shape_cast %58 : vector<1x64x32xf32> to vector<64x32xf32>
    %60 = vector.shape_cast %57 : vector<64x32xf32> to vector<1x64x32xf32>
    tpu.vector_store %arg3[%c0_46, %c0_47, %c0_48], %60 {strides = array<i32>} : memref<1x64x32xf32, #tpu.memory_space<vmem>>, vector<1x64x32xf32>,
    return
  }
  func.func @transform_0(%arg0: i32) -> (i32, i32, i32, i32) {
    %c0_i32 = arith.constant 0 : i32
    %c0_i32_0 = arith.constant 0 : i32
    %c0_i32_1 = arith.constant 0 : i32
    %c0_i32_2 = arith.constant 0 : i32
    return %arg0, %c0_i32, %c0_i32_0, %c0_i32_1 : i32, i32, i32, i32
  }
  func.func @transform_1(%arg0: i32) -> (i32, i32, i32, i32) {
    %c0_i32 = arith.constant 0 : i32
    %c0_i32_0 = arith.constant 0 : i32
    %c0_i32_1 = arith.constant 0 : i32
    %c0_i32_2 = arith.constant 0 : i32
    %c0_i32_3 = arith.constant 0 : i32
    return %c0_i32, %c0_i32_0, %c0_i32_1, %c0_i32_2 : i32, i32, i32, i32
  }
  func.func @transform_2(%arg0: i32) -> (i32, i32, i32) {
    %c0_i32 = arith.constant 0 : i32
    %c0_i32_0 = arith.constant 0 : i32
    %c0_i32_1 = arith.constant 0 : i32
    return %arg0, %c0_i32, %c0_i32_0 : i32, i32, i32
  }
}

module attributes {stable_mosaic.version = 11 : i64} {
  func.func @_decoder_kernel(%arg0: i32, %arg1: memref<2x128x32xf32, #tpu.memory_space<vmem>>, %arg2: memref<1x1x32xf32, #tpu.memory_space<vmem>>, %arg3: memref<1x32x96xbf16, #tpu.memory_space<vmem>>, %arg4: memref<1x32x32xbf16, #tpu.memory_space<vmem>>, %arg5: memref<1x1x32xf32, #tpu.memory_space<vmem>>, %arg6: memref<1x32x128xbf16, #tpu.memory_space<vmem>>, %arg7: memref<1x128x32xbf16, #tpu.memory_space<vmem>>, %arg8: memref<1x32xf32, #tpu.memory_space<vmem>>, %arg9: memref<2x128x32xf32, #tpu.memory_space<vmem>>) attributes {dimension_semantics = [#tpu.dimension_semantics<arbitrary>], iteration_bounds = array<i64: 2>, scalar_prefetch = 0 : i64, scratch_operands = 0 : i64, tpu.core_type = #tpu.core_type<tc>, window_params = [{pipeline_mode = #tpu.pipeline_mode<synchronous>, transform_indices = @transform_0, window_bounds = array<i64: 2, 128, 32>}, {transform_indices = @transform_1, window_bounds = array<i64: 1, 1, 32>}, {transform_indices = @transform_2, window_bounds = array<i64: 1, 32, 96>}, {transform_indices = @transform_3, window_bounds = array<i64: 1, 32, 32>}, {transform_indices = @transform_4, window_bounds = array<i64: 1, 1, 32>}, {transform_indices = @transform_5, window_bounds = array<i64: 1, 32, 128>}, {transform_indices = @transform_6, window_bounds = array<i64: 1, 128, 32>}, {pipeline_mode = #tpu.pipeline_mode<synchronous>, transform_indices = @transform_7, window_bounds = array<i64: 1, 32>}, {pipeline_mode = #tpu.pipeline_mode<synchronous>, transform_indices = @transform_8, window_bounds = array<i64: 2, 128, 32>}]} {
    %c0_i32 = arith.constant 0 : i32
    %0 = arith.cmpi eq, %arg0, %c0_i32 : i32
    %1 = arith.extui %0 : i1 to i32
    %c0_i32_0 = arith.constant 0 : i32
    %2 = arith.cmpi ne, %1, %c0_i32_0 : i32
    scf.if %2 {
      %c0_64 = arith.constant 0 : index
      %c0_65 = arith.constant 0 : index
      %c0_66 = arith.constant 0 : index
      %180 = vector.load %arg1[%c0_64, %c0_65, %c0_66] : memref<2x128x32xf32, #tpu.memory_space<vmem>>, vector<2x128x32xf32>
      %c0_67 = arith.constant 0 : index
      %c0_68 = arith.constant 0 : index
      %c0_69 = arith.constant 0 : index
      %181 = vector.load %arg9[%c0_67, %c0_68, %c0_69] : memref<2x128x32xf32, #tpu.memory_space<vmem>>, vector<2x128x32xf32>
      tpu.vector_store %arg9[%c0_67, %c0_68, %c0_69], %180 {strides = array<i32>} : memref<2x128x32xf32, #tpu.memory_space<vmem>>, vector<2x128x32xf32>,
    } else {
    }
    %c0 = arith.constant 0 : index
    %c0_1 = arith.constant 0 : index
    %c0_2 = arith.constant 0 : index
    %3 = vector.load %arg9[%c0, %c0_1, %c0_2] : memref<2x128x32xf32, #tpu.memory_space<vmem>>, vector<2x128x32xf32>
    %4 = tpu.iota {dimensions = array<i32: 2>} : vector<1x1x128xi32>
    %c66_i32 = arith.constant 66 : i32
    %5 = vector.broadcast %c66_i32 : i32 to vector<1x1x128xi32>
    %6 = arith.cmpi slt, %4, %5 : vector<1x1x128xi32>
    %cst = arith.constant 0.000000e+00 : f32
    %cst_3 = arith.constant -1.000000e+30 : f32
    %7 = vector.broadcast %cst : f32 to vector<1x1x128xf32>
    %8 = vector.broadcast %cst_3 : f32 to vector<1x1x128xf32>
    %9 = arith.select %6, %7, %8 : vector<1x1x128xi1>, vector<1x1x128xf32>
    %c0_4 = arith.constant 0 : index
    %c0_5 = arith.constant 0 : index
    %c0_6 = arith.constant 0 : index
    %10 = vector.load %arg2[%c0_4, %c0_5, %c0_6] : memref<1x1x32xf32, #tpu.memory_space<vmem>>, vector<1x1x32xf32>
    %11 = vector.shape_cast %10 : vector<1x1x32xf32> to vector<1x32xf32>
    %12 = arith.mulf %3, %3 : vector<2x128x32xf32>
    %cst_7 = arith.constant dense<0.000000e+00> : vector<2x128xf32>
    %13 = vector.multi_reduction <add>, %12, %cst_7 [2] : vector<2x128x32xf32> to vector<2x128xf32>
    %14 = vector.shape_cast %13 : vector<2x128xf32> to vector<2x128x1xf32>
    %cst_8 = arith.constant 3.200000e+01 : f32
    %15 = vector.broadcast %cst_8 : f32 to vector<2x128x1xf32>
    %16 = arith.divf %14, %15 : vector<2x128x1xf32>
    %cst_9 = arith.constant 9.99999993E-9 : f32
    %17 = vector.broadcast %cst_9 : f32 to vector<2x128x1xf32>
    %18 = arith.addf %16, %17 : vector<2x128x1xf32>
    %19 = math.rsqrt %18 : vector<2x128x1xf32>
    %20 = vector.broadcast %19 : vector<2x128x1xf32> to vector<2x128x32xf32>
    %21 = arith.mulf %3, %20 : vector<2x128x32xf32>
    %22 = vector.shape_cast %11 : vector<1x32xf32> to vector<1x1x32xf32>
    %23 = vector.broadcast %22 : vector<1x1x32xf32> to vector<2x128x32xf32>
    %24 = arith.mulf %21, %23 : vector<2x128x32xf32>
    %25 = arith.truncf %24 : vector<2x128x32xf32> to vector<2x128x32xbf16>
    %26 = vector.shape_cast %25 : vector<2x128x32xbf16> to vector<256x32xbf16>
    %c0_10 = arith.constant 0 : index
    %c0_11 = arith.constant 0 : index
    %c0_12 = arith.constant 0 : index
    %27 = vector.load %arg3[%c0_10, %c0_11, %c0_12] : memref<1x32x96xbf16, #tpu.memory_space<vmem>>, vector<1x32x96xbf16>
    %28 = vector.shape_cast %27 : vector<1x32x96xbf16> to vector<32x96xbf16>
    %cst_13 = arith.constant dense<0.000000e+00> : vector<256x96xf32>
    %29 = tpu.matmul %26, %28, %cst_13 {dimension_numbers = #tpu.dot_dimension_numbers<[1], [0], [0], [1], [0, 0, 1, 1], [], []>} : vector<256x32xbf16>, vector<32x96xbf16>, vector<256x96xf32> -> vector<256x96xf32>
    %30 = arith.truncf %29 : vector<256x96xf32> to vector<256x96xbf16>
    %31 = vector.shape_cast %30 : vector<256x96xbf16> to vector<2x128x96xbf16>
    %c0_14 = arith.constant 0 : index
    %c0_15 = arith.constant 0 : index
    %c0_16 = arith.constant 0 : index
    %32 = vector.load %arg4[%c0_14, %c0_15, %c0_16] : memref<1x32x32xbf16, #tpu.memory_space<vmem>>, vector<1x32x32xbf16>
    %33 = vector.shape_cast %32 : vector<1x32x32xbf16> to vector<32x32xbf16>
    %cst_17 = arith.constant 0.000000e+00 : f32
    %34 = vector.broadcast %cst_17 : f32 to vector<256x32xf32>
    %35 = vector.extract_strided_slice %31 {offsets = [0, 0, 0], sizes = [2, 128, 8], strides = [1, 1, 1]} : vector<2x128x96xbf16> to vector<2x128x8xbf16>
    %36 = vector.extract_strided_slice %31 {offsets = [0, 0, 32], sizes = [2, 128, 8], strides = [1, 1, 1]} : vector<2x128x96xbf16> to vector<2x128x8xbf16>
    %37 = vector.extract_strided_slice %31 {offsets = [0, 0, 64], sizes = [2, 128, 8], strides = [1, 1, 1]} : vector<2x128x96xbf16> to vector<2x128x8xbf16>
    "tpu.trace_start"() <{level = 10 : i32, message = "bqd,bkd->bqk"}> : () -> ()
    %cst_18 = arith.constant dense<0.000000e+00> : vector<2x128x128xf32>
    %38 = tpu.matmul %35, %36, %cst_18 {dimension_numbers = #tpu.dot_dimension_numbers<[2], [2], [1], [1], [0, 0, 0, 1, 1, 1], [0], [0]>} : vector<2x128x8xbf16>, vector<2x128x8xbf16>, vector<2x128x128xf32> -> vector<2x128x128xf32>
    "tpu.trace_stop"() : () -> ()
    %cst_19 = arith.constant 0.353553385 : f32
    %39 = vector.broadcast %cst_19 : f32 to vector<2x128x128xf32>
    %40 = arith.mulf %38, %39 : vector<2x128x128xf32>
    %41 = vector.broadcast %9 : vector<1x1x128xf32> to vector<2x128x128xf32>
    %42 = arith.addf %40, %41 : vector<2x128x128xf32>
    %cst_20 = arith.constant dense<0xFF800000> : vector<2x128xf32>
    %43 = vector.multi_reduction <maximumf>, %42, %cst_20 [2] : vector<2x128x128xf32> to vector<2x128xf32>
    %44 = vector.shape_cast %43 : vector<2x128xf32> to vector<2x128x1xf32>
    %45 = vector.broadcast %44 : vector<2x128x1xf32> to vector<2x128x128xf32>
    %46 = arith.subf %42, %45 : vector<2x128x128xf32>
    %47 = math.exp %46 : vector<2x128x128xf32>
    %cst_21 = arith.constant dense<0.000000e+00> : vector<2x128xf32>
    %48 = vector.multi_reduction <add>, %47, %cst_21 [2] : vector<2x128x128xf32> to vector<2x128xf32>
    %49 = vector.shape_cast %48 : vector<2x128xf32> to vector<2x128x1xf32>
    %50 = tpu.reciprocal %49 {approx = true} : vector<2x128x1xf32> -> vector<2x128x1xf32>
    %51 = vector.broadcast %50 : vector<2x128x1xf32> to vector<2x128x128xf32>
    %52 = arith.mulf %47, %51 : vector<2x128x128xf32>
    %53 = arith.truncf %52 : vector<2x128x128xf32> to vector<2x128x128xbf16>
    "tpu.trace_start"() <{level = 10 : i32, message = "bqk,bkd->bqd"}> : () -> ()
    %cst_22 = arith.constant dense<0.000000e+00> : vector<2x128x8xf32>
    %54 = tpu.matmul %53, %37, %cst_22 {dimension_numbers = #tpu.dot_dimension_numbers<[2], [1], [1], [2], [0, 0, 0, 1, 1, 2], [0], [0]>} : vector<2x128x128xbf16>, vector<2x128x8xbf16>, vector<2x128x8xf32> -> vector<2x128x8xf32>
    "tpu.trace_stop"() : () -> ()
    %55 = vector.shape_cast %54 : vector<2x128x8xf32> to vector<256x8xf32>
    %56 = arith.truncf %55 : vector<256x8xf32> to vector<256x8xbf16>
    %57 = vector.extract_strided_slice %33 {offsets = [0, 0], sizes = [8, 32], strides = [1, 1]} : vector<32x32xbf16> to vector<8x32xbf16>
    %cst_23 = arith.constant dense<0.000000e+00> : vector<256x32xf32>
    %58 = tpu.matmul %56, %57, %cst_23 {dimension_numbers = #tpu.dot_dimension_numbers<[1], [0], [0], [1], [0, 0, 1, 1], [], []>} : vector<256x8xbf16>, vector<8x32xbf16>, vector<256x32xf32> -> vector<256x32xf32>
    %59 = arith.addf %34, %58 : vector<256x32xf32>
    %60 = vector.extract_strided_slice %31 {offsets = [0, 0, 8], sizes = [2, 128, 8], strides = [1, 1, 1]} : vector<2x128x96xbf16> to vector<2x128x8xbf16>
    %61 = vector.extract_strided_slice %31 {offsets = [0, 0, 40], sizes = [2, 128, 8], strides = [1, 1, 1]} : vector<2x128x96xbf16> to vector<2x128x8xbf16>
    %62 = vector.extract_strided_slice %31 {offsets = [0, 0, 72], sizes = [2, 128, 8], strides = [1, 1, 1]} : vector<2x128x96xbf16> to vector<2x128x8xbf16>
    "tpu.trace_start"() <{level = 10 : i32, message = "bqd,bkd->bqk"}> : () -> ()
    %cst_24 = arith.constant dense<0.000000e+00> : vector<2x128x128xf32>
    %63 = tpu.matmul %60, %61, %cst_24 {dimension_numbers = #tpu.dot_dimension_numbers<[2], [2], [1], [1], [0, 0, 0, 1, 1, 1], [0], [0]>} : vector<2x128x8xbf16>, vector<2x128x8xbf16>, vector<2x128x128xf32> -> vector<2x128x128xf32>
    "tpu.trace_stop"() : () -> ()
    %cst_25 = arith.constant 0.353553385 : f32
    %64 = vector.broadcast %cst_25 : f32 to vector<2x128x128xf32>
    %65 = arith.mulf %63, %64 : vector<2x128x128xf32>
    %66 = vector.broadcast %9 : vector<1x1x128xf32> to vector<2x128x128xf32>
    %67 = arith.addf %65, %66 : vector<2x128x128xf32>
    %cst_26 = arith.constant dense<0xFF800000> : vector<2x128xf32>
    %68 = vector.multi_reduction <maximumf>, %67, %cst_26 [2] : vector<2x128x128xf32> to vector<2x128xf32>
    %69 = vector.shape_cast %68 : vector<2x128xf32> to vector<2x128x1xf32>
    %70 = vector.broadcast %69 : vector<2x128x1xf32> to vector<2x128x128xf32>
    %71 = arith.subf %67, %70 : vector<2x128x128xf32>
    %72 = math.exp %71 : vector<2x128x128xf32>
    %cst_27 = arith.constant dense<0.000000e+00> : vector<2x128xf32>
    %73 = vector.multi_reduction <add>, %72, %cst_27 [2] : vector<2x128x128xf32> to vector<2x128xf32>
    %74 = vector.shape_cast %73 : vector<2x128xf32> to vector<2x128x1xf32>
    %75 = tpu.reciprocal %74 {approx = true} : vector<2x128x1xf32> -> vector<2x128x1xf32>
    %76 = vector.broadcast %75 : vector<2x128x1xf32> to vector<2x128x128xf32>
    %77 = arith.mulf %72, %76 : vector<2x128x128xf32>
    %78 = arith.truncf %77 : vector<2x128x128xf32> to vector<2x128x128xbf16>
    "tpu.trace_start"() <{level = 10 : i32, message = "bqk,bkd->bqd"}> : () -> ()
    %cst_28 = arith.constant dense<0.000000e+00> : vector<2x128x8xf32>
    %79 = tpu.matmul %78, %62, %cst_28 {dimension_numbers = #tpu.dot_dimension_numbers<[2], [1], [1], [2], [0, 0, 0, 1, 1, 2], [0], [0]>} : vector<2x128x128xbf16>, vector<2x128x8xbf16>, vector<2x128x8xf32> -> vector<2x128x8xf32>
    "tpu.trace_stop"() : () -> ()
    %80 = vector.shape_cast %79 : vector<2x128x8xf32> to vector<256x8xf32>
    %81 = arith.truncf %80 : vector<256x8xf32> to vector<256x8xbf16>
    %82 = vector.extract_strided_slice %33 {offsets = [8, 0], sizes = [8, 32], strides = [1, 1]} : vector<32x32xbf16> to vector<8x32xbf16>
    %cst_29 = arith.constant dense<0.000000e+00> : vector<256x32xf32>
    %83 = tpu.matmul %81, %82, %cst_29 {dimension_numbers = #tpu.dot_dimension_numbers<[1], [0], [0], [1], [0, 0, 1, 1], [], []>} : vector<256x8xbf16>, vector<8x32xbf16>, vector<256x32xf32> -> vector<256x32xf32>
    %84 = arith.addf %59, %83 : vector<256x32xf32>
    %85 = vector.extract_strided_slice %31 {offsets = [0, 0, 16], sizes = [2, 128, 8], strides = [1, 1, 1]} : vector<2x128x96xbf16> to vector<2x128x8xbf16>
    %86 = vector.extract_strided_slice %31 {offsets = [0, 0, 48], sizes = [2, 128, 8], strides = [1, 1, 1]} : vector<2x128x96xbf16> to vector<2x128x8xbf16>
    %87 = vector.extract_strided_slice %31 {offsets = [0, 0, 80], sizes = [2, 128, 8], strides = [1, 1, 1]} : vector<2x128x96xbf16> to vector<2x128x8xbf16>
    "tpu.trace_start"() <{level = 10 : i32, message = "bqd,bkd->bqk"}> : () -> ()
    %cst_30 = arith.constant dense<0.000000e+00> : vector<2x128x128xf32>
    %88 = tpu.matmul %85, %86, %cst_30 {dimension_numbers = #tpu.dot_dimension_numbers<[2], [2], [1], [1], [0, 0, 0, 1, 1, 1], [0], [0]>} : vector<2x128x8xbf16>, vector<2x128x8xbf16>, vector<2x128x128xf32> -> vector<2x128x128xf32>
    "tpu.trace_stop"() : () -> ()
    %cst_31 = arith.constant 0.353553385 : f32
    %89 = vector.broadcast %cst_31 : f32 to vector<2x128x128xf32>
    %90 = arith.mulf %88, %89 : vector<2x128x128xf32>
    %91 = vector.broadcast %9 : vector<1x1x128xf32> to vector<2x128x128xf32>
    %92 = arith.addf %90, %91 : vector<2x128x128xf32>
    %cst_32 = arith.constant dense<0xFF800000> : vector<2x128xf32>
    %93 = vector.multi_reduction <maximumf>, %92, %cst_32 [2] : vector<2x128x128xf32> to vector<2x128xf32>
    %94 = vector.shape_cast %93 : vector<2x128xf32> to vector<2x128x1xf32>
    %95 = vector.broadcast %94 : vector<2x128x1xf32> to vector<2x128x128xf32>
    %96 = arith.subf %92, %95 : vector<2x128x128xf32>
    %97 = math.exp %96 : vector<2x128x128xf32>
    %cst_33 = arith.constant dense<0.000000e+00> : vector<2x128xf32>
    %98 = vector.multi_reduction <add>, %97, %cst_33 [2] : vector<2x128x128xf32> to vector<2x128xf32>
    %99 = vector.shape_cast %98 : vector<2x128xf32> to vector<2x128x1xf32>
    %100 = tpu.reciprocal %99 {approx = true} : vector<2x128x1xf32> -> vector<2x128x1xf32>
    %101 = vector.broadcast %100 : vector<2x128x1xf32> to vector<2x128x128xf32>
    %102 = arith.mulf %97, %101 : vector<2x128x128xf32>
    %103 = arith.truncf %102 : vector<2x128x128xf32> to vector<2x128x128xbf16>
    "tpu.trace_start"() <{level = 10 : i32, message = "bqk,bkd->bqd"}> : () -> ()
    %cst_34 = arith.constant dense<0.000000e+00> : vector<2x128x8xf32>
    %104 = tpu.matmul %103, %87, %cst_34 {dimension_numbers = #tpu.dot_dimension_numbers<[2], [1], [1], [2], [0, 0, 0, 1, 1, 2], [0], [0]>} : vector<2x128x128xbf16>, vector<2x128x8xbf16>, vector<2x128x8xf32> -> vector<2x128x8xf32>
    "tpu.trace_stop"() : () -> ()
    %105 = vector.shape_cast %104 : vector<2x128x8xf32> to vector<256x8xf32>
    %106 = arith.truncf %105 : vector<256x8xf32> to vector<256x8xbf16>
    %107 = vector.extract_strided_slice %33 {offsets = [16, 0], sizes = [8, 32], strides = [1, 1]} : vector<32x32xbf16> to vector<8x32xbf16>
    %cst_35 = arith.constant dense<0.000000e+00> : vector<256x32xf32>
    %108 = tpu.matmul %106, %107, %cst_35 {dimension_numbers = #tpu.dot_dimension_numbers<[1], [0], [0], [1], [0, 0, 1, 1], [], []>} : vector<256x8xbf16>, vector<8x32xbf16>, vector<256x32xf32> -> vector<256x32xf32>
    %109 = arith.addf %84, %108 : vector<256x32xf32>
    %110 = vector.extract_strided_slice %31 {offsets = [0, 0, 24], sizes = [2, 128, 8], strides = [1, 1, 1]} : vector<2x128x96xbf16> to vector<2x128x8xbf16>
    %111 = vector.extract_strided_slice %31 {offsets = [0, 0, 56], sizes = [2, 128, 8], strides = [1, 1, 1]} : vector<2x128x96xbf16> to vector<2x128x8xbf16>
    %112 = vector.extract_strided_slice %31 {offsets = [0, 0, 88], sizes = [2, 128, 8], strides = [1, 1, 1]} : vector<2x128x96xbf16> to vector<2x128x8xbf16>
    "tpu.trace_start"() <{level = 10 : i32, message = "bqd,bkd->bqk"}> : () -> ()
    %cst_36 = arith.constant dense<0.000000e+00> : vector<2x128x128xf32>
    %113 = tpu.matmul %110, %111, %cst_36 {dimension_numbers = #tpu.dot_dimension_numbers<[2], [2], [1], [1], [0, 0, 0, 1, 1, 1], [0], [0]>} : vector<2x128x8xbf16>, vector<2x128x8xbf16>, vector<2x128x128xf32> -> vector<2x128x128xf32>
    "tpu.trace_stop"() : () -> ()
    %cst_37 = arith.constant 0.353553385 : f32
    %114 = vector.broadcast %cst_37 : f32 to vector<2x128x128xf32>
    %115 = arith.mulf %113, %114 : vector<2x128x128xf32>
    %116 = vector.broadcast %9 : vector<1x1x128xf32> to vector<2x128x128xf32>
    %117 = arith.addf %115, %116 : vector<2x128x128xf32>
    %cst_38 = arith.constant dense<0xFF800000> : vector<2x128xf32>
    %118 = vector.multi_reduction <maximumf>, %117, %cst_38 [2] : vector<2x128x128xf32> to vector<2x128xf32>
    %119 = vector.shape_cast %118 : vector<2x128xf32> to vector<2x128x1xf32>
    %120 = vector.broadcast %119 : vector<2x128x1xf32> to vector<2x128x128xf32>
    %121 = arith.subf %117, %120 : vector<2x128x128xf32>
    %122 = math.exp %121 : vector<2x128x128xf32>
    %cst_39 = arith.constant dense<0.000000e+00> : vector<2x128xf32>
    %123 = vector.multi_reduction <add>, %122, %cst_39 [2] : vector<2x128x128xf32> to vector<2x128xf32>
    %124 = vector.shape_cast %123 : vector<2x128xf32> to vector<2x128x1xf32>
    %125 = tpu.reciprocal %124 {approx = true} : vector<2x128x1xf32> -> vector<2x128x1xf32>
    %126 = vector.broadcast %125 : vector<2x128x1xf32> to vector<2x128x128xf32>
    %127 = arith.mulf %122, %126 : vector<2x128x128xf32>
    %128 = arith.truncf %127 : vector<2x128x128xf32> to vector<2x128x128xbf16>
    "tpu.trace_start"() <{level = 10 : i32, message = "bqk,bkd->bqd"}> : () -> ()
    %cst_40 = arith.constant dense<0.000000e+00> : vector<2x128x8xf32>
    %129 = tpu.matmul %128, %112, %cst_40 {dimension_numbers = #tpu.dot_dimension_numbers<[2], [1], [1], [2], [0, 0, 0, 1, 1, 2], [0], [0]>} : vector<2x128x128xbf16>, vector<2x128x8xbf16>, vector<2x128x8xf32> -> vector<2x128x8xf32>
    "tpu.trace_stop"() : () -> ()
    %130 = vector.shape_cast %129 : vector<2x128x8xf32> to vector<256x8xf32>
    %131 = arith.truncf %130 : vector<256x8xf32> to vector<256x8xbf16>
    %132 = vector.extract_strided_slice %33 {offsets = [24, 0], sizes = [8, 32], strides = [1, 1]} : vector<32x32xbf16> to vector<8x32xbf16>
    %cst_41 = arith.constant dense<0.000000e+00> : vector<256x32xf32>
    %133 = tpu.matmul %131, %132, %cst_41 {dimension_numbers = #tpu.dot_dimension_numbers<[1], [0], [0], [1], [0, 0, 1, 1], [], []>} : vector<256x8xbf16>, vector<8x32xbf16>, vector<256x32xf32> -> vector<256x32xf32>
    %134 = arith.addf %109, %133 : vector<256x32xf32>
    %135 = vector.shape_cast %134 : vector<256x32xf32> to vector<2x128x32xf32>
    %136 = arith.addf %3, %135 : vector<2x128x32xf32>
    %c0_42 = arith.constant 0 : index
    %c0_43 = arith.constant 0 : index
    %c0_44 = arith.constant 0 : index
    %137 = vector.load %arg5[%c0_42, %c0_43, %c0_44] : memref<1x1x32xf32, #tpu.memory_space<vmem>>, vector<1x1x32xf32>
    %138 = vector.shape_cast %137 : vector<1x1x32xf32> to vector<1x32xf32>
    %139 = arith.mulf %136, %136 : vector<2x128x32xf32>
    %cst_45 = arith.constant dense<0.000000e+00> : vector<2x128xf32>
    %140 = vector.multi_reduction <add>, %139, %cst_45 [2] : vector<2x128x32xf32> to vector<2x128xf32>
    %141 = vector.shape_cast %140 : vector<2x128xf32> to vector<2x128x1xf32>
    %cst_46 = arith.constant 3.200000e+01 : f32
    %142 = vector.broadcast %cst_46 : f32 to vector<2x128x1xf32>
    %143 = arith.divf %141, %142 : vector<2x128x1xf32>
    %cst_47 = arith.constant 9.99999993E-9 : f32
    %144 = vector.broadcast %cst_47 : f32 to vector<2x128x1xf32>
    %145 = arith.addf %143, %144 : vector<2x128x1xf32>
    %146 = math.rsqrt %145 : vector<2x128x1xf32>
    %147 = vector.broadcast %146 : vector<2x128x1xf32> to vector<2x128x32xf32>
    %148 = arith.mulf %136, %147 : vector<2x128x32xf32>
    %149 = vector.shape_cast %138 : vector<1x32xf32> to vector<1x1x32xf32>
    %150 = vector.broadcast %149 : vector<1x1x32xf32> to vector<2x128x32xf32>
    %151 = arith.mulf %148, %150 : vector<2x128x32xf32>
    %152 = arith.truncf %151 : vector<2x128x32xf32> to vector<2x128x32xbf16>
    %153 = vector.shape_cast %152 : vector<2x128x32xbf16> to vector<256x32xbf16>
    %c0_48 = arith.constant 0 : index
    %c0_49 = arith.constant 0 : index
    %c0_50 = arith.constant 0 : index
    %154 = vector.load %arg6[%c0_48, %c0_49, %c0_50] : memref<1x32x128xbf16, #tpu.memory_space<vmem>>, vector<1x32x128xbf16>
    %155 = vector.shape_cast %154 : vector<1x32x128xbf16> to vector<32x128xbf16>
    %cst_51 = arith.constant dense<0.000000e+00> : vector<256x128xf32>
    %156 = tpu.matmul %153, %155, %cst_51 {dimension_numbers = #tpu.dot_dimension_numbers<[1], [0], [0], [1], [0, 0, 1, 1], [], []>} : vector<256x32xbf16>, vector<32x128xbf16>, vector<256x128xf32> -> vector<256x128xf32>
    %157 = arith.mulf %156, %156 : vector<256x128xf32>
    %158 = arith.mulf %156, %157 : vector<256x128xf32>
    %cst_52 = arith.constant 4.471500e-02 : f32
    %159 = vector.broadcast %cst_52 : f32 to vector<256x128xf32>
    %160 = arith.mulf %159, %158 : vector<256x128xf32>
    %161 = arith.addf %156, %160 : vector<256x128xf32>
    %cst_53 = arith.constant 0.797884583 : f32
    %162 = vector.broadcast %cst_53 : f32 to vector<256x128xf32>
    %163 = arith.mulf %162, %161 : vector<256x128xf32>
    %164 = math.tanh %163 : vector<256x128xf32>
    %cst_54 = arith.constant 1.000000e+00 : f32
    %165 = vector.broadcast %cst_54 : f32 to vector<256x128xf32>
    %166 = arith.addf %165, %164 : vector<256x128xf32>
    %cst_55 = arith.constant 5.000000e-01 : f32
    %167 = vector.broadcast %cst_55 : f32 to vector<256x128xf32>
    %168 = arith.mulf %167, %166 : vector<256x128xf32>
    %169 = arith.mulf %156, %168 : vector<256x128xf32>
    %170 = arith.truncf %169 : vector<256x128xf32> to vector<256x128xbf16>
    %c0_56 = arith.constant 0 : index
    %c0_57 = arith.constant 0 : index
    %c0_58 = arith.constant 0 : index
    %171 = vector.load %arg7[%c0_56, %c0_57, %c0_58] : memref<1x128x32xbf16, #tpu.memory_space<vmem>>, vector<1x128x32xbf16>
    %172 = vector.shape_cast %171 : vector<1x128x32xbf16> to vector<128x32xbf16>
    %cst_59 = arith.constant dense<0.000000e+00> : vector<256x32xf32>
    %173 = tpu.matmul %170, %172, %cst_59 {dimension_numbers = #tpu.dot_dimension_numbers<[1], [0], [0], [1], [0, 0, 1, 1], [], []>} : vector<256x128xbf16>, vector<128x32xbf16>, vector<256x32xf32> -> vector<256x32xf32>
    %174 = vector.shape_cast %173 : vector<256x32xf32> to vector<2x128x32xf32>
    %175 = arith.addf %136, %174 : vector<2x128x32xf32>
    %c0_60 = arith.constant 0 : index
    %c0_61 = arith.constant 0 : index
    %c0_62 = arith.constant 0 : index
    %176 = vector.load %arg9[%c0_60, %c0_61, %c0_62] : memref<2x128x32xf32, #tpu.memory_space<vmem>>, vector<2x128x32xf32>
    tpu.vector_store %arg9[%c0_60, %c0_61, %c0_62], %175 {strides = array<i32>} : memref<2x128x32xf32, #tpu.memory_space<vmem>>, vector<2x128x32xf32>,
    %c1_i32 = arith.constant 1 : i32
    %177 = arith.cmpi eq, %arg0, %c1_i32 : i32
    %178 = arith.extui %177 : i1 to i32
    %c0_i32_63 = arith.constant 0 : i32
    %179 = arith.cmpi ne, %178, %c0_i32_63 : i32
    scf.if %179 {
      %c0_64 = arith.constant 0 : index
      %c0_65 = arith.constant 0 : index
      %180 = vector.load %arg8[%c0_64, %c0_65] : memref<1x32xf32, #tpu.memory_space<vmem>>, vector<1x32xf32>
      %181 = arith.mulf %175, %175 : vector<2x128x32xf32>
      %cst_66 = arith.constant dense<0.000000e+00> : vector<2x128xf32>
      %182 = vector.multi_reduction <add>, %181, %cst_66 [2] : vector<2x128x32xf32> to vector<2x128xf32>
      %183 = vector.shape_cast %182 : vector<2x128xf32> to vector<2x128x1xf32>
      %cst_67 = arith.constant 3.200000e+01 : f32
      %184 = vector.broadcast %cst_67 : f32 to vector<2x128x1xf32>
      %185 = arith.divf %183, %184 : vector<2x128x1xf32>
      %cst_68 = arith.constant 9.99999993E-9 : f32
      %186 = vector.broadcast %cst_68 : f32 to vector<2x128x1xf32>
      %187 = arith.addf %185, %186 : vector<2x128x1xf32>
      %188 = math.rsqrt %187 : vector<2x128x1xf32>
      %189 = vector.broadcast %188 : vector<2x128x1xf32> to vector<2x128x32xf32>
      %190 = arith.mulf %175, %189 : vector<2x128x32xf32>
      %191 = vector.shape_cast %180 : vector<1x32xf32> to vector<1x1x32xf32>
      %192 = vector.broadcast %191 : vector<1x1x32xf32> to vector<2x128x32xf32>
      %193 = arith.mulf %190, %192 : vector<2x128x32xf32>
      %c0_69 = arith.constant 0 : index
      %c0_70 = arith.constant 0 : index
      %c0_71 = arith.constant 0 : index
      %194 = vector.load %arg9[%c0_69, %c0_70, %c0_71] : memref<2x128x32xf32, #tpu.memory_space<vmem>>, vector<2x128x32xf32>
      tpu.vector_store %arg9[%c0_69, %c0_70, %c0_71], %193 {strides = array<i32>} : memref<2x128x32xf32, #tpu.memory_space<vmem>>, vector<2x128x32xf32>,
    } else {
    }
    return
  }
  func.func @transform_0(%arg0: i32) -> (i32, i32, i32) {
    %c0_i32 = arith.constant 0 : i32
    %c0_i32_0 = arith.constant 0 : i32
    %c0_i32_1 = arith.constant 0 : i32
    %c0_i32_2 = arith.constant 0 : i32
    return %c0_i32, %c0_i32_0, %c0_i32_1 : i32, i32, i32
  }
  func.func @transform_1(%arg0: i32) -> (i32, i32, i32) {
    %c0_i32 = arith.constant 0 : i32
    %c0_i32_0 = arith.constant 0 : i32
    %c0_i32_1 = arith.constant 0 : i32
    return %arg0, %c0_i32, %c0_i32_0 : i32, i32, i32
  }
  func.func @transform_2(%arg0: i32) -> (i32, i32, i32) {
    %c0_i32 = arith.constant 0 : i32
    %c0_i32_0 = arith.constant 0 : i32
    %c0_i32_1 = arith.constant 0 : i32
    return %arg0, %c0_i32, %c0_i32_0 : i32, i32, i32
  }
  func.func @transform_3(%arg0: i32) -> (i32, i32, i32) {
    %c0_i32 = arith.constant 0 : i32
    %c0_i32_0 = arith.constant 0 : i32
    %c0_i32_1 = arith.constant 0 : i32
    return %arg0, %c0_i32, %c0_i32_0 : i32, i32, i32
  }
  func.func @transform_4(%arg0: i32) -> (i32, i32, i32) {
    %c0_i32 = arith.constant 0 : i32
    %c0_i32_0 = arith.constant 0 : i32
    %c0_i32_1 = arith.constant 0 : i32
    return %arg0, %c0_i32, %c0_i32_0 : i32, i32, i32
  }
  func.func @transform_5(%arg0: i32) -> (i32, i32, i32) {
    %c0_i32 = arith.constant 0 : i32
    %c0_i32_0 = arith.constant 0 : i32
    %c0_i32_1 = arith.constant 0 : i32
    return %arg0, %c0_i32, %c0_i32_0 : i32, i32, i32
  }
  func.func @transform_6(%arg0: i32) -> (i32, i32, i32) {
    %c0_i32 = arith.constant 0 : i32
    %c0_i32_0 = arith.constant 0 : i32
    %c0_i32_1 = arith.constant 0 : i32
    return %arg0, %c0_i32, %c0_i32_0 : i32, i32, i32
  }
  func.func @transform_7(%arg0: i32) -> (i32, i32) {
    %c0_i32 = arith.constant 0 : i32
    %c0_i32_0 = arith.constant 0 : i32
    %c0_i32_1 = arith.constant 0 : i32
    return %c0_i32, %c0_i32_0 : i32, i32
  }
  func.func @transform_8(%arg0: i32) -> (i32, i32, i32) {
    %c0_i32 = arith.constant 0 : i32
    %c0_i32_0 = arith.constant 0 : i32
    %c0_i32_1 = arith.constant 0 : i32
    %c0_i32_2 = arith.constant 0 : i32
    return %c0_i32, %c0_i32_0, %c0_i32_1 : i32, i32, i32
  }
}

module attributes {stable_mosaic.version = 11 : i64} {
  func.func @_conv3x3_kernel(%arg0: i32, %arg1: memref<1x10x10x32xf32, #tpu.memory_space<vmem>>, %arg2: memref<3x3x32x128xbf16, #tpu.memory_space<vmem>>, %arg3: memref<1x64x128xf32, #tpu.memory_space<vmem>>) attributes {dimension_semantics = [#tpu.dimension_semantics<parallel>], iteration_bounds = array<i64: 2>, scalar_prefetch = 0 : i64, scratch_operands = 0 : i64, tpu.core_type = #tpu.core_type<tc>, window_params = [{transform_indices = @transform_0, window_bounds = array<i64: 1, 10, 10, 32>}, {pipeline_mode = #tpu.pipeline_mode<synchronous>, transform_indices = @transform_1, window_bounds = array<i64: 3, 3, 32, 128>}, {transform_indices = @transform_2, window_bounds = array<i64: 1, 64, 128>}]} {
    %c0 = arith.constant 0 : index
    %c0_0 = arith.constant 0 : index
    %c0_1 = arith.constant 0 : index
    %c0_2 = arith.constant 0 : index
    %0 = vector.load %arg1[%c0, %c0_0, %c0_1, %c0_2] : memref<1x10x10x32xf32, #tpu.memory_space<vmem>>, vector<1x10x10x32xf32>
    %1 = vector.shape_cast %0 : vector<1x10x10x32xf32> to vector<10x10x32xf32>
    %2 = arith.truncf %1 : vector<10x10x32xf32> to vector<10x10x32xbf16>
    %cst = arith.constant 0.000000e+00 : f32
    %3 = vector.broadcast %cst : f32 to vector<64x128xf32>
    %4 = vector.extract_strided_slice %2 {offsets = [0, 0, 0], sizes = [8, 8, 32], strides = [1, 1, 1]} : vector<10x10x32xbf16> to vector<8x8x32xbf16>
    %5 = vector.shape_cast %4 : vector<8x8x32xbf16> to vector<64x32xbf16>
    %c0_3 = arith.constant 0 : index
    %c0_4 = arith.constant 0 : index
    %c0_5 = arith.constant 0 : index
    %c0_6 = arith.constant 0 : index
    %6 = vector.load %arg2[%c0_3, %c0_4, %c0_5, %c0_6] : memref<3x3x32x128xbf16, #tpu.memory_space<vmem>>, vector<1x1x32x128xbf16>
    %7 = vector.shape_cast %6 : vector<1x1x32x128xbf16> to vector<32x128xbf16>
    %cst_7 = arith.constant dense<0.000000e+00> : vector<64x128xf32>
    %8 = tpu.matmul %5, %7, %cst_7 {dimension_numbers = #tpu.dot_dimension_numbers<[1], [0], [0], [1], [0, 0, 1, 1], [], []>} : vector<64x32xbf16>, vector<32x128xbf16>, vector<64x128xf32> -> vector<64x128xf32>
    %9 = arith.addf %3, %8 : vector<64x128xf32>
    %10 = vector.extract_strided_slice %2 {offsets = [0, 1, 0], sizes = [8, 8, 32], strides = [1, 1, 1]} : vector<10x10x32xbf16> to vector<8x8x32xbf16>
    %11 = vector.shape_cast %10 : vector<8x8x32xbf16> to vector<64x32xbf16>
    %c0_8 = arith.constant 0 : index
    %c1 = arith.constant 1 : index
    %c0_9 = arith.constant 0 : index
    %c0_10 = arith.constant 0 : index
    %12 = vector.load %arg2[%c0_8, %c1, %c0_9, %c0_10] : memref<3x3x32x128xbf16, #tpu.memory_space<vmem>>, vector<1x1x32x128xbf16>
    %13 = vector.shape_cast %12 : vector<1x1x32x128xbf16> to vector<32x128xbf16>
    %cst_11 = arith.constant dense<0.000000e+00> : vector<64x128xf32>
    %14 = tpu.matmul %11, %13, %cst_11 {dimension_numbers = #tpu.dot_dimension_numbers<[1], [0], [0], [1], [0, 0, 1, 1], [], []>} : vector<64x32xbf16>, vector<32x128xbf16>, vector<64x128xf32> -> vector<64x128xf32>
    %15 = arith.addf %9, %14 : vector<64x128xf32>
    %16 = vector.extract_strided_slice %2 {offsets = [0, 2, 0], sizes = [8, 8, 32], strides = [1, 1, 1]} : vector<10x10x32xbf16> to vector<8x8x32xbf16>
    %17 = vector.shape_cast %16 : vector<8x8x32xbf16> to vector<64x32xbf16>
    %c0_12 = arith.constant 0 : index
    %c2 = arith.constant 2 : index
    %c0_13 = arith.constant 0 : index
    %c0_14 = arith.constant 0 : index
    %18 = vector.load %arg2[%c0_12, %c2, %c0_13, %c0_14] : memref<3x3x32x128xbf16, #tpu.memory_space<vmem>>, vector<1x1x32x128xbf16>
    %19 = vector.shape_cast %18 : vector<1x1x32x128xbf16> to vector<32x128xbf16>
    %cst_15 = arith.constant dense<0.000000e+00> : vector<64x128xf32>
    %20 = tpu.matmul %17, %19, %cst_15 {dimension_numbers = #tpu.dot_dimension_numbers<[1], [0], [0], [1], [0, 0, 1, 1], [], []>} : vector<64x32xbf16>, vector<32x128xbf16>, vector<64x128xf32> -> vector<64x128xf32>
    %21 = arith.addf %15, %20 : vector<64x128xf32>
    %22 = vector.extract_strided_slice %2 {offsets = [1, 0, 0], sizes = [8, 8, 32], strides = [1, 1, 1]} : vector<10x10x32xbf16> to vector<8x8x32xbf16>
    %23 = vector.shape_cast %22 : vector<8x8x32xbf16> to vector<64x32xbf16>
    %c1_16 = arith.constant 1 : index
    %c0_17 = arith.constant 0 : index
    %c0_18 = arith.constant 0 : index
    %c0_19 = arith.constant 0 : index
    %24 = vector.load %arg2[%c1_16, %c0_17, %c0_18, %c0_19] : memref<3x3x32x128xbf16, #tpu.memory_space<vmem>>, vector<1x1x32x128xbf16>
    %25 = vector.shape_cast %24 : vector<1x1x32x128xbf16> to vector<32x128xbf16>
    %cst_20 = arith.constant dense<0.000000e+00> : vector<64x128xf32>
    %26 = tpu.matmul %23, %25, %cst_20 {dimension_numbers = #tpu.dot_dimension_numbers<[1], [0], [0], [1], [0, 0, 1, 1], [], []>} : vector<64x32xbf16>, vector<32x128xbf16>, vector<64x128xf32> -> vector<64x128xf32>
    %27 = arith.addf %21, %26 : vector<64x128xf32>
    %28 = vector.extract_strided_slice %2 {offsets = [1, 1, 0], sizes = [8, 8, 32], strides = [1, 1, 1]} : vector<10x10x32xbf16> to vector<8x8x32xbf16>
    %29 = vector.shape_cast %28 : vector<8x8x32xbf16> to vector<64x32xbf16>
    %c1_21 = arith.constant 1 : index
    %c1_22 = arith.constant 1 : index
    %c0_23 = arith.constant 0 : index
    %c0_24 = arith.constant 0 : index
    %30 = vector.load %arg2[%c1_21, %c1_22, %c0_23, %c0_24] : memref<3x3x32x128xbf16, #tpu.memory_space<vmem>>, vector<1x1x32x128xbf16>
    %31 = vector.shape_cast %30 : vector<1x1x32x128xbf16> to vector<32x128xbf16>
    %cst_25 = arith.constant dense<0.000000e+00> : vector<64x128xf32>
    %32 = tpu.matmul %29, %31, %cst_25 {dimension_numbers = #tpu.dot_dimension_numbers<[1], [0], [0], [1], [0, 0, 1, 1], [], []>} : vector<64x32xbf16>, vector<32x128xbf16>, vector<64x128xf32> -> vector<64x128xf32>
    %33 = arith.addf %27, %32 : vector<64x128xf32>
    %34 = vector.extract_strided_slice %2 {offsets = [1, 2, 0], sizes = [8, 8, 32], strides = [1, 1, 1]} : vector<10x10x32xbf16> to vector<8x8x32xbf16>
    %35 = vector.shape_cast %34 : vector<8x8x32xbf16> to vector<64x32xbf16>
    %c1_26 = arith.constant 1 : index
    %c2_27 = arith.constant 2 : index
    %c0_28 = arith.constant 0 : index
    %c0_29 = arith.constant 0 : index
    %36 = vector.load %arg2[%c1_26, %c2_27, %c0_28, %c0_29] : memref<3x3x32x128xbf16, #tpu.memory_space<vmem>>, vector<1x1x32x128xbf16>
    %37 = vector.shape_cast %36 : vector<1x1x32x128xbf16> to vector<32x128xbf16>
    %cst_30 = arith.constant dense<0.000000e+00> : vector<64x128xf32>
    %38 = tpu.matmul %35, %37, %cst_30 {dimension_numbers = #tpu.dot_dimension_numbers<[1], [0], [0], [1], [0, 0, 1, 1], [], []>} : vector<64x32xbf16>, vector<32x128xbf16>, vector<64x128xf32> -> vector<64x128xf32>
    %39 = arith.addf %33, %38 : vector<64x128xf32>
    %40 = vector.extract_strided_slice %2 {offsets = [2, 0, 0], sizes = [8, 8, 32], strides = [1, 1, 1]} : vector<10x10x32xbf16> to vector<8x8x32xbf16>
    %41 = vector.shape_cast %40 : vector<8x8x32xbf16> to vector<64x32xbf16>
    %c2_31 = arith.constant 2 : index
    %c0_32 = arith.constant 0 : index
    %c0_33 = arith.constant 0 : index
    %c0_34 = arith.constant 0 : index
    %42 = vector.load %arg2[%c2_31, %c0_32, %c0_33, %c0_34] : memref<3x3x32x128xbf16, #tpu.memory_space<vmem>>, vector<1x1x32x128xbf16>
    %43 = vector.shape_cast %42 : vector<1x1x32x128xbf16> to vector<32x128xbf16>
    %cst_35 = arith.constant dense<0.000000e+00> : vector<64x128xf32>
    %44 = tpu.matmul %41, %43, %cst_35 {dimension_numbers = #tpu.dot_dimension_numbers<[1], [0], [0], [1], [0, 0, 1, 1], [], []>} : vector<64x32xbf16>, vector<32x128xbf16>, vector<64x128xf32> -> vector<64x128xf32>
    %45 = arith.addf %39, %44 : vector<64x128xf32>
    %46 = vector.extract_strided_slice %2 {offsets = [2, 1, 0], sizes = [8, 8, 32], strides = [1, 1, 1]} : vector<10x10x32xbf16> to vector<8x8x32xbf16>
    %47 = vector.shape_cast %46 : vector<8x8x32xbf16> to vector<64x32xbf16>
    %c2_36 = arith.constant 2 : index
    %c1_37 = arith.constant 1 : index
    %c0_38 = arith.constant 0 : index
    %c0_39 = arith.constant 0 : index
    %48 = vector.load %arg2[%c2_36, %c1_37, %c0_38, %c0_39] : memref<3x3x32x128xbf16, #tpu.memory_space<vmem>>, vector<1x1x32x128xbf16>
    %49 = vector.shape_cast %48 : vector<1x1x32x128xbf16> to vector<32x128xbf16>
    %cst_40 = arith.constant dense<0.000000e+00> : vector<64x128xf32>
    %50 = tpu.matmul %47, %49, %cst_40 {dimension_numbers = #tpu.dot_dimension_numbers<[1], [0], [0], [1], [0, 0, 1, 1], [], []>} : vector<64x32xbf16>, vector<32x128xbf16>, vector<64x128xf32> -> vector<64x128xf32>
    %51 = arith.addf %45, %50 : vector<64x128xf32>
    %52 = vector.extract_strided_slice %2 {offsets = [2, 2, 0], sizes = [8, 8, 32], strides = [1, 1, 1]} : vector<10x10x32xbf16> to vector<8x8x32xbf16>
    %53 = vector.shape_cast %52 : vector<8x8x32xbf16> to vector<64x32xbf16>
    %c2_41 = arith.constant 2 : index
    %c2_42 = arith.constant 2 : index
    %c0_43 = arith.constant 0 : index
    %c0_44 = arith.constant 0 : index
    %54 = vector.load %arg2[%c2_41, %c2_42, %c0_43, %c0_44] : memref<3x3x32x128xbf16, #tpu.memory_space<vmem>>, vector<1x1x32x128xbf16>
    %55 = vector.shape_cast %54 : vector<1x1x32x128xbf16> to vector<32x128xbf16>
    %cst_45 = arith.constant dense<0.000000e+00> : vector<64x128xf32>
    %56 = tpu.matmul %53, %55, %cst_45 {dimension_numbers = #tpu.dot_dimension_numbers<[1], [0], [0], [1], [0, 0, 1, 1], [], []>} : vector<64x32xbf16>, vector<32x128xbf16>, vector<64x128xf32> -> vector<64x128xf32>
    %57 = arith.addf %51, %56 : vector<64x128xf32>
    %c0_46 = arith.constant 0 : index
    %c0_47 = arith.constant 0 : index
    %c0_48 = arith.constant 0 : index
    %58 = vector.load %arg3[%c0_46, %c0_47, %c0_48] : memref<1x64x128xf32, #tpu.memory_space<vmem>>, vector<1x64x128xf32>
    %59 = vector.shape_cast %58 : vector<1x64x128xf32> to vector<64x128xf32>
    %60 = vector.shape_cast %57 : vector<64x128xf32> to vector<1x64x128xf32>
    tpu.vector_store %arg3[%c0_46, %c0_47, %c0_48], %60 {strides = array<i32>} : memref<1x64x128xf32, #tpu.memory_space<vmem>>, vector<1x64x128xf32>,
    return
  }
  func.func @transform_0(%arg0: i32) -> (i32, i32, i32, i32) {
    %c0_i32 = arith.constant 0 : i32
    %c0_i32_0 = arith.constant 0 : i32
    %c0_i32_1 = arith.constant 0 : i32
    %c0_i32_2 = arith.constant 0 : i32
    return %arg0, %c0_i32, %c0_i32_0, %c0_i32_1 : i32, i32, i32, i32
  }
  func.func @transform_1(%arg0: i32) -> (i32, i32, i32, i32) {
    %c0_i32 = arith.constant 0 : i32
    %c0_i32_0 = arith.constant 0 : i32
    %c0_i32_1 = arith.constant 0 : i32
    %c0_i32_2 = arith.constant 0 : i32
    %c0_i32_3 = arith.constant 0 : i32
    return %c0_i32, %c0_i32_0, %c0_i32_1, %c0_i32_2 : i32, i32, i32, i32
  }
  func.func @transform_2(%arg0: i32) -> (i32, i32, i32) {
    %c0_i32 = arith.constant 0 : i32
    %c0_i32_0 = arith.constant 0 : i32
    %c0_i32_1 = arith.constant 0 : i32
    return %arg0, %c0_i32, %c0_i32_0 : i32, i32, i32
  }
}

</mosaic_0001>

<llo_original>
// kernel: latent_diffusion_transformer_forward.3
$region0: #{latent_diffusion_transformer_forward.3}
  #allocation0 [shape = 'u32[]', space=smem, size = 0x4, offset = 0x4, fixed_abs, tag = 'smem constant byte address 0x4 - core index']
  #allocation1 [shape = 'u32[144,128]{1,0:T(1,128)}', space=vmem, size = 0x12000, scoped, tag = 'internal scratch']
  %s0 = inlined_call_operand.vmem [shape: f32[2,10,10,12], index: 0, kind: input, shape index: {}]
  %s1 = inlined_call_operand.vmem [shape: bf16[3,3,12,32], index: 1, kind: input, shape index: {}]
  %s2 = inlined_call_operand.vmem [shape: f32[2,64,32], index: 2, kind: output, shape index: {}]
  %s3 = sld [smem:[#allocation0]]
  $region41: #{latent_diffusion_transformer_forward.3} parent=0
    _
  %s5 = ssub.s32 1, %s3
  %s6 = scalar_select 0, %s5, %s3
  loop: start=0, step=1, limit=4
  $region2: #{latent_diffusion_transformer_forward.3} parent=0 // loop_pre_header
    _
  $region3: #{latent_diffusion_transformer_forward.3} parent=0 // loop_header
    %s8 = sphi 0, %s12
    %p9 = scmp.ge.s32.totalorder %s8, 4
    %s18 = sphi 0, %s20
    %s21 = sphi 0, %s18
    %s22 = sphi 0, %s21
    %s38 = sphi 0, %s22
    %s42 = sphi 0, %s42
    %s44 = sphi 0, %s42
    %s45 = sphi 0, %s44
    %s59 = sphi 0, %s45
    %s65 = sphi 0, %s67
    %s68 = sphi 0, %s65
    %s69 = sphi 0, %s68
    %s85 = sphi 0, %s69
  $region4: #{latent_diffusion_transformer_forward.3} parent=0 // loop_header_branch
    %11 = sbr.rel (%p9) target = $region8
  $region5: #{latent_diffusion_transformer_forward.3} parent=0 // loop_body
    %s13 = ssub.s32 %s8, 1
    %s14 = ssub.s32 %s8, 2
    %s15 = sadd.s32 %s8, 1
    %s16 = ssub.s32 %s8, %s15
    %p17 = scmp.eq.s32.totalorder %s16, 0
    %s19 = sadd.s32 %s18, 1
    %s20 = scalar_select %p17, %s18, %s19
    %p23 = pneg %p17
    %p24 = scmp.eq.s32.totalorder %s8, 1
    %p25 = por %p23, %p24
    %p26 = scmp.ne.s32.totalorder %s18, %s21
    %p27 = scmp.eq.s32.totalorder %s8, 0
    %p28 = por %p26, %p27
    %p29 = scmp.ne.s32.totalorder %s18, %s21
    %p30 = scmp.eq.s32.totalorder %s13, 1
    %p31 = por %p29, %p30
    %p32 = scmp.ne.s32.totalorder %s21, %s22
    %p33 = scmp.eq.s32.totalorder %s13, 0
    %p34 = por %p32, %p33
    %p35 = scmp.ne.s32.totalorder %s21, %s22
    %p36 = scmp.eq.s32.totalorder %s14, 1
    %p37 = por %p35, %p36
    %p39 = scmp.ne.s32.totalorder %s22, %s38
    %p40 = scmp.eq.s32.totalorder %s14, 0
    %p41 = por %p39, %p40
    %s43 = sadd.s32 %s42, 1
    %p46 = scmp.eq.s32.totalorder %s8, 1
    %p47 = scmp.ne.s32.totalorder %s42, %s44
    %p48 = scmp.eq.s32.totalorder %s8, 0
    %p49 = por %p47, %p48
    %p50 = scmp.ne.s32.totalorder %s42, %s44
    %p51 = scmp.eq.s32.totalorder %s13, 1
    %p52 = por %p50, %p51
    %p53 = scmp.ne.s32.totalorder %s44, %s45
    %p54 = scmp.eq.s32.totalorder %s13, 0
    %p55 = por %p53, %p54
    %p56 = scmp.ne.s32.totalorder %s44, %s45
    %p57 = scmp.eq.s32.totalorder %s14, 1
    %p58 = por %p56, %p57
    %p60 = scmp.ne.s32.totalorder %s45, %s59
    %p61 = scmp.eq.s32.totalorder %s14, 0
    %p62 = por %p60, %p61
    %s63 = ssub.s32 %s8, %s15
    %p64 = scmp.eq.s32.totalorder %s63, 0
    %s66 = sadd.s32 %s65, 1
    %s67 = scalar_select %p64, %s65, %s66
    %p70 = pneg %p64
    %p71 = scmp.eq.s32.totalorder %s8, 1
    %p72 = por %p70, %p71
    %p73 = scmp.ne.s32.totalorder %s65, %s68
    %p74 = scmp.eq.s32.totalorder %s8, 0
    %p75 = por %p73, %p74
    %p76 = scmp.ne.s32.totalorder %s65, %s68
    %p77 = scmp.eq.s32.totalorder %s13, 1
    %p78 = por %p76, %p77
    %p79 = scmp.ne.s32.totalorder %s68, %s69
    %p80 = scmp.eq.s32.totalorder %s13, 0
    %p81 = por %p79, %p80
    %p82 = scmp.ne.s32.totalorder %s68, %s69
    %p83 = scmp.eq.s32.totalorder %s14, 1
    %p84 = por %p82, %p83
    %p86 = scmp.ne.s32.totalorder %s69, %s85
    %p87 = scmp.eq.s32.totalorder %s14, 0
    %p88 = por %p86, %p87
    %p89 = scmp.le.s32.totalorder 1, %s8
    %p90 = scmp.lt.s32.totalorder %s8, 3
    %p91 = pnand %p89, %p90
    %p92 = pneg %p91
    // Predicated region
    $region9: #{latent_diffusion_transformer_forward.3} parent=5 // pred_check
      _
    $region10: #{latent_diffusion_transformer_forward.3} parent=5 // pred_check_branch
      %94 = sbr.rel (%p91) target = $region12
    $region11: #{latent_diffusion_transformer_forward.3} parent=5 // pred_region
      %s95 = ssub.s32 %s8, 1
      // Predicated region
      $region13: #{latent_diffusion_transformer_forward.3} parent=11 // pred_check
        %p96 = pneg %p55
      $region14: #{latent_diffusion_transformer_forward.3} parent=11 // pred_check_branch
        %98 = sbr.rel (%p96) target = $region16
      $region15: #{latent_diffusion_transformer_forward.3} parent=11 // pred_region
        _
      $region16: #{latent_diffusion_transformer_forward.3} parent=11 // pred_fallthru
        _
    $region12: #{latent_diffusion_transformer_forward.3} parent=5 // pred_fallthru
      _
    %p99 = scmp.lt.s32.totalorder %s8, 2
    // Predicated region
    $region17: #{latent_diffusion_transformer_forward.3} parent=5 // pred_check
      %p100 = pneg %p99
    $region18: #{latent_diffusion_transformer_forward.3} parent=5 // pred_check_branch
      %102 = sbr.rel (%p100) target = $region20
    $region19: #{latent_diffusion_transformer_forward.3} parent=5 // pred_region
      // Predicated region
      $region21: #{latent_diffusion_transformer_forward.3} parent=19 // pred_check
        %p103 = pneg %p28
      $region22: #{latent_diffusion_transformer_forward.3} parent=19 // pred_check_branch
        %105 = sbr.rel (%p103) target = $region24
      $region23: #{latent_diffusion_transformer_forward.3} parent=19 // pred_region
        %p106 = scmp.lt.s32.totalorder %s8, 1
        %s107 = scalar_select %p106, %s8, 1
        %s108 = smul.addr %s107, 20
        %s109 = smul.addr %s108, 8
        %s110 = scalar_lea.vmem %s0, %s109
      $region24: #{latent_diffusion_transformer_forward.3} parent=19 // pred_fallthru
        _
    $region20: #{latent_diffusion_transformer_forward.3} parent=5 // pred_fallthru
      _
    %p111 = scmp.le.s32.totalorder 1, %s8
    %p112 = scmp.lt.s32.totalorder %s8, 3
    %p113 = pnand %p111, %p112
    %p114 = pneg %p113
    // Predicated region
    $region25: #{latent_diffusion_transformer_forward.3} parent=5 // pred_check
      _
    $region26: #{latent_diffusion_transformer_forward.3} parent=5 // pred_check_branch
      %116 = sbr.rel (%p113) target = $region28
    $region27: #{latent_diffusion_transformer_forward.3} parent=5 // pred_region
      %s117 = ssub.s32 %s8, 1
      %p118 = scmp.lt.s32.totalorder %s13, 1
      %s119 = scalar_select %p118, %s13, 1
      %s120 = smul.addr %s119, 20
      %s121 = smul.addr %s120, 8
      %s122 = scalar_lea.vmem %s0, %s121
      %p123 = pneg %p34
      %p124 = pneg %p31
      %p125 = pneg %p55
      %p126 = pneg %p52
      %p127 = pneg %p81
      %p128 = pneg %p78
      %p129 = scmp.lt.s32.totalorder %s13, 1
      %s130 = scalar_select %p129, %s13, 1
      %s131 = smul.addr %s130, 8
      %s132 = smul.addr %s131, 8
      %s133 = scalar_lea.vmem %s2, %s132
      %p134 = scmp.lt.s32.totalorder %s13, 1
      %s135 = scalar_select %p134, %s13, 1
      %s136 = smul.addr %s135, 20
      %s137 = smul.addr %s136, 8
      %s138 = scalar_lea.vmem %s0, %s137
      %p139 = scmp.lt.s32.totalorder %s13, 1
      %s140 = scalar_select %p139, %s13, 1
      %s141 = smul.addr %s140, 8
      %s142 = smul.addr %s141, 8
      %s143 = scalar_lea.vmem %s2, %s142
      %v145 = vld [vmem:[%s138] sm:$0xff]
      %v146 = vld [vmem:[%s138 + $0x8] sm:$0x3]
      %v147 = vld [vmem:[%s138 + $0x10] sm:$0xff]
      %v148 = vld [vmem:[%s138 + $0x18] sm:$0x3]
      %v149 = vld [vmem:[%s138 + $0x20] sm:$0xff]
      %v150 = vld [vmem:[%s138 + $0x28] sm:$0x3]
      %v151 = vld [vmem:[%s138 + $0x30] sm:$0xff]
      %v152 = vld [vmem:[%s138 + $0x38] sm:$0x3]
      %v153 = vld [vmem:[%s138 + $0x40] sm:$0xff]
      %v154 = vld [vmem:[%s138 + $0x48] sm:$0x3]
      %v155 = vld [vmem:[%s138 + $0x50] sm:$0xff]
      %v156 = vld [vmem:[%s138 + $0x58] sm:$0x3]
      %v157 = vld [vmem:[%s138 + $0x60] sm:$0xff]
      %v158 = vld [vmem:[%s138 + $0x68] sm:$0x3]
      %v159 = vld [vmem:[%s138 + $0x70] sm:$0xff]
      %v160 = vld [vmem:[%s138 + $0x78] sm:$0x3]
      %v161 = vld [vmem:[%s138 + $0x80] sm:$0xff]
      %v162 = vld [vmem:[%s138 + $0x88] sm:$0x3]
      %v163 = vld [vmem:[%s138 + $0x90] sm:$0xff]
      %v164 = vld [vmem:[%s138 + $0x98] sm:$0x3]
      %v165 = vpack.c.bf16 %v146, %v145
      %v166 = vpack.c.bf16 %v148, %v147
      %v167 = vpack.c.bf16 %v150, %v149
      %v168 = vpack.c.bf16 %v152, %v151
      %v169 = vpack.c.bf16 %v154, %v153
      %v170 = vpack.c.bf16 %v156, %v155
      %v171 = vpack.c.bf16 %v158, %v157
      %v172 = vpack.c.bf16 %v160, %v159
      %v173 = vpack.c.bf16 %v162, %v161
      %v174 = vpack.c.bf16 %v164, %v163
      %v175 = vld [vmem:[%s1] sm:$0xf]
      %v176 = vld [vmem:[%s1 + $0x4] sm:$0x3]
      %v185 = vunpack.c.l.b16 %v165
      %v186 = vunpack.c.h.b16 %v165
      %v187 = vunpack.c.l.b16 %v166
      %v188 = vunpack.c.h.b16 %v166
      %v189 = vunpack.c.l.b16 %v167
      %v190 = vunpack.c.h.b16 %v167
      %v191 = vunpack.c.l.b16 %v168
      %v192 = vunpack.c.h.b16 %v168
      %v193 = vunpack.c.l.b16 %v169
      %v194 = vunpack.c.h.b16 %v169
      %v195 = vunpack.c.l.b16 %v170
      %v196 = vunpack.c.h.b16 %v170
      %v197 = vunpack.c.l.b16 %v171
      %v198 = vunpack.c.h.b16 %v171
      %v199 = vunpack.c.l.b16 %v172
      %v200 = vunpack.c.h.b16 %v172
      %v201 = vpack.c.b16 %v185, %v185
      %v202 = vpack.c.b16 %v186, %v186
      %v203 = vpack.c.b16 %v187, %v187
      %v204 = vpack.c.b16 %v188, %v188
      %v205 = vpack.c.b16 %v189, %v189
      %v206 = vpack.c.b16 %v190, %v190
      %v207 = vpack.c.b16 %v191, %v191
      %v208 = vpack.c.b16 %v192, %v192
      %v209 = vpack.c.b16 %v193, %v193
      %v210 = vpack.c.b16 %v194, %v194
      %v211 = vpack.c.b16 %v195, %v195
      %v212 = vpack.c.b16 %v196, %v196
      %v213 = vpack.c.b16 %v197, %v197
      %v214 = vpack.c.b16 %v198, %v198
      %v215 = vpack.c.b16 %v199, %v199
      %v216 = vpack.c.b16 %v200, %v200
      %vm217 = vsmask.f32 3328
      %vm218 = vsmask.f32 7440
      %vm219 = vmor %vm217, %vm218
      %v221 = vshrl.u32 %v201, 16
      %v223 = vrot.slane %v221, 4
      %v224 = vshll.u32 %v201, 16
      %v226 = vrot.slane %v224, 5
      %v227 = vor.u32 %v223, %v226
      %v228 = vrot.slane %v227, 4
      %v230 = vshll.u32 %v202, 16
      %v232 = vrot.slane %v230, 5
      %v233 = vsel %vm219, %v228, %v232
      %v235 = vshrl.u32 %v203, 16
      %v237 = vrot.slane %v235, 4
      %v238 = vshll.u32 %v203, 16
      %v240 = vrot.slane %v238, 5
      %v241 = vor.u32 %v237, %v240
      %v242 = vrot.slane %v241, 4
      %v244 = vshll.u32 %v204, 16
      %v246 = vrot.slane %v244, 5
      %v247 = vsel %vm219, %v242, %v246
      %v249 = vshrl.u32 %v205, 16
      %v251 = vrot.slane %v249, 4
      %v252 = vshll.u32 %v205, 16
      %v254 = vrot.slane %v252, 5
      %v255 = vor.u32 %v251, %v254
      %v256 = vrot.slane %v255, 4
      %v258 = vshll.u32 %v206, 16
      %v260 = vrot.slane %v258, 5
      %v261 = vsel %vm219, %v256, %v260
      %v263 = vshrl.u32 %v207, 16
      %v265 = vrot.slane %v263, 4
      %v266 = vshll.u32 %v207, 16
      %v268 = vrot.slane %v266, 5
      %v269 = vor.u32 %v265, %v268
      %v270 = vrot.slane %v269, 4
      %v272 = vshll.u32 %v208, 16
      %v274 = vrot.slane %v272, 5
      %v275 = vsel %vm219, %v270, %v274
      %v277 = vshrl.u32 %v209, 16
      %v279 = vrot.slane %v277, 4
      %v280 = vshll.u32 %v209, 16
      %v282 = vrot.slane %v280, 5
      %v283 = vor.u32 %v279, %v282
      %v284 = vrot.slane %v283, 4
      %v286 = vshll.u32 %v210, 16
      %v288 = vrot.slane %v286, 5
      %v289 = vsel %vm219, %v284, %v288
      %v291 = vshrl.u32 %v211, 16
      %v293 = vrot.slane %v291, 4
      %v294 = vshll.u32 %v211, 16
      %v296 = vrot.slane %v294, 5
      %v297 = vor.u32 %v293, %v296
      %v298 = vrot.slane %v297, 4
      %v300 = vshll.u32 %v212, 16
      %v302 = vrot.slane %v300, 5
      %v303 = vsel %vm219, %v298, %v302
      %v305 = vshrl.u32 %v213, 16
      %v307 = vrot.slane %v305, 4
      %v308 = vshll.u32 %v213, 16
      %v310 = vrot.slane %v308, 5
      %v311 = vor.u32 %v307, %v310
      %v312 = vrot.slane %v311, 4
      %v314 = vshll.u32 %v214, 16
      %v316 = vrot.slane %v314, 5
      %v317 = vsel %vm219, %v312, %v316
      %v319 = vshrl.u32 %v215, 16
      %v321 = vrot.slane %v319, 4
      %v322 = vshll.u32 %v215, 16
      %v324 = vrot.slane %v322, 5
      %v325 = vor.u32 %v321, %v324
      %v326 = vrot.slane %v325, 4
      %v328 = vshll.u32 %v216, 16
      %v330 = vrot.slane %v328, 5
      %v331 = vsel %vm219, %v326, %v330
      %s332 = scalar_lea.vmem %s1, 8
      %v333 = vld [vmem:[%s332] sm:$0xf]
      %v334 = vld [vmem:[%s332 + $0x4] sm:$0x3]
      %v335 = vunpack.c.l.b16 %v233
      %v336 = vunpack.c.l.b16 %v247
      %v337 = vunpack.c.l.b16 %v261
      %v338 = vunpack.c.l.b16 %v275
      %v339 = vunpack.c.l.b16 %v289
      %v340 = vunpack.c.l.b16 %v303
      %v341 = vunpack.c.l.b16 %v317
      %v342 = vunpack.c.l.b16 %v331
      %v343 = vpack.c.b16 %v336, %v335
      %v344 = vpack.c.b16 %v338, %v337
      %v345 = vpack.c.b16 %v340, %v339
      %v346 = vpack.c.b16 %v342, %v341
      %v349 = vunpack.c.l.b16 %v333
      %v350 = vunpack.c.l.b16 %v334
      %v351 = vpack.c.b16 %v350, %v349
      %vm352 = vcmask 97280
      %v354 = vsel %vm352, %v343, 0
      %v357 = vsel %vm352, %v344, 0
      %v360 = vsel %vm352, %v345, 0
      %v363 = vsel %vm352, %v346, 0
      %vm365 = vcmask 1045504
      %v367 = vsel %vm365, %v351, 0
      %369 = vmatprep.subr.bf16.mxu0 0
      %370 = vmatpush1.bf16.msra.mxu0 %v367
      %371 = vmatprep.subr.bf16.mxu0 0
      %372 = vmatpush1.bf16.msra.mxu0 0
      %373 = vmatprep.subr.bf16.mxu0 0
      %374 = vmatpush1.bf16.msra.mxu0 0
      %375 = vmatprep.subr.bf16.mxu0 0
      %376 = vmatpush1.bf16.msra.mxu0 0
      %377 = vmatprep.subr.bf16.mxu0 0
      %378 = vmatpush1.bf16.msra.mxu0 0
      %379 = vmatprep.subr.bf16.mxu0 0
      %380 = vmatpush1.bf16.msra.mxu0 0
      %381 = vmatprep.subr.bf16.mxu0 0
      %382 = vmatpush1.bf16.msra.mxu0 0
      %383 = vmatprep.subr.bf16.mxu0 0
      %384 = vmatpush1.bf16.msra.mxu0 0
      %385 = vmatprep.subr.bf16.mxu0 0
      %386 = vmatpush1.bf16.msra.mxu0 0
      %387 = vmatprep.subr.bf16.mxu0 0
      %388 = vmatpush1.bf16.msra.mxu0 0
      %389 = vmatprep.subr.bf16.mxu0 0
      %390 = vmatpush1.bf16.msra.mxu0 0
      %391 = vmatprep.subr.bf16.mxu0 0
      %392 = vmatpush1.bf16.msra.mxu0 0
      %393 = vmatprep.subr.bf16.mxu0 0
      %394 = vmatpush1.bf16.msra.mxu0 0
      %395 = vmatprep.subr.bf16.mxu0 0
      %396 = vmatpush1.bf16.msra.mxu0 0
      %397 = vmatprep.subr.bf16.mxu0 0
      %398 = vmatpush1.bf16.msra.mxu0 0
      %399 = vmatprep.subr.bf16.mxu0 0
      %400 = vmatpush1.bf16.msra.mxu0 0
      %401 = vmatprep.mubr.bf16.mxu0 0
      %402 = vmatmul.mubr.bf16.gmra.mrb[0].mxu0 %v354
      %v403 = vpop.f32.mrb[0].mxu0
      %v404 = vadd.f32 0.0, %v403
      %v405 = vpop.f32.mrb[0].mxu0
      %v406 = vpop.f32.mrb[0].mxu0
      %v407 = vadd.f32 0.0, %v406
      %v408 = vpop.f32.mrb[0].mxu0
      %409 = vmatprep.mubr.bf16.mxu0 0
      %410 = vmatmul.mubr.bf16.gmra.mrb[0].mxu0 %v357
      %v411 = vpop.f32.mrb[0].mxu0
      %v412 = vadd.f32 0.0, %v411
      %v413 = vpop.f32.mrb[0].mxu0
      %v414 = vpop.f32.mrb[0].mxu0
      %v415 = vadd.f32 0.0, %v414
      %v416 = vpop.f32.mrb[0].mxu0
      %417 = vmatprep.mubr.bf16.mxu0 0
      %418 = vmatmul.mubr.bf16.gmra.mrb[0].mxu0 %v360
      %v419 = vpop.f32.mrb[0].mxu0
      %v420 = vadd.f32 0.0, %v419
      %v421 = vpop.f32.mrb[0].mxu0
      %v422 = vpop.f32.mrb[0].mxu0
      %v423 = vadd.f32 0.0, %v422
      %v424 = vpop.f32.mrb[0].mxu0
      %425 = vmatprep.mubr.bf16.mxu0 0
      %426 = vmatmul.mubr.bf16.gmra.mrb[0].mxu0 %v363
      %v427 = vpop.f32.mrb[0].mxu0
      %v428 = vadd.f32 0.0, %v427
      %v429 = vpop.f32.mrb[0].mxu0
      %v430 = vpop.f32.mrb[0].mxu0
      %v431 = vadd.f32 0.0, %v430
      %v432 = vpop.f32.mrb[0].mxu0
      %433 = vdwg.mxu0
      %v434 = vpack.c.b16 %v187, %v185
      %v435 = vpack.c.b16 %v191, %v189
      %v436 = vpack.c.b16 %v195, %v193
      %v437 = vpack.c.b16 %v199, %v197
      %v440 = vunpack.c.l.b16 %v175
      %v441 = vunpack.c.l.b16 %v176
      %v442 = vpack.c.b16 %v441, %v440
      %v444 = vsel %vm352, %v434, 0
      %v447 = vsel %vm352, %v435, 0
      %v450 = vsel %vm352, %v436, 0
      %v453 = vsel %vm352, %v437, 0
      %v456 = vsel %vm365, %v442, 0
      %458 = vmatprep.subr.bf16.mxu0 0
      %459 = vmatpush1.bf16.msra.mxu0 %v456
      %460 = vmatprep.subr.bf16.mxu0 0
      %461 = vmatpush1.bf16.msra.mxu0 0
      %462 = vmatprep.subr.bf16.mxu0 0
      %463 = vmatpush1.bf16.msra.mxu0 0
      %464 = vmatprep.subr.bf16.mxu0 0
      %465 = vmatpush1.bf16.msra.mxu0 0
      %466 = vmatprep.subr.bf16.mxu0 0
      %467 = vmatpush1.bf16.msra.mxu0 0
      %468 = vmatprep.subr.bf16.mxu0 0
      %469 = vmatpush1.bf16.msra.mxu0 0
      %470 = vmatprep.subr.bf16.mxu0 0
      %471 = vmatpush1.bf16.msra.mxu0 0
      %472 = vmatprep.subr.bf16.mxu0 0
      %473 = vmatpush1.bf16.msra.mxu0 0
      %474 = vmatprep.subr.bf16.mxu0 0
      %475 = vmatpush1.bf16.msra.mxu0 0
      %476 = vmatprep.subr.bf16.mxu0 0
      %477 = vmatpush1.bf16.msra.mxu0 0
      %478 = vmatprep.subr.bf16.mxu0 0
      %479 = vmatpush1.bf16.msra.mxu0 0
      %480 = vmatprep.subr.bf16.mxu0 0
      %481 = vmatpush1.bf16.msra.mxu0 0
      %482 = vmatprep.subr.bf16.mxu0 0
      %483 = vmatpush1.bf16.msra.mxu0 0
      %484 = vmatprep.subr.bf16.mxu0 0
      %485 = vmatpush1.bf16.msra.mxu0 0
      %486 = vmatprep.subr.bf16.mxu0 0
      %487 = vmatpush1.bf16.msra.mxu0 0
      %488 = vmatprep.subr.bf16.mxu0 0
      %489 = vmatpush1.bf16.msra.mxu0 0
      %490 = vmatprep.mubr.bf16.mxu0 0
      %491 = vmatmul.mubr.bf16.gmra.mrb[0].mxu0 %v444
      %v492 = vpop.f32.mrb[0].mxu0
      %v493 = vadd.f32 %v404, %v492
      %v494 = vpop.f32.mrb[0].mxu0
      %v495 = vpop.f32.mrb[0].mxu0
      %v496 = vadd.f32 %v407, %v495
      %v497 = vpop.f32.mrb[0].mxu0
      %498 = vmatprep.mubr.bf16.mxu0 0
      %499 = vmatmul.mubr.bf16.gmra.mrb[0].mxu0 %v447
      %v500 = vpop.f32.mrb[0].mxu0
      %v501 = vadd.f32 %v412, %v500
      %v502 = vpop.f32.mrb[0].mxu0
      %v503 = vpop.f32.mrb[0].mxu0
      %v504 = vadd.f32 %v415, %v503
      %v505 = vpop.f32.mrb[0].mxu0
      %506 = vmatprep.mubr.bf16.mxu0 0
      %507 = vmatmul.mubr.bf16.gmra.mrb[0].mxu0 %v450
      %v508 = vpop.f32.mrb[0].mxu0
      %v509 = vadd.f32 %v420, %v508
      %v510 = vpop.f32.mrb[0].mxu0
      %v511 = vpop.f32.mrb[0].mxu0
      %v512 = vadd.f32 %v423, %v511
      %v513 = vpop.f32.mrb[0].mxu0
      %514 = vmatprep.mubr.bf16.mxu0 0
      %515 = vmatmul.mubr.bf16.gmra.mrb[0].mxu0 %v453
      %v516 = vpop.f32.mrb[0].mxu0
      %v517 = vadd.f32 %v428, %v516
      %v518 = vpop.f32.mrb[0].mxu0
      %v519 = vpop.f32.mrb[0].mxu0
      %v520 = vadd.f32 %v431, %v519
      %v521 = vpop.f32.mrb[0].mxu0
      %522 = vdwg.mxu0
      %vm523 = vcmask 1042432
      %vm524 = vcmask 1046532
      %vm525 = vmor %vm523, %vm524
      %v526 = vrot.slane %v201, 5
      %v527 = vrot.slane %v526, 4
      %v528 = vrot.slane %v202, 5
      %v529 = vsel %vm525, %v527, %v528
      %v530 = vrot.slane %v203, 5
      %v531 = vrot.slane %v530, 4
      %v532 = vrot.slane %v204, 5
      %v533 = vsel %vm525, %v531, %v532
      %v534 = vrot.slane %v205, 5
      %v535 = vrot.slane %v534, 4
      %v536 = vrot.slane %v206, 5
      %v537 = vsel %vm525, %v535, %v536
      %v538 = vrot.slane %v207, 5
      %v539 = vrot.slane %v538, 4
      %v540 = vrot.slane %v208, 5
      %v541 = vsel %vm525, %v539, %v540
      %v542 = vrot.slane %v209, 5
      %v543 = vrot.slane %v542, 4
      %v544 = vrot.slane %v210, 5
      %v545 = vsel %vm525, %v543, %v544
      %v546 = vrot.slane %v211, 5
      %v547 = vrot.slane %v546, 4
      %v548 = vrot.slane %v212, 5
      %v549 = vsel %vm525, %v547, %v548
      %v550 = vrot.slane %v213, 5
      %v551 = vrot.slane %v550, 4
      %v552 = vrot.slane %v214, 5
      %v553 = vsel %vm525, %v551, %v552
      %v554 = vrot.slane %v215, 5
      %v555 = vrot.slane %v554, 4
      %v556 = vrot.slane %v216, 5
      %v557 = vsel %vm525, %v555, %v556
      %s558 = scalar_lea.vmem %s1, 16
      %v559 = vld [vmem:[%s558] sm:$0xf]
      %v560 = vld [vmem:[%s558 + $0x4] sm:$0x3]
      %v561 = vunpack.c.l.b16 %v529
      %v562 = vunpack.c.l.b16 %v533
      %v563 = vunpack.c.l.b16 %v537
      %v564 = vunpack.c.l.b16 %v541
      %v565 = vunpack.c.l.b16 %v545
      %v566 = vunpack.c.l.b16 %v549
      %v567 = vunpack.c.l.b16 %v553
      %v568 = vunpack.c.l.b16 %v557
      %v569 = vpack.c.b16 %v562, %v561
      %v570 = vpack.c.b16 %v564, %v563
      %v571 = vpack.c.b16 %v566, %v565
      %v572 = vpack.c.b16 %v568, %v567
      %v575 = vunpack.c.l.b16 %v559
      %v576 = vunpack.c.l.b16 %v560
      %v577 = vpack.c.b16 %v576, %v575
      %v579 = vsel %vm352, %v569, 0
      %v582 = vsel %vm352, %v570, 0
      %v585 = vsel %vm352, %v571, 0
      %v588 = vsel %vm352, %v572, 0
      %v591 = vsel %vm365, %v577, 0
      %593 = vmatprep.subr.bf16.mxu0 0
      %594 = vmatpush1.bf16.msra.mxu0 %v591
      %595 = vmatprep.subr.bf16.mxu0 0
      %596 = vmatpush1.bf16.msra.mxu0 0
      %597 = vmatprep.subr.bf16.mxu0 0
      %598 = vmatpush1.bf16.msra.mxu0 0
      %599 = vmatprep.subr.bf16.mxu0 0
      %600 = vmatpush1.bf16.msra.mxu0 0
      %601 = vmatprep.subr.bf16.mxu0 0
      %602 = vmatpush1.bf16.msra.mxu0 0
      %603 = vmatprep.subr.bf16.mxu0 0
      %604 = vmatpush1.bf16.msra.mxu0 0
      %605 = vmatprep.subr.bf16.mxu0 0
      %606 = vmatpush1.bf16.msra.mxu0 0
      %607 = vmatprep.subr.bf16.mxu0 0
      %608 = vmatpush1.bf16.msra.mxu0 0
      %609 = vmatprep.subr.bf16.mxu0 0
      %610 = vmatpush1.bf16.msra.mxu0 0
      %611 = vmatprep.subr.bf16.mxu0 0
      %612 = vmatpush1.bf16.msra.mxu0 0
      %613 = vmatprep.subr.bf16.mxu0 0
      %614 = vmatpush1.bf16.msra.mxu0 0
      %615 = vmatprep.subr.bf16.mxu0 0
      %616 = vmatpush1.bf16.msra.mxu0 0
      %617 = vmatprep.subr.bf16.mxu0 0
      %618 = vmatpush1.bf16.msra.mxu0 0
      %619 = vmatprep.subr.bf16.mxu0 0
      %620 = vmatpush1.bf16.msra.mxu0 0
      %621 = vmatprep.subr.bf16.mxu0 0
      %622 = vmatpush1.bf16.msra.mxu0 0
      %623 = vmatprep.subr.bf16.mxu0 0
      %624 = vmatpush1.bf16.msra.mxu0 0
      %625 = vmatprep.mubr.bf16.mxu0 0
      %626 = vmatmul.mubr.bf16.gmra.mrb[0].mxu0 %v579
      %v627 = vpop.f32.mrb[0].mxu0
      %v628 = vadd.f32 0.0, %v627
      %v629 = vpop.f32.mrb[0].mxu0
      %v630 = vpop.f32.mrb[0].mxu0
      %v631 = vadd.f32 0.0, %v630
      %v632 = vpop.f32.mrb[0].mxu0
      %633 = vmatprep.mubr.bf16.mxu0 0
      %634 = vmatmul.mubr.bf16.gmra.mrb[0].mxu0 %v582
      %v635 = vpop.f32.mrb[0].mxu0
      %v636 = vadd.f32 0.0, %v635
      %v637 = vpop.f32.mrb[0].mxu0
      %v638 = vpop.f32.mrb[0].mxu0
      %v639 = vadd.f32 0.0, %v638
      %v640 = vpop.f32.mrb[0].mxu0
      %641 = vmatprep.mubr.bf16.mxu0 0
      %642 = vmatmul.mubr.bf16.gmra.mrb[0].mxu0 %v585
      %v643 = vpop.f32.mrb[0].mxu0
      %v644 = vadd.f32 0.0, %v643
      %v645 = vpop.f32.mrb[0].mxu0
      %v646 = vpop.f32.mrb[0].mxu0
      %v647 = vadd.f32 0.0, %v646
      %v648 = vpop.f32.mrb[0].mxu0
      %649 = vmatprep.mubr.bf16.mxu0 0
      %650 = vmatmul.mubr.bf16.gmra.mrb[0].mxu0 %v588
      %v651 = vpop.f32.mrb[0].mxu0
      %v652 = vadd.f32 0.0, %v651
      %v653 = vpop.f32.mrb[0].mxu0
      %v654 = vpop.f32.mrb[0].mxu0
      %v655 = vadd.f32 0.0, %v654
      %v656 = vpop.f32.mrb[0].mxu0
      %657 = vdwg.mxu0
      %v658 = vadd.f32 %v493, %v628
      %v659 = vadd.f32 %v496, %v631
      %v660 = vadd.f32 %v501, %v636
      %v661 = vadd.f32 %v504, %v639
      %v662 = vadd.f32 %v509, %v644
      %v663 = vadd.f32 %v512, %v647
      %v664 = vadd.f32 %v517, %v652
      %v665 = vadd.f32 %v520, %v655
      %s666 = scalar_lea.vmem %s1, 24
      %v667 = vld [vmem:[%s666] sm:$0xf]
      %v668 = vld [vmem:[%s666 + $0x4] sm:$0x3]
      %v670 = vunpack.c.l.b16 %v173
      %v671 = vpack.c.b16 %v189, %v187
      %v672 = vpack.c.b16 %v193, %v191
      %v673 = vpack.c.b16 %v197, %v195
      %v674 = vpack.c.b16 %v670, %v199
      %v677 = vunpack.c.l.b16 %v667
      %v678 = vunpack.c.l.b16 %v668
      %v679 = vpack.c.b16 %v678, %v677
      %v681 = vsel %vm352, %v671, 0
      %v684 = vsel %vm352, %v672, 0
      %v687 = vsel %vm352, %v673, 0
      %v690 = vsel %vm352, %v674, 0
      %v693 = vsel %vm365, %v679, 0
      %695 = vmatprep.subr.bf16.mxu0 0
      %696 = vmatpush1.bf16.msra.mxu0 %v693
      %697 = vmatprep.subr.bf16.mxu0 0
      %698 = vmatpush1.bf16.msra.mxu0 0
      %699 = vmatprep.subr.bf16.mxu0 0
      %700 = vmatpush1.bf16.msra.mxu0 0
      %701 = vmatprep.subr.bf16.mxu0 0
      %702 = vmatpush1.bf16.msra.mxu0 0
      %703 = vmatprep.subr.bf16.mxu0 0
      %704 = vmatpush1.bf16.msra.mxu0 0
      %705 = vmatprep.subr.bf16.mxu0 0
      %706 = vmatpush1.bf16.msra.mxu0 0
      %707 = vmatprep.subr.bf16.mxu0 0
      %708 = vmatpush1.bf16.msra.mxu0 0
      %709 = vmatprep.subr.bf16.mxu0 0
      %710 = vmatpush1.bf16.msra.mxu0 0
      %711 = vmatprep.subr.bf16.mxu0 0
      %712 = vmatpush1.bf16.msra.mxu0 0
      %713 = vmatprep.subr.bf16.mxu0 0
      %714 = vmatpush1.bf16.msra.mxu0 0
      %715 = vmatprep.subr.bf16.mxu0 0
      %716 = vmatpush1.bf16.msra.mxu0 0
      %717 = vmatprep.subr.bf16.mxu0 0
      %718 = vmatpush1.bf16.msra.mxu0 0
      %719 = vmatprep.subr.bf16.mxu0 0
      %720 = vmatpush1.bf16.msra.mxu0 0
      %721 = vmatprep.subr.bf16.mxu0 0
      %722 = vmatpush1.bf16.msra.mxu0 0
      %723 = vmatprep.subr.bf16.mxu0 0
      %724 = vmatpush1.bf16.msra.mxu0 0
      %725 = vmatprep.subr.bf16.mxu0 0
      %726 = vmatpush1.bf16.msra.mxu0 0
      %727 = vmatprep.mubr.bf16.mxu0 0
      %728 = vmatmul.mubr.bf16.gmra.mrb[0].mxu0 %v681
      %v729 = vpop.f32.mrb[0].mxu0
      %v730 = vadd.f32 0.0, %v729
      %v731 = vpop.f32.mrb[0].mxu0
      %v732 = vpop.f32.mrb[0].mxu0
      %v733 = vadd.f32 0.0, %v732
      %v734 = vpop.f32.mrb[0].mxu0
      %735 = vmatprep.mubr.bf16.mxu0 0
      %736 = vmatmul.mubr.bf16.gmra.mrb[0].mxu0 %v684
      %v737 = vpop.f32.mrb[0].mxu0
      %v738 = vadd.f32 0.0, %v737
      %v739 = vpop.f32.mrb[0].mxu0
      %v740 = vpop.f32.mrb[0].mxu0
      %v741 = vadd.f32 0.0, %v740
      %v742 = vpop.f32.mrb[0].mxu0
      %743 = vmatprep.mubr.bf16.mxu0 0
      %744 = vmatmul.mubr.bf16.gmra.mrb[0].mxu0 %v687
      %v745 = vpop.f32.mrb[0].mxu0
      %v746 = vadd.f32 0.0, %v745
      %v747 = vpop.f32.mrb[0].mxu0
      %v748 = vpop.f32.mrb[0].mxu0
      %v749 = vadd.f32 0.0, %v748
      %v750 = vpop.f32.mrb[0].mxu0
      %751 = vmatprep.mubr.bf16.mxu0 0
      %752 = vmatmul.mubr.bf16.gmra.mrb[0].mxu0 %v690
      %v753 = vpop.f32.mrb[0].mxu0
      %v754 = vadd.f32 0.0, %v753
      %v755 = vpop.f32.mrb[0].mxu0
      %v756 = vpop.f32.mrb[0].mxu0
      %v757 = vadd.f32 0.0, %v756
      %v758 = vpop.f32.mrb[0].mxu0
      %759 = vdwg.mxu0
      %v760 = vadd.f32 %v658, %v730
      %v761 = vadd.f32 %v659, %v733
      %v762 = vadd.f32 %v660, %v738
      %v763 = vadd.f32 %v661, %v741
      %v764 = vadd.f32 %v662, %v746
      %v765 = vadd.f32 %v663, %v749
      %v766 = vadd.f32 %v664, %v754
      %v767 = vadd.f32 %v665, %v757
      %v768 = vunpack.c.h.b16 %v173
      %v769 = vpack.c.b16 %v670, %v670
      %v770 = vpack.c.b16 %v768, %v768
      %v772 = vshrl.u32 %v769, 16
      %v774 = vrot.slane %v772, 4
      %v775 = vshll.u32 %v769, 16
      %v777 = vrot.slane %v775, 5
      %v778 = vor.u32 %v774, %v777
      %v779 = vrot.slane %v778, 4
      %v781 = vshll.u32 %v770, 16
      %v783 = vrot.slane %v781, 5
      %v784 = vsel %vm219, %v779, %v783
      %s785 = scalar_lea.vmem %s1, 32
      %v786 = vld [vmem:[%s785] sm:$0xf]
      %v787 = vld [vmem:[%s785 + $0x4] sm:$0x3]
      %v788 = vunpack.c.l.b16 %v784
      %v789 = vpack.c.b16 %v337, %v336
      %v790 = vpack.c.b16 %v339, %v338
      %v791 = vpack.c.b16 %v341, %v340
      %v792 = vpack.c.b16 %v788, %v342
      %v795 = vunpack.c.l.b16 %v786
      %v796 = vunpack.c.l.b16 %v787
      %v797 = vpack.c.b16 %v796, %v795
      %v799 = vsel %vm352, %v789, 0
      %v802 = vsel %vm352, %v790, 0
      %v805 = vsel %vm352, %v791, 0
      %v808 = vsel %vm352, %v792, 0
      %v811 = vsel %vm365, %v797, 0
      %813 = vmatprep.subr.bf16.mxu0 0
      %814 = vmatpush1.bf16.msra.mxu0 %v811
      %815 = vmatprep.subr.bf16.mxu0 0
      %816 = vmatpush1.bf16.msra.mxu0 0
      %817 = vmatprep.subr.bf16.mxu0 0
      %818 = vmatpush1.bf16.msra.mxu0 0
      %819 = vmatprep.subr.bf16.mxu0 0
      %820 = vmatpush1.bf16.msra.mxu0 0
      %821 = vmatprep.subr.bf16.mxu0 0
      %822 = vmatpush1.bf16.msra.mxu0 0
      %823 = vmatprep.subr.bf16.mxu0 0
      %824 = vmatpush1.bf16.msra.mxu0 0
      %825 = vmatprep.subr.bf16.mxu0 0
      %826 = vmatpush1.bf16.msra.mxu0 0
      %827 = vmatprep.subr.bf16.mxu0 0
      %828 = vmatpush1.bf16.msra.mxu0 0
      %829 = vmatprep.subr.bf16.mxu0 0
      %830 = vmatpush1.bf16.msra.mxu0 0
      %831 = vmatprep.subr.bf16.mxu0 0
      %832 = vmatpush1.bf16.msra.mxu0 0
      %833 = vmatprep.subr.bf16.mxu0 0
      %834 = vmatpush1.bf16.msra.mxu0 0
      %835 = vmatprep.subr.bf16.mxu0 0
      %836 = vmatpush1.bf16.msra.mxu0 0
      %837 = vmatprep.subr.bf16.mxu0 0
      %838 = vmatpush1.bf16.msra.mxu0 0
      %839 = vmatprep.subr.bf16.mxu0 0
      %840 = vmatpush1.bf16.msra.mxu0 0
      %841 = vmatprep.subr.bf16.mxu0 0
      %842 = vmatpush1.bf16.msra.mxu0 0
      %843 = vmatprep.subr.bf16.mxu0 0
      %844 = vmatpush1.bf16.msra.mxu0 0
      %845 = vmatprep.mubr.bf16.mxu0 0
      %846 = vmatmul.mubr.bf16.gmra.mrb[0].mxu0 %v799
      %v847 = vpop.f32.mrb[0].mxu0
      %v848 = vadd.f32 0.0, %v847
      %v849 = vpop.f32.mrb[0].mxu0
      %v850 = vpop.f32.mrb[0].mxu0
      %v851 = vadd.f32 0.0, %v850
      %v852 = vpop.f32.mrb[0].mxu0
      %853 = vmatprep.mubr.bf16.mxu0 0
      %854 = vmatmul.mubr.bf16.gmra.mrb[0].mxu0 %v802
      %v855 = vpop.f32.mrb[0].mxu0
      %v856 = vadd.f32 0.0, %v855
      %v857 = vpop.f32.mrb[0].mxu0
      %v858 = vpop.f32.mrb[0].mxu0
      %v859 = vadd.f32 0.0, %v858
      %v860 = vpop.f32.mrb[0].mxu0
      %861 = vmatprep.mubr.bf16.mxu0 0
      %862 = vmatmul.mubr.bf16.gmra.mrb[0].mxu0 %v805
      %v863 = vpop.f32.mrb[0].mxu0
      %v864 = vadd.f32 0.0, %v863
      %v865 = vpop.f32.mrb[0].mxu0
      %v866 = vpop.f32.mrb[0].mxu0
      %v867 = vadd.f32 0.0, %v866
      %v868 = vpop.f32.mrb[0].mxu0
      %869 = vmatprep.mubr.bf16.mxu0 0
      %870 = vmatmul.mubr.bf16.gmra.mrb[0].mxu0 %v808
      %v871 = vpop.f32.mrb[0].mxu0
      %v872 = vadd.f32 0.0, %v871
      %v873 = vpop.f32.mrb[0].mxu0
      %v874 = vpop.f32.mrb[0].mxu0
      %v875 = vadd.f32 0.0, %v874
      %v876 = vpop.f32.mrb[0].mxu0
      %877 = vdwg.mxu0
      %v878 = vadd.f32 %v760, %v848
      %v879 = vadd.f32 %v761, %v851
      %v880 = vadd.f32 %v762, %v856
      %v881 = vadd.f32 %v763, %v859
      %v882 = vadd.f32 %v764, %v864
      %v883 = vadd.f32 %v765, %v867
      %v884 = vadd.f32 %v766, %v872
      %v885 = vadd.f32 %v767, %v875
      %v886 = vrot.slane %v769, 5
      %v887 = vrot.slane %v886, 4
      %v888 = vrot.slane %v770, 5
      %v889 = vsel %vm525, %v887, %v888
      %s890 = scalar_lea.vmem %s1, 40
      %v891 = vld [vmem:[%s890] sm:$0xf]
      %v892 = vld [vmem:[%s890 + $0x4] sm:$0x3]
      %v893 = vunpack.c.l.b16 %v889
      %v894 = vpack.c.b16 %v563, %v562
      %v895 = vpack.c.b16 %v565, %v564
      %v896 = vpack.c.b16 %v567, %v566
      %v897 = vpack.c.b16 %v893, %v568
      %v900 = vunpack.c.l.b16 %v891
      %v901 = vunpack.c.l.b16 %v892
      %v902 = vpack.c.b16 %v901, %v900
      %v904 = vsel %vm352, %v894, 0
      %v907 = vsel %vm352, %v895, 0
      %v910 = vsel %vm352, %v896, 0
      %v913 = vsel %vm352, %v897, 0
      %v916 = vsel %vm365, %v902, 0
      %918 = vmatprep.subr.bf16.mxu0 0
      %919 = vmatpush1.bf16.msra.mxu0 %v916
      %920 = vmatprep.subr.bf16.mxu0 0
      %921 = vmatpush1.bf16.msra.mxu0 0
      %922 = vmatprep.subr.bf16.mxu0 0
      %923 = vmatpush1.bf16.msra.mxu0 0
      %924 = vmatprep.subr.bf16.mxu0 0
      %925 = vmatpush1.bf16.msra.mxu0 0
      %926 = vmatprep.subr.bf16.mxu0 0
      %927 = vmatpush1.bf16.msra.mxu0 0
      %928 = vmatprep.subr.bf16.mxu0 0
      %929 = vmatpush1.bf16.msra.mxu0 0
      %930 = vmatprep.subr.bf16.mxu0 0
      %931 = vmatpush1.bf16.msra.mxu0 0
      %932 = vmatprep.subr.bf16.mxu0 0
      %933 = vmatpush1.bf16.msra.mxu0 0
      %934 = vmatprep.subr.bf16.mxu0 0
      %935 = vmatpush1.bf16.msra.mxu0 0
      %936 = vmatprep.subr.bf16.mxu0 0
      %937 = vmatpush1.bf16.msra.mxu0 0
      %938 = vmatprep.subr.bf16.mxu0 0
      %939 = vmatpush1.bf16.msra.mxu0 0
      %940 = vmatprep.subr.bf16.mxu0 0
      %941 = vmatpush1.bf16.msra.mxu0 0
      %942 = vmatprep.subr.bf16.mxu0 0
      %943 = vmatpush1.bf16.msra.mxu0 0
      %944 = vmatprep.subr.bf16.mxu0 0
      %945 = vmatpush1.bf16.msra.mxu0 0
      %946 = vmatprep.subr.bf16.mxu0 0
      %947 = vmatpush1.bf16.msra.mxu0 0
      %948 = vmatprep.subr.bf16.mxu0 0
      %949 = vmatpush1.bf16.msra.mxu0 0
      %950 = vmatprep.mubr.bf16.mxu0 0
      %951 = vmatmul.mubr.bf16.gmra.mrb[0].mxu0 %v904
      %v952 = vpop.f32.mrb[0].mxu0
      %v953 = vadd.f32 0.0, %v952
      %v954 = vpop.f32.mrb[0].mxu0
      %v955 = vpop.f32.mrb[0].mxu0
      %v956 = vadd.f32 0.0, %v955
      %v957 = vpop.f32.mrb[0].mxu0
      %958 = vmatprep.mubr.bf16.mxu0 0
      %959 = vmatmul.mubr.bf16.gmra.mrb[0].mxu0 %v907
      %v960 = vpop.f32.mrb[0].mxu0
      %v961 = vadd.f32 0.0, %v960
      %v962 = vpop.f32.mrb[0].mxu0
      %v963 = vpop.f32.mrb[0].mxu0
      %v964 = vadd.f32 0.0, %v963
      %v965 = vpop.f32.mrb[0].mxu0
      %966 = vmatprep.mubr.bf16.mxu0 0
      %967 = vmatmul.mubr.bf16.gmra.mrb[0].mxu0 %v910
      %v968 = vpop.f32.mrb[0].mxu0
      %v969 = vadd.f32 0.0, %v968
      %v970 = vpop.f32.mrb[0].mxu0
      %v971 = vpop.f32.mrb[0].mxu0
      %v972 = vadd.f32 0.0, %v971
      %v973 = vpop.f32.mrb[0].mxu0
      %974 = vmatprep.mubr.bf16.mxu0 0
      %975 = vmatmul.mubr.bf16.gmra.mrb[0].mxu0 %v913
      %v976 = vpop.f32.mrb[0].mxu0
      %v977 = vadd.f32 0.0, %v976
      %v978 = vpop.f32.mrb[0].mxu0
      %v979 = vpop.f32.mrb[0].mxu0
      %v980 = vadd.f32 0.0, %v979
      %v981 = vpop.f32.mrb[0].mxu0
      %982 = vdwg.mxu0
      %v983 = vadd.f32 %v878, %v953
      %v984 = vadd.f32 %v879, %v956
      %v985 = vadd.f32 %v880, %v961
      %v986 = vadd.f32 %v881, %v964
      %v987 = vadd.f32 %v882, %v969
      %v988 = vadd.f32 %v883, %v972
      %v989 = vadd.f32 %v884, %v977
      %v990 = vadd.f32 %v885, %v980
      %s991 = scalar_lea.vmem %s1, 48
      %v992 = vld [vmem:[%s991] sm:$0xf]
      %v993 = vld [vmem:[%s991 + $0x4] sm:$0x3]
      %v995 = vunpack.c.l.b16 %v174
      %v996 = vpack.c.b16 %v995, %v670
      %v999 = vunpack.c.l.b16 %v992
      %v1000 = vunpack.c.l.b16 %v993
      %v1001 = vpack.c.b16 %v1000, %v999
      %v1003 = vsel %vm352, %v996, 0
      %v1006 = vsel %vm365, %v1001, 0
      %1008 = vmatprep.subr.bf16.mxu0 0
      %1009 = vmatpush1.bf16.msra.mxu0 %v1006
      %1010 = vmatprep.subr.bf16.mxu0 0
      %1011 = vmatpush1.bf16.msra.mxu0 0
      %1012 = vmatprep.subr.bf16.mxu0 0
      %1013 = vmatpush1.bf16.msra.mxu0 0
      %1014 = vmatprep.subr.bf16.mxu0 0
      %1015 = vmatpush1.bf16.msra.mxu0 0
      %1016 = vmatprep.subr.bf16.mxu0 0
      %1017 = vmatpush1.bf16.msra.mxu0 0
      %1018 = vmatprep.subr.bf16.mxu0 0
      %1019 = vmatpush1.bf16.msra.mxu0 0
      %1020 = vmatprep.subr.bf16.mxu0 0
      %1021 = vmatpush1.bf16.msra.mxu0 0
      %1022 = vmatprep.subr.bf16.mxu0 0
      %1023 = vmatpush1.bf16.msra.mxu0 0
      %1024 = vmatprep.subr.bf16.mxu0 0
      %1025 = vmatpush1.bf16.msra.mxu0 0
      %1026 = vmatprep.subr.bf16.mxu0 0
      %1027 = vmatpush1.bf16.msra.mxu0 0
      %1028 = vmatprep.subr.bf16.mxu0 0
      %1029 = vmatpush1.bf16.msra.mxu0 0
      %1030 = vmatprep.subr.bf16.mxu0 0
      %1031 = vmatpush1.bf16.msra.mxu0 0
      %1032 = vmatprep.subr.bf16.mxu0 0
      %1033 = vmatpush1.bf16.msra.mxu0 0
      %1034 = vmatprep.subr.bf16.mxu0 0
      %1035 = vmatpush1.bf16.msra.mxu0 0
      %1036 = vmatprep.subr.bf16.mxu0 0
      %1037 = vmatpush1.bf16.msra.mxu0 0
      %1038 = vmatprep.subr.bf16.mxu0 0
      %1039 = vmatpush1.bf16.msra.mxu0 0
      %1040 = vmatprep.mubr.bf16.mxu0 0
      %1041 = vmatmul.mubr.bf16.gmra.mrb[0].mxu0 %v447
      %v1042 = vpop.f32.mrb[0].mxu0
      %v1043 = vadd.f32 0.0, %v1042
      %v1044 = vpop.f32.mrb[0].mxu0
      %v1045 = vpop.f32.mrb[0].mxu0
      %v1046 = vadd.f32 0.0, %v1045
      %v1047 = vpop.f32.mrb[0].mxu0
      %1048 = vmatprep.mubr.bf16.mxu0 0
      %1049 = vmatmul.mubr.bf16.gmra.mrb[0].mxu0 %v450
      %v1050 = vpop.f32.mrb[0].mxu0
      %v1051 = vadd.f32 0.0, %v1050
      %v1052 = vpop.f32.mrb[0].mxu0
      %v1053 = vpop.f32.mrb[0].mxu0
      %v1054 = vadd.f32 0.0, %v1053
      %v1055 = vpop.f32.mrb[0].mxu0
      %1056 = vmatprep.mubr.bf16.mxu0 0
      %1057 = vmatmul.mubr.bf16.gmra.mrb[0].mxu0 %v453
      %v1058 = vpop.f32.mrb[0].mxu0
      %v1059 = vadd.f32 0.0, %v1058
      %v1060 = vpop.f32.mrb[0].mxu0
      %v1061 = vpop.f32.mrb[0].mxu0
      %v1062 = vadd.f32 0.0, %v1061
      %v1063 = vpop.f32.mrb[0].mxu0
      %1064 = vmatprep.mubr.bf16.mxu0 0
      %1065 = vmatmul.mubr.bf16.gmra.mrb[0].mxu0 %v1003
      %v1066 = vpop.f32.mrb[0].mxu0
      %v1067 = vadd.f32 0.0, %v1066
      %v1068 = vpop.f32.mrb[0].mxu0
      %v1069 = vpop.f32.mrb[0].mxu0
      %v1070 = vadd.f32 0.0, %v1069
      %v1071 = vpop.f32.mrb[0].mxu0
      %1072 = vdwg.mxu0
      %v1073 = vadd.f32 %v983, %v1043
      %v1074 = vadd.f32 %v984, %v1046
      %v1075 = vadd.f32 %v985, %v1051
      %v1076 = vadd.f32 %v986, %v1054
      %v1077 = vadd.f32 %v987, %v1059
      %v1078 = vadd.f32 %v988, %v1062
      %v1079 = vadd.f32 %v989, %v1067
      %v1080 = vadd.f32 %v990, %v1070
      %v1081 = vunpack.c.h.b16 %v174
      %v1082 = vpack.c.b16 %v995, %v995
      %v1083 = vpack.c.b16 %v1081, %v1081
      %v1085 = vshrl.u32 %v1082, 16
      %v1087 = vrot.slane %v1085, 4
      %v1088 = vshll.u32 %v1082, 16
      %v1090 = vrot.slane %v1088, 5
      %v1091 = vor.u32 %v1087, %v1090
      %v1092 = vrot.slane %v1091, 4
      %v1094 = vshll.u32 %v1083, 16
      %v1096 = vrot.slane %v1094, 5
      %v1097 = vsel %vm219, %v1092, %v1096
      %s1098 = scalar_lea.vmem %s1, 56
      %v1099 = vld [vmem:[%s1098] sm:$0xf]
      %v1100 = vld [vmem:[%s1098 + $0x4] sm:$0x3]
      %v1101 = vunpack.c.l.b16 %v1097
      %v1102 = vpack.c.b16 %v1101, %v788
      %v1105 = vunpack.c.l.b16 %v1099
      %v1106 = vunpack.c.l.b16 %v1100
      %v1107 = vpack.c.b16 %v1106, %v1105
      %v1109 = vsel %vm352, %v1102, 0
      %v1112 = vsel %vm365, %v1107, 0
      %1114 = vmatprep.subr.bf16.mxu0 0
      %1115 = vmatpush1.bf16.msra.mxu0 %v1112
      %1116 = vmatprep.subr.bf16.mxu0 0
      %1117 = vmatpush1.bf16.msra.mxu0 0
      %1118 = vmatprep.subr.bf16.mxu0 0
      %1119 = vmatpush1.bf16.msra.mxu0 0
      %1120 = vmatprep.subr.bf16.mxu0 0
      %1121 = vmatpush1.bf16.msra.mxu0 0
      %1122 = vmatprep.subr.bf16.mxu0 0
      %1123 = vmatpush1.bf16.msra.mxu0 0
      %1124 = vmatprep.subr.bf16.mxu0 0
      %1125 = vmatpush1.bf16.msra.mxu0 0
      %1126 = vmatprep.subr.bf16.mxu0 0
      %1127 = vmatpush1.bf16.msra.mxu0 0
      %1128 = vmatprep.subr.bf16.mxu0 0
      %1129 = vmatpush1.bf16.msra.mxu0 0
      %1130 = vmatprep.subr.bf16.mxu0 0
      %1131 = vmatpush1.bf16.msra.mxu0 0
      %1132 = vmatprep.subr.bf16.mxu0 0
      %1133 = vmatpush1.bf16.msra.mxu0 0
      %1134 = vmatprep.subr.bf16.mxu0 0
      %1135 = vmatpush1.bf16.msra.mxu0 0
      %1136 = vmatprep.subr.bf16.mxu0 0
      %1137 = vmatpush1.bf16.msra.mxu0 0
      %1138 = vmatprep.subr.bf16.mxu0 0
      %1139 = vmatpush1.bf16.msra.mxu0 0
      %1140 = vmatprep.subr.bf16.mxu0 0
      %1141 = vmatpush1.bf16.msra.mxu0 0
      %1142 = vmatprep.subr.bf16.mxu0 0
      %1143 = vmatpush1.bf16.msra.mxu0 0
      %1144 = vmatprep.subr.bf16.mxu0 0
      %1145 = vmatpush1.bf16.msra.mxu0 0
      %1146 = vmatprep.mubr.bf16.mxu0 0
      %1147 = vmatmul.mubr.bf16.gmra.mrb[0].mxu0 %v357
      %v1148 = vpop.f32.mrb[0].mxu0
      %v1149 = vadd.f32 0.0, %v1148
      %v1150 = vpop.f32.mrb[0].mxu0
      %v1151 = vpop.f32.mrb[0].mxu0
      %v1152 = vadd.f32 0.0, %v1151
      %v1153 = vpop.f32.mrb[0].mxu0
      %1154 = vmatprep.mubr.bf16.mxu0 0
      %1155 = vmatmul.mubr.bf16.gmra.mrb[0].mxu0 %v360
      %v1156 = vpop.f32.mrb[0].mxu0
      %v1157 = vadd.f32 0.0, %v1156
      %v1158 = vpop.f32.mrb[0].mxu0
      %v1159 = vpop.f32.mrb[0].mxu0
      %v1160 = vadd.f32 0.0, %v1159
      %v1161 = vpop.f32.mrb[0].mxu0
      %1162 = vmatprep.mubr.bf16.mxu0 0
      %1163 = vmatmul.mubr.bf16.gmra.mrb[0].mxu0 %v363
      %v1164 = vpop.f32.mrb[0].mxu0
      %v1165 = vadd.f32 0.0, %v1164
      %v1166 = vpop.f32.mrb[0].mxu0
      %v1167 = vpop.f32.mrb[0].mxu0
      %v1168 = vadd.f32 0.0, %v1167
      %v1169 = vpop.f32.mrb[0].mxu0
      %1170 = vmatprep.mubr.bf16.mxu0 0
      %1171 = vmatmul.mubr.bf16.gmra.mrb[0].mxu0 %v1109
      %v1172 = vpop.f32.mrb[0].mxu0
      %v1173 = vadd.f32 0.0, %v1172
      %v1174 = vpop.f32.mrb[0].mxu0
      %v1175 = vpop.f32.mrb[0].mxu0
      %v1176 = vadd.f32 0.0, %v1175
      %v1177 = vpop.f32.mrb[0].mxu0
      %1178 = vdwg.mxu0
      %v1179 = vadd.f32 %v1073, %v1149
      %v1180 = vadd.f32 %v1074, %v1152
      %v1181 = vadd.f32 %v1075, %v1157
      %v1182 = vadd.f32 %v1076, %v1160
      %v1183 = vadd.f32 %v1077, %v1165
      %v1184 = vadd.f32 %v1078, %v1168
      %v1185 = vadd.f32 %v1079, %v1173
      %v1186 = vadd.f32 %v1080, %v1176
      %v1187 = vrot.slane %v1082, 5
      %v1188 = vrot.slane %v1187, 4
      %v1189 = vrot.slane %v1083, 5
      %v1190 = vsel %vm525, %v1188, %v1189
      %s1191 = scalar_lea.vmem %s1, 64
      %v1192 = vld [vmem:[%s1191] sm:$0xf]
      %v1193 = vld [vmem:[%s1191 + $0x4] sm:$0x3]
      %v1194 = vunpack.c.l.b16 %v1190
      %v1195 = vpack.c.b16 %v1194, %v893
      %v1198 = vunpack.c.l.b16 %v1192
      %v1199 = vunpack.c.l.b16 %v1193
      %v1200 = vpack.c.b16 %v1199, %v1198
      %v1202 = vsel %vm352, %v1195, 0
      %v1205 = vsel %vm365, %v1200, 0
      %1207 = vmatprep.subr.bf16.mxu0 0
      %1208 = vmatpush1.bf16.msra.mxu0 %v1205
      %1209 = vmatprep.subr.bf16.mxu0 0
      %1210 = vmatpush1.bf16.msra.mxu0 0
      %1211 = vmatprep.subr.bf16.mxu0 0
      %1212 = vmatpush1.bf16.msra.mxu0 0
      %1213 = vmatprep.subr.bf16.mxu0 0
      %1214 = vmatpush1.bf16.msra.mxu0 0
      %1215 = vmatprep.subr.bf16.mxu0 0
      %1216 = vmatpush1.bf16.msra.mxu0 0
      %1217 = vmatprep.subr.bf16.mxu0 0
      %1218 = vmatpush1.bf16.msra.mxu0 0
      %1219 = vmatprep.subr.bf16.mxu0 0
      %1220 = vmatpush1.bf16.msra.mxu0 0
      %1221 = vmatprep.subr.bf16.mxu0 0
      %1222 = vmatpush1.bf16.msra.mxu0 0
      %1223 = vmatprep.subr.bf16.mxu0 0
      %1224 = vmatpush1.bf16.msra.mxu0 0
      %1225 = vmatprep.subr.bf16.mxu0 0
      %1226 = vmatpush1.bf16.msra.mxu0 0
      %1227 = vmatprep.subr.bf16.mxu0 0
      %1228 = vmatpush1.bf16.msra.mxu0 0
      %1229 = vmatprep.subr.bf16.mxu0 0
      %1230 = vmatpush1.bf16.msra.mxu0 0
      %1231 = vmatprep.subr.bf16.mxu0 0
      %1232 = vmatpush1.bf16.msra.mxu0 0
      %1233 = vmatprep.subr.bf16.mxu0 0
      %1234 = vmatpush1.bf16.msra.mxu0 0
      %1235 = vmatprep.subr.bf16.mxu0 0
      %1236 = vmatpush1.bf16.msra.mxu0 0
      %1237 = vmatprep.subr.bf16.mxu0 0
      %1238 = vmatpush1.bf16.msra.mxu0 0
      %1239 = vmatprep.mubr.bf16.mxu0 0
      %1240 = vmatmul.mubr.bf16.gmra.mrb[0].mxu0 %v582
      %v1241 = vpop.f32.mrb[0].mxu0
      %v1242 = vadd.f32 0.0, %v1241
      %v1243 = vpop.f32.mrb[0].mxu0
      %v1244 = vpop.f32.mrb[0].mxu0
      %v1245 = vadd.f32 0.0, %v1244
      %v1246 = vpop.f32.mrb[0].mxu0
      %1247 = vmatprep.mubr.bf16.mxu0 0
      %1248 = vmatmul.mubr.bf16.gmra.mrb[0].mxu0 %v585
      %v1249 = vpop.f32.mrb[0].mxu0
      %v1250 = vadd.f32 0.0, %v1249
      %v1251 = vpop.f32.mrb[0].mxu0
      %v1252 = vpop.f32.mrb[0].mxu0
      %v1253 = vadd.f32 0.0, %v1252
      %v1254 = vpop.f32.mrb[0].mxu0
      %1255 = vmatprep.mubr.bf16.mxu0 0
      %1256 = vmatmul.mubr.bf16.gmra.mrb[0].mxu0 %v588
      %v1257 = vpop.f32.mrb[0].mxu0
      %v1258 = vadd.f32 0.0, %v1257
      %v1259 = vpop.f32.mrb[0].mxu0
      %v1260 = vpop.f32.mrb[0].mxu0
      %v1261 = vadd.f32 0.0, %v1260
      %v1262 = vpop.f32.mrb[0].mxu0
      %1263 = vmatprep.mubr.bf16.mxu0 0
      %1264 = vmatmul.mubr.bf16.gmra.mrb[0].mxu0 %v1202
      %v1265 = vpop.f32.mrb[0].mxu0
      %v1266 = vadd.f32 0.0, %v1265
      %v1267 = vpop.f32.mrb[0].mxu0
      %v1268 = vpop.f32.mrb[0].mxu0
      %v1269 = vadd.f32 0.0, %v1268
      %v1270 = vpop.f32.mrb[0].mxu0
      %1271 = vdwg.mxu0
      %v1272 = vadd.f32 %v1179, %v1242
      %v1273 = vadd.f32 %v1180, %v1245
      %v1274 = vadd.f32 %v1181, %v1250
      %v1275 = vadd.f32 %v1182, %v1253
      %v1276 = vadd.f32 %v1183, %v1258
      %v1277 = vadd.f32 %v1184, %v1261
      %v1278 = vadd.f32 %v1185, %v1266
      %v1279 = vadd.f32 %v1186, %v1269
      %vm1280 = vcmask 261120
      %1281 = vst.msk [vmem:[%s143] sm:$0xff] %vm1280, %v1272
      %1282 = vst.msk [vmem:[%s143 + $0x8] sm:$0xff] %vm1280, %v1273
      %1283 = vst.msk [vmem:[%s143 + $0x10] sm:$0xff] %vm1280, %v1274
      %1284 = vst.msk [vmem:[%s143 + $0x18] sm:$0xff] %vm1280, %v1275
      %1285 = vst.msk [vmem:[%s143 + $0x20] sm:$0xff] %vm1280, %v1276
      %1286 = vst.msk [vmem:[%s143 + $0x28] sm:$0xff] %vm1280, %v1277
      %1287 = vst.msk [vmem:[%s143 + $0x30] sm:$0xff] %vm1280, %v1278
      %1288 = vst.msk [vmem:[%s143 + $0x38] sm:$0xff] %vm1280, %v1279
      %p1289 = scmp.lt.s32.totalorder %s13, 1
      %s1290 = scalar_select %p1289, %s13, 1
      %s1291 = smul.addr %s1290, 8
      %s1292 = smul.addr %s1291, 8
      %s1293 = scalar_lea.vmem %s2, %s1292
      // Predicated region
      $region29: #{latent_diffusion_transformer_forward.3} parent=27 // pred_check
        %p1294 = pneg %p78
      $region30: #{latent_diffusion_transformer_forward.3} parent=27 // pred_check_branch
        %1296 = sbr.rel (%p1294) target = $region32
      $region31: #{latent_diffusion_transformer_forward.3} parent=27 // pred_region
        _
      $region32: #{latent_diffusion_transformer_forward.3} parent=27 // pred_fallthru
        _
    $region28: #{latent_diffusion_transformer_forward.3} parent=5 // pred_fallthru
      _
    %p1297 = scmp.le.s32.totalorder 2, %s8
    // Predicated region
    $region33: #{latent_diffusion_transformer_forward.3} parent=5 // pred_check
      %p1298 = pneg %p1297
    $region34: #{latent_diffusion_transformer_forward.3} parent=5 // pred_check_branch
      %1300 = sbr.rel (%p1298) target = $region36
    $region35: #{latent_diffusion_transformer_forward.3} parent=5 // pred_region
      %s1301 = ssub.s32 %s8, 2
      // Predicated region
      $region37: #{latent_diffusion_transformer_forward.3} parent=35 // pred_check
        %p1302 = pneg %p84
      $region38: #{latent_diffusion_transformer_forward.3} parent=35 // pred_check_branch
        %1304 = sbr.rel (%p1302) target = $region40
      $region39: #{latent_diffusion_transformer_forward.3} parent=35 // pred_region
        %p1305 = scmp.lt.s32.totalorder %s14, 1
        %s1306 = scalar_select %p1305, %s14, 1
        %s1307 = smul.addr %s1306, 8
        %s1308 = smul.addr %s1307, 8
        %s1309 = scalar_lea.vmem %s2, %s1308
      $region40: #{latent_diffusion_transformer_forward.3} parent=35 // pred_fallthru
        _
    $region36: #{latent_diffusion_transformer_forward.3} parent=5 // pred_fallthru
      _
  $region6: #{latent_diffusion_transformer_forward.3} parent=0 // loop_footer
    %s12 = sadd.s32 1, %s8
  $region7: #{latent_diffusion_transformer_forward.3} parent=0 // loop_footer_branch
    %7 = sbr.rel target = $region3
  $region8: #{latent_diffusion_transformer_forward.3} parent=0 // loop_exit
    _

// kernel: latent_diffusion_transformer_forward.5
$region0: #{latent_diffusion_transformer_forward.5}
  #allocation0 [shape = 'u32[]', space=smem, size = 0x4, offset = 0x4, fixed_abs, tag = 'smem constant byte address 0x4 - core index']
  #allocation1 [shape = 'u32[144,128]{1,0:T(1,128)}', space=vmem, size = 0x12000, scoped, tag = 'internal scratch']
  %s0 = inlined_call_operand.vmem [shape: f32[2,10,10,32], index: 0, kind: input, shape index: {}]
  %s1 = inlined_call_operand.vmem [shape: bf16[3,3,32,128], index: 1, kind: input, shape index: {}]
  %s2 = inlined_call_operand.vmem [shape: f32[2,64,128], index: 2, kind: output, shape index: {}]
  %s3 = sld [smem:[#allocation0]]
  $region41: #{latent_diffusion_transformer_forward.5} parent=0
    _
  %s5 = ssub.s32 1, %s3
  %s6 = scalar_select 0, %s5, %s3
  loop: start=0, step=1, limit=4
  $region2: #{latent_diffusion_transformer_forward.5} parent=0 // loop_pre_header
    _
  $region3: #{latent_diffusion_transformer_forward.5} parent=0 // loop_header
    %s8 = sphi 0, %s12
    %p9 = scmp.ge.s32.totalorder %s8, 4
    %s18 = sphi 0, %s20
    %s21 = sphi 0, %s18
    %s22 = sphi 0, %s21
    %s38 = sphi 0, %s22
    %s42 = sphi 0, %s42
    %s44 = sphi 0, %s42
    %s45 = sphi 0, %s44
    %s59 = sphi 0, %s45
    %s65 = sphi 0, %s67
    %s68 = sphi 0, %s65
    %s69 = sphi 0, %s68
    %s85 = sphi 0, %s69
  $region4: #{latent_diffusion_transformer_forward.5} parent=0 // loop_header_branch
    %11 = sbr.rel (%p9) target = $region8
  $region5: #{latent_diffusion_transformer_forward.5} parent=0 // loop_body
    %s13 = ssub.s32 %s8, 1
    %s14 = ssub.s32 %s8, 2
    %s15 = sadd.s32 %s8, 1
    %s16 = ssub.s32 %s8, %s15
    %p17 = scmp.eq.s32.totalorder %s16, 0
    %s19 = sadd.s32 %s18, 1
    %s20 = scalar_select %p17, %s18, %s19
    %p23 = pneg %p17
    %p24 = scmp.eq.s32.totalorder %s8, 1
    %p25 = por %p23, %p24
    %p26 = scmp.ne.s32.totalorder %s18, %s21
    %p27 = scmp.eq.s32.totalorder %s8, 0
    %p28 = por %p26, %p27
    %p29 = scmp.ne.s32.totalorder %s18, %s21
    %p30 = scmp.eq.s32.totalorder %s13, 1
    %p31 = por %p29, %p30
    %p32 = scmp.ne.s32.totalorder %s21, %s22
    %p33 = scmp.eq.s32.totalorder %s13, 0
    %p34 = por %p32, %p33
    %p35 = scmp.ne.s32.totalorder %s21, %s22
    %p36 = scmp.eq.s32.totalorder %s14, 1
    %p37 = por %p35, %p36
    %p39 = scmp.ne.s32.totalorder %s22, %s38
    %p40 = scmp.eq.s32.totalorder %s14, 0
    %p41 = por %p39, %p40
    %s43 = sadd.s32 %s42, 1
    %p46 = scmp.eq.s32.totalorder %s8, 1
    %p47 = scmp.ne.s32.totalorder %s42, %s44
    %p48 = scmp.eq.s32.totalorder %s8, 0
    %p49 = por %p47, %p48
    %p50 = scmp.ne.s32.totalorder %s42, %s44
    %p51 = scmp.eq.s32.totalorder %s13, 1
    %p52 = por %p50, %p51
    %p53 = scmp.ne.s32.totalorder %s44, %s45
    %p54 = scmp.eq.s32.totalorder %s13, 0
    %p55 = por %p53, %p54
    %p56 = scmp.ne.s32.totalorder %s44, %s45
    %p57 = scmp.eq.s32.totalorder %s14, 1
    %p58 = por %p56, %p57
    %p60 = scmp.ne.s32.totalorder %s45, %s59
    %p61 = scmp.eq.s32.totalorder %s14, 0
    %p62 = por %p60, %p61
    %s63 = ssub.s32 %s8, %s15
    %p64 = scmp.eq.s32.totalorder %s63, 0
    %s66 = sadd.s32 %s65, 1
    %s67 = scalar_select %p64, %s65, %s66
    %p70 = pneg %p64
    %p71 = scmp.eq.s32.totalorder %s8, 1
    %p72 = por %p70, %p71
    %p73 = scmp.ne.s32.totalorder %s65, %s68
    %p74 = scmp.eq.s32.totalorder %s8, 0
    %p75 = por %p73, %p74
    %p76 = scmp.ne.s32.totalorder %s65, %s68
    %p77 = scmp.eq.s32.totalorder %s13, 1
    %p78 = por %p76, %p77
    %p79 = scmp.ne.s32.totalorder %s68, %s69
    %p80 = scmp.eq.s32.totalorder %s13, 0
    %p81 = por %p79, %p80
    %p82 = scmp.ne.s32.totalorder %s68, %s69
    %p83 = scmp.eq.s32.totalorder %s14, 1
    %p84 = por %p82, %p83
    %p86 = scmp.ne.s32.totalorder %s69, %s85
    %p87 = scmp.eq.s32.totalorder %s14, 0
    %p88 = por %p86, %p87
    %p89 = scmp.le.s32.totalorder 1, %s8
    %p90 = scmp.lt.s32.totalorder %s8, 3
    %p91 = pnand %p89, %p90
    %p92 = pneg %p91
    // Predicated region
    $region9: #{latent_diffusion_transformer_forward.5} parent=5 // pred_check
      _
    $region10: #{latent_diffusion_transformer_forward.5} parent=5 // pred_check_branch
      %94 = sbr.rel (%p91) target = $region12
    $region11: #{latent_diffusion_transformer_forward.5} parent=5 // pred_region
      %s95 = ssub.s32 %s8, 1
      // Predicated region
      $region13: #{latent_diffusion_transformer_forward.5} parent=11 // pred_check
        %p96 = pneg %p55
      $region14: #{latent_diffusion_transformer_forward.5} parent=11 // pred_check_branch
        %98 = sbr.rel (%p96) target = $region16
      $region15: #{latent_diffusion_transformer_forward.5} parent=11 // pred_region
        _
      $region16: #{latent_diffusion_transformer_forward.5} parent=11 // pred_fallthru
        _
    $region12: #{latent_diffusion_transformer_forward.5} parent=5 // pred_fallthru
      _
    %p99 = scmp.lt.s32.totalorder %s8, 2
    // Predicated region
    $region17: #{latent_diffusion_transformer_forward.5} parent=5 // pred_check
      %p100 = pneg %p99
    $region18: #{latent_diffusion_transformer_forward.5} parent=5 // pred_check_branch
      %102 = sbr.rel (%p100) target = $region20
    $region19: #{latent_diffusion_transformer_forward.5} parent=5 // pred_region
      // Predicated region
      $region21: #{latent_diffusion_transformer_forward.5} parent=19 // pred_check
        %p103 = pneg %p28
      $region22: #{latent_diffusion_transformer_forward.5} parent=19 // pred_check_branch
        %105 = sbr.rel (%p103) target = $region24
      $region23: #{latent_diffusion_transformer_forward.5} parent=19 // pred_region
        %p106 = scmp.lt.s32.totalorder %s8, 1
        %s107 = scalar_select %p106, %s8, 1
        %s108 = smul.addr %s107, 20
        %s109 = smul.addr %s108, 8
        %s110 = scalar_lea.vmem %s0, %s109
      $region24: #{latent_diffusion_transformer_forward.5} parent=19 // pred_fallthru
        _
    $region20: #{latent_diffusion_transformer_forward.5} parent=5 // pred_fallthru
      _
    %p111 = scmp.le.s32.totalorder 1, %s8
    %p112 = scmp.lt.s32.totalorder %s8, 3
    %p113 = pnand %p111, %p112
    %p114 = pneg %p113
    // Predicated region
    $region25: #{latent_diffusion_transformer_forward.5} parent=5 // pred_check
      _
    $region26: #{latent_diffusion_transformer_forward.5} parent=5 // pred_check_branch
      %116 = sbr.rel (%p113) target = $region28
    $region27: #{latent_diffusion_transformer_forward.5} parent=5 // pred_region
      %s117 = ssub.s32 %s8, 1
      %p118 = scmp.lt.s32.totalorder %s13, 1
      %s119 = scalar_select %p118, %s13, 1
      %s120 = smul.addr %s119, 20
      %s121 = smul.addr %s120, 8
      %s122 = scalar_lea.vmem %s0, %s121
      %p123 = pneg %p34
      %p124 = pneg %p31
      %p125 = pneg %p55
      %p126 = pneg %p52
      %p127 = pneg %p81
      %p128 = pneg %p78
      %p129 = scmp.lt.s32.totalorder %s13, 1
      %s130 = scalar_select %p129, %s13, 1
      %s131 = smul.addr %s130, 8
      %s132 = smul.addr %s131, 8
      %s133 = scalar_lea.vmem %s2, %s132
      %p134 = scmp.lt.s32.totalorder %s13, 1
      %s135 = scalar_select %p134, %s13, 1
      %s136 = smul.addr %s135, 20
      %s137 = smul.addr %s136, 8
      %s138 = scalar_lea.vmem %s0, %s137
      %p139 = scmp.lt.s32.totalorder %s13, 1
      %s140 = scalar_select %p139, %s13, 1
      %s141 = smul.addr %s140, 8
      %s142 = smul.addr %s141, 8
      %s143 = scalar_lea.vmem %s2, %s142
      %v145 = vld [vmem:[%s138] sm:$0xff]
      %v146 = vld [vmem:[%s138 + $0x8] sm:$0x3]
      %v147 = vld [vmem:[%s138 + $0x10] sm:$0xff]
      %v148 = vld [vmem:[%s138 + $0x18] sm:$0x3]
      %v149 = vld [vmem:[%s138 + $0x20] sm:$0xff]
      %v150 = vld [vmem:[%s138 + $0x28] sm:$0x3]
      %v151 = vld [vmem:[%s138 + $0x30] sm:$0xff]
      %v152 = vld [vmem:[%s138 + $0x38] sm:$0x3]
      %v153 = vld [vmem:[%s138 + $0x40] sm:$0xff]
      %v154 = vld [vmem:[%s138 + $0x48] sm:$0x3]
      %v155 = vld [vmem:[%s138 + $0x50] sm:$0xff]
      %v156 = vld [vmem:[%s138 + $0x58] sm:$0x3]
      %v157 = vld [vmem:[%s138 + $0x60] sm:$0xff]
      %v158 = vld [vmem:[%s138 + $0x68] sm:$0x3]
      %v159 = vld [vmem:[%s138 + $0x70] sm:$0xff]
      %v160 = vld [vmem:[%s138 + $0x78] sm:$0x3]
      %v161 = vld [vmem:[%s138 + $0x80] sm:$0xff]
      %v162 = vld [vmem:[%s138 + $0x88] sm:$0x3]
      %v163 = vld [vmem:[%s138 + $0x90] sm:$0xff]
      %v164 = vld [vmem:[%s138 + $0x98] sm:$0x3]
      %v165 = vpack.c.bf16 %v146, %v145
      %v166 = vpack.c.bf16 %v148, %v147
      %v167 = vpack.c.bf16 %v150, %v149
      %v168 = vpack.c.bf16 %v152, %v151
      %v169 = vpack.c.bf16 %v154, %v153
      %v170 = vpack.c.bf16 %v156, %v155
      %v171 = vpack.c.bf16 %v158, %v157
      %v172 = vpack.c.bf16 %v160, %v159
      %v173 = vpack.c.bf16 %v162, %v161
      %v174 = vpack.c.bf16 %v164, %v163
      %v175 = vld [vmem:[%s1] sm:$0xf]
      %v176 = vld [vmem:[%s1 + $0x4] sm:$0xf]
      %v177 = vld [vmem:[%s1 + $0x8] sm:$0xf]
      %v178 = vld [vmem:[%s1 + $0xc] sm:$0xf]
      %v187 = vunpack.c.l.b16 %v165
      %v188 = vunpack.c.h.b16 %v165
      %v189 = vunpack.c.l.b16 %v166
      %v190 = vunpack.c.h.b16 %v166
      %v191 = vunpack.c.l.b16 %v167
      %v192 = vunpack.c.h.b16 %v167
      %v193 = vunpack.c.l.b16 %v168
      %v194 = vunpack.c.h.b16 %v168
      %v195 = vunpack.c.l.b16 %v169
      %v196 = vunpack.c.h.b16 %v169
      %v197 = vunpack.c.l.b16 %v170
      %v198 = vunpack.c.h.b16 %v170
      %v199 = vunpack.c.l.b16 %v171
      %v200 = vunpack.c.h.b16 %v171
      %v201 = vunpack.c.l.b16 %v172
      %v202 = vunpack.c.h.b16 %v172
      %v203 = vpack.c.b16 %v187, %v187
      %v204 = vpack.c.b16 %v188, %v188
      %v205 = vpack.c.b16 %v189, %v189
      %v206 = vpack.c.b16 %v190, %v190
      %v207 = vpack.c.b16 %v191, %v191
      %v208 = vpack.c.b16 %v192, %v192
      %v209 = vpack.c.b16 %v193, %v193
      %v210 = vpack.c.b16 %v194, %v194
      %v211 = vpack.c.b16 %v195, %v195
      %v212 = vpack.c.b16 %v196, %v196
      %v213 = vpack.c.b16 %v197, %v197
      %v214 = vpack.c.b16 %v198, %v198
      %v215 = vpack.c.b16 %v199, %v199
      %v216 = vpack.c.b16 %v200, %v200
      %v217 = vpack.c.b16 %v201, %v201
      %v218 = vpack.c.b16 %v202, %v202
      %vm219 = vsmask.f32 3328
      %vm220 = vsmask.f32 7440
      %vm221 = vmor %vm219, %vm220
      %v223 = vshrl.u32 %v203, 16
      %v225 = vrot.slane %v223, 4
      %v226 = vshll.u32 %v203, 16
      %v228 = vrot.slane %v226, 5
      %v229 = vor.u32 %v225, %v228
      %v230 = vrot.slane %v229, 4
      %v232 = vshll.u32 %v204, 16
      %v234 = vrot.slane %v232, 5
      %v235 = vsel %vm221, %v230, %v234
      %v237 = vshrl.u32 %v205, 16
      %v239 = vrot.slane %v237, 4
      %v240 = vshll.u32 %v205, 16
      %v242 = vrot.slane %v240, 5
      %v243 = vor.u32 %v239, %v242
      %v244 = vrot.slane %v243, 4
      %v246 = vshll.u32 %v206, 16
      %v248 = vrot.slane %v246, 5
      %v249 = vsel %vm221, %v244, %v248
      %v251 = vshrl.u32 %v207, 16
      %v253 = vrot.slane %v251, 4
      %v254 = vshll.u32 %v207, 16
      %v256 = vrot.slane %v254, 5
      %v257 = vor.u32 %v253, %v256
      %v258 = vrot.slane %v257, 4
      %v260 = vshll.u32 %v208, 16
      %v262 = vrot.slane %v260, 5
      %v263 = vsel %vm221, %v258, %v262
      %v265 = vshrl.u32 %v209, 16
      %v267 = vrot.slane %v265, 4
      %v268 = vshll.u32 %v209, 16
      %v270 = vrot.slane %v268, 5
      %v271 = vor.u32 %v267, %v270
      %v272 = vrot.slane %v271, 4
      %v274 = vshll.u32 %v210, 16
      %v276 = vrot.slane %v274, 5
      %v277 = vsel %vm221, %v272, %v276
      %v279 = vshrl.u32 %v211, 16
      %v281 = vrot.slane %v279, 4
      %v282 = vshll.u32 %v211, 16
      %v284 = vrot.slane %v282, 5
      %v285 = vor.u32 %v281, %v284
      %v286 = vrot.slane %v285, 4
      %v288 = vshll.u32 %v212, 16
      %v290 = vrot.slane %v288, 5
      %v291 = vsel %vm221, %v286, %v290
      %v293 = vshrl.u32 %v213, 16
      %v295 = vrot.slane %v293, 4
      %v296 = vshll.u32 %v213, 16
      %v298 = vrot.slane %v296, 5
      %v299 = vor.u32 %v295, %v298
      %v300 = vrot.slane %v299, 4
      %v302 = vshll.u32 %v214, 16
      %v304 = vrot.slane %v302, 5
      %v305 = vsel %vm221, %v300, %v304
      %v307 = vshrl.u32 %v215, 16
      %v309 = vrot.slane %v307, 4
      %v310 = vshll.u32 %v215, 16
      %v312 = vrot.slane %v310, 5
      %v313 = vor.u32 %v309, %v312
      %v314 = vrot.slane %v313, 4
      %v316 = vshll.u32 %v216, 16
      %v318 = vrot.slane %v316, 5
      %v319 = vsel %vm221, %v314, %v318
      %v321 = vshrl.u32 %v217, 16
      %v323 = vrot.slane %v321, 4
      %v324 = vshll.u32 %v217, 16
      %v326 = vrot.slane %v324, 5
      %v327 = vor.u32 %v323, %v326
      %v328 = vrot.slane %v327, 4
      %v330 = vshll.u32 %v218, 16
      %v332 = vrot.slane %v330, 5
      %v333 = vsel %vm221, %v328, %v332
      %s334 = scalar_lea.vmem %s1, 16
      %v335 = vld [vmem:[%s334] sm:$0xf]
      %v336 = vld [vmem:[%s334 + $0x4] sm:$0xf]
      %v337 = vld [vmem:[%s334 + $0x8] sm:$0xf]
      %v338 = vld [vmem:[%s334 + $0xc] sm:$0xf]
      %v339 = vunpack.c.l.b16 %v235
      %v340 = vunpack.c.l.b16 %v249
      %v341 = vunpack.c.l.b16 %v263
      %v342 = vunpack.c.l.b16 %v277
      %v343 = vunpack.c.l.b16 %v291
      %v344 = vunpack.c.l.b16 %v305
      %v345 = vunpack.c.l.b16 %v319
      %v346 = vunpack.c.l.b16 %v333
      %v347 = vpack.c.b16 %v340, %v339
      %v348 = vpack.c.b16 %v342, %v341
      %v349 = vpack.c.b16 %v344, %v343
      %v350 = vpack.c.b16 %v346, %v345
      %v355 = vunpack.c.l.b16 %v335
      %v356 = vunpack.c.l.b16 %v336
      %v357 = vunpack.c.l.b16 %v337
      %v358 = vunpack.c.l.b16 %v338
      %v359 = vpack.c.b16 %v356, %v355
      %v360 = vpack.c.b16 %v358, %v357
      %vm363 = vcmask 261120
      %v365 = vsel %vm363, %v347, 0
      %v368 = vsel %vm363, %v348, 0
      %v371 = vsel %vm363, %v349, 0
      %v374 = vsel %vm363, %v350, 0
      %376 = vmatprep.subr.bf16.mxu0 0
      %377 = vmatpush1.bf16.msra.mxu0 %v359
      %378 = vmatprep.subr.bf16.mxu0 0
      %379 = vmatpush1.bf16.msra.mxu0 %v360
      %380 = vmatprep.subr.bf16.mxu0 0
      %381 = vmatpush1.bf16.msra.mxu0 0
      %382 = vmatprep.subr.bf16.mxu0 0
      %383 = vmatpush1.bf16.msra.mxu0 0
      %384 = vmatprep.subr.bf16.mxu0 0
      %385 = vmatpush1.bf16.msra.mxu0 0
      %386 = vmatprep.subr.bf16.mxu0 0
      %387 = vmatpush1.bf16.msra.mxu0 0
      %388 = vmatprep.subr.bf16.mxu0 0
      %389 = vmatpush1.bf16.msra.mxu0 0
      %390 = vmatprep.subr.bf16.mxu0 0
      %391 = vmatpush1.bf16.msra.mxu0 0
      %392 = vmatprep.subr.bf16.mxu0 0
      %393 = vmatpush1.bf16.msra.mxu0 0
      %394 = vmatprep.subr.bf16.mxu0 0
      %395 = vmatpush1.bf16.msra.mxu0 0
      %396 = vmatprep.subr.bf16.mxu0 0
      %397 = vmatpush1.bf16.msra.mxu0 0
      %398 = vmatprep.subr.bf16.mxu0 0
      %399 = vmatpush1.bf16.msra.mxu0 0
      %400 = vmatprep.subr.bf16.mxu0 0
      %401 = vmatpush1.bf16.msra.mxu0 0
      %402 = vmatprep.subr.bf16.mxu0 0
      %403 = vmatpush1.bf16.msra.mxu0 0
      %404 = vmatprep.subr.bf16.mxu0 0
      %405 = vmatpush1.bf16.msra.mxu0 0
      %406 = vmatprep.subr.bf16.mxu0 0
      %407 = vmatpush1.bf16.msra.mxu0 0
      %408 = vmatprep.mubr.bf16.mxu0 0
      %409 = vmatmul.mubr.bf16.gmra.mrb[0].mxu0 %v365
      %v410 = vpop.f32.mrb[0].mxu0
      %v411 = vadd.f32 0.0, %v410
      %v412 = vpop.f32.mrb[0].mxu0
      %v413 = vpop.f32.mrb[0].mxu0
      %v414 = vadd.f32 0.0, %v413
      %v415 = vpop.f32.mrb[0].mxu0
      %416 = vmatprep.mubr.bf16.mxu0 0
      %417 = vmatmul.mubr.bf16.gmra.mrb[0].mxu0 %v368
      %v418 = vpop.f32.mrb[0].mxu0
      %v419 = vadd.f32 0.0, %v418
      %v420 = vpop.f32.mrb[0].mxu0
      %v421 = vpop.f32.mrb[0].mxu0
      %v422 = vadd.f32 0.0, %v421
      %v423 = vpop.f32.mrb[0].mxu0
      %424 = vmatprep.mubr.bf16.mxu0 0
      %425 = vmatmul.mubr.bf16.gmra.mrb[0].mxu0 %v371
      %v426 = vpop.f32.mrb[0].mxu0
      %v427 = vadd.f32 0.0, %v426
      %v428 = vpop.f32.mrb[0].mxu0
      %v429 = vpop.f32.mrb[0].mxu0
      %v430 = vadd.f32 0.0, %v429
      %v431 = vpop.f32.mrb[0].mxu0
      %432 = vmatprep.mubr.bf16.mxu0 0
      %433 = vmatmul.mubr.bf16.gmra.mrb[0].mxu0 %v374
      %v434 = vpop.f32.mrb[0].mxu0
      %v435 = vadd.f32 0.0, %v434
      %v436 = vpop.f32.mrb[0].mxu0
      %v437 = vpop.f32.mrb[0].mxu0
      %v438 = vadd.f32 0.0, %v437
      %v439 = vpop.f32.mrb[0].mxu0
      %440 = vdwg.mxu0
      %v441 = vpack.c.b16 %v189, %v187
      %v442 = vpack.c.b16 %v193, %v191
      %v443 = vpack.c.b16 %v197, %v195
      %v444 = vpack.c.b16 %v201, %v199
      %v449 = vunpack.c.l.b16 %v175
      %v450 = vunpack.c.l.b16 %v176
      %v451 = vunpack.c.l.b16 %v177
      %v452 = vunpack.c.l.b16 %v178
      %v453 = vpack.c.b16 %v450, %v449
      %v454 = vpack.c.b16 %v452, %v451
      %v458 = vsel %vm363, %v441, 0
      %v461 = vsel %vm363, %v442, 0
      %v464 = vsel %vm363, %v443, 0
      %v467 = vsel %vm363, %v444, 0
      %469 = vmatprep.subr.bf16.mxu0 0
      %470 = vmatpush1.bf16.msra.mxu0 %v453
      %471 = vmatprep.subr.bf16.mxu0 0
      %472 = vmatpush1.bf16.msra.mxu0 %v454
      %473 = vmatprep.subr.bf16.mxu0 0
      %474 = vmatpush1.bf16.msra.mxu0 0
      %475 = vmatprep.subr.bf16.mxu0 0
      %476 = vmatpush1.bf16.msra.mxu0 0
      %477 = vmatprep.subr.bf16.mxu0 0
      %478 = vmatpush1.bf16.msra.mxu0 0
      %479 = vmatprep.subr.bf16.mxu0 0
      %480 = vmatpush1.bf16.msra.mxu0 0
      %481 = vmatprep.subr.bf16.mxu0 0
      %482 = vmatpush1.bf16.msra.mxu0 0
      %483 = vmatprep.subr.bf16.mxu0 0
      %484 = vmatpush1.bf16.msra.mxu0 0
      %485 = vmatprep.subr.bf16.mxu0 0
      %486 = vmatpush1.bf16.msra.mxu0 0
      %487 = vmatprep.subr.bf16.mxu0 0
      %488 = vmatpush1.bf16.msra.mxu0 0
      %489 = vmatprep.subr.bf16.mxu0 0
      %490 = vmatpush1.bf16.msra.mxu0 0
      %491 = vmatprep.subr.bf16.mxu0 0
      %492 = vmatpush1.bf16.msra.mxu0 0
      %493 = vmatprep.subr.bf16.mxu0 0
      %494 = vmatpush1.bf16.msra.mxu0 0
      %495 = vmatprep.subr.bf16.mxu0 0
      %496 = vmatpush1.bf16.msra.mxu0 0
      %497 = vmatprep.subr.bf16.mxu0 0
      %498 = vmatpush1.bf16.msra.mxu0 0
      %499 = vmatprep.subr.bf16.mxu0 0
      %500 = vmatpush1.bf16.msra.mxu0 0
      %501 = vmatprep.mubr.bf16.mxu0 0
      %502 = vmatmul.mubr.bf16.gmra.mrb[0].mxu0 %v458
      %v503 = vpop.f32.mrb[0].mxu0
      %v504 = vadd.f32 %v411, %v503
      %v505 = vpop.f32.mrb[0].mxu0
      %v506 = vpop.f32.mrb[0].mxu0
      %v507 = vadd.f32 %v414, %v506
      %v508 = vpop.f32.mrb[0].mxu0
      %509 = vmatprep.mubr.bf16.mxu0 0
      %510 = vmatmul.mubr.bf16.gmra.mrb[0].mxu0 %v461
      %v511 = vpop.f32.mrb[0].mxu0
      %v512 = vadd.f32 %v419, %v511
      %v513 = vpop.f32.mrb[0].mxu0
      %v514 = vpop.f32.mrb[0].mxu0
      %v515 = vadd.f32 %v422, %v514
      %v516 = vpop.f32.mrb[0].mxu0
      %517 = vmatprep.mubr.bf16.mxu0 0
      %518 = vmatmul.mubr.bf16.gmra.mrb[0].mxu0 %v464
      %v519 = vpop.f32.mrb[0].mxu0
      %v520 = vadd.f32 %v427, %v519
      %v521 = vpop.f32.mrb[0].mxu0
      %v522 = vpop.f32.mrb[0].mxu0
      %v523 = vadd.f32 %v430, %v522
      %v524 = vpop.f32.mrb[0].mxu0
      %525 = vmatprep.mubr.bf16.mxu0 0
      %526 = vmatmul.mubr.bf16.gmra.mrb[0].mxu0 %v467
      %v527 = vpop.f32.mrb[0].mxu0
      %v528 = vadd.f32 %v435, %v527
      %v529 = vpop.f32.mrb[0].mxu0
      %v530 = vpop.f32.mrb[0].mxu0
      %v531 = vadd.f32 %v438, %v530
      %v532 = vpop.f32.mrb[0].mxu0
      %533 = vdwg.mxu0
      %vm534 = vcmask 1042432
      %vm535 = vcmask 1046532
      %vm536 = vmor %vm534, %vm535
      %v537 = vrot.slane %v203, 5
      %v538 = vrot.slane %v537, 4
      %v539 = vrot.slane %v204, 5
      %v540 = vsel %vm536, %v538, %v539
      %v541 = vrot.slane %v205, 5
      %v542 = vrot.slane %v541, 4
      %v543 = vrot.slane %v206, 5
      %v544 = vsel %vm536, %v542, %v543
      %v545 = vrot.slane %v207, 5
      %v546 = vrot.slane %v545, 4
      %v547 = vrot.slane %v208, 5
      %v548 = vsel %vm536, %v546, %v547
      %v549 = vrot.slane %v209, 5
      %v550 = vrot.slane %v549, 4
      %v551 = vrot.slane %v210, 5
      %v552 = vsel %vm536, %v550, %v551
      %v553 = vrot.slane %v211, 5
      %v554 = vrot.slane %v553, 4
      %v555 = vrot.slane %v212, 5
      %v556 = vsel %vm536, %v554, %v555
      %v557 = vrot.slane %v213, 5
      %v558 = vrot.slane %v557, 4
      %v559 = vrot.slane %v214, 5
      %v560 = vsel %vm536, %v558, %v559
      %v561 = vrot.slane %v215, 5
      %v562 = vrot.slane %v561, 4
      %v563 = vrot.slane %v216, 5
      %v564 = vsel %vm536, %v562, %v563
      %v565 = vrot.slane %v217, 5
      %v566 = vrot.slane %v565, 4
      %v567 = vrot.slane %v218, 5
      %v568 = vsel %vm536, %v566, %v567
      %s569 = scalar_lea.vmem %s1, 32
      %v570 = vld [vmem:[%s569] sm:$0xf]
      %v571 = vld [vmem:[%s569 + $0x4] sm:$0xf]
      %v572 = vld [vmem:[%s569 + $0x8] sm:$0xf]
      %v573 = vld [vmem:[%s569 + $0xc] sm:$0xf]
      %v574 = vunpack.c.l.b16 %v540
      %v575 = vunpack.c.l.b16 %v544
      %v576 = vunpack.c.l.b16 %v548
      %v577 = vunpack.c.l.b16 %v552
      %v578 = vunpack.c.l.b16 %v556
      %v579 = vunpack.c.l.b16 %v560
      %v580 = vunpack.c.l.b16 %v564
      %v581 = vunpack.c.l.b16 %v568
      %v582 = vpack.c.b16 %v575, %v574
      %v583 = vpack.c.b16 %v577, %v576
      %v584 = vpack.c.b16 %v579, %v578
      %v585 = vpack.c.b16 %v581, %v580
      %v590 = vunpack.c.l.b16 %v570
      %v591 = vunpack.c.l.b16 %v571
      %v592 = vunpack.c.l.b16 %v572
      %v593 = vunpack.c.l.b16 %v573
      %v594 = vpack.c.b16 %v591, %v590
      %v595 = vpack.c.b16 %v593, %v592
      %v599 = vsel %vm363, %v582, 0
      %v602 = vsel %vm363, %v583, 0
      %v605 = vsel %vm363, %v584, 0
      %v608 = vsel %vm363, %v585, 0
      %610 = vmatprep.subr.bf16.mxu0 0
      %611 = vmatpush1.bf16.msra.mxu0 %v594
      %612 = vmatprep.subr.bf16.mxu0 0
      %613 = vmatpush1.bf16.msra.mxu0 %v595
      %614 = vmatprep.subr.bf16.mxu0 0
      %615 = vmatpush1.bf16.msra.mxu0 0
      %616 = vmatprep.subr.bf16.mxu0 0
      %617 = vmatpush1.bf16.msra.mxu0 0
      %618 = vmatprep.subr.bf16.mxu0 0
      %619 = vmatpush1.bf16.msra.mxu0 0
      %620 = vmatprep.subr.bf16.mxu0 0
      %621 = vmatpush1.bf16.msra.mxu0 0
      %622 = vmatprep.subr.bf16.mxu0 0
      %623 = vmatpush1.bf16.msra.mxu0 0
      %624 = vmatprep.subr.bf16.mxu0 0
      %625 = vmatpush1.bf16.msra.mxu0 0
      %626 = vmatprep.subr.bf16.mxu0 0
      %627 = vmatpush1.bf16.msra.mxu0 0
      %628 = vmatprep.subr.bf16.mxu0 0
      %629 = vmatpush1.bf16.msra.mxu0 0
      %630 = vmatprep.subr.bf16.mxu0 0
      %631 = vmatpush1.bf16.msra.mxu0 0
      %632 = vmatprep.subr.bf16.mxu0 0
      %633 = vmatpush1.bf16.msra.mxu0 0
      %634 = vmatprep.subr.bf16.mxu0 0
      %635 = vmatpush1.bf16.msra.mxu0 0
      %636 = vmatprep.subr.bf16.mxu0 0
      %637 = vmatpush1.bf16.msra.mxu0 0
      %638 = vmatprep.subr.bf16.mxu0 0
      %639 = vmatpush1.bf16.msra.mxu0 0
      %640 = vmatprep.subr.bf16.mxu0 0
      %641 = vmatpush1.bf16.msra.mxu0 0
      %642 = vmatprep.mubr.bf16.mxu0 0
      %643 = vmatmul.mubr.bf16.gmra.mrb[0].mxu0 %v599
      %v644 = vpop.f32.mrb[0].mxu0
      %v645 = vadd.f32 0.0, %v644
      %v646 = vpop.f32.mrb[0].mxu0
      %v647 = vpop.f32.mrb[0].mxu0
      %v648 = vadd.f32 0.0, %v647
      %v649 = vpop.f32.mrb[0].mxu0
      %650 = vmatprep.mubr.bf16.mxu0 0
      %651 = vmatmul.mubr.bf16.gmra.mrb[0].mxu0 %v602
      %v652 = vpop.f32.mrb[0].mxu0
      %v653 = vadd.f32 0.0, %v652
      %v654 = vpop.f32.mrb[0].mxu0
      %v655 = vpop.f32.mrb[0].mxu0
      %v656 = vadd.f32 0.0, %v655
      %v657 = vpop.f32.mrb[0].mxu0
      %658 = vmatprep.mubr.bf16.mxu0 0
      %659 = vmatmul.mubr.bf16.gmra.mrb[0].mxu0 %v605
      %v660 = vpop.f32.mrb[0].mxu0
      %v661 = vadd.f32 0.0, %v660
      %v662 = vpop.f32.mrb[0].mxu0
      %v663 = vpop.f32.mrb[0].mxu0
      %v664 = vadd.f32 0.0, %v663
      %v665 = vpop.f32.mrb[0].mxu0
      %666 = vmatprep.mubr.bf16.mxu0 0
      %667 = vmatmul.mubr.bf16.gmra.mrb[0].mxu0 %v608
      %v668 = vpop.f32.mrb[0].mxu0
      %v669 = vadd.f32 0.0, %v668
      %v670 = vpop.f32.mrb[0].mxu0
      %v671 = vpop.f32.mrb[0].mxu0
      %v672 = vadd.f32 0.0, %v671
      %v673 = vpop.f32.mrb[0].mxu0
      %674 = vdwg.mxu0
      %v675 = vadd.f32 %v504, %v645
      %v676 = vadd.f32 %v507, %v648
      %v677 = vadd.f32 %v512, %v653
      %v678 = vadd.f32 %v515, %v656
      %v679 = vadd.f32 %v520, %v661
      %v680 = vadd.f32 %v523, %v664
      %v681 = vadd.f32 %v528, %v669
      %v682 = vadd.f32 %v531, %v672
      %s683 = scalar_lea.vmem %s1, 48
      %v684 = vld [vmem:[%s683] sm:$0xf]
      %v685 = vld [vmem:[%s683 + $0x4] sm:$0xf]
      %v686 = vld [vmem:[%s683 + $0x8] sm:$0xf]
      %v687 = vld [vmem:[%s683 + $0xc] sm:$0xf]
      %v689 = vunpack.c.l.b16 %v173
      %v690 = vpack.c.b16 %v191, %v189
      %v691 = vpack.c.b16 %v195, %v193
      %v692 = vpack.c.b16 %v199, %v197
      %v693 = vpack.c.b16 %v689, %v201
      %v698 = vunpack.c.l.b16 %v684
      %v699 = vunpack.c.l.b16 %v685
      %v700 = vunpack.c.l.b16 %v686
      %v701 = vunpack.c.l.b16 %v687
      %v702 = vpack.c.b16 %v699, %v698
      %v703 = vpack.c.b16 %v701, %v700
      %v707 = vsel %vm363, %v690, 0
      %v710 = vsel %vm363, %v691, 0
      %v713 = vsel %vm363, %v692, 0
      %v716 = vsel %vm363, %v693, 0
      %718 = vmatprep.subr.bf16.mxu0 0
      %719 = vmatpush1.bf16.msra.mxu0 %v702
      %720 = vmatprep.subr.bf16.mxu0 0
      %721 = vmatpush1.bf16.msra.mxu0 %v703
      %722 = vmatprep.subr.bf16.mxu0 0
      %723 = vmatpush1.bf16.msra.mxu0 0
      %724 = vmatprep.subr.bf16.mxu0 0
      %725 = vmatpush1.bf16.msra.mxu0 0
      %726 = vmatprep.subr.bf16.mxu0 0
      %727 = vmatpush1.bf16.msra.mxu0 0
      %728 = vmatprep.subr.bf16.mxu0 0
      %729 = vmatpush1.bf16.msra.mxu0 0
      %730 = vmatprep.subr.bf16.mxu0 0
      %731 = vmatpush1.bf16.msra.mxu0 0
      %732 = vmatprep.subr.bf16.mxu0 0
      %733 = vmatpush1.bf16.msra.mxu0 0
      %734 = vmatprep.subr.bf16.mxu0 0
      %735 = vmatpush1.bf16.msra.mxu0 0
      %736 = vmatprep.subr.bf16.mxu0 0
      %737 = vmatpush1.bf16.msra.mxu0 0
      %738 = vmatprep.subr.bf16.mxu0 0
      %739 = vmatpush1.bf16.msra.mxu0 0
      %740 = vmatprep.subr.bf16.mxu0 0
      %741 = vmatpush1.bf16.msra.mxu0 0
      %742 = vmatprep.subr.bf16.mxu0 0
      %743 = vmatpush1.bf16.msra.mxu0 0
      %744 = vmatprep.subr.bf16.mxu0 0
      %745 = vmatpush1.bf16.msra.mxu0 0
      %746 = vmatprep.subr.bf16.mxu0 0
      %747 = vmatpush1.bf16.msra.mxu0 0
      %748 = vmatprep.subr.bf16.mxu0 0
      %749 = vmatpush1.bf16.msra.mxu0 0
      %750 = vmatprep.mubr.bf16.mxu0 0
      %751 = vmatmul.mubr.bf16.gmra.mrb[0].mxu0 %v707
      %v752 = vpop.f32.mrb[0].mxu0
      %v753 = vadd.f32 0.0, %v752
      %v754 = vpop.f32.mrb[0].mxu0
      %v755 = vpop.f32.mrb[0].mxu0
      %v756 = vadd.f32 0.0, %v755
      %v757 = vpop.f32.mrb[0].mxu0
      %758 = vmatprep.mubr.bf16.mxu0 0
      %759 = vmatmul.mubr.bf16.gmra.mrb[0].mxu0 %v710
      %v760 = vpop.f32.mrb[0].mxu0
      %v761 = vadd.f32 0.0, %v760
      %v762 = vpop.f32.mrb[0].mxu0
      %v763 = vpop.f32.mrb[0].mxu0
      %v764 = vadd.f32 0.0, %v763
      %v765 = vpop.f32.mrb[0].mxu0
      %766 = vmatprep.mubr.bf16.mxu0 0
      %767 = vmatmul.mubr.bf16.gmra.mrb[0].mxu0 %v713
      %v768 = vpop.f32.mrb[0].mxu0
      %v769 = vadd.f32 0.0, %v768
      %v770 = vpop.f32.mrb[0].mxu0
      %v771 = vpop.f32.mrb[0].mxu0
      %v772 = vadd.f32 0.0, %v771
      %v773 = vpop.f32.mrb[0].mxu0
      %774 = vmatprep.mubr.bf16.mxu0 0
      %775 = vmatmul.mubr.bf16.gmra.mrb[0].mxu0 %v716
      %v776 = vpop.f32.mrb[0].mxu0
      %v777 = vadd.f32 0.0, %v776
      %v778 = vpop.f32.mrb[0].mxu0
      %v779 = vpop.f32.mrb[0].mxu0
      %v780 = vadd.f32 0.0, %v779
      %v781 = vpop.f32.mrb[0].mxu0
      %782 = vdwg.mxu0
      %v783 = vadd.f32 %v675, %v753
      %v784 = vadd.f32 %v676, %v756
      %v785 = vadd.f32 %v677, %v761
      %v786 = vadd.f32 %v678, %v764
      %v787 = vadd.f32 %v679, %v769
      %v788 = vadd.f32 %v680, %v772
      %v789 = vadd.f32 %v681, %v777
      %v790 = vadd.f32 %v682, %v780
      %v791 = vunpack.c.h.b16 %v173
      %v792 = vpack.c.b16 %v689, %v689
      %v793 = vpack.c.b16 %v791, %v791
      %v795 = vshrl.u32 %v792, 16
      %v797 = vrot.slane %v795, 4
      %v798 = vshll.u32 %v792, 16
      %v800 = vrot.slane %v798, 5
      %v801 = vor.u32 %v797, %v800
      %v802 = vrot.slane %v801, 4
      %v804 = vshll.u32 %v793, 16
      %v806 = vrot.slane %v804, 5
      %v807 = vsel %vm221, %v802, %v806
      %s808 = scalar_lea.vmem %s1, 64
      %v809 = vld [vmem:[%s808] sm:$0xf]
      %v810 = vld [vmem:[%s808 + $0x4] sm:$0xf]
      %v811 = vld [vmem:[%s808 + $0x8] sm:$0xf]
      %v812 = vld [vmem:[%s808 + $0xc] sm:$0xf]
      %v813 = vunpack.c.l.b16 %v807
      %v814 = vpack.c.b16 %v341, %v340
      %v815 = vpack.c.b16 %v343, %v342
      %v816 = vpack.c.b16 %v345, %v344
      %v817 = vpack.c.b16 %v813, %v346
      %v822 = vunpack.c.l.b16 %v809
      %v823 = vunpack.c.l.b16 %v810
      %v824 = vunpack.c.l.b16 %v811
      %v825 = vunpack.c.l.b16 %v812
      %v826 = vpack.c.b16 %v823, %v822
      %v827 = vpack.c.b16 %v825, %v824
      %v831 = vsel %vm363, %v814, 0
      %v834 = vsel %vm363, %v815, 0
      %v837 = vsel %vm363, %v816, 0
      %v840 = vsel %vm363, %v817, 0
      %842 = vmatprep.subr.bf16.mxu0 0
      %843 = vmatpush1.bf16.msra.mxu0 %v826
      %844 = vmatprep.subr.bf16.mxu0 0
      %845 = vmatpush1.bf16.msra.mxu0 %v827
      %846 = vmatprep.subr.bf16.mxu0 0
      %847 = vmatpush1.bf16.msra.mxu0 0
      %848 = vmatprep.subr.bf16.mxu0 0
      %849 = vmatpush1.bf16.msra.mxu0 0
      %850 = vmatprep.subr.bf16.mxu0 0
      %851 = vmatpush1.bf16.msra.mxu0 0
      %852 = vmatprep.subr.bf16.mxu0 0
      %853 = vmatpush1.bf16.msra.mxu0 0
      %854 = vmatprep.subr.bf16.mxu0 0
      %855 = vmatpush1.bf16.msra.mxu0 0
      %856 = vmatprep.subr.bf16.mxu0 0
      %857 = vmatpush1.bf16.msra.mxu0 0
      %858 = vmatprep.subr.bf16.mxu0 0
      %859 = vmatpush1.bf16.msra.mxu0 0
      %860 = vmatprep.subr.bf16.mxu0 0
      %861 = vmatpush1.bf16.msra.mxu0 0
      %862 = vmatprep.subr.bf16.mxu0 0
      %863 = vmatpush1.bf16.msra.mxu0 0
      %864 = vmatprep.subr.bf16.mxu0 0
      %865 = vmatpush1.bf16.msra.mxu0 0
      %866 = vmatprep.subr.bf16.mxu0 0
      %867 = vmatpush1.bf16.msra.mxu0 0
      %868 = vmatprep.subr.bf16.mxu0 0
      %869 = vmatpush1.bf16.msra.mxu0 0
      %870 = vmatprep.subr.bf16.mxu0 0
      %871 = vmatpush1.bf16.msra.mxu0 0
      %872 = vmatprep.subr.bf16.mxu0 0
      %873 = vmatpush1.bf16.msra.mxu0 0
      %874 = vmatprep.mubr.bf16.mxu0 0
      %875 = vmatmul.mubr.bf16.gmra.mrb[0].mxu0 %v831
      %v876 = vpop.f32.mrb[0].mxu0
      %v877 = vadd.f32 0.0, %v876
      %v878 = vpop.f32.mrb[0].mxu0
      %v879 = vpop.f32.mrb[0].mxu0
      %v880 = vadd.f32 0.0, %v879
      %v881 = vpop.f32.mrb[0].mxu0
      %882 = vmatprep.mubr.bf16.mxu0 0
      %883 = vmatmul.mubr.bf16.gmra.mrb[0].mxu0 %v834
      %v884 = vpop.f32.mrb[0].mxu0
      %v885 = vadd.f32 0.0, %v884
      %v886 = vpop.f32.mrb[0].mxu0
      %v887 = vpop.f32.mrb[0].mxu0
      %v888 = vadd.f32 0.0, %v887
      %v889 = vpop.f32.mrb[0].mxu0
      %890 = vmatprep.mubr.bf16.mxu0 0
      %891 = vmatmul.mubr.bf16.gmra.mrb[0].mxu0 %v837
      %v892 = vpop.f32.mrb[0].mxu0
      %v893 = vadd.f32 0.0, %v892
      %v894 = vpop.f32.mrb[0].mxu0
      %v895 = vpop.f32.mrb[0].mxu0
      %v896 = vadd.f32 0.0, %v895
      %v897 = vpop.f32.mrb[0].mxu0
      %898 = vmatprep.mubr.bf16.mxu0 0
      %899 = vmatmul.mubr.bf16.gmra.mrb[0].mxu0 %v840
      %v900 = vpop.f32.mrb[0].mxu0
      %v901 = vadd.f32 0.0, %v900
      %v902 = vpop.f32.mrb[0].mxu0
      %v903 = vpop.f32.mrb[0].mxu0
      %v904 = vadd.f32 0.0, %v903
      %v905 = vpop.f32.mrb[0].mxu0
      %906 = vdwg.mxu0
      %v907 = vadd.f32 %v783, %v877
      %v908 = vadd.f32 %v784, %v880
      %v909 = vadd.f32 %v785, %v885
      %v910 = vadd.f32 %v786, %v888
      %v911 = vadd.f32 %v787, %v893
      %v912 = vadd.f32 %v788, %v896
      %v913 = vadd.f32 %v789, %v901
      %v914 = vadd.f32 %v790, %v904
      %v915 = vrot.slane %v792, 5
      %v916 = vrot.slane %v915, 4
      %v917 = vrot.slane %v793, 5
      %v918 = vsel %vm536, %v916, %v917
      %s919 = scalar_lea.vmem %s1, 80
      %v920 = vld [vmem:[%s919] sm:$0xf]
      %v921 = vld [vmem:[%s919 + $0x4] sm:$0xf]
      %v922 = vld [vmem:[%s919 + $0x8] sm:$0xf]
      %v923 = vld [vmem:[%s919 + $0xc] sm:$0xf]
      %v924 = vunpack.c.l.b16 %v918
      %v925 = vpack.c.b16 %v576, %v575
      %v926 = vpack.c.b16 %v578, %v577
      %v927 = vpack.c.b16 %v580, %v579
      %v928 = vpack.c.b16 %v924, %v581
      %v933 = vunpack.c.l.b16 %v920
      %v934 = vunpack.c.l.b16 %v921
      %v935 = vunpack.c.l.b16 %v922
      %v936 = vunpack.c.l.b16 %v923
      %v937 = vpack.c.b16 %v934, %v933
      %v938 = vpack.c.b16 %v936, %v935
      %v942 = vsel %vm363, %v925, 0
      %v945 = vsel %vm363, %v926, 0
      %v948 = vsel %vm363, %v927, 0
      %v951 = vsel %vm363, %v928, 0
      %953 = vmatprep.subr.bf16.mxu0 0
      %954 = vmatpush1.bf16.msra.mxu0 %v937
      %955 = vmatprep.subr.bf16.mxu0 0
      %956 = vmatpush1.bf16.msra.mxu0 %v938
      %957 = vmatprep.subr.bf16.mxu0 0
      %958 = vmatpush1.bf16.msra.mxu0 0
      %959 = vmatprep.subr.bf16.mxu0 0
      %960 = vmatpush1.bf16.msra.mxu0 0
      %961 = vmatprep.subr.bf16.mxu0 0
      %962 = vmatpush1.bf16.msra.mxu0 0
      %963 = vmatprep.subr.bf16.mxu0 0
      %964 = vmatpush1.bf16.msra.mxu0 0
      %965 = vmatprep.subr.bf16.mxu0 0
      %966 = vmatpush1.bf16.msra.mxu0 0
      %967 = vmatprep.subr.bf16.mxu0 0
      %968 = vmatpush1.bf16.msra.mxu0 0
      %969 = vmatprep.subr.bf16.mxu0 0
      %970 = vmatpush1.bf16.msra.mxu0 0
      %971 = vmatprep.subr.bf16.mxu0 0
      %972 = vmatpush1.bf16.msra.mxu0 0
      %973 = vmatprep.subr.bf16.mxu0 0
      %974 = vmatpush1.bf16.msra.mxu0 0
      %975 = vmatprep.subr.bf16.mxu0 0
      %976 = vmatpush1.bf16.msra.mxu0 0
      %977 = vmatprep.subr.bf16.mxu0 0
      %978 = vmatpush1.bf16.msra.mxu0 0
      %979 = vmatprep.subr.bf16.mxu0 0
      %980 = vmatpush1.bf16.msra.mxu0 0
      %981 = vmatprep.subr.bf16.mxu0 0
      %982 = vmatpush1.bf16.msra.mxu0 0
      %983 = vmatprep.subr.bf16.mxu0 0
      %984 = vmatpush1.bf16.msra.mxu0 0
      %985 = vmatprep.mubr.bf16.mxu0 0
      %986 = vmatmul.mubr.bf16.gmra.mrb[0].mxu0 %v942
      %v987 = vpop.f32.mrb[0].mxu0
      %v988 = vadd.f32 0.0, %v987
      %v989 = vpop.f32.mrb[0].mxu0
      %v990 = vpop.f32.mrb[0].mxu0
      %v991 = vadd.f32 0.0, %v990
      %v992 = vpop.f32.mrb[0].mxu0
      %993 = vmatprep.mubr.bf16.mxu0 0
      %994 = vmatmul.mubr.bf16.gmra.mrb[0].mxu0 %v945
      %v995 = vpop.f32.mrb[0].mxu0
      %v996 = vadd.f32 0.0, %v995
      %v997 = vpop.f32.mrb[0].mxu0
      %v998 = vpop.f32.mrb[0].mxu0
      %v999 = vadd.f32 0.0, %v998
      %v1000 = vpop.f32.mrb[0].mxu0
      %1001 = vmatprep.mubr.bf16.mxu0 0
      %1002 = vmatmul.mubr.bf16.gmra.mrb[0].mxu0 %v948
      %v1003 = vpop.f32.mrb[0].mxu0
      %v1004 = vadd.f32 0.0, %v1003
      %v1005 = vpop.f32.mrb[0].mxu0
      %v1006 = vpop.f32.mrb[0].mxu0
      %v1007 = vadd.f32 0.0, %v1006
      %v1008 = vpop.f32.mrb[0].mxu0
      %1009 = vmatprep.mubr.bf16.mxu0 0
      %1010 = vmatmul.mubr.bf16.gmra.mrb[0].mxu0 %v951
      %v1011 = vpop.f32.mrb[0].mxu0
      %v1012 = vadd.f32 0.0, %v1011
      %v1013 = vpop.f32.mrb[0].mxu0
      %v1014 = vpop.f32.mrb[0].mxu0
      %v1015 = vadd.f32 0.0, %v1014
      %v1016 = vpop.f32.mrb[0].mxu0
      %1017 = vdwg.mxu0
      %v1018 = vadd.f32 %v907, %v988
      %v1019 = vadd.f32 %v908, %v991
      %v1020 = vadd.f32 %v909, %v996
      %v1021 = vadd.f32 %v910, %v999
      %v1022 = vadd.f32 %v911, %v1004
      %v1023 = vadd.f32 %v912, %v1007
      %v1024 = vadd.f32 %v913, %v1012
      %v1025 = vadd.f32 %v914, %v1015
      %s1026 = scalar_lea.vmem %s1, 96
      %v1027 = vld [vmem:[%s1026] sm:$0xf]
      %v1028 = vld [vmem:[%s1026 + $0x4] sm:$0xf]
      %v1029 = vld [vmem:[%s1026 + $0x8] sm:$0xf]
      %v1030 = vld [vmem:[%s1026 + $0xc] sm:$0xf]
      %v1032 = vunpack.c.l.b16 %v174
      %v1033 = vpack.c.b16 %v1032, %v689
      %v1038 = vunpack.c.l.b16 %v1027
      %v1039 = vunpack.c.l.b16 %v1028
      %v1040 = vunpack.c.l.b16 %v1029
      %v1041 = vunpack.c.l.b16 %v1030
      %v1042 = vpack.c.b16 %v1039, %v1038
      %v1043 = vpack.c.b16 %v1041, %v1040
      %v1047 = vsel %vm363, %v1033, 0
      %1049 = vmatprep.subr.bf16.mxu0 0
      %1050 = vmatpush1.bf16.msra.mxu0 %v1042
      %1051 = vmatprep.subr.bf16.mxu0 0
      %1052 = vmatpush1.bf16.msra.mxu0 %v1043
      %1053 = vmatprep.subr.bf16.mxu0 0
      %1054 = vmatpush1.bf16.msra.mxu0 0
      %1055 = vmatprep.subr.bf16.mxu0 0
      %1056 = vmatpush1.bf16.msra.mxu0 0
      %1057 = vmatprep.subr.bf16.mxu0 0
      %1058 = vmatpush1.bf16.msra.mxu0 0
      %1059 = vmatprep.subr.bf16.mxu0 0
      %1060 = vmatpush1.bf16.msra.mxu0 0
      %1061 = vmatprep.subr.bf16.mxu0 0
      %1062 = vmatpush1.bf16.msra.mxu0 0
      %1063 = vmatprep.subr.bf16.mxu0 0
      %1064 = vmatpush1.bf16.msra.mxu0 0
      %1065 = vmatprep.subr.bf16.mxu0 0
      %1066 = vmatpush1.bf16.msra.mxu0 0
      %1067 = vmatprep.subr.bf16.mxu0 0
      %1068 = vmatpush1.bf16.msra.mxu0 0
      %1069 = vmatprep.subr.bf16.mxu0 0
      %1070 = vmatpush1.bf16.msra.mxu0 0
      %1071 = vmatprep.subr.bf16.mxu0 0
      %1072 = vmatpush1.bf16.msra.mxu0 0
      %1073 = vmatprep.subr.bf16.mxu0 0
      %1074 = vmatpush1.bf16.msra.mxu0 0
      %1075 = vmatprep.subr.bf16.mxu0 0
      %1076 = vmatpush1.bf16.msra.mxu0 0
      %1077 = vmatprep.subr.bf16.mxu0 0
      %1078 = vmatpush1.bf16.msra.mxu0 0
      %1079 = vmatprep.subr.bf16.mxu0 0
      %1080 = vmatpush1.bf16.msra.mxu0 0
      %1081 = vmatprep.mubr.bf16.mxu0 0
      %1082 = vmatmul.mubr.bf16.gmra.mrb[0].mxu0 %v461
      %v1083 = vpop.f32.mrb[0].mxu0
      %v1084 = vadd.f32 0.0, %v1083
      %v1085 = vpop.f32.mrb[0].mxu0
      %v1086 = vpop.f32.mrb[0].mxu0
      %v1087 = vadd.f32 0.0, %v1086
      %v1088 = vpop.f32.mrb[0].mxu0
      %1089 = vmatprep.mubr.bf16.mxu0 0
      %1090 = vmatmul.mubr.bf16.gmra.mrb[0].mxu0 %v464
      %v1091 = vpop.f32.mrb[0].mxu0
      %v1092 = vadd.f32 0.0, %v1091
      %v1093 = vpop.f32.mrb[0].mxu0
      %v1094 = vpop.f32.mrb[0].mxu0
      %v1095 = vadd.f32 0.0, %v1094
      %v1096 = vpop.f32.mrb[0].mxu0
      %1097 = vmatprep.mubr.bf16.mxu0 0
      %1098 = vmatmul.mubr.bf16.gmra.mrb[0].mxu0 %v467
      %v1099 = vpop.f32.mrb[0].mxu0
      %v1100 = vadd.f32 0.0, %v1099
      %v1101 = vpop.f32.mrb[0].mxu0
      %v1102 = vpop.f32.mrb[0].mxu0
      %v1103 = vadd.f32 0.0, %v1102
      %v1104 = vpop.f32.mrb[0].mxu0
      %1105 = vmatprep.mubr.bf16.mxu0 0
      %1106 = vmatmul.mubr.bf16.gmra.mrb[0].mxu0 %v1047
      %v1107 = vpop.f32.mrb[0].mxu0
      %v1108 = vadd.f32 0.0, %v1107
      %v1109 = vpop.f32.mrb[0].mxu0
      %v1110 = vpop.f32.mrb[0].mxu0
      %v1111 = vadd.f32 0.0, %v1110
      %v1112 = vpop.f32.mrb[0].mxu0
      %1113 = vdwg.mxu0
      %v1114 = vadd.f32 %v1018, %v1084
      %v1115 = vadd.f32 %v1019, %v1087
      %v1116 = vadd.f32 %v1020, %v1092
      %v1117 = vadd.f32 %v1021, %v1095
      %v1118 = vadd.f32 %v1022, %v1100
      %v1119 = vadd.f32 %v1023, %v1103
      %v1120 = vadd.f32 %v1024, %v1108
      %v1121 = vadd.f32 %v1025, %v1111
      %v1122 = vunpack.c.h.b16 %v174
      %v1123 = vpack.c.b16 %v1032, %v1032
      %v1124 = vpack.c.b16 %v1122, %v1122
      %v1126 = vshrl.u32 %v1123, 16
      %v1128 = vrot.slane %v1126, 4
      %v1129 = vshll.u32 %v1123, 16
      %v1131 = vrot.slane %v1129, 5
      %v1132 = vor.u32 %v1128, %v1131
      %v1133 = vrot.slane %v1132, 4
      %v1135 = vshll.u32 %v1124, 16
      %v1137 = vrot.slane %v1135, 5
      %v1138 = vsel %vm221, %v1133, %v1137
      %s1139 = scalar_lea.vmem %s1, 112
      %v1140 = vld [vmem:[%s1139] sm:$0xf]
      %v1141 = vld [vmem:[%s1139 + $0x4] sm:$0xf]
      %v1142 = vld [vmem:[%s1139 + $0x8] sm:$0xf]
      %v1143 = vld [vmem:[%s1139 + $0xc] sm:$0xf]
      %v1144 = vunpack.c.l.b16 %v1138
      %v1145 = vpack.c.b16 %v1144, %v813
      %v1150 = vunpack.c.l.b16 %v1140
      %v1151 = vunpack.c.l.b16 %v1141
      %v1152 = vunpack.c.l.b16 %v1142
      %v1153 = vunpack.c.l.b16 %v1143
      %v1154 = vpack.c.b16 %v1151, %v1150
      %v1155 = vpack.c.b16 %v1153, %v1152
      %v1159 = vsel %vm363, %v1145, 0
      %1161 = vmatprep.subr.bf16.mxu0 0
      %1162 = vmatpush1.bf16.msra.mxu0 %v1154
      %1163 = vmatprep.subr.bf16.mxu0 0
      %1164 = vmatpush1.bf16.msra.mxu0 %v1155
      %1165 = vmatprep.subr.bf16.mxu0 0
      %1166 = vmatpush1.bf16.msra.mxu0 0
      %1167 = vmatprep.subr.bf16.mxu0 0
      %1168 = vmatpush1.bf16.msra.mxu0 0
      %1169 = vmatprep.subr.bf16.mxu0 0
      %1170 = vmatpush1.bf16.msra.mxu0 0
      %1171 = vmatprep.subr.bf16.mxu0 0
      %1172 = vmatpush1.bf16.msra.mxu0 0
      %1173 = vmatprep.subr.bf16.mxu0 0
      %1174 = vmatpush1.bf16.msra.mxu0 0
      %1175 = vmatprep.subr.bf16.mxu0 0
      %1176 = vmatpush1.bf16.msra.mxu0 0
      %1177 = vmatprep.subr.bf16.mxu0 0
      %1178 = vmatpush1.bf16.msra.mxu0 0
      %1179 = vmatprep.subr.bf16.mxu0 0
      %1180 = vmatpush1.bf16.msra.mxu0 0
      %1181 = vmatprep.subr.bf16.mxu0 0
      %1182 = vmatpush1.bf16.msra.mxu0 0
      %1183 = vmatprep.subr.bf16.mxu0 0
      %1184 = vmatpush1.bf16.msra.mxu0 0
      %1185 = vmatprep.subr.bf16.mxu0 0
      %1186 = vmatpush1.bf16.msra.mxu0 0
      %1187 = vmatprep.subr.bf16.mxu0 0
      %1188 = vmatpush1.bf16.msra.mxu0 0
      %1189 = vmatprep.subr.bf16.mxu0 0
      %1190 = vmatpush1.bf16.msra.mxu0 0
      %1191 = vmatprep.subr.bf16.mxu0 0
      %1192 = vmatpush1.bf16.msra.mxu0 0
      %1193 = vmatprep.mubr.bf16.mxu0 0
      %1194 = vmatmul.mubr.bf16.gmra.mrb[0].mxu0 %v368
      %v1195 = vpop.f32.mrb[0].mxu0
      %v1196 = vadd.f32 0.0, %v1195
      %v1197 = vpop.f32.mrb[0].mxu0
      %v1198 = vpop.f32.mrb[0].mxu0
      %v1199 = vadd.f32 0.0, %v1198
      %v1200 = vpop.f32.mrb[0].mxu0
      %1201 = vmatprep.mubr.bf16.mxu0 0
      %1202 = vmatmul.mubr.bf16.gmra.mrb[0].mxu0 %v371
      %v1203 = vpop.f32.mrb[0].mxu0
      %v1204 = vadd.f32 0.0, %v1203
      %v1205 = vpop.f32.mrb[0].mxu0
      %v1206 = vpop.f32.mrb[0].mxu0
      %v1207 = vadd.f32 0.0, %v1206
      %v1208 = vpop.f32.mrb[0].mxu0
      %1209 = vmatprep.mubr.bf16.mxu0 0
      %1210 = vmatmul.mubr.bf16.gmra.mrb[0].mxu0 %v374
      %v1211 = vpop.f32.mrb[0].mxu0
      %v1212 = vadd.f32 0.0, %v1211
      %v1213 = vpop.f32.mrb[0].mxu0
      %v1214 = vpop.f32.mrb[0].mxu0
      %v1215 = vadd.f32 0.0, %v1214
      %v1216 = vpop.f32.mrb[0].mxu0
      %1217 = vmatprep.mubr.bf16.mxu0 0
      %1218 = vmatmul.mubr.bf16.gmra.mrb[0].mxu0 %v1159
      %v1219 = vpop.f32.mrb[0].mxu0
      %v1220 = vadd.f32 0.0, %v1219
      %v1221 = vpop.f32.mrb[0].mxu0
      %v1222 = vpop.f32.mrb[0].mxu0
      %v1223 = vadd.f32 0.0, %v1222
      %v1224 = vpop.f32.mrb[0].mxu0
      %1225 = vdwg.mxu0
      %v1226 = vadd.f32 %v1114, %v1196
      %v1227 = vadd.f32 %v1115, %v1199
      %v1228 = vadd.f32 %v1116, %v1204
      %v1229 = vadd.f32 %v1117, %v1207
      %v1230 = vadd.f32 %v1118, %v1212
      %v1231 = vadd.f32 %v1119, %v1215
      %v1232 = vadd.f32 %v1120, %v1220
      %v1233 = vadd.f32 %v1121, %v1223
      %v1234 = vrot.slane %v1123, 5
      %v1235 = vrot.slane %v1234, 4
      %v1236 = vrot.slane %v1124, 5
      %v1237 = vsel %vm536, %v1235, %v1236
      %s1238 = scalar_lea.vmem %s1, 128
      %v1239 = vld [vmem:[%s1238] sm:$0xf]
      %v1240 = vld [vmem:[%s1238 + $0x4] sm:$0xf]
      %v1241 = vld [vmem:[%s1238 + $0x8] sm:$0xf]
      %v1242 = vld [vmem:[%s1238 + $0xc] sm:$0xf]
      %v1243 = vunpack.c.l.b16 %v1237
      %v1244 = vpack.c.b16 %v1243, %v924
      %v1249 = vunpack.c.l.b16 %v1239
      %v1250 = vunpack.c.l.b16 %v1240
      %v1251 = vunpack.c.l.b16 %v1241
      %v1252 = vunpack.c.l.b16 %v1242
      %v1253 = vpack.c.b16 %v1250, %v1249
      %v1254 = vpack.c.b16 %v1252, %v1251
      %v1258 = vsel %vm363, %v1244, 0
      %1260 = vmatprep.subr.bf16.mxu0 0
      %1261 = vmatpush1.bf16.msra.mxu0 %v1253
      %1262 = vmatprep.subr.bf16.mxu0 0
      %1263 = vmatpush1.bf16.msra.mxu0 %v1254
      %1264 = vmatprep.subr.bf16.mxu0 0
      %1265 = vmatpush1.bf16.msra.mxu0 0
      %1266 = vmatprep.subr.bf16.mxu0 0
      %1267 = vmatpush1.bf16.msra.mxu0 0
      %1268 = vmatprep.subr.bf16.mxu0 0
      %1269 = vmatpush1.bf16.msra.mxu0 0
      %1270 = vmatprep.subr.bf16.mxu0 0
      %1271 = vmatpush1.bf16.msra.mxu0 0
      %1272 = vmatprep.subr.bf16.mxu0 0
      %1273 = vmatpush1.bf16.msra.mxu0 0
      %1274 = vmatprep.subr.bf16.mxu0 0
      %1275 = vmatpush1.bf16.msra.mxu0 0
      %1276 = vmatprep.subr.bf16.mxu0 0
      %1277 = vmatpush1.bf16.msra.mxu0 0
      %1278 = vmatprep.subr.bf16.mxu0 0
      %1279 = vmatpush1.bf16.msra.mxu0 0
      %1280 = vmatprep.subr.bf16.mxu0 0
      %1281 = vmatpush1.bf16.msra.mxu0 0
      %1282 = vmatprep.subr.bf16.mxu0 0
      %1283 = vmatpush1.bf16.msra.mxu0 0
      %1284 = vmatprep.subr.bf16.mxu0 0
      %1285 = vmatpush1.bf16.msra.mxu0 0
      %1286 = vmatprep.subr.bf16.mxu0 0
      %1287 = vmatpush1.bf16.msra.mxu0 0
      %1288 = vmatprep.subr.bf16.mxu0 0
      %1289 = vmatpush1.bf16.msra.mxu0 0
      %1290 = vmatprep.subr.bf16.mxu0 0
      %1291 = vmatpush1.bf16.msra.mxu0 0
      %1292 = vmatprep.mubr.bf16.mxu0 0
      %1293 = vmatmul.mubr.bf16.gmra.mrb[0].mxu0 %v602
      %v1294 = vpop.f32.mrb[0].mxu0
      %v1295 = vadd.f32 0.0, %v1294
      %v1296 = vpop.f32.mrb[0].mxu0
      %v1297 = vpop.f32.mrb[0].mxu0
      %v1298 = vadd.f32 0.0, %v1297
      %v1299 = vpop.f32.mrb[0].mxu0
      %1300 = vmatprep.mubr.bf16.mxu0 0
      %1301 = vmatmul.mubr.bf16.gmra.mrb[0].mxu0 %v605
      %v1302 = vpop.f32.mrb[0].mxu0
      %v1303 = vadd.f32 0.0, %v1302
      %v1304 = vpop.f32.mrb[0].mxu0
      %v1305 = vpop.f32.mrb[0].mxu0
      %v1306 = vadd.f32 0.0, %v1305
      %v1307 = vpop.f32.mrb[0].mxu0
      %1308 = vmatprep.mubr.bf16.mxu0 0
      %1309 = vmatmul.mubr.bf16.gmra.mrb[0].mxu0 %v608
      %v1310 = vpop.f32.mrb[0].mxu0
      %v1311 = vadd.f32 0.0, %v1310
      %v1312 = vpop.f32.mrb[0].mxu0
      %v1313 = vpop.f32.mrb[0].mxu0
      %v1314 = vadd.f32 0.0, %v1313
      %v1315 = vpop.f32.mrb[0].mxu0
      %1316 = vmatprep.mubr.bf16.mxu0 0
      %1317 = vmatmul.mubr.bf16.gmra.mrb[0].mxu0 %v1258
      %v1318 = vpop.f32.mrb[0].mxu0
      %v1319 = vadd.f32 0.0, %v1318
      %v1320 = vpop.f32.mrb[0].mxu0
      %v1321 = vpop.f32.mrb[0].mxu0
      %v1322 = vadd.f32 0.0, %v1321
      %v1323 = vpop.f32.mrb[0].mxu0
      %1324 = vdwg.mxu0
      %v1325 = vadd.f32 %v1226, %v1295
      %v1326 = vadd.f32 %v1227, %v1298
      %v1327 = vadd.f32 %v1228, %v1303
      %v1328 = vadd.f32 %v1229, %v1306
      %v1329 = vadd.f32 %v1230, %v1311
      %v1330 = vadd.f32 %v1231, %v1314
      %v1331 = vadd.f32 %v1232, %v1319
      %v1332 = vadd.f32 %v1233, %v1322
      %1333 = vst [vmem:[%s143] sm:$0xff] %v1325
      %1334 = vst [vmem:[%s143 + $0x8] sm:$0xff] %v1326
      %1335 = vst [vmem:[%s143 + $0x10] sm:$0xff] %v1327
      %1336 = vst [vmem:[%s143 + $0x18] sm:$0xff] %v1328
      %1337 = vst [vmem:[%s143 + $0x20] sm:$0xff] %v1329
      %1338 = vst [vmem:[%s143 + $0x28] sm:$0xff] %v1330
      %1339 = vst [vmem:[%s143 + $0x30] sm:$0xff] %v1331
      %1340 = vst [vmem:[%s143 + $0x38] sm:$0xff] %v1332
      %p1341 = scmp.lt.s32.totalorder %s13, 1
      %s1342 = scalar_select %p1341, %s13, 1
      %s1343 = smul.addr %s1342, 8
      %s1344 = smul.addr %s1343, 8
      %s1345 = scalar_lea.vmem %s2, %s1344
      // Predicated region
      $region29: #{latent_diffusion_transformer_forward.5} parent=27 // pred_check
        %p1346 = pneg %p78
      $region30: #{latent_diffusion_transformer_forward.5} parent=27 // pred_check_branch
        %1348 = sbr.rel (%p1346) target = $region32
      $region31: #{latent_diffusion_transformer_forward.5} parent=27 // pred_region
        _
      $region32: #{latent_diffusion_transformer_forward.5} parent=27 // pred_fallthru
        _
    $region28: #{latent_diffusion_transformer_forward.5} parent=5 // pred_fallthru
      _
    %p1349 = scmp.le.s32.totalorder 2, %s8
    // Predicated region
    $region33: #{latent_diffusion_transformer_forward.5} parent=5 // pred_check
      %p1350 = pneg %p1349
    $region34: #{latent_diffusion_transformer_forward.5} parent=5 // pred_check_branch
      %1352 = sbr.rel (%p1350) target = $region36
    $region35: #{latent_diffusion_transformer_forward.5} parent=5 // pred_region
      %s1353 = ssub.s32 %s8, 2
      // Predicated region
      $region37: #{latent_diffusion_transformer_forward.5} parent=35 // pred_check
        %p1354 = pneg %p84
      $region38: #{latent_diffusion_transformer_forward.5} parent=35 // pred_check_branch
        %1356 = sbr.rel (%p1354) target = $region40
      $region39: #{latent_diffusion_transformer_forward.5} parent=35 // pred_region
        %p1357 = scmp.lt.s32.totalorder %s14, 1
        %s1358 = scalar_select %p1357, %s14, 1
        %s1359 = smul.addr %s1358, 8
        %s1360 = smul.addr %s1359, 8
        %s1361 = scalar_lea.vmem %s2, %s1360
      $region40: #{latent_diffusion_transformer_forward.5} parent=35 // pred_fallthru
        _
    $region36: #{latent_diffusion_transformer_forward.5} parent=5 // pred_fallthru
      _
  $region6: #{latent_diffusion_transformer_forward.5} parent=0 // loop_footer
    %s12 = sadd.s32 1, %s8
  $region7: #{latent_diffusion_transformer_forward.5} parent=0 // loop_footer_branch
    %7 = sbr.rel target = $region3
  $region8: #{latent_diffusion_transformer_forward.5} parent=0 // loop_exit
    _

// kernel: latent_diffusion_transformer_forward.4
$region0: #{latent_diffusion_transformer_forward.4}
  #allocation0 [shape = 'u32[]', space=smem, size = 0x4, offset = 0x4, fixed_abs, tag = 'smem constant byte address 0x4 - core index']
  #allocation1 [shape = 'u32[144,128]{1,0:T(1,128)}', space=vmem, size = 0x12000, scoped, tag = 'internal scratch']
  %s0 = inlined_call_operand.vmem [shape: f32[2,128,32], index: 0, kind: input, shape index: {}]
  %s1 = inlined_call_operand.vmem [shape: f32[2,1,32], index: 1, kind: input, shape index: {}]
  %s2 = inlined_call_operand.vmem [shape: bf16[2,32,96], index: 2, kind: input, shape index: {}]
  %s3 = inlined_call_operand.vmem [shape: bf16[2,32,32], index: 3, kind: input, shape index: {}]
  %s4 = inlined_call_operand.vmem [shape: f32[2,1,32], index: 4, kind: input, shape index: {}]
  %s5 = inlined_call_operand.vmem [shape: bf16[2,32,128], index: 5, kind: input, shape index: {}]
  %s6 = inlined_call_operand.vmem [shape: bf16[2,128,32], index: 6, kind: input, shape index: {}]
  %s7 = inlined_call_operand.vmem [shape: f32[1,32], index: 7, kind: input, shape index: {}]
  %s8 = inlined_call_operand.vmem [shape: f32[2,128,32], index: 8, kind: output, shape index: {}]
  %s9 = sld [smem:[#allocation0]]
  $region73: #{latent_diffusion_transformer_forward.4} parent=0
    _
  %s11 = ssub.s32 1, %s9
  %s12 = scalar_select 0, %s11, %s9
  loop: start=0, step=1, limit=4
  $region2: #{latent_diffusion_transformer_forward.4} parent=0 // loop_pre_header
    _
  $region3: #{latent_diffusion_transformer_forward.4} parent=0 // loop_header
    %s14 = sphi 0, %s18
    %p15 = scmp.ge.s32.totalorder %s14, 4
    %s22 = sphi 0, %s22
    %s24 = sphi 0, %s22
    %s25 = sphi 0, %s24
    %s39 = sphi 0, %s25
    %s45 = sphi 0, %s47
    %s48 = sphi 0, %s45
    %s49 = sphi 0, %s48
    %s65 = sphi 0, %s49
    %s71 = sphi 0, %s73
    %s74 = sphi 0, %s71
    %s75 = sphi 0, %s74
    %s91 = sphi 0, %s75
    %s97 = sphi 0, %s99
    %s100 = sphi 0, %s97
    %s101 = sphi 0, %s100
    %s117 = sphi 0, %s101
    %s123 = sphi 0, %s125
    %s126 = sphi 0, %s123
    %s127 = sphi 0, %s126
    %s143 = sphi 0, %s127
    %s149 = sphi 0, %s151
    %s152 = sphi 0, %s149
    %s153 = sphi 0, %s152
    %s169 = sphi 0, %s153
    %s175 = sphi 0, %s177
    %s178 = sphi 0, %s175
    %s179 = sphi 0, %s178
    %s195 = sphi 0, %s179
    %s199 = sphi 0, %s199
    %s201 = sphi 0, %s199
    %s202 = sphi 0, %s201
    %s216 = sphi 0, %s202
    %s220 = sphi 0, %s220
    %s222 = sphi 0, %s220
    %s223 = sphi 0, %s222
    %s237 = sphi 0, %s223
  $region4: #{latent_diffusion_transformer_forward.4} parent=0 // loop_header_branch
    %17 = sbr.rel (%p15) target = $region8
  $region5: #{latent_diffusion_transformer_forward.4} parent=0 // loop_body
    %s19 = ssub.s32 %s14, 1
    %s20 = ssub.s32 %s14, 2
    %s21 = sadd.s32 %s14, 1
    %s23 = sadd.s32 %s22, 1
    %p26 = scmp.eq.s32.totalorder %s14, 1
    %p27 = scmp.ne.s32.totalorder %s22, %s24
    %p28 = scmp.eq.s32.totalorder %s14, 0
    %p29 = por %p27, %p28
    %p30 = scmp.ne.s32.totalorder %s22, %s24
    %p31 = scmp.eq.s32.totalorder %s19, 1
    %p32 = por %p30, %p31
    %p33 = scmp.ne.s32.totalorder %s24, %s25
    %p34 = scmp.eq.s32.totalorder %s19, 0
    %p35 = por %p33, %p34
    %p36 = scmp.ne.s32.totalorder %s24, %s25
    %p37 = scmp.eq.s32.totalorder %s20, 1
    %p38 = por %p36, %p37
    %p40 = scmp.ne.s32.totalorder %s25, %s39
    %p41 = scmp.eq.s32.totalorder %s20, 0
    %p42 = por %p40, %p41
    %s43 = ssub.s32 %s14, %s21
    %p44 = scmp.eq.s32.totalorder %s43, 0
    %s46 = sadd.s32 %s45, 1
    %s47 = scalar_select %p44, %s45, %s46
    %p50 = pneg %p44
    %p51 = scmp.eq.s32.totalorder %s14, 1
    %p52 = por %p50, %p51
    %p53 = scmp.ne.s32.totalorder %s45, %s48
    %p54 = scmp.eq.s32.totalorder %s14, 0
    %p55 = por %p53, %p54
    %p56 = scmp.ne.s32.totalorder %s45, %s48
    %p57 = scmp.eq.s32.totalorder %s19, 1
    %p58 = por %p56, %p57
    %p59 = scmp.ne.s32.totalorder %s48, %s49
    %p60 = scmp.eq.s32.totalorder %s19, 0
    %p61 = por %p59, %p60
    %p62 = scmp.ne.s32.totalorder %s48, %s49
    %p63 = scmp.eq.s32.totalorder %s20, 1
    %p64 = por %p62, %p63
    %p66 = scmp.ne.s32.totalorder %s49, %s65
    %p67 = scmp.eq.s32.totalorder %s20, 0
    %p68 = por %p66, %p67
    %s69 = ssub.s32 %s14, %s21
    %p70 = scmp.eq.s32.totalorder %s69, 0
    %s72 = sadd.s32 %s71, 1
    %s73 = scalar_select %p70, %s71, %s72
    %p76 = pneg %p70
    %p77 = scmp.eq.s32.totalorder %s14, 1
    %p78 = por %p76, %p77
    %p79 = scmp.ne.s32.totalorder %s71, %s74
    %p80 = scmp.eq.s32.totalorder %s14, 0
    %p81 = por %p79, %p80
    %p82 = scmp.ne.s32.totalorder %s71, %s74
    %p83 = scmp.eq.s32.totalorder %s19, 1
    %p84 = por %p82, %p83
    %p85 = scmp.ne.s32.totalorder %s74, %s75
    %p86 = scmp.eq.s32.totalorder %s19, 0
    %p87 = por %p85, %p86
    %p88 = scmp.ne.s32.totalorder %s74, %s75
    %p89 = scmp.eq.s32.totalorder %s20, 1
    %p90 = por %p88, %p89
    %p92 = scmp.ne.s32.totalorder %s75, %s91
    %p93 = scmp.eq.s32.totalorder %s20, 0
    %p94 = por %p92, %p93
    %s95 = ssub.s32 %s14, %s21
    %p96 = scmp.eq.s32.totalorder %s95, 0
    %s98 = sadd.s32 %s97, 1
    %s99 = scalar_select %p96, %s97, %s98
    %p102 = pneg %p96
    %p103 = scmp.eq.s32.totalorder %s14, 1
    %p104 = por %p102, %p103
    %p105 = scmp.ne.s32.totalorder %s97, %s100
    %p106 = scmp.eq.s32.totalorder %s14, 0
    %p107 = por %p105, %p106
    %p108 = scmp.ne.s32.totalorder %s97, %s100
    %p109 = scmp.eq.s32.totalorder %s19, 1
    %p110 = por %p108, %p109
    %p111 = scmp.ne.s32.totalorder %s100, %s101
    %p112 = scmp.eq.s32.totalorder %s19, 0
    %p113 = por %p111, %p112
    %p114 = scmp.ne.s32.totalorder %s100, %s101
    %p115 = scmp.eq.s32.totalorder %s20, 1
    %p116 = por %p114, %p115
    %p118 = scmp.ne.s32.totalorder %s101, %s117
    %p119 = scmp.eq.s32.totalorder %s20, 0
    %p120 = por %p118, %p119
    %s121 = ssub.s32 %s14, %s21
    %p122 = scmp.eq.s32.totalorder %s121, 0
    %s124 = sadd.s32 %s123, 1
    %s125 = scalar_select %p122, %s123, %s124
    %p128 = pneg %p122
    %p129 = scmp.eq.s32.totalorder %s14, 1
    %p130 = por %p128, %p129
    %p131 = scmp.ne.s32.totalorder %s123, %s126
    %p132 = scmp.eq.s32.totalorder %s14, 0
    %p133 = por %p131, %p132
    %p134 = scmp.ne.s32.totalorder %s123, %s126
    %p135 = scmp.eq.s32.totalorder %s19, 1
    %p136 = por %p134, %p135
    %p137 = scmp.ne.s32.totalorder %s126, %s127
    %p138 = scmp.eq.s32.totalorder %s19, 0
    %p139 = por %p137, %p138
    %p140 = scmp.ne.s32.totalorder %s126, %s127
    %p141 = scmp.eq.s32.totalorder %s20, 1
    %p142 = por %p140, %p141
    %p144 = scmp.ne.s32.totalorder %s127, %s143
    %p145 = scmp.eq.s32.totalorder %s20, 0
    %p146 = por %p144, %p145
    %s147 = ssub.s32 %s14, %s21
    %p148 = scmp.eq.s32.totalorder %s147, 0
    %s150 = sadd.s32 %s149, 1
    %s151 = scalar_select %p148, %s149, %s150
    %p154 = pneg %p148
    %p155 = scmp.eq.s32.totalorder %s14, 1
    %p156 = por %p154, %p155
    %p157 = scmp.ne.s32.totalorder %s149, %s152
    %p158 = scmp.eq.s32.totalorder %s14, 0
    %p159 = por %p157, %p158
    %p160 = scmp.ne.s32.totalorder %s149, %s152
    %p161 = scmp.eq.s32.totalorder %s19, 1
    %p162 = por %p160, %p161
    %p163 = scmp.ne.s32.totalorder %s152, %s153
    %p164 = scmp.eq.s32.totalorder %s19, 0
    %p165 = por %p163, %p164
    %p166 = scmp.ne.s32.totalorder %s152, %s153
    %p167 = scmp.eq.s32.totalorder %s20, 1
    %p168 = por %p166, %p167
    %p170 = scmp.ne.s32.totalorder %s153, %s169
    %p171 = scmp.eq.s32.totalorder %s20, 0
    %p172 = por %p170, %p171
    %s173 = ssub.s32 %s14, %s21
    %p174 = scmp.eq.s32.totalorder %s173, 0
    %s176 = sadd.s32 %s175, 1
    %s177 = scalar_select %p174, %s175, %s176
    %p180 = pneg %p174
    %p181 = scmp.eq.s32.totalorder %s14, 1
    %p182 = por %p180, %p181
    %p183 = scmp.ne.s32.totalorder %s175, %s178
    %p184 = scmp.eq.s32.totalorder %s14, 0
    %p185 = por %p183, %p184
    %p186 = scmp.ne.s32.totalorder %s175, %s178
    %p187 = scmp.eq.s32.totalorder %s19, 1
    %p188 = por %p186, %p187
    %p189 = scmp.ne.s32.totalorder %s178, %s179
    %p190 = scmp.eq.s32.totalorder %s19, 0
    %p191 = por %p189, %p190
    %p192 = scmp.ne.s32.totalorder %s178, %s179
    %p193 = scmp.eq.s32.totalorder %s20, 1
    %p194 = por %p192, %p193
    %p196 = scmp.ne.s32.totalorder %s179, %s195
    %p197 = scmp.eq.s32.totalorder %s20, 0
    %p198 = por %p196, %p197
    %s200 = sadd.s32 %s199, 1
    %p203 = scmp.eq.s32.totalorder %s14, 1
    %p204 = scmp.ne.s32.totalorder %s199, %s201
    %p205 = scmp.eq.s32.totalorder %s14, 0
    %p206 = por %p204, %p205
    %p207 = scmp.ne.s32.totalorder %s199, %s201
    %p208 = scmp.eq.s32.totalorder %s19, 1
    %p209 = por %p207, %p208
    %p210 = scmp.ne.s32.totalorder %s201, %s202
    %p211 = scmp.eq.s32.totalorder %s19, 0
    %p212 = por %p210, %p211
    %p213 = scmp.ne.s32.totalorder %s201, %s202
    %p214 = scmp.eq.s32.totalorder %s20, 1
    %p215 = por %p213, %p214
    %p217 = scmp.ne.s32.totalorder %s202, %s216
    %p218 = scmp.eq.s32.totalorder %s20, 0
    %p219 = por %p217, %p218
    %s221 = sadd.s32 %s220, 1
    %p224 = scmp.eq.s32.totalorder %s14, 1
    %p225 = scmp.ne.s32.totalorder %s220, %s222
    %p226 = scmp.eq.s32.totalorder %s14, 0
    %p227 = por %p225, %p226
    %p228 = scmp.ne.s32.totalorder %s220, %s222
    %p229 = scmp.eq.s32.totalorder %s19, 1
    %p230 = por %p228, %p229
    %p231 = scmp.ne.s32.totalorder %s222, %s223
    %p232 = scmp.eq.s32.totalorder %s19, 0
    %p233 = por %p231, %p232
    %p234 = scmp.ne.s32.totalorder %s222, %s223
    %p235 = scmp.eq.s32.totalorder %s20, 1
    %p236 = por %p234, %p235
    %p238 = scmp.ne.s32.totalorder %s223, %s237
    %p239 = scmp.eq.s32.totalorder %s20, 0
    %p240 = por %p238, %p239
    %p241 = scmp.le.s32.totalorder 1, %s14
    %p242 = scmp.lt.s32.totalorder %s14, 3
    %p243 = pnand %p241, %p242
    %p244 = pneg %p243
    // Predicated region
    $region9: #{latent_diffusion_transformer_forward.4} parent=5 // pred_check
      _
    $region10: #{latent_diffusion_transformer_forward.4} parent=5 // pred_check_branch
      %246 = sbr.rel (%p243) target = $region12
    $region11: #{latent_diffusion_transformer_forward.4} parent=5 // pred_region
      %s247 = ssub.s32 %s14, 1
      // Predicated region
      $region13: #{latent_diffusion_transformer_forward.4} parent=11 // pred_check
        %p248 = pneg %p35
      $region14: #{latent_diffusion_transformer_forward.4} parent=11 // pred_check_branch
        %250 = sbr.rel (%p248) target = $region16
      $region15: #{latent_diffusion_transformer_forward.4} parent=11 // pred_region
        _
      $region16: #{latent_diffusion_transformer_forward.4} parent=11 // pred_fallthru
        _
      // Predicated region
      $region17: #{latent_diffusion_transformer_forward.4} parent=11 // pred_check
        %p251 = pneg %p212
      $region18: #{latent_diffusion_transformer_forward.4} parent=11 // pred_check_branch
        %253 = sbr.rel (%p251) target = $region20
      $region19: #{latent_diffusion_transformer_forward.4} parent=11 // pred_region
        _
      $region20: #{latent_diffusion_transformer_forward.4} parent=11 // pred_fallthru
        _
    $region12: #{latent_diffusion_transformer_forward.4} parent=5 // pred_fallthru
      _
    %p254 = scmp.lt.s32.totalorder %s14, 2
    // Predicated region
    $region21: #{latent_diffusion_transformer_forward.4} parent=5 // pred_check
      %p255 = pneg %p254
    $region22: #{latent_diffusion_transformer_forward.4} parent=5 // pred_check_branch
      %257 = sbr.rel (%p255) target = $region24
    $region23: #{latent_diffusion_transformer_forward.4} parent=5 // pred_region
      // Predicated region
      $region25: #{latent_diffusion_transformer_forward.4} parent=23 // pred_check
        %p258 = pneg %p55
      $region26: #{latent_diffusion_transformer_forward.4} parent=23 // pred_check_branch
        %260 = sbr.rel (%p258) target = $region28
      $region27: #{latent_diffusion_transformer_forward.4} parent=23 // pred_region
        %p261 = scmp.lt.s32.totalorder %s14, 1
        %s262 = scalar_select %p261, %s14, 1
        %s263 = scalar_lea.vmem %s1, %s262
      $region28: #{latent_diffusion_transformer_forward.4} parent=23 // pred_fallthru
        _
      // Predicated region
      $region29: #{latent_diffusion_transformer_forward.4} parent=23 // pred_check
        %p264 = pneg %p81
      $region30: #{latent_diffusion_transformer_forward.4} parent=23 // pred_check_branch
        %266 = sbr.rel (%p264) target = $region32
      $region31: #{latent_diffusion_transformer_forward.4} parent=23 // pred_region
        %p267 = scmp.lt.s32.totalorder %s14, 1
        %s268 = scalar_select %p267, %s14, 1
        %s269 = smul.addr %s268, 4
        %s270 = smul.addr %s269, 4
        %s271 = scalar_lea.vmem %s2, %s270
      $region32: #{latent_diffusion_transformer_forward.4} parent=23 // pred_fallthru
        _
      // Predicated region
      $region33: #{latent_diffusion_transformer_forward.4} parent=23 // pred_check
        %p272 = pneg %p107
      $region34: #{latent_diffusion_transformer_forward.4} parent=23 // pred_check_branch
        %274 = sbr.rel (%p272) target = $region36
      $region35: #{latent_diffusion_transformer_forward.4} parent=23 // pred_region
        %p275 = scmp.lt.s32.totalorder %s14, 1
        %s276 = scalar_select %p275, %s14, 1
        %s277 = smul.addr %s276, 4
        %s278 = smul.addr %s277, 4
        %s279 = scalar_lea.vmem %s3, %s278
      $region36: #{latent_diffusion_transformer_forward.4} parent=23 // pred_fallthru
        _
      // Predicated region
      $region37: #{latent_diffusion_transformer_forward.4} parent=23 // pred_check
        %p280 = pneg %p133
      $region38: #{latent_diffusion_transformer_forward.4} parent=23 // pred_check_branch
        %282 = sbr.rel (%p280) target = $region40
      $region39: #{latent_diffusion_transformer_forward.4} parent=23 // pred_region
        %p283 = scmp.lt.s32.totalorder %s14, 1
        %s284 = scalar_select %p283, %s14, 1
        %s285 = scalar_lea.vmem %s4, %s284
      $region40: #{latent_diffusion_transformer_forward.4} parent=23 // pred_fallthru
        _
      // Predicated region
      $region41: #{latent_diffusion_transformer_forward.4} parent=23 // pred_check
        %p286 = pneg %p159
      $region42: #{latent_diffusion_transformer_forward.4} parent=23 // pred_check_branch
        %288 = sbr.rel (%p286) target = $region44
      $region43: #{latent_diffusion_transformer_forward.4} parent=23 // pred_region
        %p289 = scmp.lt.s32.totalorder %s14, 1
        %s290 = scalar_select %p289, %s14, 1
        %s291 = smul.addr %s290, 4
        %s292 = smul.addr %s291, 4
        %s293 = scalar_lea.vmem %s5, %s292
      $region44: #{latent_diffusion_transformer_forward.4} parent=23 // pred_fallthru
        _
      // Predicated region
      $region45: #{latent_diffusion_transformer_forward.4} parent=23 // pred_check
        %p294 = pneg %p185
      $region46: #{latent_diffusion_transformer_forward.4} parent=23 // pred_check_branch
        %296 = sbr.rel (%p294) target = $region48
      $region47: #{latent_diffusion_transformer_forward.4} parent=23 // pred_region
        %p297 = scmp.lt.s32.totalorder %s14, 1
        %s298 = scalar_select %p297, %s14, 1
        %s299 = smul.addr %s298, 16
        %s300 = smul.addr %s299, 4
        %s301 = scalar_lea.vmem %s6, %s300
      $region48: #{latent_diffusion_transformer_forward.4} parent=23 // pred_fallthru
        _
    $region24: #{latent_diffusion_transformer_forward.4} parent=5 // pred_fallthru
      _
    %p302 = scmp.le.s32.totalorder 1, %s14
    %p303 = scmp.lt.s32.totalorder %s14, 3
    %p304 = pnand %p302, %p303
    %p305 = pneg %p304
    // Predicated region
    $region49: #{latent_diffusion_transformer_forward.4} parent=5 // pred_check
      _
    $region50: #{latent_diffusion_transformer_forward.4} parent=5 // pred_check_branch
      %307 = sbr.rel (%p304) target = $region52
    $region51: #{latent_diffusion_transformer_forward.4} parent=5 // pred_region
      %s308 = ssub.s32 %s14, 1
      %p309 = pneg %p35
      %p310 = pneg %p32
      %p311 = scmp.lt.s32.totalorder %s19, 1
      %s312 = scalar_select %p311, %s19, 1
      %s313 = scalar_lea.vmem %s1, %s312
      %p314 = pneg %p61
      %p315 = pneg %p58
      %p316 = scmp.lt.s32.totalorder %s19, 1
      %s317 = scalar_select %p316, %s19, 1
      %s318 = smul.addr %s317, 4
      %s319 = smul.addr %s318, 4
      %s320 = scalar_lea.vmem %s2, %s319
      %p321 = pneg %p87
      %p322 = pneg %p84
      %p323 = scmp.lt.s32.totalorder %s19, 1
      %s324 = scalar_select %p323, %s19, 1
      %s325 = smul.addr %s324, 4
      %s326 = smul.addr %s325, 4
      %s327 = scalar_lea.vmem %s3, %s326
      %p328 = pneg %p113
      %p329 = pneg %p110
      %p330 = scmp.lt.s32.totalorder %s19, 1
      %s331 = scalar_select %p330, %s19, 1
      %s332 = scalar_lea.vmem %s4, %s331
      %p333 = pneg %p139
      %p334 = pneg %p136
      %p335 = scmp.lt.s32.totalorder %s19, 1
      %s336 = scalar_select %p335, %s19, 1
      %s337 = smul.addr %s336, 4
      %s338 = smul.addr %s337, 4
      %s339 = scalar_lea.vmem %s5, %s338
      %p340 = pneg %p165
      %p341 = pneg %p162
      %p342 = scmp.lt.s32.totalorder %s19, 1
      %s343 = scalar_select %p342, %s19, 1
      %s344 = smul.addr %s343, 16
      %s345 = smul.addr %s344, 4
      %s346 = scalar_lea.vmem %s6, %s345
      %p347 = pneg %p191
      %p348 = pneg %p188
      %p349 = pneg %p212
      %p350 = pneg %p209
      %p351 = pneg %p233
      %p352 = pneg %p230
      %p353 = scmp.lt.s32.totalorder %s19, 1
      %s354 = scalar_select %p353, %s19, 1
      %s355 = scalar_lea.vmem %s1, %s354
      %p356 = scmp.lt.s32.totalorder %s19, 1
      %s357 = scalar_select %p356, %s19, 1
      %s358 = smul.addr %s357, 4
      %s359 = smul.addr %s358, 4
      %s360 = scalar_lea.vmem %s2, %s359
      %p361 = scmp.lt.s32.totalorder %s19, 1
      %s362 = scalar_select %p361, %s19, 1
      %s363 = smul.addr %s362, 4
      %s364 = smul.addr %s363, 4
      %s365 = scalar_lea.vmem %s3, %s364
      %p366 = scmp.lt.s32.totalorder %s19, 1
      %s367 = scalar_select %p366, %s19, 1
      %s368 = scalar_lea.vmem %s4, %s367
      %p369 = scmp.lt.s32.totalorder %s19, 1
      %s370 = scalar_select %p369, %s19, 1
      %s371 = smul.addr %s370, 4
      %s372 = smul.addr %s371, 4
      %s373 = scalar_lea.vmem %s5, %s372
      %p374 = scmp.lt.s32.totalorder %s19, 1
      %s375 = scalar_select %p374, %s19, 1
      %s376 = smul.addr %s375, 16
      %s377 = smul.addr %s376, 4
      %s378 = scalar_lea.vmem %s6, %s377
      %p380 = scmp.eq.s32.totalorder %s19, 0
      // Predicated region
      $region53: #{latent_diffusion_transformer_forward.4} parent=51 // pred_check
        %p381 = pneg %p380
      $region54: #{latent_diffusion_transformer_forward.4} parent=51 // pred_check_branch
        %383 = sbr.rel (%p381) target = $region56
      $region55: #{latent_diffusion_transformer_forward.4} parent=51 // pred_region
        %v384 = vld [vmem:[%s0] sm:$0xff]
        %v385 = vld [vmem:[%s0 + $0x8] sm:$0xff]
        %v386 = vld [vmem:[%s0 + $0x10] sm:$0xff]
        %v387 = vld [vmem:[%s0 + $0x18] sm:$0xff]
        %v388 = vld [vmem:[%s0 + $0x20] sm:$0xff]
        %v389 = vld [vmem:[%s0 + $0x28] sm:$0xff]
        %v390 = vld [vmem:[%s0 + $0x30] sm:$0xff]
        %v391 = vld [vmem:[%s0 + $0x38] sm:$0xff]
        %v392 = vld [vmem:[%s0 + $0x40] sm:$0xff]
        %v393 = vld [vmem:[%s0 + $0x48] sm:$0xff]
        %v394 = vld [vmem:[%s0 + $0x50] sm:$0xff]
        %v395 = vld [vmem:[%s0 + $0x58] sm:$0xff]
        %v396 = vld [vmem:[%s0 + $0x60] sm:$0xff]
        %v397 = vld [vmem:[%s0 + $0x68] sm:$0xff]
        %v398 = vld [vmem:[%s0 + $0x70] sm:$0xff]
        %v399 = vld [vmem:[%s0 + $0x78] sm:$0xff]
        %v400 = vld [vmem:[%s0 + $0x80] sm:$0xff]
        %v401 = vld [vmem:[%s0 + $0x88] sm:$0xff]
        %v402 = vld [vmem:[%s0 + $0x90] sm:$0xff]
        %v403 = vld [vmem:[%s0 + $0x98] sm:$0xff]
        %v404 = vld [vmem:[%s0 + $0xa0] sm:$0xff]
        %v405 = vld [vmem:[%s0 + $0xa8] sm:$0xff]
        %v406 = vld [vmem:[%s0 + $0xb0] sm:$0xff]
        %v407 = vld [vmem:[%s0 + $0xb8] sm:$0xff]
        %v408 = vld [vmem:[%s0 + $0xc0] sm:$0xff]
        %v409 = vld [vmem:[%s0 + $0xc8] sm:$0xff]
        %v410 = vld [vmem:[%s0 + $0xd0] sm:$0xff]
        %v411 = vld [vmem:[%s0 + $0xd8] sm:$0xff]
        %v412 = vld [vmem:[%s0 + $0xe0] sm:$0xff]
        %v413 = vld [vmem:[%s0 + $0xe8] sm:$0xff]
        %v414 = vld [vmem:[%s0 + $0xf0] sm:$0xff]
        %v415 = vld [vmem:[%s0 + $0xf8] sm:$0xff]
        %vm416 = vcmask 261120
        %417 = vst.msk [vmem:[%s8] sm:$0xff] %vm416, %v384
        %418 = vst.msk [vmem:[%s8 + $0x8] sm:$0xff] %vm416, %v385
        %419 = vst.msk [vmem:[%s8 + $0x10] sm:$0xff] %vm416, %v386
        %420 = vst.msk [vmem:[%s8 + $0x18] sm:$0xff] %vm416, %v387
        %421 = vst.msk [vmem:[%s8 + $0x20] sm:$0xff] %vm416, %v388
        %422 = vst.msk [vmem:[%s8 + $0x28] sm:$0xff] %vm416, %v389
        %423 = vst.msk [vmem:[%s8 + $0x30] sm:$0xff] %vm416, %v390
        %424 = vst.msk [vmem:[%s8 + $0x38] sm:$0xff] %vm416, %v391
        %425 = vst.msk [vmem:[%s8 + $0x40] sm:$0xff] %vm416, %v392
        %426 = vst.msk [vmem:[%s8 + $0x48] sm:$0xff] %vm416, %v393
        %427 = vst.msk [vmem:[%s8 + $0x50] sm:$0xff] %vm416, %v394
        %428 = vst.msk [vmem:[%s8 + $0x58] sm:$0xff] %vm416, %v395
        %429 = vst.msk [vmem:[%s8 + $0x60] sm:$0xff] %vm416, %v396
        %430 = vst.msk [vmem:[%s8 + $0x68] sm:$0xff] %vm416, %v397
        %431 = vst.msk [vmem:[%s8 + $0x70] sm:$0xff] %vm416, %v398
        %432 = vst.msk [vmem:[%s8 + $0x78] sm:$0xff] %vm416, %v399
        %433 = vst.msk [vmem:[%s8 + $0x80] sm:$0xff] %vm416, %v400
        %434 = vst.msk [vmem:[%s8 + $0x88] sm:$0xff] %vm416, %v401
        %435 = vst.msk [vmem:[%s8 + $0x90] sm:$0xff] %vm416, %v402
        %436 = vst.msk [vmem:[%s8 + $0x98] sm:$0xff] %vm416, %v403
        %437 = vst.msk [vmem:[%s8 + $0xa0] sm:$0xff] %vm416, %v404
        %438 = vst.msk [vmem:[%s8 + $0xa8] sm:$0xff] %vm416, %v405
        %439 = vst.msk [vmem:[%s8 + $0xb0] sm:$0xff] %vm416, %v406
        %440 = vst.msk [vmem:[%s8 + $0xb8] sm:$0xff] %vm416, %v407
        %441 = vst.msk [vmem:[%s8 + $0xc0] sm:$0xff] %vm416, %v408
        %442 = vst.msk [vmem:[%s8 + $0xc8] sm:$0xff] %vm416, %v409
        %443 = vst.msk [vmem:[%s8 + $0xd0] sm:$0xff] %vm416, %v410
        %444 = vst.msk [vmem:[%s8 + $0xd8] sm:$0xff] %vm416, %v411
        %445 = vst.msk [vmem:[%s8 + $0xe0] sm:$0xff] %vm416, %v412
        %446 = vst.msk [vmem:[%s8 + $0xe8] sm:$0xff] %vm416, %v413
        %447 = vst.msk [vmem:[%s8 + $0xf0] sm:$0xff] %vm416, %v414
        %448 = vst.msk [vmem:[%s8 + $0xf8] sm:$0xff] %vm416, %v415
      $region56: #{latent_diffusion_transformer_forward.4} parent=51 // pred_fallthru
        _
      %v449 = vld [vmem:[%s8] sm:$0xff]
      %v450 = vld [vmem:[%s8 + $0x8] sm:$0xff]
      %v451 = vld [vmem:[%s8 + $0x10] sm:$0xff]
      %v452 = vld [vmem:[%s8 + $0x18] sm:$0xff]
      %v453 = vld [vmem:[%s8 + $0x20] sm:$0xff]
      %v454 = vld [vmem:[%s8 + $0x28] sm:$0xff]
      %v455 = vld [vmem:[%s8 + $0x30] sm:$0xff]
      %v456 = vld [vmem:[%s8 + $0x38] sm:$0xff]
      %v457 = vld [vmem:[%s8 + $0x40] sm:$0xff]
      %v458 = vld [vmem:[%s8 + $0x48] sm:$0xff]
      %v459 = vld [vmem:[%s8 + $0x50] sm:$0xff]
      %v460 = vld [vmem:[%s8 + $0x58] sm:$0xff]
      %v461 = vld [vmem:[%s8 + $0x60] sm:$0xff]
      %v462 = vld [vmem:[%s8 + $0x68] sm:$0xff]
      %v463 = vld [vmem:[%s8 + $0x70] sm:$0xff]
      %v464 = vld [vmem:[%s8 + $0x78] sm:$0xff]
      %v465 = vld [vmem:[%s8 + $0x80] sm:$0xff]
      %v466 = vld [vmem:[%s8 + $0x88] sm:$0xff]
      %v467 = vld [vmem:[%s8 + $0x90] sm:$0xff]
      %v468 = vld [vmem:[%s8 + $0x98] sm:$0xff]
      %v469 = vld [vmem:[%s8 + $0xa0] sm:$0xff]
      %v470 = vld [vmem:[%s8 + $0xa8] sm:$0xff]
      %v471 = vld [vmem:[%s8 + $0xb0] sm:$0xff]
      %v472 = vld [vmem:[%s8 + $0xb8] sm:$0xff]
      %v473 = vld [vmem:[%s8 + $0xc0] sm:$0xff]
      %v474 = vld [vmem:[%s8 + $0xc8] sm:$0xff]
      %v475 = vld [vmem:[%s8 + $0xd0] sm:$0xff]
      %v476 = vld [vmem:[%s8 + $0xd8] sm:$0xff]
      %v477 = vld [vmem:[%s8 + $0xe0] sm:$0xff]
      %v478 = vld [vmem:[%s8 + $0xe8] sm:$0xff]
      %v479 = vld [vmem:[%s8 + $0xf0] sm:$0xff]
      %v480 = vld [vmem:[%s8 + $0xf8] sm:$0xff]
      %v481 = vlaneseq
      %v482 = vand.u32 %v481, 127
      %vm483 = vcmp.lt.s32.totalorder %v482, 66
      %v484 = vsel %vm483, 0.0, -1e+30
      %v485 = vld [vmem:[%s355] sm:$0x1]
      %v486 = vmul.f32 %v449, %v449
      %v487 = vmul.f32 %v450, %v450
      %v488 = vmul.f32 %v451, %v451
      %v489 = vmul.f32 %v452, %v452
      %v490 = vmul.f32 %v453, %v453
      %v491 = vmul.f32 %v454, %v454
      %v492 = vmul.f32 %v455, %v455
      %v493 = vmul.f32 %v456, %v456
      %v494 = vmul.f32 %v457, %v457
      %v495 = vmul.f32 %v458, %v458
      %v496 = vmul.f32 %v459, %v459
      %v497 = vmul.f32 %v460, %v460
      %v498 = vmul.f32 %v461, %v461
      %v499 = vmul.f32 %v462, %v462
      %v500 = vmul.f32 %v463, %v463
      %v501 = vmul.f32 %v464, %v464
      %v502 = vmul.f32 %v465, %v465
      %v503 = vmul.f32 %v466, %v466
      %v504 = vmul.f32 %v467, %v467
      %v505 = vmul.f32 %v468, %v468
      %v506 = vmul.f32 %v469, %v469
      %v507 = vmul.f32 %v470, %v470
      %v508 = vmul.f32 %v471, %v471
      %v509 = vmul.f32 %v472, %v472
      %v510 = vmul.f32 %v473, %v473
      %v511 = vmul.f32 %v474, %v474
      %v512 = vmul.f32 %v475, %v475
      %v513 = vmul.f32 %v476, %v476
      %v514 = vmul.f32 %v477, %v477
      %v515 = vmul.f32 %v478, %v478
      %v516 = vmul.f32 %v479, %v479
      %v517 = vmul.f32 %v480, %v480
      %vm518 = vcmask 261120
      %v519 = vsel %vm518, %v486, 0.0
      %520 = vadd.xlane.f32.xlu0 %v519
      %v521 = vpop.xlane.xlu0 %520
      %v522 = vsel %vm518, %v487, 0.0
      %523 = vadd.xlane.f32.xlu0 %v522
      %v524 = vpop.xlane.xlu0 %523
      %v525 = vsel %vm518, %v488, 0.0
      %526 = vadd.xlane.f32.xlu0 %v525
      %v527 = vpop.xlane.xlu0 %526
      %v528 = vsel %vm518, %v489, 0.0
      %529 = vadd.xlane.f32.xlu0 %v528
      %v530 = vpop.xlane.xlu0 %529
      %v531 = vsel %vm518, %v490, 0.0
      %532 = vadd.xlane.f32.xlu0 %v531
      %v533 = vpop.xlane.xlu0 %532
      %v534 = vsel %vm518, %v491, 0.0
      %535 = vadd.xlane.f32.xlu0 %v534
      %v536 = vpop.xlane.xlu0 %535
      %v537 = vsel %vm518, %v492, 0.0
      %538 = vadd.xlane.f32.xlu0 %v537
      %v539 = vpop.xlane.xlu0 %538
      %v540 = vsel %vm518, %v493, 0.0
      %541 = vadd.xlane.f32.xlu0 %v540
      %v542 = vpop.xlane.xlu0 %541
      %v543 = vsel %vm518, %v494, 0.0
      %544 = vadd.xlane.f32.xlu0 %v543
      %v545 = vpop.xlane.xlu0 %544
      %v546 = vsel %vm518, %v495, 0.0
      %547 = vadd.xlane.f32.xlu0 %v546
      %v548 = vpop.xlane.xlu0 %547
      %v549 = vsel %vm518, %v496, 0.0
      %550 = vadd.xlane.f32.xlu0 %v549
      %v551 = vpop.xlane.xlu0 %550
      %v552 = vsel %vm518, %v497, 0.0
      %553 = vadd.xlane.f32.xlu0 %v552
      %v554 = vpop.xlane.xlu0 %553
      %v555 = vsel %vm518, %v498, 0.0
      %556 = vadd.xlane.f32.xlu0 %v555
      %v557 = vpop.xlane.xlu0 %556
      %v558 = vsel %vm518, %v499, 0.0
      %559 = vadd.xlane.f32.xlu0 %v558
      %v560 = vpop.xlane.xlu0 %559
      %v561 = vsel %vm518, %v500, 0.0
      %562 = vadd.xlane.f32.xlu0 %v561
      %v563 = vpop.xlane.xlu0 %562
      %v564 = vsel %vm518, %v501, 0.0
      %565 = vadd.xlane.f32.xlu0 %v564
      %v566 = vpop.xlane.xlu0 %565
      %v567 = vsel %vm518, %v502, 0.0
      %568 = vadd.xlane.f32.xlu0 %v567
      %v569 = vpop.xlane.xlu0 %568
      %v570 = vsel %vm518, %v503, 0.0
      %571 = vadd.xlane.f32.xlu0 %v570
      %v572 = vpop.xlane.xlu0 %571
      %v573 = vsel %vm518, %v504, 0.0
      %574 = vadd.xlane.f32.xlu0 %v573
      %v575 = vpop.xlane.xlu0 %574
      %v576 = vsel %vm518, %v505, 0.0
      %577 = vadd.xlane.f32.xlu0 %v576
      %v578 = vpop.xlane.xlu0 %577
      %v579 = vsel %vm518, %v506, 0.0
      %580 = vadd.xlane.f32.xlu0 %v579
      %v581 = vpop.xlane.xlu0 %580
      %v582 = vsel %vm518, %v507, 0.0
      %583 = vadd.xlane.f32.xlu0 %v582
      %v584 = vpop.xlane.xlu0 %583
      %v585 = vsel %vm518, %v508, 0.0
      %586 = vadd.xlane.f32.xlu0 %v585
      %v587 = vpop.xlane.xlu0 %586
      %v588 = vsel %vm518, %v509, 0.0
      %589 = vadd.xlane.f32.xlu0 %v588
      %v590 = vpop.xlane.xlu0 %589
      %v591 = vsel %vm518, %v510, 0.0
      %592 = vadd.xlane.f32.xlu0 %v591
      %v593 = vpop.xlane.xlu0 %592
      %v594 = vsel %vm518, %v511, 0.0
      %595 = vadd.xlane.f32.xlu0 %v594
      %v596 = vpop.xlane.xlu0 %595
      %v597 = vsel %vm518, %v512, 0.0
      %598 = vadd.xlane.f32.xlu0 %v597
      %v599 = vpop.xlane.xlu0 %598
      %v600 = vsel %vm518, %v513, 0.0
      %601 = vadd.xlane.f32.xlu0 %v600
      %v602 = vpop.xlane.xlu0 %601
      %v603 = vsel %vm518, %v514, 0.0
      %604 = vadd.xlane.f32.xlu0 %v603
      %v605 = vpop.xlane.xlu0 %604
      %v606 = vsel %vm518, %v515, 0.0
      %607 = vadd.xlane.f32.xlu0 %v606
      %v608 = vpop.xlane.xlu0 %607
      %v609 = vsel %vm518, %v516, 0.0
      %610 = vadd.xlane.f32.xlu0 %v609
      %v611 = vpop.xlane.xlu0 %610
      %v612 = vsel %vm518, %v517, 0.0
      %613 = vadd.xlane.f32.xlu0 %v612
      %v614 = vpop.xlane.xlu0 %613
      %v615 = vrcp.pop 32.0
      %v616 = vmul.f32 %v521, %v615
      %v617 = vmul.f32 %v524, %v615
      %v618 = vmul.f32 %v527, %v615
      %v619 = vmul.f32 %v530, %v615
      %v620 = vmul.f32 %v533, %v615
      %v621 = vmul.f32 %v536, %v615
      %v622 = vmul.f32 %v539, %v615
      %v623 = vmul.f32 %v542, %v615
      %v624 = vmul.f32 %v545, %v615
      %v625 = vmul.f32 %v548, %v615
      %v626 = vmul.f32 %v551, %v615
      %v627 = vmul.f32 %v554, %v615
      %v628 = vmul.f32 %v557, %v615
      %v629 = vmul.f32 %v560, %v615
      %v630 = vmul.f32 %v563, %v615
      %v631 = vmul.f32 %v566, %v615
      %v632 = vmul.f32 %v569, %v615
      %v633 = vmul.f32 %v572, %v615
      %v634 = vmul.f32 %v575, %v615
      %v635 = vmul.f32 %v578, %v615
      %v636 = vmul.f32 %v581, %v615
      %v637 = vmul.f32 %v584, %v615
      %v638 = vmul.f32 %v587, %v615
      %v639 = vmul.f32 %v590, %v615
      %v640 = vmul.f32 %v593, %v615
      %v641 = vmul.f32 %v596, %v615
      %v642 = vmul.f32 %v599, %v615
      %v643 = vmul.f32 %v602, %v615
      %v644 = vmul.f32 %v605, %v615
      %v645 = vmul.f32 %v608, %v615
      %v646 = vmul.f32 %v611, %v615
      %v647 = vmul.f32 %v614, %v615
      %v648 = vadd.f32 %v616, 1e-08
      %v649 = vadd.f32 %v617, 1e-08
      %v650 = vadd.f32 %v618, 1e-08
      %v651 = vadd.f32 %v619, 1e-08
      %v652 = vadd.f32 %v620, 1e-08
      %v653 = vadd.f32 %v621, 1e-08
      %v654 = vadd.f32 %v622, 1e-08
      %v655 = vadd.f32 %v623, 1e-08
      %v656 = vadd.f32 %v624, 1e-08
      %v657 = vadd.f32 %v625, 1e-08
      %v658 = vadd.f32 %v626, 1e-08
      %v659 = vadd.f32 %v627, 1e-08
      %v660 = vadd.f32 %v628, 1e-08
      %v661 = vadd.f32 %v629, 1e-08
      %v662 = vadd.f32 %v630, 1e-08
      %v663 = vadd.f32 %v631, 1e-08
      %v664 = vadd.f32 %v632, 1e-08
      %v665 = vadd.f32 %v633, 1e-08
      %v666 = vadd.f32 %v634, 1e-08
      %v667 = vadd.f32 %v635, 1e-08
      %v668 = vadd.f32 %v636, 1e-08
      %v669 = vadd.f32 %v637, 1e-08
      %v670 = vadd.f32 %v638, 1e-08
      %v671 = vadd.f32 %v639, 1e-08
      %v672 = vadd.f32 %v640, 1e-08
      %v673 = vadd.f32 %v641, 1e-08
      %v674 = vadd.f32 %v642, 1e-08
      %v675 = vadd.f32 %v643, 1e-08
      %v676 = vadd.f32 %v644, 1e-08
      %v677 = vadd.f32 %v645, 1e-08
      %v678 = vadd.f32 %v646, 1e-08
      %v679 = vadd.f32 %v647, 1e-08
      %v680 = vrsqrt.pop %v648
      %v681 = vrsqrt.pop %v649
      %v682 = vrsqrt.pop %v650
      %v683 = vrsqrt.pop %v651
      %v684 = vrsqrt.pop %v652
      %v685 = vrsqrt.pop %v653
      %v686 = vrsqrt.pop %v654
      %v687 = vrsqrt.pop %v655
      %v688 = vrsqrt.pop %v656
      %v689 = vrsqrt.pop %v657
      %v690 = vrsqrt.pop %v658
      %v691 = vrsqrt.pop %v659
      %v692 = vrsqrt.pop %v660
      %v693 = vrsqrt.pop %v661
      %v694 = vrsqrt.pop %v662
      %v695 = vrsqrt.pop %v663
      %v696 = vrsqrt.pop %v664
      %v697 = vrsqrt.pop %v665
      %v698 = vrsqrt.pop %v666
      %v699 = vrsqrt.pop %v667
      %v700 = vrsqrt.pop %v668
      %v701 = vrsqrt.pop %v669
      %v702 = vrsqrt.pop %v670
      %v703 = vrsqrt.pop %v671
      %v704 = vrsqrt.pop %v672
      %v705 = vrsqrt.pop %v673
      %v706 = vrsqrt.pop %v674
      %v707 = vrsqrt.pop %v675
      %v708 = vrsqrt.pop %v676
      %v709 = vrsqrt.pop %v677
      %v710 = vrsqrt.pop %v678
      %v711 = vrsqrt.pop %v679
      %v712 = vmul.f32 %v449, %v680
      %v713 = vmul.f32 %v450, %v681
      %v714 = vmul.f32 %v451, %v682
      %v715 = vmul.f32 %v452, %v683
      %v716 = vmul.f32 %v453, %v684
      %v717 = vmul.f32 %v454, %v685
      %v718 = vmul.f32 %v455, %v686
      %v719 = vmul.f32 %v456, %v687
      %v720 = vmul.f32 %v457, %v688
      %v721 = vmul.f32 %v458, %v689
      %v722 = vmul.f32 %v459, %v690
      %v723 = vmul.f32 %v460, %v691
      %v724 = vmul.f32 %v461, %v692
      %v725 = vmul.f32 %v462, %v693
      %v726 = vmul.f32 %v463, %v694
      %v727 = vmul.f32 %v464, %v695
      %v728 = vmul.f32 %v465, %v696
      %v729 = vmul.f32 %v466, %v697
      %v730 = vmul.f32 %v467, %v698
      %v731 = vmul.f32 %v468, %v699
      %v732 = vmul.f32 %v469, %v700
      %v733 = vmul.f32 %v470, %v701
      %v734 = vmul.f32 %v471, %v702
      %v735 = vmul.f32 %v472, %v703
      %v736 = vmul.f32 %v473, %v704
      %v737 = vmul.f32 %v474, %v705
      %v738 = vmul.f32 %v475, %v706
      %v739 = vmul.f32 %v476, %v707
      %v740 = vmul.f32 %v477, %v708
      %v741 = vmul.f32 %v478, %v709
      %v742 = vmul.f32 %v479, %v710
      %v743 = vmul.f32 %v480, %v711
      %v745 = vlaneseq
      %v746 = vshrl.u32 %v745, 7
      %v747 = vsub.s32 0, %v746
      %v748 = vrot.slane %v485, %v747
      %v750 = vmul.f32 %v712, %v748
      %v751 = vmul.f32 %v713, %v748
      %v752 = vmul.f32 %v714, %v748
      %v753 = vmul.f32 %v715, %v748
      %v754 = vmul.f32 %v716, %v748
      %v755 = vmul.f32 %v717, %v748
      %v756 = vmul.f32 %v718, %v748
      %v757 = vmul.f32 %v719, %v748
      %v758 = vmul.f32 %v720, %v748
      %v759 = vmul.f32 %v721, %v748
      %v760 = vmul.f32 %v722, %v748
      %v761 = vmul.f32 %v723, %v748
      %v762 = vmul.f32 %v724, %v748
      %v763 = vmul.f32 %v725, %v748
      %v764 = vmul.f32 %v726, %v748
      %v765 = vmul.f32 %v727, %v748
      %v766 = vmul.f32 %v728, %v748
      %v767 = vmul.f32 %v729, %v748
      %v768 = vmul.f32 %v730, %v748
      %v769 = vmul.f32 %v731, %v748
      %v770 = vmul.f32 %v732, %v748
      %v771 = vmul.f32 %v733, %v748
      %v772 = vmul.f32 %v734, %v748
      %v773 = vmul.f32 %v735, %v748
      %v774 = vmul.f32 %v736, %v748
      %v775 = vmul.f32 %v737, %v748
      %v776 = vmul.f32 %v738, %v748
      %v777 = vmul.f32 %v739, %v748
      %v778 = vmul.f32 %v740, %v748
      %v779 = vmul.f32 %v741, %v748
      %v780 = vmul.f32 %v742, %v748
      %v781 = vmul.f32 %v743, %v748
      %v782 = vpack.c.bf16 %v751, %v750
      %v783 = vpack.c.bf16 %v753, %v752
      %v784 = vpack.c.bf16 %v755, %v754
      %v785 = vpack.c.bf16 %v757, %v756
      %v786 = vpack.c.bf16 %v759, %v758
      %v787 = vpack.c.bf16 %v761, %v760
      %v788 = vpack.c.bf16 %v763, %v762
      %v789 = vpack.c.bf16 %v765, %v764
      %v790 = vpack.c.bf16 %v767, %v766
      %v791 = vpack.c.bf16 %v769, %v768
      %v792 = vpack.c.bf16 %v771, %v770
      %v793 = vpack.c.bf16 %v773, %v772
      %v794 = vpack.c.bf16 %v775, %v774
      %v795 = vpack.c.bf16 %v777, %v776
      %v796 = vpack.c.bf16 %v779, %v778
      %v797 = vpack.c.bf16 %v781, %v780
      %v798 = vld [vmem:[%s360] sm:$0xf]
      %v799 = vld [vmem:[%s360 + $0x4] sm:$0xf]
      %v800 = vld [vmem:[%s360 + $0x8] sm:$0xf]
      %v801 = vld [vmem:[%s360 + $0xc] sm:$0xf]
      %v806 = vunpack.c.l.b16 %v798
      %v807 = vunpack.c.l.b16 %v799
      %v808 = vunpack.c.l.b16 %v800
      %v809 = vunpack.c.l.b16 %v801
      %v810 = vpack.c.b16 %v807, %v806
      %v811 = vpack.c.b16 %v809, %v808
      %v815 = vsel %vm518, %v782, 0
      %v818 = vsel %vm518, %v783, 0
      %v821 = vsel %vm518, %v784, 0
      %v824 = vsel %vm518, %v785, 0
      %v827 = vsel %vm518, %v786, 0
      %v830 = vsel %vm518, %v787, 0
      %v833 = vsel %vm518, %v788, 0
      %v836 = vsel %vm518, %v789, 0
      %v839 = vsel %vm518, %v790, 0
      %v842 = vsel %vm518, %v791, 0
      %v845 = vsel %vm518, %v792, 0
      %v848 = vsel %vm518, %v793, 0
      %v851 = vsel %vm518, %v794, 0
      %v854 = vsel %vm518, %v795, 0
      %v857 = vsel %vm518, %v796, 0
      %v860 = vsel %vm518, %v797, 0
      %862 = vmatprep.subr.bf16.mxu0 0
      %863 = vmatpush1.bf16.msra.mxu0 %v810
      %864 = vmatprep.subr.bf16.mxu0 0
      %865 = vmatpush1.bf16.msra.mxu0 %v811
      %866 = vmatprep.subr.bf16.mxu0 0
      %867 = vmatpush1.bf16.msra.mxu0 0
      %868 = vmatprep.subr.bf16.mxu0 0
      %869 = vmatpush1.bf16.msra.mxu0 0
      %870 = vmatprep.subr.bf16.mxu0 0
      %871 = vmatpush1.bf16.msra.mxu0 0
      %872 = vmatprep.subr.bf16.mxu0 0
      %873 = vmatpush1.bf16.msra.mxu0 0
      %874 = vmatprep.subr.bf16.mxu0 0
      %875 = vmatpush1.bf16.msra.mxu0 0
      %876 = vmatprep.subr.bf16.mxu0 0
      %877 = vmatpush1.bf16.msra.mxu0 0
      %878 = vmatprep.subr.bf16.mxu0 0
      %879 = vmatpush1.bf16.msra.mxu0 0
      %880 = vmatprep.subr.bf16.mxu0 0
      %881 = vmatpush1.bf16.msra.mxu0 0
      %882 = vmatprep.subr.bf16.mxu0 0
      %883 = vmatpush1.bf16.msra.mxu0 0
      %884 = vmatprep.subr.bf16.mxu0 0
      %885 = vmatpush1.bf16.msra.mxu0 0
      %886 = vmatprep.subr.bf16.mxu0 0
      %887 = vmatpush1.bf16.msra.mxu0 0
      %888 = vmatprep.subr.bf16.mxu0 0
      %889 = vmatpush1.bf16.msra.mxu0 0
      %890 = vmatprep.subr.bf16.mxu0 0
      %891 = vmatpush1.bf16.msra.mxu0 0
      %892 = vmatprep.subr.bf16.mxu0 0
      %893 = vmatpush1.bf16.msra.mxu0 0
      %894 = vmatprep.mubr.bf16.mxu0 0
      %895 = vmatmul.mubr.bf16.gmra.mrb[0].mxu0 %v815
      %v896 = vpop.f32.mrb[0].mxu0
      %v897 = vadd.f32 0.0, %v896
      %v898 = vpop.f32.mrb[0].mxu0
      %v899 = vpop.f32.mrb[0].mxu0
      %v900 = vadd.f32 0.0, %v899
      %v901 = vpop.f32.mrb[0].mxu0
      %902 = vmatprep.mubr.bf16.mxu0 0
      %903 = vmatmul.mubr.bf16.gmra.mrb[0].mxu0 %v818
      %v904 = vpop.f32.mrb[0].mxu0
      %v905 = vadd.f32 0.0, %v904
      %v906 = vpop.f32.mrb[0].mxu0
      %v907 = vpop.f32.mrb[0].mxu0
      %v908 = vadd.f32 0.0, %v907
      %v909 = vpop.f32.mrb[0].mxu0
      %910 = vmatprep.mubr.bf16.mxu0 0
      %911 = vmatmul.mubr.bf16.gmra.mrb[0].mxu0 %v821
      %v912 = vpop.f32.mrb[0].mxu0
      %v913 = vadd.f32 0.0, %v912
      %v914 = vpop.f32.mrb[0].mxu0
      %v915 = vpop.f32.mrb[0].mxu0
      %v916 = vadd.f32 0.0, %v915
      %v917 = vpop.f32.mrb[0].mxu0
      %918 = vmatprep.mubr.bf16.mxu0 0
      %919 = vmatmul.mubr.bf16.gmra.mrb[0].mxu0 %v824
      %v920 = vpop.f32.mrb[0].mxu0
      %v921 = vadd.f32 0.0, %v920
      %v922 = vpop.f32.mrb[0].mxu0
      %v923 = vpop.f32.mrb[0].mxu0
      %v924 = vadd.f32 0.0, %v923
      %v925 = vpop.f32.mrb[0].mxu0
      %926 = vmatprep.mubr.bf16.mxu0 0
      %927 = vmatmul.mubr.bf16.gmra.mrb[0].mxu0 %v827
      %v928 = vpop.f32.mrb[0].mxu0
      %v929 = vadd.f32 0.0, %v928
      %v930 = vpop.f32.mrb[0].mxu0
      %v931 = vpop.f32.mrb[0].mxu0
      %v932 = vadd.f32 0.0, %v931
      %v933 = vpop.f32.mrb[0].mxu0
      %934 = vmatprep.mubr.bf16.mxu0 0
      %935 = vmatmul.mubr.bf16.gmra.mrb[0].mxu0 %v830
      %v936 = vpop.f32.mrb[0].mxu0
      %v937 = vadd.f32 0.0, %v936
      %v938 = vpop.f32.mrb[0].mxu0
      %v939 = vpop.f32.mrb[0].mxu0
      %v940 = vadd.f32 0.0, %v939
      %v941 = vpop.f32.mrb[0].mxu0
      %942 = vmatprep.mubr.bf16.mxu0 0
      %943 = vmatmul.mubr.bf16.gmra.mrb[0].mxu0 %v833
      %v944 = vpop.f32.mrb[0].mxu0
      %v945 = vadd.f32 0.0, %v944
      %v946 = vpop.f32.mrb[0].mxu0
      %v947 = vpop.f32.mrb[0].mxu0
      %v948 = vadd.f32 0.0, %v947
      %v949 = vpop.f32.mrb[0].mxu0
      %950 = vmatprep.mubr.bf16.mxu0 0
      %951 = vmatmul.mubr.bf16.gmra.mrb[0].mxu0 %v836
      %v952 = vpop.f32.mrb[0].mxu0
      %v953 = vadd.f32 0.0, %v952
      %v954 = vpop.f32.mrb[0].mxu0
      %v955 = vpop.f32.mrb[0].mxu0
      %v956 = vadd.f32 0.0, %v955
      %v957 = vpop.f32.mrb[0].mxu0
      %958 = vmatprep.mubr.bf16.mxu0 0
      %959 = vmatmul.mubr.bf16.gmra.mrb[0].mxu0 %v839
      %v960 = vpop.f32.mrb[0].mxu0
      %v961 = vadd.f32 0.0, %v960
      %v962 = vpop.f32.mrb[0].mxu0
      %v963 = vpop.f32.mrb[0].mxu0
      %v964 = vadd.f32 0.0, %v963
      %v965 = vpop.f32.mrb[0].mxu0
      %966 = vmatprep.mubr.bf16.mxu0 0
      %967 = vmatmul.mubr.bf16.gmra.mrb[0].mxu0 %v842
      %v968 = vpop.f32.mrb[0].mxu0
      %v969 = vadd.f32 0.0, %v968
      %v970 = vpop.f32.mrb[0].mxu0
      %v971 = vpop.f32.mrb[0].mxu0
      %v972 = vadd.f32 0.0, %v971
      %v973 = vpop.f32.mrb[0].mxu0
      %974 = vmatprep.mubr.bf16.mxu0 0
      %975 = vmatmul.mubr.bf16.gmra.mrb[0].mxu0 %v845
      %v976 = vpop.f32.mrb[0].mxu0
      %v977 = vadd.f32 0.0, %v976
      %v978 = vpop.f32.mrb[0].mxu0
      %v979 = vpop.f32.mrb[0].mxu0
      %v980 = vadd.f32 0.0, %v979
      %v981 = vpop.f32.mrb[0].mxu0
      %982 = vmatprep.mubr.bf16.mxu0 0
      %983 = vmatmul.mubr.bf16.gmra.mrb[0].mxu0 %v848
      %v984 = vpop.f32.mrb[0].mxu0
      %v985 = vadd.f32 0.0, %v984
      %v986 = vpop.f32.mrb[0].mxu0
      %v987 = vpop.f32.mrb[0].mxu0
      %v988 = vadd.f32 0.0, %v987
      %v989 = vpop.f32.mrb[0].mxu0
      %990 = vmatprep.mubr.bf16.mxu0 0
      %991 = vmatmul.mubr.bf16.gmra.mrb[0].mxu0 %v851
      %v992 = vpop.f32.mrb[0].mxu0
      %v993 = vadd.f32 0.0, %v992
      %v994 = vpop.f32.mrb[0].mxu0
      %v995 = vpop.f32.mrb[0].mxu0
      %v996 = vadd.f32 0.0, %v995
      %v997 = vpop.f32.mrb[0].mxu0
      %998 = vmatprep.mubr.bf16.mxu0 0
      %999 = vmatmul.mubr.bf16.gmra.mrb[0].mxu0 %v854
      %v1000 = vpop.f32.mrb[0].mxu0
      %v1001 = vadd.f32 0.0, %v1000
      %v1002 = vpop.f32.mrb[0].mxu0
      %v1003 = vpop.f32.mrb[0].mxu0
      %v1004 = vadd.f32 0.0, %v1003
      %v1005 = vpop.f32.mrb[0].mxu0
      %1006 = vmatprep.mubr.bf16.mxu0 0
      %1007 = vmatmul.mubr.bf16.gmra.mrb[0].mxu0 %v857
      %v1008 = vpop.f32.mrb[0].mxu0
      %v1009 = vadd.f32 0.0, %v1008
      %v1010 = vpop.f32.mrb[0].mxu0
      %v1011 = vpop.f32.mrb[0].mxu0
      %v1012 = vadd.f32 0.0, %v1011
      %v1013 = vpop.f32.mrb[0].mxu0
      %1014 = vmatprep.mubr.bf16.mxu0 0
      %1015 = vmatmul.mubr.bf16.gmra.mrb[0].mxu0 %v860
      %v1016 = vpop.f32.mrb[0].mxu0
      %v1017 = vadd.f32 0.0, %v1016
      %v1018 = vpop.f32.mrb[0].mxu0
      %v1019 = vpop.f32.mrb[0].mxu0
      %v1020 = vadd.f32 0.0, %v1019
      %v1021 = vpop.f32.mrb[0].mxu0
      %1022 = vdwg.mxu0
      %v1023 = vpack.c.bf16 %v900, %v897
      %v1024 = vpack.c.bf16 %v908, %v905
      %v1025 = vpack.c.bf16 %v916, %v913
      %v1026 = vpack.c.bf16 %v924, %v921
      %v1027 = vpack.c.bf16 %v932, %v929
      %v1028 = vpack.c.bf16 %v940, %v937
      %v1029 = vpack.c.bf16 %v948, %v945
      %v1030 = vpack.c.bf16 %v956, %v953
      %v1031 = vpack.c.bf16 %v964, %v961
      %v1032 = vpack.c.bf16 %v972, %v969
      %v1033 = vpack.c.bf16 %v980, %v977
      %v1034 = vpack.c.bf16 %v988, %v985
      %v1035 = vpack.c.bf16 %v996, %v993
      %v1036 = vpack.c.bf16 %v1004, %v1001
      %v1037 = vpack.c.bf16 %v1012, %v1009
      %v1038 = vpack.c.bf16 %v1020, %v1017
      %v1039 = vld [vmem:[%s365] sm:$0xf]
      %v1040 = vld [vmem:[%s365 + $0x4] sm:$0xf]
      %v1041 = vld [vmem:[%s365 + $0x8] sm:$0xf]
      %v1042 = vld [vmem:[%s365 + $0xc] sm:$0xf]
      %1051 = vrot.lane.b32.xlu0 %v1023, 96
      %v1052 = vpop.permute.xlu0 %1051
      %1053 = vrot.lane.b32.xlu0 %v1024, 96
      %v1054 = vpop.permute.xlu0 %1053
      %1055 = vrot.lane.b32.xlu0 %v1025, 96
      %v1056 = vpop.permute.xlu0 %1055
      %1057 = vrot.lane.b32.xlu0 %v1026, 96
      %v1058 = vpop.permute.xlu0 %1057
      %1059 = vrot.lane.b32.xlu0 %v1027, 96
      %v1060 = vpop.permute.xlu0 %1059
      %1061 = vrot.lane.b32.xlu0 %v1028, 96
      %v1062 = vpop.permute.xlu0 %1061
      %1063 = vrot.lane.b32.xlu0 %v1029, 96
      %v1064 = vpop.permute.xlu0 %1063
      %1065 = vrot.lane.b32.xlu0 %v1030, 96
      %v1066 = vpop.permute.xlu0 %1065
      %vm1067 = vcmask 64512
      %v1069 = vsel %vm1067, %v1023, 0
      %v1072 = vsel %vm1067, %v1024, 0
      %v1075 = vsel %vm1067, %v1025, 0
      %v1078 = vsel %vm1067, %v1026, 0
      %v1081 = vsel %vm1067, %v1027, 0
      %v1084 = vsel %vm1067, %v1028, 0
      %v1087 = vsel %vm1067, %v1029, 0
      %v1090 = vsel %vm1067, %v1030, 0
      %v1093 = vsel %vm1067, %v1052, 0
      %v1096 = vsel %vm1067, %v1054, 0
      %v1099 = vsel %vm1067, %v1056, 0
      %v1102 = vsel %vm1067, %v1058, 0
      %v1105 = vsel %vm1067, %v1060, 0
      %v1108 = vsel %vm1067, %v1062, 0
      %v1111 = vsel %vm1067, %v1064, 0
      %v1114 = vsel %vm1067, %v1066, 0
      %1116 = vmatprep.subr.bf16.mxu0 0
      %1117 = vmatpush1.bf16.xpose.msra.mxu0 %v1093
      %1118 = vmatprep.subr.bf16.mxu0 0
      %1119 = vmatpush1.bf16.xpose.msra.mxu0 %v1096
      %1120 = vmatprep.subr.bf16.mxu0 0
      %1121 = vmatpush1.bf16.xpose.msra.mxu0 %v1099
      %1122 = vmatprep.subr.bf16.mxu0 0
      %1123 = vmatpush1.bf16.xpose.msra.mxu0 %v1102
      %1124 = vmatprep.subr.bf16.mxu0 0
      %1125 = vmatpush1.bf16.xpose.msra.mxu0 %v1105
      %1126 = vmatprep.subr.bf16.mxu0 0
      %1127 = vmatpush1.bf16.xpose.msra.mxu0 %v1108
      %1128 = vmatprep.subr.bf16.mxu0 0
      %1129 = vmatpush1.bf16.xpose.msra.mxu0 %v1111
      %1130 = vmatprep.subr.bf16.mxu0 0
      %1131 = vmatpush1.bf16.xpose.msra.mxu0 %v1114
      %1132 = vmatprep.subr.bf16.mxu0 0
      %1133 = vmatpush1.bf16.xpose.msra.mxu0 0
      %1134 = vmatprep.subr.bf16.mxu0 0
      %1135 = vmatpush1.bf16.xpose.msra.mxu0 0
      %1136 = vmatprep.subr.bf16.mxu0 0
      %1137 = vmatpush1.bf16.xpose.msra.mxu0 0
      %1138 = vmatprep.subr.bf16.mxu0 0
      %1139 = vmatpush1.bf16.xpose.msra.mxu0 0
      %1140 = vmatprep.subr.bf16.mxu0 0
      %1141 = vmatpush1.bf16.xpose.msra.mxu0 0
      %1142 = vmatprep.subr.bf16.mxu0 0
      %1143 = vmatpush1.bf16.xpose.msra.mxu0 0
      %1144 = vmatprep.subr.bf16.mxu0 0
      %1145 = vmatpush1.bf16.xpose.msra.mxu0 0
      %1146 = vmatprep.subr.bf16.mxu0 0
      %1147 = vmatpush1.bf16.xpose.msra.mxu0 0
      %1148 = vmatprep.mubr.bf16.mxu0 0
      %1149 = vmatmul.mubr.bf16.gmra.mrb[0].mxu0 %v1069
      %v1150 = vpop.f32.mrb[0].mxu0
      %v1151 = vadd.f32 0.0, %v1150
      %v1152 = vpop.f32.mrb[0].mxu0
      %v1153 = vpop.f32.mrb[0].mxu0
      %v1154 = vadd.f32 0.0, %v1153
      %v1155 = vpop.f32.mrb[0].mxu0
      %1156 = vmatprep.mubr.bf16.mxu0 0
      %1157 = vmatmul.mubr.bf16.gmra.mrb[0].mxu0 %v1072
      %v1158 = vpop.f32.mrb[0].mxu0
      %v1159 = vadd.f32 0.0, %v1158
      %v1160 = vpop.f32.mrb[0].mxu0
      %v1161 = vpop.f32.mrb[0].mxu0
      %v1162 = vadd.f32 0.0, %v1161
      %v1163 = vpop.f32.mrb[0].mxu0
      %1164 = vmatprep.mubr.bf16.mxu0 0
      %1165 = vmatmul.mubr.bf16.gmra.mrb[0].mxu0 %v1075
      %v1166 = vpop.f32.mrb[0].mxu0
      %v1167 = vadd.f32 0.0, %v1166
      %v1168 = vpop.f32.mrb[0].mxu0
      %v1169 = vpop.f32.mrb[0].mxu0
      %v1170 = vadd.f32 0.0, %v1169
      %v1171 = vpop.f32.mrb[0].mxu0
      %1172 = vmatprep.mubr.bf16.mxu0 0
      %1173 = vmatmul.mubr.bf16.gmra.mrb[0].mxu0 %v1078
      %v1174 = vpop.f32.mrb[0].mxu0
      %v1175 = vadd.f32 0.0, %v1174
      %v1176 = vpop.f32.mrb[0].mxu0
      %v1177 = vpop.f32.mrb[0].mxu0
      %v1178 = vadd.f32 0.0, %v1177
      %v1179 = vpop.f32.mrb[0].mxu0
      %1180 = vmatprep.mubr.bf16.mxu0 0
      %1181 = vmatmul.mubr.bf16.gmra.mrb[0].mxu0 %v1081
      %v1182 = vpop.f32.mrb[0].mxu0
      %v1183 = vadd.f32 0.0, %v1182
      %v1184 = vpop.f32.mrb[0].mxu0
      %v1185 = vpop.f32.mrb[0].mxu0
      %v1186 = vadd.f32 0.0, %v1185
      %v1187 = vpop.f32.mrb[0].mxu0
      %1188 = vmatprep.mubr.bf16.mxu0 0
      %1189 = vmatmul.mubr.bf16.gmra.mrb[0].mxu0 %v1084
      %v1190 = vpop.f32.mrb[0].mxu0
      %v1191 = vadd.f32 0.0, %v1190
      %v1192 = vpop.f32.mrb[0].mxu0
      %v1193 = vpop.f32.mrb[0].mxu0
      %v1194 = vadd.f32 0.0, %v1193
      %v1195 = vpop.f32.mrb[0].mxu0
      %1196 = vmatprep.mubr.bf16.mxu0 0
      %1197 = vmatmul.mubr.bf16.gmra.mrb[0].mxu0 %v1087
      %v1198 = vpop.f32.mrb[0].mxu0
      %v1199 = vadd.f32 0.0, %v1198
      %v1200 = vpop.f32.mrb[0].mxu0
      %v1201 = vpop.f32.mrb[0].mxu0
      %v1202 = vadd.f32 0.0, %v1201
      %v1203 = vpop.f32.mrb[0].mxu0
      %1204 = vmatprep.mubr.bf16.mxu0 0
      %1205 = vmatmul.mubr.bf16.gmra.mrb[0].mxu0 %v1090
      %v1206 = vpop.f32.mrb[0].mxu0
      %v1207 = vadd.f32 0.0, %v1206
      %v1208 = vpop.f32.mrb[0].mxu0
      %v1209 = vpop.f32.mrb[0].mxu0
      %v1210 = vadd.f32 0.0, %v1209
      %v1211 = vpop.f32.mrb[0].mxu0
      %1212 = vdwg.mxu0
      %1221 = vrot.lane.b32.xlu0 %v1031, 96
      %v1222 = vpop.permute.xlu0 %1221
      %1223 = vrot.lane.b32.xlu0 %v1032, 96
      %v1224 = vpop.permute.xlu0 %1223
      %1225 = vrot.lane.b32.xlu0 %v1033, 96
      %v1226 = vpop.permute.xlu0 %1225
      %1227 = vrot.lane.b32.xlu0 %v1034, 96
      %v1228 = vpop.permute.xlu0 %1227
      %1229 = vrot.lane.b32.xlu0 %v1035, 96
      %v1230 = vpop.permute.xlu0 %1229
      %1231 = vrot.lane.b32.xlu0 %v1036, 96
      %v1232 = vpop.permute.xlu0 %1231
      %1233 = vrot.lane.b32.xlu0 %v1037, 96
      %v1234 = vpop.permute.xlu0 %1233
      %1235 = vrot.lane.b32.xlu0 %v1038, 96
      %v1236 = vpop.permute.xlu0 %1235
      %v1238 = vsel %vm1067, %v1031, 0
      %v1241 = vsel %vm1067, %v1032, 0
      %v1244 = vsel %vm1067, %v1033, 0
      %v1247 = vsel %vm1067, %v1034, 0
      %v1250 = vsel %vm1067, %v1035, 0
      %v1253 = vsel %vm1067, %v1036, 0
      %v1256 = vsel %vm1067, %v1037, 0
      %v1259 = vsel %vm1067, %v1038, 0
      %v1262 = vsel %vm1067, %v1222, 0
      %v1265 = vsel %vm1067, %v1224, 0
      %v1268 = vsel %vm1067, %v1226, 0
      %v1271 = vsel %vm1067, %v1228, 0
      %v1274 = vsel %vm1067, %v1230, 0
      %v1277 = vsel %vm1067, %v1232, 0
      %v1280 = vsel %vm1067, %v1234, 0
      %v1283 = vsel %vm1067, %v1236, 0
      %1285 = vmatprep.subr.bf16.mxu0 0
      %1286 = vmatpush1.bf16.xpose.msra.mxu0 %v1262
      %1287 = vmatprep.subr.bf16.mxu0 0
      %1288 = vmatpush1.bf16.xpose.msra.mxu0 %v1265
      %1289 = vmatprep.subr.bf16.mxu0 0
      %1290 = vmatpush1.bf16.xpose.msra.mxu0 %v1268
      %1291 = vmatprep.subr.bf16.mxu0 0
      %1292 = vmatpush1.bf16.xpose.msra.mxu0 %v1271
      %1293 = vmatprep.subr.bf16.mxu0 0
      %1294 = vmatpush1.bf16.xpose.msra.mxu0 %v1274
      %1295 = vmatprep.subr.bf16.mxu0 0
      %1296 = vmatpush1.bf16.xpose.msra.mxu0 %v1277
      %1297 = vmatprep.subr.bf16.mxu0 0
      %1298 = vmatpush1.bf16.xpose.msra.mxu0 %v1280
      %1299 = vmatprep.subr.bf16.mxu0 0
      %1300 = vmatpush1.bf16.xpose.msra.mxu0 %v1283
      %1301 = vmatprep.subr.bf16.mxu0 0
      %1302 = vmatpush1.bf16.xpose.msra.mxu0 0
      %1303 = vmatprep.subr.bf16.mxu0 0
      %1304 = vmatpush1.bf16.xpose.msra.mxu0 0
      %1305 = vmatprep.subr.bf16.mxu0 0
      %1306 = vmatpush1.bf16.xpose.msra.mxu0 0
      %1307 = vmatprep.subr.bf16.mxu0 0
      %1308 = vmatpush1.bf16.xpose.msra.mxu0 0
      %1309 = vmatprep.subr.bf16.mxu0 0
      %1310 = vmatpush1.bf16.xpose.msra.mxu0 0
      %1311 = vmatprep.subr.bf16.mxu0 0
      %1312 = vmatpush1.bf16.xpose.msra.mxu0 0
      %1313 = vmatprep.subr.bf16.mxu0 0
      %1314 = vmatpush1.bf16.xpose.msra.mxu0 0
      %1315 = vmatprep.subr.bf16.mxu0 0
      %1316 = vmatpush1.bf16.xpose.msra.mxu0 0
      %1317 = vmatprep.mubr.bf16.mxu0 0
      %1318 = vmatmul.mubr.bf16.gmra.mrb[0].mxu0 %v1238
      %v1319 = vpop.f32.mrb[0].mxu0
      %v1320 = vadd.f32 0.0, %v1319
      %v1321 = vpop.f32.mrb[0].mxu0
      %v1322 = vpop.f32.mrb[0].mxu0
      %v1323 = vadd.f32 0.0, %v1322
      %v1324 = vpop.f32.mrb[0].mxu0
      %1325 = vmatprep.mubr.bf16.mxu0 0
      %1326 = vmatmul.mubr.bf16.gmra.mrb[0].mxu0 %v1241
      %v1327 = vpop.f32.mrb[0].mxu0
      %v1328 = vadd.f32 0.0, %v1327
      %v1329 = vpop.f32.mrb[0].mxu0
      %v1330 = vpop.f32.mrb[0].mxu0
      %v1331 = vadd.f32 0.0, %v1330
      %v1332 = vpop.f32.mrb[0].mxu0
      %1333 = vmatprep.mubr.bf16.mxu0 0
      %1334 = vmatmul.mubr.bf16.gmra.mrb[0].mxu0 %v1244
      %v1335 = vpop.f32.mrb[0].mxu0
      %v1336 = vadd.f32 0.0, %v1335
      %v1337 = vpop.f32.mrb[0].mxu0
      %v1338 = vpop.f32.mrb[0].mxu0
      %v1339 = vadd.f32 0.0, %v1338
      %v1340 = vpop.f32.mrb[0].mxu0
      %1341 = vmatprep.mubr.bf16.mxu0 0
      %1342 = vmatmul.mubr.bf16.gmra.mrb[0].mxu0 %v1247
      %v1343 = vpop.f32.mrb[0].mxu0
      %v1344 = vadd.f32 0.0, %v1343
      %v1345 = vpop.f32.mrb[0].mxu0
      %v1346 = vpop.f32.mrb[0].mxu0
      %v1347 = vadd.f32 0.0, %v1346
      %v1348 = vpop.f32.mrb[0].mxu0
      %1349 = vmatprep.mubr.bf16.mxu0 0
      %1350 = vmatmul.mubr.bf16.gmra.mrb[0].mxu0 %v1250
      %v1351 = vpop.f32.mrb[0].mxu0
      %v1352 = vadd.f32 0.0, %v1351
      %v1353 = vpop.f32.mrb[0].mxu0
      %v1354 = vpop.f32.mrb[0].mxu0
      %v1355 = vadd.f32 0.0, %v1354
      %v1356 = vpop.f32.mrb[0].mxu0
      %1357 = vmatprep.mubr.bf16.mxu0 0
      %1358 = vmatmul.mubr.bf16.gmra.mrb[0].mxu0 %v1253
      %v1359 = vpop.f32.mrb[0].mxu0
      %v1360 = vadd.f32 0.0, %v1359
      %v1361 = vpop.f32.mrb[0].mxu0
      %v1362 = vpop.f32.mrb[0].mxu0
      %v1363 = vadd.f32 0.0, %v1362
      %v1364 = vpop.f32.mrb[0].mxu0
      %1365 = vmatprep.mubr.bf16.mxu0 0
      %1366 = vmatmul.mubr.bf16.gmra.mrb[0].mxu0 %v1256
      %v1367 = vpop.f32.mrb[0].mxu0
      %v1368 = vadd.f32 0.0, %v1367
      %v1369 = vpop.f32.mrb[0].mxu0
      %v1370 = vpop.f32.mrb[0].mxu0
      %v1371 = vadd.f32 0.0, %v1370
      %v1372 = vpop.f32.mrb[0].mxu0
      %1373 = vmatprep.mubr.bf16.mxu0 0
      %1374 = vmatmul.mubr.bf16.gmra.mrb[0].mxu0 %v1259
      %v1375 = vpop.f32.mrb[0].mxu0
      %v1376 = vadd.f32 0.0, %v1375
      %v1377 = vpop.f32.mrb[0].mxu0
      %v1378 = vpop.f32.mrb[0].mxu0
      %v1379 = vadd.f32 0.0, %v1378
      %v1380 = vpop.f32.mrb[0].mxu0
      %1381 = vdwg.mxu0
      %v1382 = vmul.f32 %v1151, 0.35355338
      %v1383 = vmul.f32 %v1154, 0.35355338
      %v1384 = vmul.f32 %v1159, 0.35355338
      %v1385 = vmul.f32 %v1162, 0.35355338
      %v1386 = vmul.f32 %v1167, 0.35355338
      %v1387 = vmul.f32 %v1170, 0.35355338
      %v1388 = vmul.f32 %v1175, 0.35355338
      %v1389 = vmul.f32 %v1178, 0.35355338
      %v1390 = vmul.f32 %v1183, 0.35355338
      %v1391 = vmul.f32 %v1186, 0.35355338
      %v1392 = vmul.f32 %v1191, 0.35355338
      %v1393 = vmul.f32 %v1194, 0.35355338
      %v1394 = vmul.f32 %v1199, 0.35355338
      %v1395 = vmul.f32 %v1202, 0.35355338
      %v1396 = vmul.f32 %v1207, 0.35355338
      %v1397 = vmul.f32 %v1210, 0.35355338
      %v1398 = vmul.f32 %v1320, 0.35355338
      %v1399 = vmul.f32 %v1323, 0.35355338
      %v1400 = vmul.f32 %v1328, 0.35355338
      %v1401 = vmul.f32 %v1331, 0.35355338
      %v1402 = vmul.f32 %v1336, 0.35355338
      %v1403 = vmul.f32 %v1339, 0.35355338
      %v1404 = vmul.f32 %v1344, 0.35355338
      %v1405 = vmul.f32 %v1347, 0.35355338
      %v1406 = vmul.f32 %v1352, 0.35355338
      %v1407 = vmul.f32 %v1355, 0.35355338
      %v1408 = vmul.f32 %v1360, 0.35355338
      %v1409 = vmul.f32 %v1363, 0.35355338
      %v1410 = vmul.f32 %v1368, 0.35355338
      %v1411 = vmul.f32 %v1371, 0.35355338
      %v1412 = vmul.f32 %v1376, 0.35355338
      %v1413 = vmul.f32 %v1379, 0.35355338
      %v1414 = vadd.f32 %v1382, %v484
      %v1415 = vadd.f32 %v1383, %v484
      %v1416 = vadd.f32 %v1384, %v484
      %v1417 = vadd.f32 %v1385, %v484
      %v1418 = vadd.f32 %v1386, %v484
      %v1419 = vadd.f32 %v1387, %v484
      %v1420 = vadd.f32 %v1388, %v484
      %v1421 = vadd.f32 %v1389, %v484
      %v1422 = vadd.f32 %v1390, %v484
      %v1423 = vadd.f32 %v1391, %v484
      %v1424 = vadd.f32 %v1392, %v484
      %v1425 = vadd.f32 %v1393, %v484
      %v1426 = vadd.f32 %v1394, %v484
      %v1427 = vadd.f32 %v1395, %v484
      %v1428 = vadd.f32 %v1396, %v484
      %v1429 = vadd.f32 %v1397, %v484
      %v1430 = vadd.f32 %v1398, %v484
      %v1431 = vadd.f32 %v1399, %v484
      %v1432 = vadd.f32 %v1400, %v484
      %v1433 = vadd.f32 %v1401, %v484
      %v1434 = vadd.f32 %v1402, %v484
      %v1435 = vadd.f32 %v1403, %v484
      %v1436 = vadd.f32 %v1404, %v484
      %v1437 = vadd.f32 %v1405, %v484
      %v1438 = vadd.f32 %v1406, %v484
      %v1439 = vadd.f32 %v1407, %v484
      %v1440 = vadd.f32 %v1408, %v484
      %v1441 = vadd.f32 %v1409, %v484
      %v1442 = vadd.f32 %v1410, %v484
      %v1443 = vadd.f32 %v1411, %v484
      %v1444 = vadd.f32 %v1412, %v484
      %v1445 = vadd.f32 %v1413, %v484
      %1446 = vmax.xlane.f32.xlu0 %v1414
      %v1447 = vpop.xlane.xlu0 %1446
      %1448 = vmax.xlane.f32.xlu0 %v1415
      %v1449 = vpop.xlane.xlu0 %1448
      %1450 = vmax.xlane.f32.xlu0 %v1416
      %v1451 = vpop.xlane.xlu0 %1450
      %1452 = vmax.xlane.f32.xlu0 %v1417
      %v1453 = vpop.xlane.xlu0 %1452
      %1454 = vmax.xlane.f32.xlu0 %v1418
      %v1455 = vpop.xlane.xlu0 %1454
      %1456 = vmax.xlane.f32.xlu0 %v1419
      %v1457 = vpop.xlane.xlu0 %1456
      %1458 = vmax.xlane.f32.xlu0 %v1420
      %v1459 = vpop.xlane.xlu0 %1458
      %1460 = vmax.xlane.f32.xlu0 %v1421
      %v1461 = vpop.xlane.xlu0 %1460
      %1462 = vmax.xlane.f32.xlu0 %v1422
      %v1463 = vpop.xlane.xlu0 %1462
      %1464 = vmax.xlane.f32.xlu0 %v1423
      %v1465 = vpop.xlane.xlu0 %1464
      %1466 = vmax.xlane.f32.xlu0 %v1424
      %v1467 = vpop.xlane.xlu0 %1466
      %1468 = vmax.xlane.f32.xlu0 %v1425
      %v1469 = vpop.xlane.xlu0 %1468
      %1470 = vmax.xlane.f32.xlu0 %v1426
      %v1471 = vpop.xlane.xlu0 %1470
      %1472 = vmax.xlane.f32.xlu0 %v1427
      %v1473 = vpop.xlane.xlu0 %1472
      %1474 = vmax.xlane.f32.xlu0 %v1428
      %v1475 = vpop.xlane.xlu0 %1474
      %1476 = vmax.xlane.f32.xlu0 %v1429
      %v1477 = vpop.xlane.xlu0 %1476
      %1478 = vmax.xlane.f32.xlu0 %v1430
      %v1479 = vpop.xlane.xlu0 %1478
      %1480 = vmax.xlane.f32.xlu0 %v1431
      %v1481 = vpop.xlane.xlu0 %1480
      %1482 = vmax.xlane.f32.xlu0 %v1432
      %v1483 = vpop.xlane.xlu0 %1482
      %1484 = vmax.xlane.f32.xlu0 %v1433
      %v1485 = vpop.xlane.xlu0 %1484
      %1486 = vmax.xlane.f32.xlu0 %v1434
      %v1487 = vpop.xlane.xlu0 %1486
      %1488 = vmax.xlane.f32.xlu0 %v1435
      %v1489 = vpop.xlane.xlu0 %1488
      %1490 = vmax.xlane.f32.xlu0 %v1436
      %v1491 = vpop.xlane.xlu0 %1490
      %1492 = vmax.xlane.f32.xlu0 %v1437
      %v1493 = vpop.xlane.xlu0 %1492
      %1494 = vmax.xlane.f32.xlu0 %v1438
      %v1495 = vpop.xlane.xlu0 %1494
      %1496 = vmax.xlane.f32.xlu0 %v1439
      %v1497 = vpop.xlane.xlu0 %1496
      %1498 = vmax.xlane.f32.xlu0 %v1440
      %v1499 = vpop.xlane.xlu0 %1498
      %1500 = vmax.xlane.f32.xlu0 %v1441
      %v1501 = vpop.xlane.xlu0 %1500
      %1502 = vmax.xlane.f32.xlu0 %v1442
      %v1503 = vpop.xlane.xlu0 %1502
      %1504 = vmax.xlane.f32.xlu0 %v1443
      %v1505 = vpop.xlane.xlu0 %1504
      %1506 = vmax.xlane.f32.xlu0 %v1444
      %v1507 = vpop.xlane.xlu0 %1506
      %1508 = vmax.xlane.f32.xlu0 %v1445
      %v1509 = vpop.xlane.xlu0 %1508
      %v1510 = vsub.f32 %v1414, %v1447
      %v1511 = vsub.f32 %v1415, %v1449
      %v1512 = vsub.f32 %v1416, %v1451
      %v1513 = vsub.f32 %v1417, %v1453
      %v1514 = vsub.f32 %v1418, %v1455
      %v1515 = vsub.f32 %v1419, %v1457
      %v1516 = vsub.f32 %v1420, %v1459
      %v1517 = vsub.f32 %v1421, %v1461
      %v1518 = vsub.f32 %v1422, %v1463
      %v1519 = vsub.f32 %v1423, %v1465
      %v1520 = vsub.f32 %v1424, %v1467
      %v1521 = vsub.f32 %v1425, %v1469
      %v1522 = vsub.f32 %v1426, %v1471
      %v1523 = vsub.f32 %v1427, %v1473
      %v1524 = vsub.f32 %v1428, %v1475
      %v1525 = vsub.f32 %v1429, %v1477
      %v1526 = vsub.f32 %v1430, %v1479
      %v1527 = vsub.f32 %v1431, %v1481
      %v1528 = vsub.f32 %v1432, %v1483
      %v1529 = vsub.f32 %v1433, %v1485
      %v1530 = vsub.f32 %v1434, %v1487
      %v1531 = vsub.f32 %v1435, %v1489
      %v1532 = vsub.f32 %v1436, %v1491
      %v1533 = vsub.f32 %v1437, %v1493
      %v1534 = vsub.f32 %v1438, %v1495
      %v1535 = vsub.f32 %v1439, %v1497
      %v1536 = vsub.f32 %v1440, %v1499
      %v1537 = vsub.f32 %v1441, %v1501
      %v1538 = vsub.f32 %v1442, %v1503
      %v1539 = vsub.f32 %v1443, %v1505
      %v1540 = vsub.f32 %v1444, %v1507
      %v1541 = vsub.f32 %v1445, %v1509
      %v1542 = vmul.f32 %v1510, 1.442695
      %v1543 = vpow.pop %v1542
      %v1544 = vmul.f32 %v1511, 1.442695
      %v1545 = vpow.pop %v1544
      %v1546 = vmul.f32 %v1512, 1.442695
      %v1547 = vpow.pop %v1546
      %v1548 = vmul.f32 %v1513, 1.442695
      %v1549 = vpow.pop %v1548
      %v1550 = vmul.f32 %v1514, 1.442695
      %v1551 = vpow.pop %v1550
      %v1552 = vmul.f32 %v1515, 1.442695
      %v1553 = vpow.pop %v1552
      %v1554 = vmul.f32 %v1516, 1.442695
      %v1555 = vpow.pop %v1554
      %v1556 = vmul.f32 %v1517, 1.442695
      %v1557 = vpow.pop %v1556
      %v1558 = vmul.f32 %v1518, 1.442695
      %v1559 = vpow.pop %v1558
      %v1560 = vmul.f32 %v1519, 1.442695
      %v1561 = vpow.pop %v1560
      %v1562 = vmul.f32 %v1520, 1.442695
      %v1563 = vpow.pop %v1562
      %v1564 = vmul.f32 %v1521, 1.442695
      %v1565 = vpow.pop %v1564
      %v1566 = vmul.f32 %v1522, 1.442695
      %v1567 = vpow.pop %v1566
      %v1568 = vmul.f32 %v1523, 1.442695
      %v1569 = vpow.pop %v1568
      %v1570 = vmul.f32 %v1524, 1.442695
      %v1571 = vpow.pop %v1570
      %v1572 = vmul.f32 %v1525, 1.442695
      %v1573 = vpow.pop %v1572
      %v1574 = vmul.f32 %v1526, 1.442695
      %v1575 = vpow.pop %v1574
      %v1576 = vmul.f32 %v1527, 1.442695
      %v1577 = vpow.pop %v1576
      %v1578 = vmul.f32 %v1528, 1.442695
      %v1579 = vpow.pop %v1578
      %v1580 = vmul.f32 %v1529, 1.442695
      %v1581 = vpow.pop %v1580
      %v1582 = vmul.f32 %v1530, 1.442695
      %v1583 = vpow.pop %v1582
      %v1584 = vmul.f32 %v1531, 1.442695
      %v1585 = vpow.pop %v1584
      %v1586 = vmul.f32 %v1532, 1.442695
      %v1587 = vpow.pop %v1586
      %v1588 = vmul.f32 %v1533, 1.442695
      %v1589 = vpow.pop %v1588
      %v1590 = vmul.f32 %v1534, 1.442695
      %v1591 = vpow.pop %v1590
      %v1592 = vmul.f32 %v1535, 1.442695
      %v1593 = vpow.pop %v1592
      %v1594 = vmul.f32 %v1536, 1.442695
      %v1595 = vpow.pop %v1594
      %v1596 = vmul.f32 %v1537, 1.442695
      %v1597 = vpow.pop %v1596
      %v1598 = vmul.f32 %v1538, 1.442695
      %v1599 = vpow.pop %v1598
      %v1600 = vmul.f32 %v1539, 1.442695
      %v1601 = vpow.pop %v1600
      %v1602 = vmul.f32 %v1540, 1.442695
      %v1603 = vpow.pop %v1602
      %v1604 = vmul.f32 %v1541, 1.442695
      %v1605 = vpow.pop %v1604
      %1606 = vadd.xlane.f32.xlu0 %v1543
      %v1607 = vpop.xlane.xlu0 %1606
      %1608 = vadd.xlane.f32.xlu0 %v1545
      %v1609 = vpop.xlane.xlu0 %1608
      %1610 = vadd.xlane.f32.xlu0 %v1547
      %v1611 = vpop.xlane.xlu0 %1610
      %1612 = vadd.xlane.f32.xlu0 %v1549
      %v1613 = vpop.xlane.xlu0 %1612
      %1614 = vadd.xlane.f32.xlu0 %v1551
      %v1615 = vpop.xlane.xlu0 %1614
      %1616 = vadd.xlane.f32.xlu0 %v1553
      %v1617 = vpop.xlane.xlu0 %1616
      %1618 = vadd.xlane.f32.xlu0 %v1555
      %v1619 = vpop.xlane.xlu0 %1618
      %1620 = vadd.xlane.f32.xlu0 %v1557
      %v1621 = vpop.xlane.xlu0 %1620
      %1622 = vadd.xlane.f32.xlu0 %v1559
      %v1623 = vpop.xlane.xlu0 %1622
      %1624 = vadd.xlane.f32.xlu0 %v1561
      %v1625 = vpop.xlane.xlu0 %1624
      %1626 = vadd.xlane.f32.xlu0 %v1563
      %v1627 = vpop.xlane.xlu0 %1626
      %1628 = vadd.xlane.f32.xlu0 %v1565
      %v1629 = vpop.xlane.xlu0 %1628
      %1630 = vadd.xlane.f32.xlu0 %v1567
      %v1631 = vpop.xlane.xlu0 %1630
      %1632 = vadd.xlane.f32.xlu0 %v1569
      %v1633 = vpop.xlane.xlu0 %1632
      %1634 = vadd.xlane.f32.xlu0 %v1571
      %v1635 = vpop.xlane.xlu0 %1634
      %1636 = vadd.xlane.f32.xlu0 %v1573
      %v1637 = vpop.xlane.xlu0 %1636
      %1638 = vadd.xlane.f32.xlu0 %v1575
      %v1639 = vpop.xlane.xlu0 %1638
      %1640 = vadd.xlane.f32.xlu0 %v1577
      %v1641 = vpop.xlane.xlu0 %1640
      %1642 = vadd.xlane.f32.xlu0 %v1579
      %v1643 = vpop.xlane.xlu0 %1642
      %1644 = vadd.xlane.f32.xlu0 %v1581
      %v1645 = vpop.xlane.xlu0 %1644
      %1646 = vadd.xlane.f32.xlu0 %v1583
      %v1647 = vpop.xlane.xlu0 %1646
      %1648 = vadd.xlane.f32.xlu0 %v1585
      %v1649 = vpop.xlane.xlu0 %1648
      %1650 = vadd.xlane.f32.xlu0 %v1587
      %v1651 = vpop.xlane.xlu0 %1650
      %1652 = vadd.xlane.f32.xlu0 %v1589
      %v1653 = vpop.xlane.xlu0 %1652
      %1654 = vadd.xlane.f32.xlu0 %v1591
      %v1655 = vpop.xlane.xlu0 %1654
      %1656 = vadd.xlane.f32.xlu0 %v1593
      %v1657 = vpop.xlane.xlu0 %1656
      %1658 = vadd.xlane.f32.xlu0 %v1595
      %v1659 = vpop.xlane.xlu0 %1658
      %1660 = vadd.xlane.f32.xlu0 %v1597
      %v1661 = vpop.xlane.xlu0 %1660
      %1662 = vadd.xlane.f32.xlu0 %v1599
      %v1663 = vpop.xlane.xlu0 %1662
      %1664 = vadd.xlane.f32.xlu0 %v1601
      %v1665 = vpop.xlane.xlu0 %1664
      %1666 = vadd.xlane.f32.xlu0 %v1603
      %v1667 = vpop.xlane.xlu0 %1666
      %1668 = vadd.xlane.f32.xlu0 %v1605
      %v1669 = vpop.xlane.xlu0 %1668
      %v1670 = vrcp.pop %v1607
      %v1671 = vrcp.pop %v1609
      %v1672 = vrcp.pop %v1611
      %v1673 = vrcp.pop %v1613
      %v1674 = vrcp.pop %v1615
      %v1675 = vrcp.pop %v1617
      %v1676 = vrcp.pop %v1619
      %v1677 = vrcp.pop %v1621
      %v1678 = vrcp.pop %v1623
      %v1679 = vrcp.pop %v1625
      %v1680 = vrcp.pop %v1627
      %v1681 = vrcp.pop %v1629
      %v1682 = vrcp.pop %v1631
      %v1683 = vrcp.pop %v1633
      %v1684 = vrcp.pop %v1635
      %v1685 = vrcp.pop %v1637
      %v1686 = vrcp.pop %v1639
      %v1687 = vrcp.pop %v1641
      %v1688 = vrcp.pop %v1643
      %v1689 = vrcp.pop %v1645
      %v1690 = vrcp.pop %v1647
      %v1691 = vrcp.pop %v1649
      %v1692 = vrcp.pop %v1651
      %v1693 = vrcp.pop %v1653
      %v1694 = vrcp.pop %v1655
      %v1695 = vrcp.pop %v1657
      %v1696 = vrcp.pop %v1659
      %v1697 = vrcp.pop %v1661
      %v1698 = vrcp.pop %v1663
      %v1699 = vrcp.pop %v1665
      %v1700 = vrcp.pop %v1667
      %v1701 = vrcp.pop %v1669
      %v1702 = vmul.f32 %v1543, %v1670
      %v1703 = vmul.f32 %v1545, %v1671
      %v1704 = vmul.f32 %v1547, %v1672
      %v1705 = vmul.f32 %v1549, %v1673
      %v1706 = vmul.f32 %v1551, %v1674
      %v1707 = vmul.f32 %v1553, %v1675
      %v1708 = vmul.f32 %v1555, %v1676
      %v1709 = vmul.f32 %v1557, %v1677
      %v1710 = vmul.f32 %v1559, %v1678
      %v1711 = vmul.f32 %v1561, %v1679
      %v1712 = vmul.f32 %v1563, %v1680
      %v1713 = vmul.f32 %v1565, %v1681
      %v1714 = vmul.f32 %v1567, %v1682
      %v1715 = vmul.f32 %v1569, %v1683
      %v1716 = vmul.f32 %v1571, %v1684
      %v1717 = vmul.f32 %v1573, %v1685
      %v1718 = vmul.f32 %v1575, %v1686
      %v1719 = vmul.f32 %v1577, %v1687
      %v1720 = vmul.f32 %v1579, %v1688
      %v1721 = vmul.f32 %v1581, %v1689
      %v1722 = vmul.f32 %v1583, %v1690
      %v1723 = vmul.f32 %v1585, %v1691
      %v1724 = vmul.f32 %v1587, %v1692
      %v1725 = vmul.f32 %v1589, %v1693
      %v1726 = vmul.f32 %v1591, %v1694
      %v1727 = vmul.f32 %v1593, %v1695
      %v1728 = vmul.f32 %v1595, %v1696
      %v1729 = vmul.f32 %v1597, %v1697
      %v1730 = vmul.f32 %v1599, %v1698
      %v1731 = vmul.f32 %v1601, %v1699
      %v1732 = vmul.f32 %v1603, %v1700
      %v1733 = vmul.f32 %v1605, %v1701
      %v1734 = vpack.c.bf16 %v1703, %v1702
      %v1735 = vpack.c.bf16 %v1705, %v1704
      %v1736 = vpack.c.bf16 %v1707, %v1706
      %v1737 = vpack.c.bf16 %v1709, %v1708
      %v1738 = vpack.c.bf16 %v1711, %v1710
      %v1739 = vpack.c.bf16 %v1713, %v1712
      %v1740 = vpack.c.bf16 %v1715, %v1714
      %v1741 = vpack.c.bf16 %v1717, %v1716
      %v1742 = vpack.c.bf16 %v1719, %v1718
      %v1743 = vpack.c.bf16 %v1721, %v1720
      %v1744 = vpack.c.bf16 %v1723, %v1722
      %v1745 = vpack.c.bf16 %v1725, %v1724
      %v1746 = vpack.c.bf16 %v1727, %v1726
      %v1747 = vpack.c.bf16 %v1729, %v1728
      %v1748 = vpack.c.bf16 %v1731, %v1730
      %v1749 = vpack.c.bf16 %v1733, %v1732
      %1750 = vrot.lane.b32.xlu0 %v1023, 64
      %v1751 = vpop.permute.xlu0 %1750
      %1752 = vrot.lane.b32.xlu0 %v1024, 64
      %v1753 = vpop.permute.xlu0 %1752
      %1754 = vrot.lane.b32.xlu0 %v1025, 64
      %v1755 = vpop.permute.xlu0 %1754
      %1756 = vrot.lane.b32.xlu0 %v1026, 64
      %v1757 = vpop.permute.xlu0 %1756
      %1758 = vrot.lane.b32.xlu0 %v1027, 64
      %v1759 = vpop.permute.xlu0 %1758
      %1760 = vrot.lane.b32.xlu0 %v1028, 64
      %v1761 = vpop.permute.xlu0 %1760
      %1762 = vrot.lane.b32.xlu0 %v1029, 64
      %v1763 = vpop.permute.xlu0 %1762
      %1764 = vrot.lane.b32.xlu0 %v1030, 64
      %v1765 = vpop.permute.xlu0 %1764
      %1774 = vmatprep.subr.bf16.mxu0 0
      %1775 = vmatpush1.bf16.msra.mxu0 %v1751
      %1776 = vmatprep.subr.bf16.mxu0 0
      %1777 = vmatpush1.bf16.msra.mxu0 %v1753
      %1778 = vmatprep.subr.bf16.mxu0 0
      %1779 = vmatpush1.bf16.msra.mxu0 %v1755
      %1780 = vmatprep.subr.bf16.mxu0 0
      %1781 = vmatpush1.bf16.msra.mxu0 %v1757
      %1782 = vmatprep.subr.bf16.mxu0 0
      %1783 = vmatpush1.bf16.msra.mxu0 %v1759
      %1784 = vmatprep.subr.bf16.mxu0 0
      %1785 = vmatpush1.bf16.msra.mxu0 %v1761
      %1786 = vmatprep.subr.bf16.mxu0 0
      %1787 = vmatpush1.bf16.msra.mxu0 %v1763
      %1788 = vmatprep.subr.bf16.mxu0 0
      %1789 = vmatpush1.bf16.msra.mxu0 %v1765
      %1790 = vmatprep.subr.bf16.mxu0 0
      %1791 = vmatpush1.bf16.msra.mxu0 0
      %1792 = vmatprep.subr.bf16.mxu0 0
      %1793 = vmatpush1.bf16.msra.mxu0 0
      %1794 = vmatprep.subr.bf16.mxu0 0
      %1795 = vmatpush1.bf16.msra.mxu0 0
      %1796 = vmatprep.subr.bf16.mxu0 0
      %1797 = vmatpush1.bf16.msra.mxu0 0
      %1798 = vmatprep.subr.bf16.mxu0 0
      %1799 = vmatpush1.bf16.msra.mxu0 0
      %1800 = vmatprep.subr.bf16.mxu0 0
      %1801 = vmatpush1.bf16.msra.mxu0 0
      %1802 = vmatprep.subr.bf16.mxu0 0
      %1803 = vmatpush1.bf16.msra.mxu0 0
      %1804 = vmatprep.subr.bf16.mxu0 0
      %1805 = vmatpush1.bf16.msra.mxu0 0
      %1806 = vmatprep.mubr.bf16.mxu0 0
      %1807 = vmatmul.mubr.bf16.gmra.mrb[0].mxu0 %v1734
      %v1808 = vpop.f32.mrb[0].mxu0
      %v1809 = vadd.f32 0.0, %v1808
      %v1810 = vpop.f32.mrb[0].mxu0
      %v1811 = vpop.f32.mrb[0].mxu0
      %v1812 = vadd.f32 0.0, %v1811
      %v1813 = vpop.f32.mrb[0].mxu0
      %1814 = vmatprep.mubr.bf16.mxu0 0
      %1815 = vmatmul.mubr.bf16.gmra.mrb[0].mxu0 %v1735
      %v1816 = vpop.f32.mrb[0].mxu0
      %v1817 = vadd.f32 0.0, %v1816
      %v1818 = vpop.f32.mrb[0].mxu0
      %v1819 = vpop.f32.mrb[0].mxu0
      %v1820 = vadd.f32 0.0, %v1819
      %v1821 = vpop.f32.mrb[0].mxu0
      %1822 = vmatprep.mubr.bf16.mxu0 0
      %1823 = vmatmul.mubr.bf16.gmra.mrb[0].mxu0 %v1736
      %v1824 = vpop.f32.mrb[0].mxu0
      %v1825 = vadd.f32 0.0, %v1824
      %v1826 = vpop.f32.mrb[0].mxu0
      %v1827 = vpop.f32.mrb[0].mxu0
      %v1828 = vadd.f32 0.0, %v1827
      %v1829 = vpop.f32.mrb[0].mxu0
      %1830 = vmatprep.mubr.bf16.mxu0 0
      %1831 = vmatmul.mubr.bf16.gmra.mrb[0].mxu0 %v1737
      %v1832 = vpop.f32.mrb[0].mxu0
      %v1833 = vadd.f32 0.0, %v1832
      %v1834 = vpop.f32.mrb[0].mxu0
      %v1835 = vpop.f32.mrb[0].mxu0
      %v1836 = vadd.f32 0.0, %v1835
      %v1837 = vpop.f32.mrb[0].mxu0
      %1838 = vmatprep.mubr.bf16.mxu0 0
      %1839 = vmatmul.mubr.bf16.gmra.mrb[0].mxu0 %v1738
      %v1840 = vpop.f32.mrb[0].mxu0
      %v1841 = vadd.f32 0.0, %v1840
      %v1842 = vpop.f32.mrb[0].mxu0
      %v1843 = vpop.f32.mrb[0].mxu0
      %v1844 = vadd.f32 0.0, %v1843
      %v1845 = vpop.f32.mrb[0].mxu0
      %1846 = vmatprep.mubr.bf16.mxu0 0
      %1847 = vmatmul.mubr.bf16.gmra.mrb[0].mxu0 %v1739
      %v1848 = vpop.f32.mrb[0].mxu0
      %v1849 = vadd.f32 0.0, %v1848
      %v1850 = vpop.f32.mrb[0].mxu0
      %v1851 = vpop.f32.mrb[0].mxu0
      %v1852 = vadd.f32 0.0, %v1851
      %v1853 = vpop.f32.mrb[0].mxu0
      %1854 = vmatprep.mubr.bf16.mxu0 0
      %1855 = vmatmul.mubr.bf16.gmra.mrb[0].mxu0 %v1740
      %v1856 = vpop.f32.mrb[0].mxu0
      %v1857 = vadd.f32 0.0, %v1856
      %v1858 = vpop.f32.mrb[0].mxu0
      %v1859 = vpop.f32.mrb[0].mxu0
      %v1860 = vadd.f32 0.0, %v1859
      %v1861 = vpop.f32.mrb[0].mxu0
      %1862 = vmatprep.mubr.bf16.mxu0 0
      %1863 = vmatmul.mubr.bf16.gmra.mrb[0].mxu0 %v1741
      %v1864 = vpop.f32.mrb[0].mxu0
      %v1865 = vadd.f32 0.0, %v1864
      %v1866 = vpop.f32.mrb[0].mxu0
      %v1867 = vpop.f32.mrb[0].mxu0
      %v1868 = vadd.f32 0.0, %v1867
      %v1869 = vpop.f32.mrb[0].mxu0
      %1870 = vdwg.mxu0
      %1871 = vrot.lane.b32.xlu0 %v1031, 64
      %v1872 = vpop.permute.xlu0 %1871
      %1873 = vrot.lane.b32.xlu0 %v1032, 64
      %v1874 = vpop.permute.xlu0 %1873
      %1875 = vrot.lane.b32.xlu0 %v1033, 64
      %v1876 = vpop.permute.xlu0 %1875
      %1877 = vrot.lane.b32.xlu0 %v1034, 64
      %v1878 = vpop.permute.xlu0 %1877
      %1879 = vrot.lane.b32.xlu0 %v1035, 64
      %v1880 = vpop.permute.xlu0 %1879
      %1881 = vrot.lane.b32.xlu0 %v1036, 64
      %v1882 = vpop.permute.xlu0 %1881
      %1883 = vrot.lane.b32.xlu0 %v1037, 64
      %v1884 = vpop.permute.xlu0 %1883
      %1885 = vrot.lane.b32.xlu0 %v1038, 64
      %v1886 = vpop.permute.xlu0 %1885
      %1895 = vmatprep.subr.bf16.mxu0 0
      %1896 = vmatpush1.bf16.msra.mxu0 %v1872
      %1897 = vmatprep.subr.bf16.mxu0 0
      %1898 = vmatpush1.bf16.msra.mxu0 %v1874
      %1899 = vmatprep.subr.bf16.mxu0 0
      %1900 = vmatpush1.bf16.msra.mxu0 %v1876
      %1901 = vmatprep.subr.bf16.mxu0 0
      %1902 = vmatpush1.bf16.msra.mxu0 %v1878
      %1903 = vmatprep.subr.bf16.mxu0 0
      %1904 = vmatpush1.bf16.msra.mxu0 %v1880
      %1905 = vmatprep.subr.bf16.mxu0 0
      %1906 = vmatpush1.bf16.msra.mxu0 %v1882
      %1907 = vmatprep.subr.bf16.mxu0 0
      %1908 = vmatpush1.bf16.msra.mxu0 %v1884
      %1909 = vmatprep.subr.bf16.mxu0 0
      %1910 = vmatpush1.bf16.msra.mxu0 %v1886
      %1911 = vmatprep.subr.bf16.mxu0 0
      %1912 = vmatpush1.bf16.msra.mxu0 0
      %1913 = vmatprep.subr.bf16.mxu0 0
      %1914 = vmatpush1.bf16.msra.mxu0 0
      %1915 = vmatprep.subr.bf16.mxu0 0
      %1916 = vmatpush1.bf16.msra.mxu0 0
      %1917 = vmatprep.subr.bf16.mxu0 0
      %1918 = vmatpush1.bf16.msra.mxu0 0
      %1919 = vmatprep.subr.bf16.mxu0 0
      %1920 = vmatpush1.bf16.msra.mxu0 0
      %1921 = vmatprep.subr.bf16.mxu0 0
      %1922 = vmatpush1.bf16.msra.mxu0 0
      %1923 = vmatprep.subr.bf16.mxu0 0
      %1924 = vmatpush1.bf16.msra.mxu0 0
      %1925 = vmatprep.subr.bf16.mxu0 0
      %1926 = vmatpush1.bf16.msra.mxu0 0
      %1927 = vmatprep.mubr.bf16.mxu0 0
      %1928 = vmatmul.mubr.bf16.gmra.mrb[0].mxu0 %v1742
      %v1929 = vpop.f32.mrb[0].mxu0
      %v1930 = vadd.f32 0.0, %v1929
      %v1931 = vpop.f32.mrb[0].mxu0
      %v1932 = vpop.f32.mrb[0].mxu0
      %v1933 = vadd.f32 0.0, %v1932
      %v1934 = vpop.f32.mrb[0].mxu0
      %1935 = vmatprep.mubr.bf16.mxu0 0
      %1936 = vmatmul.mubr.bf16.gmra.mrb[0].mxu0 %v1743
      %v1937 = vpop.f32.mrb[0].mxu0
      %v1938 = vadd.f32 0.0, %v1937
      %v1939 = vpop.f32.mrb[0].mxu0
      %v1940 = vpop.f32.mrb[0].mxu0
      %v1941 = vadd.f32 0.0, %v1940
      %v1942 = vpop.f32.mrb[0].mxu0
      %1943 = vmatprep.mubr.bf16.mxu0 0
      %1944 = vmatmul.mubr.bf16.gmra.mrb[0].mxu0 %v1744
      %v1945 = vpop.f32.mrb[0].mxu0
      %v1946 = vadd.f32 0.0, %v1945
      %v1947 = vpop.f32.mrb[0].mxu0
      %v1948 = vpop.f32.mrb[0].mxu0
      %v1949 = vadd.f32 0.0, %v1948
      %v1950 = vpop.f32.mrb[0].mxu0
      %1951 = vmatprep.mubr.bf16.mxu0 0
      %1952 = vmatmul.mubr.bf16.gmra.mrb[0].mxu0 %v1745
      %v1953 = vpop.f32.mrb[0].mxu0
      %v1954 = vadd.f32 0.0, %v1953
      %v1955 = vpop.f32.mrb[0].mxu0
      %v1956 = vpop.f32.mrb[0].mxu0
      %v1957 = vadd.f32 0.0, %v1956
      %v1958 = vpop.f32.mrb[0].mxu0
      %1959 = vmatprep.mubr.bf16.mxu0 0
      %1960 = vmatmul.mubr.bf16.gmra.mrb[0].mxu0 %v1746
      %v1961 = vpop.f32.mrb[0].mxu0
      %v1962 = vadd.f32 0.0, %v1961
      %v1963 = vpop.f32.mrb[0].mxu0
      %v1964 = vpop.f32.mrb[0].mxu0
      %v1965 = vadd.f32 0.0, %v1964
      %v1966 = vpop.f32.mrb[0].mxu0
      %1967 = vmatprep.mubr.bf16.mxu0 0
      %1968 = vmatmul.mubr.bf16.gmra.mrb[0].mxu0 %v1747
      %v1969 = vpop.f32.mrb[0].mxu0
      %v1970 = vadd.f32 0.0, %v1969
      %v1971 = vpop.f32.mrb[0].mxu0
      %v1972 = vpop.f32.mrb[0].mxu0
      %v1973 = vadd.f32 0.0, %v1972
      %v1974 = vpop.f32.mrb[0].mxu0
      %1975 = vmatprep.mubr.bf16.mxu0 0
      %1976 = vmatmul.mubr.bf16.gmra.mrb[0].mxu0 %v1748
      %v1977 = vpop.f32.mrb[0].mxu0
      %v1978 = vadd.f32 0.0, %v1977
      %v1979 = vpop.f32.mrb[0].mxu0
      %v1980 = vpop.f32.mrb[0].mxu0
      %v1981 = vadd.f32 0.0, %v1980
      %v1982 = vpop.f32.mrb[0].mxu0
      %1983 = vmatprep.mubr.bf16.mxu0 0
      %1984 = vmatmul.mubr.bf16.gmra.mrb[0].mxu0 %v1749
      %v1985 = vpop.f32.mrb[0].mxu0
      %v1986 = vadd.f32 0.0, %v1985
      %v1987 = vpop.f32.mrb[0].mxu0
      %v1988 = vpop.f32.mrb[0].mxu0
      %v1989 = vadd.f32 0.0, %v1988
      %v1990 = vpop.f32.mrb[0].mxu0
      %1991 = vdwg.mxu0
      %v1992 = vpack.c.bf16 %v1812, %v1809
      %v1993 = vpack.c.bf16 %v1820, %v1817
      %v1994 = vpack.c.bf16 %v1828, %v1825
      %v1995 = vpack.c.bf16 %v1836, %v1833
      %v1996 = vpack.c.bf16 %v1844, %v1841
      %v1997 = vpack.c.bf16 %v1852, %v1849
      %v1998 = vpack.c.bf16 %v1860, %v1857
      %v1999 = vpack.c.bf16 %v1868, %v1865
      %v2000 = vpack.c.bf16 %v1933, %v1930
      %v2001 = vpack.c.bf16 %v1941, %v1938
      %v2002 = vpack.c.bf16 %v1949, %v1946
      %v2003 = vpack.c.bf16 %v1957, %v1954
      %v2004 = vpack.c.bf16 %v1965, %v1962
      %v2005 = vpack.c.bf16 %v1973, %v1970
      %v2006 = vpack.c.bf16 %v1981, %v1978
      %v2007 = vpack.c.bf16 %v1989, %v1986
      %2008 = vrot.lane.b32.xlu0 %v1023, 120
      %v2009 = vpop.permute.xlu0 %2008
      %2010 = vrot.lane.b32.xlu0 %v1024, 120
      %v2011 = vpop.permute.xlu0 %2010
      %2012 = vrot.lane.b32.xlu0 %v1025, 120
      %v2013 = vpop.permute.xlu0 %2012
      %2014 = vrot.lane.b32.xlu0 %v1026, 120
      %v2015 = vpop.permute.xlu0 %2014
      %2016 = vrot.lane.b32.xlu0 %v1027, 120
      %v2017 = vpop.permute.xlu0 %2016
      %2018 = vrot.lane.b32.xlu0 %v1028, 120
      %v2019 = vpop.permute.xlu0 %2018
      %2020 = vrot.lane.b32.xlu0 %v1029, 120
      %v2021 = vpop.permute.xlu0 %2020
      %2022 = vrot.lane.b32.xlu0 %v1030, 120
      %v2023 = vpop.permute.xlu0 %2022
      %2024 = vrot.lane.b32.xlu0 %v1023, 88
      %v2025 = vpop.permute.xlu0 %2024
      %2026 = vrot.lane.b32.xlu0 %v1024, 88
      %v2027 = vpop.permute.xlu0 %2026
      %2028 = vrot.lane.b32.xlu0 %v1025, 88
      %v2029 = vpop.permute.xlu0 %2028
      %2030 = vrot.lane.b32.xlu0 %v1026, 88
      %v2031 = vpop.permute.xlu0 %2030
      %2032 = vrot.lane.b32.xlu0 %v1027, 88
      %v2033 = vpop.permute.xlu0 %2032
      %2034 = vrot.lane.b32.xlu0 %v1028, 88
      %v2035 = vpop.permute.xlu0 %2034
      %2036 = vrot.lane.b32.xlu0 %v1029, 88
      %v2037 = vpop.permute.xlu0 %2036
      %2038 = vrot.lane.b32.xlu0 %v1030, 88
      %v2039 = vpop.permute.xlu0 %2038
      %v2041 = vsel %vm1067, %v2009, 0
      %v2044 = vsel %vm1067, %v2011, 0
      %v2047 = vsel %vm1067, %v2013, 0
      %v2050 = vsel %vm1067, %v2015, 0
      %v2053 = vsel %vm1067, %v2017, 0
      %v2056 = vsel %vm1067, %v2019, 0
      %v2059 = vsel %vm1067, %v2021, 0
      %v2062 = vsel %vm1067, %v2023, 0
      %v2065 = vsel %vm1067, %v2025, 0
      %v2068 = vsel %vm1067, %v2027, 0
      %v2071 = vsel %vm1067, %v2029, 0
      %v2074 = vsel %vm1067, %v2031, 0
      %v2077 = vsel %vm1067, %v2033, 0
      %v2080 = vsel %vm1067, %v2035, 0
      %v2083 = vsel %vm1067, %v2037, 0
      %v2086 = vsel %vm1067, %v2039, 0
      %2088 = vmatprep.subr.bf16.mxu0 0
      %2089 = vmatpush1.bf16.xpose.msra.mxu0 %v2065
      %2090 = vmatprep.subr.bf16.mxu0 0
      %2091 = vmatpush1.bf16.xpose.msra.mxu0 %v2068
      %2092 = vmatprep.subr.bf16.mxu0 0
      %2093 = vmatpush1.bf16.xpose.msra.mxu0 %v2071
      %2094 = vmatprep.subr.bf16.mxu0 0
      %2095 = vmatpush1.bf16.xpose.msra.mxu0 %v2074
      %2096 = vmatprep.subr.bf16.mxu0 0
      %2097 = vmatpush1.bf16.xpose.msra.mxu0 %v2077
      %2098 = vmatprep.subr.bf16.mxu0 0
      %2099 = vmatpush1.bf16.xpose.msra.mxu0 %v2080
      %2100 = vmatprep.subr.bf16.mxu0 0
      %2101 = vmatpush1.bf16.xpose.msra.mxu0 %v2083
      %2102 = vmatprep.subr.bf16.mxu0 0
      %2103 = vmatpush1.bf16.xpose.msra.mxu0 %v2086
      %2104 = vmatprep.subr.bf16.mxu0 0
      %2105 = vmatpush1.bf16.xpose.msra.mxu0 0
      %2106 = vmatprep.subr.bf16.mxu0 0
      %2107 = vmatpush1.bf16.xpose.msra.mxu0 0
      %2108 = vmatprep.subr.bf16.mxu0 0
      %2109 = vmatpush1.bf16.xpose.msra.mxu0 0
      %2110 = vmatprep.subr.bf16.mxu0 0
      %2111 = vmatpush1.bf16.xpose.msra.mxu0 0
      %2112 = vmatprep.subr.bf16.mxu0 0
      %2113 = vmatpush1.bf16.xpose.msra.mxu0 0
      %2114 = vmatprep.subr.bf16.mxu0 0
      %2115 = vmatpush1.bf16.xpose.msra.mxu0 0
      %2116 = vmatprep.subr.bf16.mxu0 0
      %2117 = vmatpush1.bf16.xpose.msra.mxu0 0
      %2118 = vmatprep.subr.bf16.mxu0 0
      %2119 = vmatpush1.bf16.xpose.msra.mxu0 0
      %2120 = vmatprep.mubr.bf16.mxu0 0
      %2121 = vmatmul.mubr.bf16.gmra.mrb[0].mxu0 %v2041
      %v2122 = vpop.f32.mrb[0].mxu0
      %v2123 = vadd.f32 0.0, %v2122
      %v2124 = vpop.f32.mrb[0].mxu0
      %v2125 = vpop.f32.mrb[0].mxu0
      %v2126 = vadd.f32 0.0, %v2125
      %v2127 = vpop.f32.mrb[0].mxu0
      %2128 = vmatprep.mubr.bf16.mxu0 0
      %2129 = vmatmul.mubr.bf16.gmra.mrb[0].mxu0 %v2044
      %v2130 = vpop.f32.mrb[0].mxu0
      %v2131 = vadd.f32 0.0, %v2130
      %v2132 = vpop.f32.mrb[0].mxu0
      %v2133 = vpop.f32.mrb[0].mxu0
      %v2134 = vadd.f32 0.0, %v2133
      %v2135 = vpop.f32.mrb[0].mxu0
      %2136 = vmatprep.mubr.bf16.mxu0 0
      %2137 = vmatmul.mubr.bf16.gmra.mrb[0].mxu0 %v2047
      %v2138 = vpop.f32.mrb[0].mxu0
      %v2139 = vadd.f32 0.0, %v2138
      %v2140 = vpop.f32.mrb[0].mxu0
      %v2141 = vpop.f32.mrb[0].mxu0
      %v2142 = vadd.f32 0.0, %v2141
      %v2143 = vpop.f32.mrb[0].mxu0
      %2144 = vmatprep.mubr.bf16.mxu0 0
      %2145 = vmatmul.mubr.bf16.gmra.mrb[0].mxu0 %v2050
      %v2146 = vpop.f32.mrb[0].mxu0
      %v2147 = vadd.f32 0.0, %v2146
      %v2148 = vpop.f32.mrb[0].mxu0
      %v2149 = vpop.f32.mrb[0].mxu0
      %v2150 = vadd.f32 0.0, %v2149
      %v2151 = vpop.f32.mrb[0].mxu0
      %2152 = vmatprep.mubr.bf16.mxu0 0
      %2153 = vmatmul.mubr.bf16.gmra.mrb[0].mxu0 %v2053
      %v2154 = vpop.f32.mrb[0].mxu0
      %v2155 = vadd.f32 0.0, %v2154
      %v2156 = vpop.f32.mrb[0].mxu0
      %v2157 = vpop.f32.mrb[0].mxu0
      %v2158 = vadd.f32 0.0, %v2157
      %v2159 = vpop.f32.mrb[0].mxu0
      %2160 = vmatprep.mubr.bf16.mxu0 0
      %2161 = vmatmul.mubr.bf16.gmra.mrb[0].mxu0 %v2056
      %v2162 = vpop.f32.mrb[0].mxu0
      %v2163 = vadd.f32 0.0, %v2162
      %v2164 = vpop.f32.mrb[0].mxu0
      %v2165 = vpop.f32.mrb[0].mxu0
      %v2166 = vadd.f32 0.0, %v2165
      %v2167 = vpop.f32.mrb[0].mxu0
      %2168 = vmatprep.mubr.bf16.mxu0 0
      %2169 = vmatmul.mubr.bf16.gmra.mrb[0].mxu0 %v2059
      %v2170 = vpop.f32.mrb[0].mxu0
      %v2171 = vadd.f32 0.0, %v2170
      %v2172 = vpop.f32.mrb[0].mxu0
      %v2173 = vpop.f32.mrb[0].mxu0
      %v2174 = vadd.f32 0.0, %v2173
      %v2175 = vpop.f32.mrb[0].mxu0
      %2176 = vmatprep.mubr.bf16.mxu0 0
      %2177 = vmatmul.mubr.bf16.gmra.mrb[0].mxu0 %v2062
      %v2178 = vpop.f32.mrb[0].mxu0
      %v2179 = vadd.f32 0.0, %v2178
      %v2180 = vpop.f32.mrb[0].mxu0
      %v2181 = vpop.f32.mrb[0].mxu0
      %v2182 = vadd.f32 0.0, %v2181
      %v2183 = vpop.f32.mrb[0].mxu0
      %2184 = vdwg.mxu0
      %2185 = vrot.lane.b32.xlu0 %v1031, 120
      %v2186 = vpop.permute.xlu0 %2185
      %2187 = vrot.lane.b32.xlu0 %v1032, 120
      %v2188 = vpop.permute.xlu0 %2187
      %2189 = vrot.lane.b32.xlu0 %v1033, 120
      %v2190 = vpop.permute.xlu0 %2189
      %2191 = vrot.lane.b32.xlu0 %v1034, 120
      %v2192 = vpop.permute.xlu0 %2191
      %2193 = vrot.lane.b32.xlu0 %v1035, 120
      %v2194 = vpop.permute.xlu0 %2193
      %2195 = vrot.lane.b32.xlu0 %v1036, 120
      %v2196 = vpop.permute.xlu0 %2195
      %2197 = vrot.lane.b32.xlu0 %v1037, 120
      %v2198 = vpop.permute.xlu0 %2197
      %2199 = vrot.lane.b32.xlu0 %v1038, 120
      %v2200 = vpop.permute.xlu0 %2199
      %2201 = vrot.lane.b32.xlu0 %v1031, 88
      %v2202 = vpop.permute.xlu0 %2201
      %2203 = vrot.lane.b32.xlu0 %v1032, 88
      %v2204 = vpop.permute.xlu0 %2203
      %2205 = vrot.lane.b32.xlu0 %v1033, 88
      %v2206 = vpop.permute.xlu0 %2205
      %2207 = vrot.lane.b32.xlu0 %v1034, 88
      %v2208 = vpop.permute.xlu0 %2207
      %2209 = vrot.lane.b32.xlu0 %v1035, 88
      %v2210 = vpop.permute.xlu0 %2209
      %2211 = vrot.lane.b32.xlu0 %v1036, 88
      %v2212 = vpop.permute.xlu0 %2211
      %2213 = vrot.lane.b32.xlu0 %v1037, 88
      %v2214 = vpop.permute.xlu0 %2213
      %2215 = vrot.lane.b32.xlu0 %v1038, 88
      %v2216 = vpop.permute.xlu0 %2215
      %v2218 = vsel %vm1067, %v2186, 0
      %v2221 = vsel %vm1067, %v2188, 0
      %v2224 = vsel %vm1067, %v2190, 0
      %v2227 = vsel %vm1067, %v2192, 0
      %v2230 = vsel %vm1067, %v2194, 0
      %v2233 = vsel %vm1067, %v2196, 0
      %v2236 = vsel %vm1067, %v2198, 0
      %v2239 = vsel %vm1067, %v2200, 0
      %v2242 = vsel %vm1067, %v2202, 0
      %v2245 = vsel %vm1067, %v2204, 0
      %v2248 = vsel %vm1067, %v2206, 0
      %v2251 = vsel %vm1067, %v2208, 0
      %v2254 = vsel %vm1067, %v2210, 0
      %v2257 = vsel %vm1067, %v2212, 0
      %v2260 = vsel %vm1067, %v2214, 0
      %v2263 = vsel %vm1067, %v2216, 0
      %2265 = vmatprep.subr.bf16.mxu0 0
      %2266 = vmatpush1.bf16.xpose.msra.mxu0 %v2242
      %2267 = vmatprep.subr.bf16.mxu0 0
      %2268 = vmatpush1.bf16.xpose.msra.mxu0 %v2245
      %2269 = vmatprep.subr.bf16.mxu0 0
      %2270 = vmatpush1.bf16.xpose.msra.mxu0 %v2248
      %2271 = vmatprep.subr.bf16.mxu0 0
      %2272 = vmatpush1.bf16.xpose.msra.mxu0 %v2251
      %2273 = vmatprep.subr.bf16.mxu0 0
      %2274 = vmatpush1.bf16.xpose.msra.mxu0 %v2254
      %2275 = vmatprep.subr.bf16.mxu0 0
      %2276 = vmatpush1.bf16.xpose.msra.mxu0 %v2257
      %2277 = vmatprep.subr.bf16.mxu0 0
      %2278 = vmatpush1.bf16.xpose.msra.mxu0 %v2260
      %2279 = vmatprep.subr.bf16.mxu0 0
      %2280 = vmatpush1.bf16.xpose.msra.mxu0 %v2263
      %2281 = vmatprep.subr.bf16.mxu0 0
      %2282 = vmatpush1.bf16.xpose.msra.mxu0 0
      %2283 = vmatprep.subr.bf16.mxu0 0
      %2284 = vmatpush1.bf16.xpose.msra.mxu0 0
      %2285 = vmatprep.subr.bf16.mxu0 0
      %2286 = vmatpush1.bf16.xpose.msra.mxu0 0
      %2287 = vmatprep.subr.bf16.mxu0 0
      %2288 = vmatpush1.bf16.xpose.msra.mxu0 0
      %2289 = vmatprep.subr.bf16.mxu0 0
      %2290 = vmatpush1.bf16.xpose.msra.mxu0 0
      %2291 = vmatprep.subr.bf16.mxu0 0
      %2292 = vmatpush1.bf16.xpose.msra.mxu0 0
      %2293 = vmatprep.subr.bf16.mxu0 0
      %2294 = vmatpush1.bf16.xpose.msra.mxu0 0
      %2295 = vmatprep.subr.bf16.mxu0 0
      %2296 = vmatpush1.bf16.xpose.msra.mxu0 0
      %2297 = vmatprep.mubr.bf16.mxu0 0
      %2298 = vmatmul.mubr.bf16.gmra.mrb[0].mxu0 %v2218
      %v2299 = vpop.f32.mrb[0].mxu0
      %v2300 = vadd.f32 0.0, %v2299
      %v2301 = vpop.f32.mrb[0].mxu0
      %v2302 = vpop.f32.mrb[0].mxu0
      %v2303 = vadd.f32 0.0, %v2302
      %v2304 = vpop.f32.mrb[0].mxu0
      %2305 = vmatprep.mubr.bf16.mxu0 0
      %2306 = vmatmul.mubr.bf16.gmra.mrb[0].mxu0 %v2221
      %v2307 = vpop.f32.mrb[0].mxu0
      %v2308 = vadd.f32 0.0, %v2307
      %v2309 = vpop.f32.mrb[0].mxu0
      %v2310 = vpop.f32.mrb[0].mxu0
      %v2311 = vadd.f32 0.0, %v2310
      %v2312 = vpop.f32.mrb[0].mxu0
      %2313 = vmatprep.mubr.bf16.mxu0 0
      %2314 = vmatmul.mubr.bf16.gmra.mrb[0].mxu0 %v2224
      %v2315 = vpop.f32.mrb[0].mxu0
      %v2316 = vadd.f32 0.0, %v2315
      %v2317 = vpop.f32.mrb[0].mxu0
      %v2318 = vpop.f32.mrb[0].mxu0
      %v2319 = vadd.f32 0.0, %v2318
      %v2320 = vpop.f32.mrb[0].mxu0
      %2321 = vmatprep.mubr.bf16.mxu0 0
      %2322 = vmatmul.mubr.bf16.gmra.mrb[0].mxu0 %v2227
      %v2323 = vpop.f32.mrb[0].mxu0
      %v2324 = vadd.f32 0.0, %v2323
      %v2325 = vpop.f32.mrb[0].mxu0
      %v2326 = vpop.f32.mrb[0].mxu0
      %v2327 = vadd.f32 0.0, %v2326
      %v2328 = vpop.f32.mrb[0].mxu0
      %2329 = vmatprep.mubr.bf16.mxu0 0
      %2330 = vmatmul.mubr.bf16.gmra.mrb[0].mxu0 %v2230
      %v2331 = vpop.f32.mrb[0].mxu0
      %v2332 = vadd.f32 0.0, %v2331
      %v2333 = vpop.f32.mrb[0].mxu0
      %v2334 = vpop.f32.mrb[0].mxu0
      %v2335 = vadd.f32 0.0, %v2334
      %v2336 = vpop.f32.mrb[0].mxu0
      %2337 = vmatprep.mubr.bf16.mxu0 0
      %2338 = vmatmul.mubr.bf16.gmra.mrb[0].mxu0 %v2233
      %v2339 = vpop.f32.mrb[0].mxu0
      %v2340 = vadd.f32 0.0, %v2339
      %v2341 = vpop.f32.mrb[0].mxu0
      %v2342 = vpop.f32.mrb[0].mxu0
      %v2343 = vadd.f32 0.0, %v2342
      %v2344 = vpop.f32.mrb[0].mxu0
      %2345 = vmatprep.mubr.bf16.mxu0 0
      %2346 = vmatmul.mubr.bf16.gmra.mrb[0].mxu0 %v2236
      %v2347 = vpop.f32.mrb[0].mxu0
      %v2348 = vadd.f32 0.0, %v2347
      %v2349 = vpop.f32.mrb[0].mxu0
      %v2350 = vpop.f32.mrb[0].mxu0
      %v2351 = vadd.f32 0.0, %v2350
      %v2352 = vpop.f32.mrb[0].mxu0
      %2353 = vmatprep.mubr.bf16.mxu0 0
      %2354 = vmatmul.mubr.bf16.gmra.mrb[0].mxu0 %v2239
      %v2355 = vpop.f32.mrb[0].mxu0
      %v2356 = vadd.f32 0.0, %v2355
      %v2357 = vpop.f32.mrb[0].mxu0
      %v2358 = vpop.f32.mrb[0].mxu0
      %v2359 = vadd.f32 0.0, %v2358
      %v2360 = vpop.f32.mrb[0].mxu0
      %2361 = vdwg.mxu0
      %v2362 = vmul.f32 %v2123, 0.35355338
      %v2363 = vmul.f32 %v2126, 0.35355338
      %v2364 = vmul.f32 %v2131, 0.35355338
      %v2365 = vmul.f32 %v2134, 0.35355338
      %v2366 = vmul.f32 %v2139, 0.35355338
      %v2367 = vmul.f32 %v2142, 0.35355338
      %v2368 = vmul.f32 %v2147, 0.35355338
      %v2369 = vmul.f32 %v2150, 0.35355338
      %v2370 = vmul.f32 %v2155, 0.35355338
      %v2371 = vmul.f32 %v2158, 0.35355338
      %v2372 = vmul.f32 %v2163, 0.35355338
      %v2373 = vmul.f32 %v2166, 0.35355338
      %v2374 = vmul.f32 %v2171, 0.35355338
      %v2375 = vmul.f32 %v2174, 0.35355338
      %v2376 = vmul.f32 %v2179, 0.35355338
      %v2377 = vmul.f32 %v2182, 0.35355338
      %v2378 = vmul.f32 %v2300, 0.35355338
      %v2379 = vmul.f32 %v2303, 0.35355338
      %v2380 = vmul.f32 %v2308, 0.35355338
      %v2381 = vmul.f32 %v2311, 0.35355338
      %v2382 = vmul.f32 %v2316, 0.35355338
      %v2383 = vmul.f32 %v2319, 0.35355338
      %v2384 = vmul.f32 %v2324, 0.35355338
      %v2385 = vmul.f32 %v2327, 0.35355338
      %v2386 = vmul.f32 %v2332, 0.35355338
      %v2387 = vmul.f32 %v2335, 0.35355338
      %v2388 = vmul.f32 %v2340, 0.35355338
      %v2389 = vmul.f32 %v2343, 0.35355338
      %v2390 = vmul.f32 %v2348, 0.35355338
      %v2391 = vmul.f32 %v2351, 0.35355338
      %v2392 = vmul.f32 %v2356, 0.35355338
      %v2393 = vmul.f32 %v2359, 0.35355338
      %v2394 = vadd.f32 %v2362, %v484
      %v2395 = vadd.f32 %v2363, %v484
      %v2396 = vadd.f32 %v2364, %v484
      %v2397 = vadd.f32 %v2365, %v484
      %v2398 = vadd.f32 %v2366, %v484
      %v2399 = vadd.f32 %v2367, %v484
      %v2400 = vadd.f32 %v2368, %v484
      %v2401 = vadd.f32 %v2369, %v484
      %v2402 = vadd.f32 %v2370, %v484
      %v2403 = vadd.f32 %v2371, %v484
      %v2404 = vadd.f32 %v2372, %v484
      %v2405 = vadd.f32 %v2373, %v484
      %v2406 = vadd.f32 %v2374, %v484
      %v2407 = vadd.f32 %v2375, %v484
      %v2408 = vadd.f32 %v2376, %v484
      %v2409 = vadd.f32 %v2377, %v484
      %v2410 = vadd.f32 %v2378, %v484
      %v2411 = vadd.f32 %v2379, %v484
      %v2412 = vadd.f32 %v2380, %v484
      %v2413 = vadd.f32 %v2381, %v484
      %v2414 = vadd.f32 %v2382, %v484
      %v2415 = vadd.f32 %v2383, %v484
      %v2416 = vadd.f32 %v2384, %v484
      %v2417 = vadd.f32 %v2385, %v484
      %v2418 = vadd.f32 %v2386, %v484
      %v2419 = vadd.f32 %v2387, %v484
      %v2420 = vadd.f32 %v2388, %v484
      %v2421 = vadd.f32 %v2389, %v484
      %v2422 = vadd.f32 %v2390, %v484
      %v2423 = vadd.f32 %v2391, %v484
      %v2424 = vadd.f32 %v2392, %v484
      %v2425 = vadd.f32 %v2393, %v484
      %2426 = vmax.xlane.f32.xlu0 %v2394
      %v2427 = vpop.xlane.xlu0 %2426
      %2428 = vmax.xlane.f32.xlu0 %v2395
      %v2429 = vpop.xlane.xlu0 %2428
      %2430 = vmax.xlane.f32.xlu0 %v2396
      %v2431 = vpop.xlane.xlu0 %2430
      %2432 = vmax.xlane.f32.xlu0 %v2397
      %v2433 = vpop.xlane.xlu0 %2432
      %2434 = vmax.xlane.f32.xlu0 %v2398
      %v2435 = vpop.xlane.xlu0 %2434
      %2436 = vmax.xlane.f32.xlu0 %v2399
      %v2437 = vpop.xlane.xlu0 %2436
      %2438 = vmax.xlane.f32.xlu0 %v2400
      %v2439 = vpop.xlane.xlu0 %2438
      %2440 = vmax.xlane.f32.xlu0 %v2401
      %v2441 = vpop.xlane.xlu0 %2440
      %2442 = vmax.xlane.f32.xlu0 %v2402
      %v2443 = vpop.xlane.xlu0 %2442
      %2444 = vmax.xlane.f32.xlu0 %v2403
      %v2445 = vpop.xlane.xlu0 %2444
      %2446 = vmax.xlane.f32.xlu0 %v2404
      %v2447 = vpop.xlane.xlu0 %2446
      %2448 = vmax.xlane.f32.xlu0 %v2405
      %v2449 = vpop.xlane.xlu0 %2448
      %2450 = vmax.xlane.f32.xlu0 %v2406
      %v2451 = vpop.xlane.xlu0 %2450
      %2452 = vmax.xlane.f32.xlu0 %v2407
      %v2453 = vpop.xlane.xlu0 %2452
      %2454 = vmax.xlane.f32.xlu0 %v2408
      %v2455 = vpop.xlane.xlu0 %2454
      %2456 = vmax.xlane.f32.xlu0 %v2409
      %v2457 = vpop.xlane.xlu0 %2456
      %2458 = vmax.xlane.f32.xlu0 %v2410
      %v2459 = vpop.xlane.xlu0 %2458
      %2460 = vmax.xlane.f32.xlu0 %v2411
      %v2461 = vpop.xlane.xlu0 %2460
      %2462 = vmax.xlane.f32.xlu0 %v2412
      %v2463 = vpop.xlane.xlu0 %2462
      %2464 = vmax.xlane.f32.xlu0 %v2413
      %v2465 = vpop.xlane.xlu0 %2464
      %2466 = vmax.xlane.f32.xlu0 %v2414
      %v2467 = vpop.xlane.xlu0 %2466
      %2468 = vmax.xlane.f32.xlu0 %v2415
      %v2469 = vpop.xlane.xlu0 %2468
      %2470 = vmax.xlane.f32.xlu0 %v2416
      %v2471 = vpop.xlane.xlu0 %2470
      %2472 = vmax.xlane.f32.xlu0 %v2417
      %v2473 = vpop.xlane.xlu0 %2472
      %2474 = vmax.xlane.f32.xlu0 %v2418
      %v2475 = vpop.xlane.xlu0 %2474
      %2476 = vmax.xlane.f32.xlu0 %v2419
      %v2477 = vpop.xlane.xlu0 %2476
      %2478 = vmax.xlane.f32.xlu0 %v2420
      %v2479 = vpop.xlane.xlu0 %2478
      %2480 = vmax.xlane.f32.xlu0 %v2421
      %v2481 = vpop.xlane.xlu0 %2480
      %2482 = vmax.xlane.f32.xlu0 %v2422
      %v2483 = vpop.xlane.xlu0 %2482
      %2484 = vmax.xlane.f32.xlu0 %v2423
      %v2485 = vpop.xlane.xlu0 %2484
      %2486 = vmax.xlane.f32.xlu0 %v2424
      %v2487 = vpop.xlane.xlu0 %2486
      %2488 = vmax.xlane.f32.xlu0 %v2425
      %v2489 = vpop.xlane.xlu0 %2488
      %v2490 = vsub.f32 %v2394, %v2427
      %v2491 = vsub.f32 %v2395, %v2429
      %v2492 = vsub.f32 %v2396, %v2431
      %v2493 = vsub.f32 %v2397, %v2433
      %v2494 = vsub.f32 %v2398, %v2435
      %v2495 = vsub.f32 %v2399, %v2437
      %v2496 = vsub.f32 %v2400, %v2439
      %v2497 = vsub.f32 %v2401, %v2441
      %v2498 = vsub.f32 %v2402, %v2443
      %v2499 = vsub.f32 %v2403, %v2445
      %v2500 = vsub.f32 %v2404, %v2447
      %v2501 = vsub.f32 %v2405, %v2449
      %v2502 = vsub.f32 %v2406, %v2451
      %v2503 = vsub.f32 %v2407, %v2453
      %v2504 = vsub.f32 %v2408, %v2455
      %v2505 = vsub.f32 %v2409, %v2457
      %v2506 = vsub.f32 %v2410, %v2459
      %v2507 = vsub.f32 %v2411, %v2461
      %v2508 = vsub.f32 %v2412, %v2463
      %v2509 = vsub.f32 %v2413, %v2465
      %v2510 = vsub.f32 %v2414, %v2467
      %v2511 = vsub.f32 %v2415, %v2469
      %v2512 = vsub.f32 %v2416, %v2471
      %v2513 = vsub.f32 %v2417, %v2473
      %v2514 = vsub.f32 %v2418, %v2475
      %v2515 = vsub.f32 %v2419, %v2477
      %v2516 = vsub.f32 %v2420, %v2479
      %v2517 = vsub.f32 %v2421, %v2481
      %v2518 = vsub.f32 %v2422, %v2483
      %v2519 = vsub.f32 %v2423, %v2485
      %v2520 = vsub.f32 %v2424, %v2487
      %v2521 = vsub.f32 %v2425, %v2489
      %v2522 = vmul.f32 %v2490, 1.442695
      %v2523 = vpow.pop %v2522
      %v2524 = vmul.f32 %v2491, 1.442695
      %v2525 = vpow.pop %v2524
      %v2526 = vmul.f32 %v2492, 1.442695
      %v2527 = vpow.pop %v2526
      %v2528 = vmul.f32 %v2493, 1.442695
      %v2529 = vpow.pop %v2528
      %v2530 = vmul.f32 %v2494, 1.442695
      %v2531 = vpow.pop %v2530
      %v2532 = vmul.f32 %v2495, 1.442695
      %v2533 = vpow.pop %v2532
      %v2534 = vmul.f32 %v2496, 1.442695
      %v2535 = vpow.pop %v2534
      %v2536 = vmul.f32 %v2497, 1.442695
      %v2537 = vpow.pop %v2536
      %v2538 = vmul.f32 %v2498, 1.442695
      %v2539 = vpow.pop %v2538
      %v2540 = vmul.f32 %v2499, 1.442695
      %v2541 = vpow.pop %v2540
      %v2542 = vmul.f32 %v2500, 1.442695
      %v2543 = vpow.pop %v2542
      %v2544 = vmul.f32 %v2501, 1.442695
      %v2545 = vpow.pop %v2544
      %v2546 = vmul.f32 %v2502, 1.442695
      %v2547 = vpow.pop %v2546
      %v2548 = vmul.f32 %v2503, 1.442695
      %v2549 = vpow.pop %v2548
      %v2550 = vmul.f32 %v2504, 1.442695
      %v2551 = vpow.pop %v2550
      %v2552 = vmul.f32 %v2505, 1.442695
      %v2553 = vpow.pop %v2552
      %v2554 = vmul.f32 %v2506, 1.442695
      %v2555 = vpow.pop %v2554
      %v2556 = vmul.f32 %v2507, 1.442695
      %v2557 = vpow.pop %v2556
      %v2558 = vmul.f32 %v2508, 1.442695
      %v2559 = vpow.pop %v2558
      %v2560 = vmul.f32 %v2509, 1.442695
      %v2561 = vpow.pop %v2560
      %v2562 = vmul.f32 %v2510, 1.442695
      %v2563 = vpow.pop %v2562
      %v2564 = vmul.f32 %v2511, 1.442695
      %v2565 = vpow.pop %v2564
      %v2566 = vmul.f32 %v2512, 1.442695
      %v2567 = vpow.pop %v2566
      %v2568 = vmul.f32 %v2513, 1.442695
      %v2569 = vpow.pop %v2568
      %v2570 = vmul.f32 %v2514, 1.442695
      %v2571 = vpow.pop %v2570
      %v2572 = vmul.f32 %v2515, 1.442695
      %v2573 = vpow.pop %v2572
      %v2574 = vmul.f32 %v2516, 1.442695
      %v2575 = vpow.pop %v2574
      %v2576 = vmul.f32 %v2517, 1.442695
      %v2577 = vpow.pop %v2576
      %v2578 = vmul.f32 %v2518, 1.442695
      %v2579 = vpow.pop %v2578
      %v2580 = vmul.f32 %v2519, 1.442695
      %v2581 = vpow.pop %v2580
      %v2582 = vmul.f32 %v2520, 1.442695
      %v2583 = vpow.pop %v2582
      %v2584 = vmul.f32 %v2521, 1.442695
      %v2585 = vpow.pop %v2584
      %2586 = vadd.xlane.f32.xlu0 %v2523
      %v2587 = vpop.xlane.xlu0 %2586
      %2588 = vadd.xlane.f32.xlu0 %v2525
      %v2589 = vpop.xlane.xlu0 %2588
      %2590 = vadd.xlane.f32.xlu0 %v2527
      %v2591 = vpop.xlane.xlu0 %2590
      %2592 = vadd.xlane.f32.xlu0 %v2529
      %v2593 = vpop.xlane.xlu0 %2592
      %2594 = vadd.xlane.f32.xlu0 %v2531
      %v2595 = vpop.xlane.xlu0 %2594
      %2596 = vadd.xlane.f32.xlu0 %v2533
      %v2597 = vpop.xlane.xlu0 %2596
      %2598 = vadd.xlane.f32.xlu0 %v2535
      %v2599 = vpop.xlane.xlu0 %2598
      %2600 = vadd.xlane.f32.xlu0 %v2537
      %v2601 = vpop.xlane.xlu0 %2600
      %2602 = vadd.xlane.f32.xlu0 %v2539
      %v2603 = vpop.xlane.xlu0 %2602
      %2604 = vadd.xlane.f32.xlu0 %v2541
      %v2605 = vpop.xlane.xlu0 %2604
      %2606 = vadd.xlane.f32.xlu0 %v2543
      %v2607 = vpop.xlane.xlu0 %2606
      %2608 = vadd.xlane.f32.xlu0 %v2545
      %v2609 = vpop.xlane.xlu0 %2608
      %2610 = vadd.xlane.f32.xlu0 %v2547
      %v2611 = vpop.xlane.xlu0 %2610
      %2612 = vadd.xlane.f32.xlu0 %v2549
      %v2613 = vpop.xlane.xlu0 %2612
      %2614 = vadd.xlane.f32.xlu0 %v2551
      %v2615 = vpop.xlane.xlu0 %2614
      %2616 = vadd.xlane.f32.xlu0 %v2553
      %v2617 = vpop.xlane.xlu0 %2616
      %2618 = vadd.xlane.f32.xlu0 %v2555
      %v2619 = vpop.xlane.xlu0 %2618
      %2620 = vadd.xlane.f32.xlu0 %v2557
      %v2621 = vpop.xlane.xlu0 %2620
      %2622 = vadd.xlane.f32.xlu0 %v2559
      %v2623 = vpop.xlane.xlu0 %2622
      %2624 = vadd.xlane.f32.xlu0 %v2561
      %v2625 = vpop.xlane.xlu0 %2624
      %2626 = vadd.xlane.f32.xlu0 %v2563
      %v2627 = vpop.xlane.xlu0 %2626
      %2628 = vadd.xlane.f32.xlu0 %v2565
      %v2629 = vpop.xlane.xlu0 %2628
      %2630 = vadd.xlane.f32.xlu0 %v2567
      %v2631 = vpop.xlane.xlu0 %2630
      %2632 = vadd.xlane.f32.xlu0 %v2569
      %v2633 = vpop.xlane.xlu0 %2632
      %2634 = vadd.xlane.f32.xlu0 %v2571
      %v2635 = vpop.xlane.xlu0 %2634
      %2636 = vadd.xlane.f32.xlu0 %v2573
      %v2637 = vpop.xlane.xlu0 %2636
      %2638 = vadd.xlane.f32.xlu0 %v2575
      %v2639 = vpop.xlane.xlu0 %2638
      %2640 = vadd.xlane.f32.xlu0 %v2577
      %v2641 = vpop.xlane.xlu0 %2640
      %2642 = vadd.xlane.f32.xlu0 %v2579
      %v2643 = vpop.xlane.xlu0 %2642
      %2644 = vadd.xlane.f32.xlu0 %v2581
      %v2645 = vpop.xlane.xlu0 %2644
      %2646 = vadd.xlane.f32.xlu0 %v2583
      %v2647 = vpop.xlane.xlu0 %2646
      %2648 = vadd.xlane.f32.xlu0 %v2585
      %v2649 = vpop.xlane.xlu0 %2648
      %v2650 = vrcp.pop %v2587
      %v2651 = vrcp.pop %v2589
      %v2652 = vrcp.pop %v2591
      %v2653 = vrcp.pop %v2593
      %v2654 = vrcp.pop %v2595
      %v2655 = vrcp.pop %v2597
      %v2656 = vrcp.pop %v2599
      %v2657 = vrcp.pop %v2601
      %v2658 = vrcp.pop %v2603
      %v2659 = vrcp.pop %v2605
      %v2660 = vrcp.pop %v2607
      %v2661 = vrcp.pop %v2609
      %v2662 = vrcp.pop %v2611
      %v2663 = vrcp.pop %v2613
      %v2664 = vrcp.pop %v2615
      %v2665 = vrcp.pop %v2617
      %v2666 = vrcp.pop %v2619
      %v2667 = vrcp.pop %v2621
      %v2668 = vrcp.pop %v2623
      %v2669 = vrcp.pop %v2625
      %v2670 = vrcp.pop %v2627
      %v2671 = vrcp.pop %v2629
      %v2672 = vrcp.pop %v2631
      %v2673 = vrcp.pop %v2633
      %v2674 = vrcp.pop %v2635
      %v2675 = vrcp.pop %v2637
      %v2676 = vrcp.pop %v2639
      %v2677 = vrcp.pop %v2641
      %v2678 = vrcp.pop %v2643
      %v2679 = vrcp.pop %v2645
      %v2680 = vrcp.pop %v2647
      %v2681 = vrcp.pop %v2649
      %v2682 = vmul.f32 %v2523, %v2650
      %v2683 = vmul.f32 %v2525, %v2651
      %v2684 = vmul.f32 %v2527, %v2652
      %v2685 = vmul.f32 %v2529, %v2653
      %v2686 = vmul.f32 %v2531, %v2654
      %v2687 = vmul.f32 %v2533, %v2655
      %v2688 = vmul.f32 %v2535, %v2656
      %v2689 = vmul.f32 %v2537, %v2657
      %v2690 = vmul.f32 %v2539, %v2658
      %v2691 = vmul.f32 %v2541, %v2659
      %v2692 = vmul.f32 %v2543, %v2660
      %v2693 = vmul.f32 %v2545, %v2661
      %v2694 = vmul.f32 %v2547, %v2662
      %v2695 = vmul.f32 %v2549, %v2663
      %v2696 = vmul.f32 %v2551, %v2664
      %v2697 = vmul.f32 %v2553, %v2665
      %v2698 = vmul.f32 %v2555, %v2666
      %v2699 = vmul.f32 %v2557, %v2667
      %v2700 = vmul.f32 %v2559, %v2668
      %v2701 = vmul.f32 %v2561, %v2669
      %v2702 = vmul.f32 %v2563, %v2670
      %v2703 = vmul.f32 %v2565, %v2671
      %v2704 = vmul.f32 %v2567, %v2672
      %v2705 = vmul.f32 %v2569, %v2673
      %v2706 = vmul.f32 %v2571, %v2674
      %v2707 = vmul.f32 %v2573, %v2675
      %v2708 = vmul.f32 %v2575, %v2676
      %v2709 = vmul.f32 %v2577, %v2677
      %v2710 = vmul.f32 %v2579, %v2678
      %v2711 = vmul.f32 %v2581, %v2679
      %v2712 = vmul.f32 %v2583, %v2680
      %v2713 = vmul.f32 %v2585, %v2681
      %v2714 = vpack.c.bf16 %v2683, %v2682
      %v2715 = vpack.c.bf16 %v2685, %v2684
      %v2716 = vpack.c.bf16 %v2687, %v2686
      %v2717 = vpack.c.bf16 %v2689, %v2688
      %v2718 = vpack.c.bf16 %v2691, %v2690
      %v2719 = vpack.c.bf16 %v2693, %v2692
      %v2720 = vpack.c.bf16 %v2695, %v2694
      %v2721 = vpack.c.bf16 %v2697, %v2696
      %v2722 = vpack.c.bf16 %v2699, %v2698
      %v2723 = vpack.c.bf16 %v2701, %v2700
      %v2724 = vpack.c.bf16 %v2703, %v2702
      %v2725 = vpack.c.bf16 %v2705, %v2704
      %v2726 = vpack.c.bf16 %v2707, %v2706
      %v2727 = vpack.c.bf16 %v2709, %v2708
      %v2728 = vpack.c.bf16 %v2711, %v2710
      %v2729 = vpack.c.bf16 %v2713, %v2712
      %2730 = vrot.lane.b32.xlu0 %v1023, 56
      %v2731 = vpop.permute.xlu0 %2730
      %2732 = vrot.lane.b32.xlu0 %v1024, 56
      %v2733 = vpop.permute.xlu0 %2732
      %2734 = vrot.lane.b32.xlu0 %v1025, 56
      %v2735 = vpop.permute.xlu0 %2734
      %2736 = vrot.lane.b32.xlu0 %v1026, 56
      %v2737 = vpop.permute.xlu0 %2736
      %2738 = vrot.lane.b32.xlu0 %v1027, 56
      %v2739 = vpop.permute.xlu0 %2738
      %2740 = vrot.lane.b32.xlu0 %v1028, 56
      %v2741 = vpop.permute.xlu0 %2740
      %2742 = vrot.lane.b32.xlu0 %v1029, 56
      %v2743 = vpop.permute.xlu0 %2742
      %2744 = vrot.lane.b32.xlu0 %v1030, 56
      %v2745 = vpop.permute.xlu0 %2744
      %2754 = vmatprep.subr.bf16.mxu0 0
      %2755 = vmatpush1.bf16.msra.mxu0 %v2731
      %2756 = vmatprep.subr.bf16.mxu0 0
      %2757 = vmatpush1.bf16.msra.mxu0 %v2733
      %2758 = vmatprep.subr.bf16.mxu0 0
      %2759 = vmatpush1.bf16.msra.mxu0 %v2735
      %2760 = vmatprep.subr.bf16.mxu0 0
      %2761 = vmatpush1.bf16.msra.mxu0 %v2737
      %2762 = vmatprep.subr.bf16.mxu0 0
      %2763 = vmatpush1.bf16.msra.mxu0 %v2739
      %2764 = vmatprep.subr.bf16.mxu0 0
      %2765 = vmatpush1.bf16.msra.mxu0 %v2741
      %2766 = vmatprep.subr.bf16.mxu0 0
      %2767 = vmatpush1.bf16.msra.mxu0 %v2743
      %2768 = vmatprep.subr.bf16.mxu0 0
      %2769 = vmatpush1.bf16.msra.mxu0 %v2745
      %2770 = vmatprep.subr.bf16.mxu0 0
      %2771 = vmatpush1.bf16.msra.mxu0 0
      %2772 = vmatprep.subr.bf16.mxu0 0
      %2773 = vmatpush1.bf16.msra.mxu0 0
      %2774 = vmatprep.subr.bf16.mxu0 0
      %2775 = vmatpush1.bf16.msra.mxu0 0
      %2776 = vmatprep.subr.bf16.mxu0 0
      %2777 = vmatpush1.bf16.msra.mxu0 0
      %2778 = vmatprep.subr.bf16.mxu0 0
      %2779 = vmatpush1.bf16.msra.mxu0 0
      %2780 = vmatprep.subr.bf16.mxu0 0
      %2781 = vmatpush1.bf16.msra.mxu0 0
      %2782 = vmatprep.subr.bf16.mxu0 0
      %2783 = vmatpush1.bf16.msra.mxu0 0
      %2784 = vmatprep.subr.bf16.mxu0 0
      %2785 = vmatpush1.bf16.msra.mxu0 0
      %2786 = vmatprep.mubr.bf16.mxu0 0
      %2787 = vmatmul.mubr.bf16.gmra.mrb[0].mxu0 %v2714
      %v2788 = vpop.f32.mrb[0].mxu0
      %v2789 = vadd.f32 0.0, %v2788
      %v2790 = vpop.f32.mrb[0].mxu0
      %v2791 = vpop.f32.mrb[0].mxu0
      %v2792 = vadd.f32 0.0, %v2791
      %v2793 = vpop.f32.mrb[0].mxu0
      %2794 = vmatprep.mubr.bf16.mxu0 0
      %2795 = vmatmul.mubr.bf16.gmra.mrb[0].mxu0 %v2715
      %v2796 = vpop.f32.mrb[0].mxu0
      %v2797 = vadd.f32 0.0, %v2796
      %v2798 = vpop.f32.mrb[0].mxu0
      %v2799 = vpop.f32.mrb[0].mxu0
      %v2800 = vadd.f32 0.0, %v2799
      %v2801 = vpop.f32.mrb[0].mxu0
      %2802 = vmatprep.mubr.bf16.mxu0 0
      %2803 = vmatmul.mubr.bf16.gmra.mrb[0].mxu0 %v2716
      %v2804 = vpop.f32.mrb[0].mxu0
      %v2805 = vadd.f32 0.0, %v2804
      %v2806 = vpop.f32.mrb[0].mxu0
      %v2807 = vpop.f32.mrb[0].mxu0
      %v2808 = vadd.f32 0.0, %v2807
      %v2809 = vpop.f32.mrb[0].mxu0
      %2810 = vmatprep.mubr.bf16.mxu0 0
      %2811 = vmatmul.mubr.bf16.gmra.mrb[0].mxu0 %v2717
      %v2812 = vpop.f32.mrb[0].mxu0
      %v2813 = vadd.f32 0.0, %v2812
      %v2814 = vpop.f32.mrb[0].mxu0
      %v2815 = vpop.f32.mrb[0].mxu0
      %v2816 = vadd.f32 0.0, %v2815
      %v2817 = vpop.f32.mrb[0].mxu0
      %2818 = vmatprep.mubr.bf16.mxu0 0
      %2819 = vmatmul.mubr.bf16.gmra.mrb[0].mxu0 %v2718
      %v2820 = vpop.f32.mrb[0].mxu0
      %v2821 = vadd.f32 0.0, %v2820
      %v2822 = vpop.f32.mrb[0].mxu0
      %v2823 = vpop.f32.mrb[0].mxu0
      %v2824 = vadd.f32 0.0, %v2823
      %v2825 = vpop.f32.mrb[0].mxu0
      %2826 = vmatprep.mubr.bf16.mxu0 0
      %2827 = vmatmul.mubr.bf16.gmra.mrb[0].mxu0 %v2719
      %v2828 = vpop.f32.mrb[0].mxu0
      %v2829 = vadd.f32 0.0, %v2828
      %v2830 = vpop.f32.mrb[0].mxu0
      %v2831 = vpop.f32.mrb[0].mxu0
      %v2832 = vadd.f32 0.0, %v2831
      %v2833 = vpop.f32.mrb[0].mxu0
      %2834 = vmatprep.mubr.bf16.mxu0 0
      %2835 = vmatmul.mubr.bf16.gmra.mrb[0].mxu0 %v2720
      %v2836 = vpop.f32.mrb[0].mxu0
      %v2837 = vadd.f32 0.0, %v2836
      %v2838 = vpop.f32.mrb[0].mxu0
      %v2839 = vpop.f32.mrb[0].mxu0
      %v2840 = vadd.f32 0.0, %v2839
      %v2841 = vpop.f32.mrb[0].mxu0
      %2842 = vmatprep.mubr.bf16.mxu0 0
      %2843 = vmatmul.mubr.bf16.gmra.mrb[0].mxu0 %v2721
      %v2844 = vpop.f32.mrb[0].mxu0
      %v2845 = vadd.f32 0.0, %v2844
      %v2846 = vpop.f32.mrb[0].mxu0
      %v2847 = vpop.f32.mrb[0].mxu0
      %v2848 = vadd.f32 0.0, %v2847
      %v2849 = vpop.f32.mrb[0].mxu0
      %2850 = vdwg.mxu0
      %2851 = vrot.lane.b32.xlu0 %v1031, 56
      %v2852 = vpop.permute.xlu0 %2851
      %2853 = vrot.lane.b32.xlu0 %v1032, 56
      %v2854 = vpop.permute.xlu0 %2853
      %2855 = vrot.lane.b32.xlu0 %v1033, 56
      %v2856 = vpop.permute.xlu0 %2855
      %2857 = vrot.lane.b32.xlu0 %v1034, 56
      %v2858 = vpop.permute.xlu0 %2857
      %2859 = vrot.lane.b32.xlu0 %v1035, 56
      %v2860 = vpop.permute.xlu0 %2859
      %2861 = vrot.lane.b32.xlu0 %v1036, 56
      %v2862 = vpop.permute.xlu0 %2861
      %2863 = vrot.lane.b32.xlu0 %v1037, 56
      %v2864 = vpop.permute.xlu0 %2863
      %2865 = vrot.lane.b32.xlu0 %v1038, 56
      %v2866 = vpop.permute.xlu0 %2865
      %2875 = vmatprep.subr.bf16.mxu0 0
      %2876 = vmatpush1.bf16.msra.mxu0 %v2852
      %2877 = vmatprep.subr.bf16.mxu0 0
      %2878 = vmatpush1.bf16.msra.mxu0 %v2854
      %2879 = vmatprep.subr.bf16.mxu0 0
      %2880 = vmatpush1.bf16.msra.mxu0 %v2856
      %2881 = vmatprep.subr.bf16.mxu0 0
      %2882 = vmatpush1.bf16.msra.mxu0 %v2858
      %2883 = vmatprep.subr.bf16.mxu0 0
      %2884 = vmatpush1.bf16.msra.mxu0 %v2860
      %2885 = vmatprep.subr.bf16.mxu0 0
      %2886 = vmatpush1.bf16.msra.mxu0 %v2862
      %2887 = vmatprep.subr.bf16.mxu0 0
      %2888 = vmatpush1.bf16.msra.mxu0 %v2864
      %2889 = vmatprep.subr.bf16.mxu0 0
      %2890 = vmatpush1.bf16.msra.mxu0 %v2866
      %2891 = vmatprep.subr.bf16.mxu0 0
      %2892 = vmatpush1.bf16.msra.mxu0 0
      %2893 = vmatprep.subr.bf16.mxu0 0
      %2894 = vmatpush1.bf16.msra.mxu0 0
      %2895 = vmatprep.subr.bf16.mxu0 0
      %2896 = vmatpush1.bf16.msra.mxu0 0
      %2897 = vmatprep.subr.bf16.mxu0 0
      %2898 = vmatpush1.bf16.msra.mxu0 0
      %2899 = vmatprep.subr.bf16.mxu0 0
      %2900 = vmatpush1.bf16.msra.mxu0 0
      %2901 = vmatprep.subr.bf16.mxu0 0
      %2902 = vmatpush1.bf16.msra.mxu0 0
      %2903 = vmatprep.subr.bf16.mxu0 0
      %2904 = vmatpush1.bf16.msra.mxu0 0
      %2905 = vmatprep.subr.bf16.mxu0 0
      %2906 = vmatpush1.bf16.msra.mxu0 0
      %2907 = vmatprep.mubr.bf16.mxu0 0
      %2908 = vmatmul.mubr.bf16.gmra.mrb[0].mxu0 %v2722
      %v2909 = vpop.f32.mrb[0].mxu0
      %v2910 = vadd.f32 0.0, %v2909
      %v2911 = vpop.f32.mrb[0].mxu0
      %v2912 = vpop.f32.mrb[0].mxu0
      %v2913 = vadd.f32 0.0, %v2912
      %v2914 = vpop.f32.mrb[0].mxu0
      %2915 = vmatprep.mubr.bf16.mxu0 0
      %2916 = vmatmul.mubr.bf16.gmra.mrb[0].mxu0 %v2723
      %v2917 = vpop.f32.mrb[0].mxu0
      %v2918 = vadd.f32 0.0, %v2917
      %v2919 = vpop.f32.mrb[0].mxu0
      %v2920 = vpop.f32.mrb[0].mxu0
      %v2921 = vadd.f32 0.0, %v2920
      %v2922 = vpop.f32.mrb[0].mxu0
      %2923 = vmatprep.mubr.bf16.mxu0 0
      %2924 = vmatmul.mubr.bf16.gmra.mrb[0].mxu0 %v2724
      %v2925 = vpop.f32.mrb[0].mxu0
      %v2926 = vadd.f32 0.0, %v2925
      %v2927 = vpop.f32.mrb[0].mxu0
      %v2928 = vpop.f32.mrb[0].mxu0
      %v2929 = vadd.f32 0.0, %v2928
      %v2930 = vpop.f32.mrb[0].mxu0
      %2931 = vmatprep.mubr.bf16.mxu0 0
      %2932 = vmatmul.mubr.bf16.gmra.mrb[0].mxu0 %v2725
      %v2933 = vpop.f32.mrb[0].mxu0
      %v2934 = vadd.f32 0.0, %v2933
      %v2935 = vpop.f32.mrb[0].mxu0
      %v2936 = vpop.f32.mrb[0].mxu0
      %v2937 = vadd.f32 0.0, %v2936
      %v2938 = vpop.f32.mrb[0].mxu0
      %2939 = vmatprep.mubr.bf16.mxu0 0
      %2940 = vmatmul.mubr.bf16.gmra.mrb[0].mxu0 %v2726
      %v2941 = vpop.f32.mrb[0].mxu0
      %v2942 = vadd.f32 0.0, %v2941
      %v2943 = vpop.f32.mrb[0].mxu0
      %v2944 = vpop.f32.mrb[0].mxu0
      %v2945 = vadd.f32 0.0, %v2944
      %v2946 = vpop.f32.mrb[0].mxu0
      %2947 = vmatprep.mubr.bf16.mxu0 0
      %2948 = vmatmul.mubr.bf16.gmra.mrb[0].mxu0 %v2727
      %v2949 = vpop.f32.mrb[0].mxu0
      %v2950 = vadd.f32 0.0, %v2949
      %v2951 = vpop.f32.mrb[0].mxu0
      %v2952 = vpop.f32.mrb[0].mxu0
      %v2953 = vadd.f32 0.0, %v2952
      %v2954 = vpop.f32.mrb[0].mxu0
      %2955 = vmatprep.mubr.bf16.mxu0 0
      %2956 = vmatmul.mubr.bf16.gmra.mrb[0].mxu0 %v2728
      %v2957 = vpop.f32.mrb[0].mxu0
      %v2958 = vadd.f32 0.0, %v2957
      %v2959 = vpop.f32.mrb[0].mxu0
      %v2960 = vpop.f32.mrb[0].mxu0
      %v2961 = vadd.f32 0.0, %v2960
      %v2962 = vpop.f32.mrb[0].mxu0
      %2963 = vmatprep.mubr.bf16.mxu0 0
      %2964 = vmatmul.mubr.bf16.gmra.mrb[0].mxu0 %v2729
      %v2965 = vpop.f32.mrb[0].mxu0
      %v2966 = vadd.f32 0.0, %v2965
      %v2967 = vpop.f32.mrb[0].mxu0
      %v2968 = vpop.f32.mrb[0].mxu0
      %v2969 = vadd.f32 0.0, %v2968
      %v2970 = vpop.f32.mrb[0].mxu0
      %2971 = vdwg.mxu0
      %v2972 = vpack.c.bf16 %v2792, %v2789
      %v2973 = vpack.c.bf16 %v2800, %v2797
      %v2974 = vpack.c.bf16 %v2808, %v2805
      %v2975 = vpack.c.bf16 %v2816, %v2813
      %v2976 = vpack.c.bf16 %v2824, %v2821
      %v2977 = vpack.c.bf16 %v2832, %v2829
      %v2978 = vpack.c.bf16 %v2840, %v2837
      %v2979 = vpack.c.bf16 %v2848, %v2845
      %v2980 = vpack.c.bf16 %v2913, %v2910
      %v2981 = vpack.c.bf16 %v2921, %v2918
      %v2982 = vpack.c.bf16 %v2929, %v2926
      %v2983 = vpack.c.bf16 %v2937, %v2934
      %v2984 = vpack.c.bf16 %v2945, %v2942
      %v2985 = vpack.c.bf16 %v2953, %v2950
      %v2986 = vpack.c.bf16 %v2961, %v2958
      %v2987 = vpack.c.bf16 %v2969, %v2966
      %v2989 = vsel %vm1067, %v2972, 0
      %v2992 = vsel %vm1067, %v2973, 0
      %v2995 = vsel %vm1067, %v2974, 0
      %v2998 = vsel %vm1067, %v2975, 0
      %v3001 = vsel %vm1067, %v2976, 0
      %v3004 = vsel %vm1067, %v2977, 0
      %v3007 = vsel %vm1067, %v2978, 0
      %v3010 = vsel %vm1067, %v2979, 0
      %v3013 = vsel %vm1067, %v2980, 0
      %v3016 = vsel %vm1067, %v2981, 0
      %v3019 = vsel %vm1067, %v2982, 0
      %v3022 = vsel %vm1067, %v2983, 0
      %v3025 = vsel %vm1067, %v2984, 0
      %v3028 = vsel %vm1067, %v2985, 0
      %v3031 = vsel %vm1067, %v2986, 0
      %v3034 = vsel %vm1067, %v2987, 0
      %vm3036 = vcmask 1043456
      %v3038 = vsel %vm3036, %v1040, 0
      %3040 = vmatprep.subr.bf16.mxu0 0
      %3041 = vmatpush1.bf16.msra.mxu0 %v3038
      %3042 = vmatprep.subr.bf16.mxu0 0
      %3043 = vmatpush1.bf16.msra.mxu0 0
      %3044 = vmatprep.subr.bf16.mxu0 0
      %3045 = vmatpush1.bf16.msra.mxu0 0
      %3046 = vmatprep.subr.bf16.mxu0 0
      %3047 = vmatpush1.bf16.msra.mxu0 0
      %3048 = vmatprep.subr.bf16.mxu0 0
      %3049 = vmatpush1.bf16.msra.mxu0 0
      %3050 = vmatprep.subr.bf16.mxu0 0
      %3051 = vmatpush1.bf16.msra.mxu0 0
      %3052 = vmatprep.subr.bf16.mxu0 0
      %3053 = vmatpush1.bf16.msra.mxu0 0
      %3054 = vmatprep.subr.bf16.mxu0 0
      %3055 = vmatpush1.bf16.msra.mxu0 0
      %3056 = vmatprep.subr.bf16.mxu0 0
      %3057 = vmatpush1.bf16.msra.mxu0 0
      %3058 = vmatprep.subr.bf16.mxu0 0
      %3059 = vmatpush1.bf16.msra.mxu0 0
      %3060 = vmatprep.subr.bf16.mxu0 0
      %3061 = vmatpush1.bf16.msra.mxu0 0
      %3062 = vmatprep.subr.bf16.mxu0 0
      %3063 = vmatpush1.bf16.msra.mxu0 0
      %3064 = vmatprep.subr.bf16.mxu0 0
      %3065 = vmatpush1.bf16.msra.mxu0 0
      %3066 = vmatprep.subr.bf16.mxu0 0
      %3067 = vmatpush1.bf16.msra.mxu0 0
      %3068 = vmatprep.subr.bf16.mxu0 0
      %3069 = vmatpush1.bf16.msra.mxu0 0
      %3070 = vmatprep.subr.bf16.mxu0 0
      %3071 = vmatpush1.bf16.msra.mxu0 0
      %3072 = vmatprep.mubr.bf16.mxu0 0
      %3073 = vmatmul.mubr.bf16.gmra.mrb[0].mxu0 %v2989
      %v3074 = vpop.f32.mrb[0].mxu0
      %v3075 = vadd.f32 0.0, %v3074
      %v3076 = vpop.f32.mrb[0].mxu0
      %v3077 = vpop.f32.mrb[0].mxu0
      %v3078 = vadd.f32 0.0, %v3077
      %v3079 = vpop.f32.mrb[0].mxu0
      %3080 = vmatprep.mubr.bf16.mxu0 0
      %3081 = vmatmul.mubr.bf16.gmra.mrb[0].mxu0 %v2992
      %v3082 = vpop.f32.mrb[0].mxu0
      %v3083 = vadd.f32 0.0, %v3082
      %v3084 = vpop.f32.mrb[0].mxu0
      %v3085 = vpop.f32.mrb[0].mxu0
      %v3086 = vadd.f32 0.0, %v3085
      %v3087 = vpop.f32.mrb[0].mxu0
      %3088 = vmatprep.mubr.bf16.mxu0 0
      %3089 = vmatmul.mubr.bf16.gmra.mrb[0].mxu0 %v2995
      %v3090 = vpop.f32.mrb[0].mxu0
      %v3091 = vadd.f32 0.0, %v3090
      %v3092 = vpop.f32.mrb[0].mxu0
      %v3093 = vpop.f32.mrb[0].mxu0
      %v3094 = vadd.f32 0.0, %v3093
      %v3095 = vpop.f32.mrb[0].mxu0
      %3096 = vmatprep.mubr.bf16.mxu0 0
      %3097 = vmatmul.mubr.bf16.gmra.mrb[0].mxu0 %v2998
      %v3098 = vpop.f32.mrb[0].mxu0
      %v3099 = vadd.f32 0.0, %v3098
      %v3100 = vpop.f32.mrb[0].mxu0
      %v3101 = vpop.f32.mrb[0].mxu0
      %v3102 = vadd.f32 0.0, %v3101
      %v3103 = vpop.f32.mrb[0].mxu0
      %3104 = vmatprep.mubr.bf16.mxu0 0
      %3105 = vmatmul.mubr.bf16.gmra.mrb[0].mxu0 %v3001
      %v3106 = vpop.f32.mrb[0].mxu0
      %v3107 = vadd.f32 0.0, %v3106
      %v3108 = vpop.f32.mrb[0].mxu0
      %v3109 = vpop.f32.mrb[0].mxu0
      %v3110 = vadd.f32 0.0, %v3109
      %v3111 = vpop.f32.mrb[0].mxu0
      %3112 = vmatprep.mubr.bf16.mxu0 0
      %3113 = vmatmul.mubr.bf16.gmra.mrb[0].mxu0 %v3004
      %v3114 = vpop.f32.mrb[0].mxu0
      %v3115 = vadd.f32 0.0, %v3114
      %v3116 = vpop.f32.mrb[0].mxu0
      %v3117 = vpop.f32.mrb[0].mxu0
      %v3118 = vadd.f32 0.0, %v3117
      %v3119 = vpop.f32.mrb[0].mxu0
      %3120 = vmatprep.mubr.bf16.mxu0 0
      %3121 = vmatmul.mubr.bf16.gmra.mrb[0].mxu0 %v3007
      %v3122 = vpop.f32.mrb[0].mxu0
      %v3123 = vadd.f32 0.0, %v3122
      %v3124 = vpop.f32.mrb[0].mxu0
      %v3125 = vpop.f32.mrb[0].mxu0
      %v3126 = vadd.f32 0.0, %v3125
      %v3127 = vpop.f32.mrb[0].mxu0
      %3128 = vmatprep.mubr.bf16.mxu0 0
      %3129 = vmatmul.mubr.bf16.gmra.mrb[0].mxu0 %v3010
      %v3130 = vpop.f32.mrb[0].mxu0
      %v3131 = vadd.f32 0.0, %v3130
      %v3132 = vpop.f32.mrb[0].mxu0
      %v3133 = vpop.f32.mrb[0].mxu0
      %v3134 = vadd.f32 0.0, %v3133
      %v3135 = vpop.f32.mrb[0].mxu0
      %3136 = vmatprep.mubr.bf16.mxu0 0
      %3137 = vmatmul.mubr.bf16.gmra.mrb[0].mxu0 %v3013
      %v3138 = vpop.f32.mrb[0].mxu0
      %v3139 = vadd.f32 0.0, %v3138
      %v3140 = vpop.f32.mrb[0].mxu0
      %v3141 = vpop.f32.mrb[0].mxu0
      %v3142 = vadd.f32 0.0, %v3141
      %v3143 = vpop.f32.mrb[0].mxu0
      %3144 = vmatprep.mubr.bf16.mxu0 0
      %3145 = vmatmul.mubr.bf16.gmra.mrb[0].mxu0 %v3016
      %v3146 = vpop.f32.mrb[0].mxu0
      %v3147 = vadd.f32 0.0, %v3146
      %v3148 = vpop.f32.mrb[0].mxu0
      %v3149 = vpop.f32.mrb[0].mxu0
      %v3150 = vadd.f32 0.0, %v3149
      %v3151 = vpop.f32.mrb[0].mxu0
      %3152 = vmatprep.mubr.bf16.mxu0 0
      %3153 = vmatmul.mubr.bf16.gmra.mrb[0].mxu0 %v3019
      %v3154 = vpop.f32.mrb[0].mxu0
      %v3155 = vadd.f32 0.0, %v3154
      %v3156 = vpop.f32.mrb[0].mxu0
      %v3157 = vpop.f32.mrb[0].mxu0
      %v3158 = vadd.f32 0.0, %v3157
      %v3159 = vpop.f32.mrb[0].mxu0
      %3160 = vmatprep.mubr.bf16.mxu0 0
      %3161 = vmatmul.mubr.bf16.gmra.mrb[0].mxu0 %v3022
      %v3162 = vpop.f32.mrb[0].mxu0
      %v3163 = vadd.f32 0.0, %v3162
      %v3164 = vpop.f32.mrb[0].mxu0
      %v3165 = vpop.f32.mrb[0].mxu0
      %v3166 = vadd.f32 0.0, %v3165
      %v3167 = vpop.f32.mrb[0].mxu0
      %3168 = vmatprep.mubr.bf16.mxu0 0
      %3169 = vmatmul.mubr.bf16.gmra.mrb[0].mxu0 %v3025
      %v3170 = vpop.f32.mrb[0].mxu0
      %v3171 = vadd.f32 0.0, %v3170
      %v3172 = vpop.f32.mrb[0].mxu0
      %v3173 = vpop.f32.mrb[0].mxu0
      %v3174 = vadd.f32 0.0, %v3173
      %v3175 = vpop.f32.mrb[0].mxu0
      %3176 = vmatprep.mubr.bf16.mxu0 0
      %3177 = vmatmul.mubr.bf16.gmra.mrb[0].mxu0 %v3028
      %v3178 = vpop.f32.mrb[0].mxu0
      %v3179 = vadd.f32 0.0, %v3178
      %v3180 = vpop.f32.mrb[0].mxu0
      %v3181 = vpop.f32.mrb[0].mxu0
      %v3182 = vadd.f32 0.0, %v3181
      %v3183 = vpop.f32.mrb[0].mxu0
      %3184 = vmatprep.mubr.bf16.mxu0 0
      %3185 = vmatmul.mubr.bf16.gmra.mrb[0].mxu0 %v3031
      %v3186 = vpop.f32.mrb[0].mxu0
      %v3187 = vadd.f32 0.0, %v3186
      %v3188 = vpop.f32.mrb[0].mxu0
      %v3189 = vpop.f32.mrb[0].mxu0
      %v3190 = vadd.f32 0.0, %v3189
      %v3191 = vpop.f32.mrb[0].mxu0
      %3192 = vmatprep.mubr.bf16.mxu0 0
      %3193 = vmatmul.mubr.bf16.gmra.mrb[0].mxu0 %v3034
      %v3194 = vpop.f32.mrb[0].mxu0
      %v3195 = vadd.f32 0.0, %v3194
      %v3196 = vpop.f32.mrb[0].mxu0
      %v3197 = vpop.f32.mrb[0].mxu0
      %v3198 = vadd.f32 0.0, %v3197
      %v3199 = vpop.f32.mrb[0].mxu0
      %3200 = vdwg.mxu0
      %v3202 = vsel %vm1067, %v1992, 0
      %v3205 = vsel %vm1067, %v1993, 0
      %v3208 = vsel %vm1067, %v1994, 0
      %v3211 = vsel %vm1067, %v1995, 0
      %v3214 = vsel %vm1067, %v1996, 0
      %v3217 = vsel %vm1067, %v1997, 0
      %v3220 = vsel %vm1067, %v1998, 0
      %v3223 = vsel %vm1067, %v1999, 0
      %v3226 = vsel %vm1067, %v2000, 0
      %v3229 = vsel %vm1067, %v2001, 0
      %v3232 = vsel %vm1067, %v2002, 0
      %v3235 = vsel %vm1067, %v2003, 0
      %v3238 = vsel %vm1067, %v2004, 0
      %v3241 = vsel %vm1067, %v2005, 0
      %v3244 = vsel %vm1067, %v2006, 0
      %v3247 = vsel %vm1067, %v2007, 0
      %v3250 = vsel %vm3036, %v1039, 0
      %3252 = vmatprep.subr.bf16.mxu0 0
      %3253 = vmatpush1.bf16.msra.mxu0 %v3250
      %3254 = vmatprep.subr.bf16.mxu0 0
      %3255 = vmatpush1.bf16.msra.mxu0 0
      %3256 = vmatprep.subr.bf16.mxu0 0
      %3257 = vmatpush1.bf16.msra.mxu0 0
      %3258 = vmatprep.subr.bf16.mxu0 0
      %3259 = vmatpush1.bf16.msra.mxu0 0
      %3260 = vmatprep.subr.bf16.mxu0 0
      %3261 = vmatpush1.bf16.msra.mxu0 0
      %3262 = vmatprep.subr.bf16.mxu0 0
      %3263 = vmatpush1.bf16.msra.mxu0 0
      %3264 = vmatprep.subr.bf16.mxu0 0
      %3265 = vmatpush1.bf16.msra.mxu0 0
      %3266 = vmatprep.subr.bf16.mxu0 0
      %3267 = vmatpush1.bf16.msra.mxu0 0
      %3268 = vmatprep.subr.bf16.mxu0 0
      %3269 = vmatpush1.bf16.msra.mxu0 0
      %3270 = vmatprep.subr.bf16.mxu0 0
      %3271 = vmatpush1.bf16.msra.mxu0 0
      %3272 = vmatprep.subr.bf16.mxu0 0
      %3273 = vmatpush1.bf16.msra.mxu0 0
      %3274 = vmatprep.subr.bf16.mxu0 0
      %3275 = vmatpush1.bf16.msra.mxu0 0
      %3276 = vmatprep.subr.bf16.mxu0 0
      %3277 = vmatpush1.bf16.msra.mxu0 0
      %3278 = vmatprep.subr.bf16.mxu0 0
      %3279 = vmatpush1.bf16.msra.mxu0 0
      %3280 = vmatprep.subr.bf16.mxu0 0
      %3281 = vmatpush1.bf16.msra.mxu0 0
      %3282 = vmatprep.subr.bf16.mxu0 0
      %3283 = vmatpush1.bf16.msra.mxu0 0
      %3284 = vmatprep.mubr.bf16.mxu0 0
      %3285 = vmatmul.mubr.bf16.gmra.mrb[0].mxu0 %v3202
      %v3286 = vpop.f32.mrb[0].mxu0
      %v3287 = vadd.f32 %v3075, %v3286
      %v3288 = vpop.f32.mrb[0].mxu0
      %v3289 = vpop.f32.mrb[0].mxu0
      %v3290 = vadd.f32 %v3078, %v3289
      %v3291 = vpop.f32.mrb[0].mxu0
      %3292 = vmatprep.mubr.bf16.mxu0 0
      %3293 = vmatmul.mubr.bf16.gmra.mrb[0].mxu0 %v3205
      %v3294 = vpop.f32.mrb[0].mxu0
      %v3295 = vadd.f32 %v3083, %v3294
      %v3296 = vpop.f32.mrb[0].mxu0
      %v3297 = vpop.f32.mrb[0].mxu0
      %v3298 = vadd.f32 %v3086, %v3297
      %v3299 = vpop.f32.mrb[0].mxu0
      %3300 = vmatprep.mubr.bf16.mxu0 0
      %3301 = vmatmul.mubr.bf16.gmra.mrb[0].mxu0 %v3208
      %v3302 = vpop.f32.mrb[0].mxu0
      %v3303 = vadd.f32 %v3091, %v3302
      %v3304 = vpop.f32.mrb[0].mxu0
      %v3305 = vpop.f32.mrb[0].mxu0
      %v3306 = vadd.f32 %v3094, %v3305
      %v3307 = vpop.f32.mrb[0].mxu0
      %3308 = vmatprep.mubr.bf16.mxu0 0
      %3309 = vmatmul.mubr.bf16.gmra.mrb[0].mxu0 %v3211
      %v3310 = vpop.f32.mrb[0].mxu0
      %v3311 = vadd.f32 %v3099, %v3310
      %v3312 = vpop.f32.mrb[0].mxu0
      %v3313 = vpop.f32.mrb[0].mxu0
      %v3314 = vadd.f32 %v3102, %v3313
      %v3315 = vpop.f32.mrb[0].mxu0
      %3316 = vmatprep.mubr.bf16.mxu0 0
      %3317 = vmatmul.mubr.bf16.gmra.mrb[0].mxu0 %v3214
      %v3318 = vpop.f32.mrb[0].mxu0
      %v3319 = vadd.f32 %v3107, %v3318
      %v3320 = vpop.f32.mrb[0].mxu0
      %v3321 = vpop.f32.mrb[0].mxu0
      %v3322 = vadd.f32 %v3110, %v3321
      %v3323 = vpop.f32.mrb[0].mxu0
      %3324 = vmatprep.mubr.bf16.mxu0 0
      %3325 = vmatmul.mubr.bf16.gmra.mrb[0].mxu0 %v3217
      %v3326 = vpop.f32.mrb[0].mxu0
      %v3327 = vadd.f32 %v3115, %v3326
      %v3328 = vpop.f32.mrb[0].mxu0
      %v3329 = vpop.f32.mrb[0].mxu0
      %v3330 = vadd.f32 %v3118, %v3329
      %v3331 = vpop.f32.mrb[0].mxu0
      %3332 = vmatprep.mubr.bf16.mxu0 0
      %3333 = vmatmul.mubr.bf16.gmra.mrb[0].mxu0 %v3220
      %v3334 = vpop.f32.mrb[0].mxu0
      %v3335 = vadd.f32 %v3123, %v3334
      %v3336 = vpop.f32.mrb[0].mxu0
      %v3337 = vpop.f32.mrb[0].mxu0
      %v3338 = vadd.f32 %v3126, %v3337
      %v3339 = vpop.f32.mrb[0].mxu0
      %3340 = vmatprep.mubr.bf16.mxu0 0
      %3341 = vmatmul.mubr.bf16.gmra.mrb[0].mxu0 %v3223
      %v3342 = vpop.f32.mrb[0].mxu0
      %v3343 = vadd.f32 %v3131, %v3342
      %v3344 = vpop.f32.mrb[0].mxu0
      %v3345 = vpop.f32.mrb[0].mxu0
      %v3346 = vadd.f32 %v3134, %v3345
      %v3347 = vpop.f32.mrb[0].mxu0
      %3348 = vmatprep.mubr.bf16.mxu0 0
      %3349 = vmatmul.mubr.bf16.gmra.mrb[0].mxu0 %v3226
      %v3350 = vpop.f32.mrb[0].mxu0
      %v3351 = vadd.f32 %v3139, %v3350
      %v3352 = vpop.f32.mrb[0].mxu0
      %v3353 = vpop.f32.mrb[0].mxu0
      %v3354 = vadd.f32 %v3142, %v3353
      %v3355 = vpop.f32.mrb[0].mxu0
      %3356 = vmatprep.mubr.bf16.mxu0 0
      %3357 = vmatmul.mubr.bf16.gmra.mrb[0].mxu0 %v3229
      %v3358 = vpop.f32.mrb[0].mxu0
      %v3359 = vadd.f32 %v3147, %v3358
      %v3360 = vpop.f32.mrb[0].mxu0
      %v3361 = vpop.f32.mrb[0].mxu0
      %v3362 = vadd.f32 %v3150, %v3361
      %v3363 = vpop.f32.mrb[0].mxu0
      %3364 = vmatprep.mubr.bf16.mxu0 0
      %3365 = vmatmul.mubr.bf16.gmra.mrb[0].mxu0 %v3232
      %v3366 = vpop.f32.mrb[0].mxu0
      %v3367 = vadd.f32 %v3155, %v3366
      %v3368 = vpop.f32.mrb[0].mxu0
      %v3369 = vpop.f32.mrb[0].mxu0
      %v3370 = vadd.f32 %v3158, %v3369
      %v3371 = vpop.f32.mrb[0].mxu0
      %3372 = vmatprep.mubr.bf16.mxu0 0
      %3373 = vmatmul.mubr.bf16.gmra.mrb[0].mxu0 %v3235
      %v3374 = vpop.f32.mrb[0].mxu0
      %v3375 = vadd.f32 %v3163, %v3374
      %v3376 = vpop.f32.mrb[0].mxu0
      %v3377 = vpop.f32.mrb[0].mxu0
      %v3378 = vadd.f32 %v3166, %v3377
      %v3379 = vpop.f32.mrb[0].mxu0
      %3380 = vmatprep.mubr.bf16.mxu0 0
      %3381 = vmatmul.mubr.bf16.gmra.mrb[0].mxu0 %v3238
      %v3382 = vpop.f32.mrb[0].mxu0
      %v3383 = vadd.f32 %v3171, %v3382
      %v3384 = vpop.f32.mrb[0].mxu0
      %v3385 = vpop.f32.mrb[0].mxu0
      %v3386 = vadd.f32 %v3174, %v3385
      %v3387 = vpop.f32.mrb[0].mxu0
      %3388 = vmatprep.mubr.bf16.mxu0 0
      %3389 = vmatmul.mubr.bf16.gmra.mrb[0].mxu0 %v3241
      %v3390 = vpop.f32.mrb[0].mxu0
      %v3391 = vadd.f32 %v3179, %v3390
      %v3392 = vpop.f32.mrb[0].mxu0
      %v3393 = vpop.f32.mrb[0].mxu0
      %v3394 = vadd.f32 %v3182, %v3393
      %v3395 = vpop.f32.mrb[0].mxu0
      %3396 = vmatprep.mubr.bf16.mxu0 0
      %3397 = vmatmul.mubr.bf16.gmra.mrb[0].mxu0 %v3244
      %v3398 = vpop.f32.mrb[0].mxu0
      %v3399 = vadd.f32 %v3187, %v3398
      %v3400 = vpop.f32.mrb[0].mxu0
      %v3401 = vpop.f32.mrb[0].mxu0
      %v3402 = vadd.f32 %v3190, %v3401
      %v3403 = vpop.f32.mrb[0].mxu0
      %3404 = vmatprep.mubr.bf16.mxu0 0
      %3405 = vmatmul.mubr.bf16.gmra.mrb[0].mxu0 %v3247
      %v3406 = vpop.f32.mrb[0].mxu0
      %v3407 = vadd.f32 %v3195, %v3406
      %v3408 = vpop.f32.mrb[0].mxu0
      %v3409 = vpop.f32.mrb[0].mxu0
      %v3410 = vadd.f32 %v3198, %v3409
      %v3411 = vpop.f32.mrb[0].mxu0
      %3412 = vdwg.mxu0
      %3413 = vrot.lane.b32.xlu0 %v1023, 112
      %v3414 = vpop.permute.xlu0 %3413
      %3415 = vrot.lane.b32.xlu0 %v1024, 112
      %v3416 = vpop.permute.xlu0 %3415
      %3417 = vrot.lane.b32.xlu0 %v1025, 112
      %v3418 = vpop.permute.xlu0 %3417
      %3419 = vrot.lane.b32.xlu0 %v1026, 112
      %v3420 = vpop.permute.xlu0 %3419
      %3421 = vrot.lane.b32.xlu0 %v1027, 112
      %v3422 = vpop.permute.xlu0 %3421
      %3423 = vrot.lane.b32.xlu0 %v1028, 112
      %v3424 = vpop.permute.xlu0 %3423
      %3425 = vrot.lane.b32.xlu0 %v1029, 112
      %v3426 = vpop.permute.xlu0 %3425
      %3427 = vrot.lane.b32.xlu0 %v1030, 112
      %v3428 = vpop.permute.xlu0 %3427
      %3429 = vrot.lane.b32.xlu0 %v1023, 80
      %v3430 = vpop.permute.xlu0 %3429
      %3431 = vrot.lane.b32.xlu0 %v1024, 80
      %v3432 = vpop.permute.xlu0 %3431
      %3433 = vrot.lane.b32.xlu0 %v1025, 80
      %v3434 = vpop.permute.xlu0 %3433
      %3435 = vrot.lane.b32.xlu0 %v1026, 80
      %v3436 = vpop.permute.xlu0 %3435
      %3437 = vrot.lane.b32.xlu0 %v1027, 80
      %v3438 = vpop.permute.xlu0 %3437
      %3439 = vrot.lane.b32.xlu0 %v1028, 80
      %v3440 = vpop.permute.xlu0 %3439
      %3441 = vrot.lane.b32.xlu0 %v1029, 80
      %v3442 = vpop.permute.xlu0 %3441
      %3443 = vrot.lane.b32.xlu0 %v1030, 80
      %v3444 = vpop.permute.xlu0 %3443
      %v3446 = vsel %vm1067, %v3414, 0
      %v3449 = vsel %vm1067, %v3416, 0
      %v3452 = vsel %vm1067, %v3418, 0
      %v3455 = vsel %vm1067, %v3420, 0
      %v3458 = vsel %vm1067, %v3422, 0
      %v3461 = vsel %vm1067, %v3424, 0
      %v3464 = vsel %vm1067, %v3426, 0
      %v3467 = vsel %vm1067, %v3428, 0
      %v3470 = vsel %vm1067, %v3430, 0
      %v3473 = vsel %vm1067, %v3432, 0
      %v3476 = vsel %vm1067, %v3434, 0
      %v3479 = vsel %vm1067, %v3436, 0
      %v3482 = vsel %vm1067, %v3438, 0
      %v3485 = vsel %vm1067, %v3440, 0
      %v3488 = vsel %vm1067, %v3442, 0
      %v3491 = vsel %vm1067, %v3444, 0
      %3493 = vmatprep.subr.bf16.mxu0 0
      %3494 = vmatpush1.bf16.xpose.msra.mxu0 %v3470
      %3495 = vmatprep.subr.bf16.mxu0 0
      %3496 = vmatpush1.bf16.xpose.msra.mxu0 %v3473
      %3497 = vmatprep.subr.bf16.mxu0 0
      %3498 = vmatpush1.bf16.xpose.msra.mxu0 %v3476
      %3499 = vmatprep.subr.bf16.mxu0 0
      %3500 = vmatpush1.bf16.xpose.msra.mxu0 %v3479
      %3501 = vmatprep.subr.bf16.mxu0 0
      %3502 = vmatpush1.bf16.xpose.msra.mxu0 %v3482
      %3503 = vmatprep.subr.bf16.mxu0 0
      %3504 = vmatpush1.bf16.xpose.msra.mxu0 %v3485
      %3505 = vmatprep.subr.bf16.mxu0 0
      %3506 = vmatpush1.bf16.xpose.msra.mxu0 %v3488
      %3507 = vmatprep.subr.bf16.mxu0 0
      %3508 = vmatpush1.bf16.xpose.msra.mxu0 %v3491
      %3509 = vmatprep.subr.bf16.mxu0 0
      %3510 = vmatpush1.bf16.xpose.msra.mxu0 0
      %3511 = vmatprep.subr.bf16.mxu0 0
      %3512 = vmatpush1.bf16.xpose.msra.mxu0 0
      %3513 = vmatprep.subr.bf16.mxu0 0
      %3514 = vmatpush1.bf16.xpose.msra.mxu0 0
      %3515 = vmatprep.subr.bf16.mxu0 0
      %3516 = vmatpush1.bf16.xpose.msra.mxu0 0
      %3517 = vmatprep.subr.bf16.mxu0 0
      %3518 = vmatpush1.bf16.xpose.msra.mxu0 0
      %3519 = vmatprep.subr.bf16.mxu0 0
      %3520 = vmatpush1.bf16.xpose.msra.mxu0 0
      %3521 = vmatprep.subr.bf16.mxu0 0
      %3522 = vmatpush1.bf16.xpose.msra.mxu0 0
      %3523 = vmatprep.subr.bf16.mxu0 0
      %3524 = vmatpush1.bf16.xpose.msra.mxu0 0
      %3525 = vmatprep.mubr.bf16.mxu0 0
      %3526 = vmatmul.mubr.bf16.gmra.mrb[0].mxu0 %v3446
      %v3527 = vpop.f32.mrb[0].mxu0
      %v3528 = vadd.f32 0.0, %v3527
      %v3529 = vpop.f32.mrb[0].mxu0
      %v3530 = vpop.f32.mrb[0].mxu0
      %v3531 = vadd.f32 0.0, %v3530
      %v3532 = vpop.f32.mrb[0].mxu0
      %3533 = vmatprep.mubr.bf16.mxu0 0
      %3534 = vmatmul.mubr.bf16.gmra.mrb[0].mxu0 %v3449
      %v3535 = vpop.f32.mrb[0].mxu0
      %v3536 = vadd.f32 0.0, %v3535
      %v3537 = vpop.f32.mrb[0].mxu0
      %v3538 = vpop.f32.mrb[0].mxu0
      %v3539 = vadd.f32 0.0, %v3538
      %v3540 = vpop.f32.mrb[0].mxu0
      %3541 = vmatprep.mubr.bf16.mxu0 0
      %3542 = vmatmul.mubr.bf16.gmra.mrb[0].mxu0 %v3452
      %v3543 = vpop.f32.mrb[0].mxu0
      %v3544 = vadd.f32 0.0, %v3543
      %v3545 = vpop.f32.mrb[0].mxu0
      %v3546 = vpop.f32.mrb[0].mxu0
      %v3547 = vadd.f32 0.0, %v3546
      %v3548 = vpop.f32.mrb[0].mxu0
      %3549 = vmatprep.mubr.bf16.mxu0 0
      %3550 = vmatmul.mubr.bf16.gmra.mrb[0].mxu0 %v3455
      %v3551 = vpop.f32.mrb[0].mxu0
      %v3552 = vadd.f32 0.0, %v3551
      %v3553 = vpop.f32.mrb[0].mxu0
      %v3554 = vpop.f32.mrb[0].mxu0
      %v3555 = vadd.f32 0.0, %v3554
      %v3556 = vpop.f32.mrb[0].mxu0
      %3557 = vmatprep.mubr.bf16.mxu0 0
      %3558 = vmatmul.mubr.bf16.gmra.mrb[0].mxu0 %v3458
      %v3559 = vpop.f32.mrb[0].mxu0
      %v3560 = vadd.f32 0.0, %v3559
      %v3561 = vpop.f32.mrb[0].mxu0
      %v3562 = vpop.f32.mrb[0].mxu0
      %v3563 = vadd.f32 0.0, %v3562
      %v3564 = vpop.f32.mrb[0].mxu0
      %3565 = vmatprep.mubr.bf16.mxu0 0
      %3566 = vmatmul.mubr.bf16.gmra.mrb[0].mxu0 %v3461
      %v3567 = vpop.f32.mrb[0].mxu0
      %v3568 = vadd.f32 0.0, %v3567
      %v3569 = vpop.f32.mrb[0].mxu0
      %v3570 = vpop.f32.mrb[0].mxu0
      %v3571 = vadd.f32 0.0, %v3570
      %v3572 = vpop.f32.mrb[0].mxu0
      %3573 = vmatprep.mubr.bf16.mxu0 0
      %3574 = vmatmul.mubr.bf16.gmra.mrb[0].mxu0 %v3464
      %v3575 = vpop.f32.mrb[0].mxu0
      %v3576 = vadd.f32 0.0, %v3575
      %v3577 = vpop.f32.mrb[0].mxu0
      %v3578 = vpop.f32.mrb[0].mxu0
      %v3579 = vadd.f32 0.0, %v3578
      %v3580 = vpop.f32.mrb[0].mxu0
      %3581 = vmatprep.mubr.bf16.mxu0 0
      %3582 = vmatmul.mubr.bf16.gmra.mrb[0].mxu0 %v3467
      %v3583 = vpop.f32.mrb[0].mxu0
      %v3584 = vadd.f32 0.0, %v3583
      %v3585 = vpop.f32.mrb[0].mxu0
      %v3586 = vpop.f32.mrb[0].mxu0
      %v3587 = vadd.f32 0.0, %v3586
      %v3588 = vpop.f32.mrb[0].mxu0
      %3589 = vdwg.mxu0
      %3590 = vrot.lane.b32.xlu0 %v1031, 112
      %v3591 = vpop.permute.xlu0 %3590
      %3592 = vrot.lane.b32.xlu0 %v1032, 112
      %v3593 = vpop.permute.xlu0 %3592
      %3594 = vrot.lane.b32.xlu0 %v1033, 112
      %v3595 = vpop.permute.xlu0 %3594
      %3596 = vrot.lane.b32.xlu0 %v1034, 112
      %v3597 = vpop.permute.xlu0 %3596
      %3598 = vrot.lane.b32.xlu0 %v1035, 112
      %v3599 = vpop.permute.xlu0 %3598
      %3600 = vrot.lane.b32.xlu0 %v1036, 112
      %v3601 = vpop.permute.xlu0 %3600
      %3602 = vrot.lane.b32.xlu0 %v1037, 112
      %v3603 = vpop.permute.xlu0 %3602
      %3604 = vrot.lane.b32.xlu0 %v1038, 112
      %v3605 = vpop.permute.xlu0 %3604
      %3606 = vrot.lane.b32.xlu0 %v1031, 80
      %v3607 = vpop.permute.xlu0 %3606
      %3608 = vrot.lane.b32.xlu0 %v1032, 80
      %v3609 = vpop.permute.xlu0 %3608
      %3610 = vrot.lane.b32.xlu0 %v1033, 80
      %v3611 = vpop.permute.xlu0 %3610
      %3612 = vrot.lane.b32.xlu0 %v1034, 80
      %v3613 = vpop.permute.xlu0 %3612
      %3614 = vrot.lane.b32.xlu0 %v1035, 80
      %v3615 = vpop.permute.xlu0 %3614
      %3616 = vrot.lane.b32.xlu0 %v1036, 80
      %v3617 = vpop.permute.xlu0 %3616
      %3618 = vrot.lane.b32.xlu0 %v1037, 80
      %v3619 = vpop.permute.xlu0 %3618
      %3620 = vrot.lane.b32.xlu0 %v1038, 80
      %v3621 = vpop.permute.xlu0 %3620
      %v3623 = vsel %vm1067, %v3591, 0
      %v3626 = vsel %vm1067, %v3593, 0
      %v3629 = vsel %vm1067, %v3595, 0
      %v3632 = vsel %vm1067, %v3597, 0
      %v3635 = vsel %vm1067, %v3599, 0
      %v3638 = vsel %vm1067, %v3601, 0
      %v3641 = vsel %vm1067, %v3603, 0
      %v3644 = vsel %vm1067, %v3605, 0
      %v3647 = vsel %vm1067, %v3607, 0
      %v3650 = vsel %vm1067, %v3609, 0
      %v3653 = vsel %vm1067, %v3611, 0
      %v3656 = vsel %vm1067, %v3613, 0
      %v3659 = vsel %vm1067, %v3615, 0
      %v3662 = vsel %vm1067, %v3617, 0
      %v3665 = vsel %vm1067, %v3619, 0
      %v3668 = vsel %vm1067, %v3621, 0
      %3670 = vmatprep.subr.bf16.mxu0 0
      %3671 = vmatpush1.bf16.xpose.msra.mxu0 %v3647
      %3672 = vmatprep.subr.bf16.mxu0 0
      %3673 = vmatpush1.bf16.xpose.msra.mxu0 %v3650
      %3674 = vmatprep.subr.bf16.mxu0 0
      %3675 = vmatpush1.bf16.xpose.msra.mxu0 %v3653
      %3676 = vmatprep.subr.bf16.mxu0 0
      %3677 = vmatpush1.bf16.xpose.msra.mxu0 %v3656
      %3678 = vmatprep.subr.bf16.mxu0 0
      %3679 = vmatpush1.bf16.xpose.msra.mxu0 %v3659
      %3680 = vmatprep.subr.bf16.mxu0 0
      %3681 = vmatpush1.bf16.xpose.msra.mxu0 %v3662
      %3682 = vmatprep.subr.bf16.mxu0 0
      %3683 = vmatpush1.bf16.xpose.msra.mxu0 %v3665
      %3684 = vmatprep.subr.bf16.mxu0 0
      %3685 = vmatpush1.bf16.xpose.msra.mxu0 %v3668
      %3686 = vmatprep.subr.bf16.mxu0 0
      %3687 = vmatpush1.bf16.xpose.msra.mxu0 0
      %3688 = vmatprep.subr.bf16.mxu0 0
      %3689 = vmatpush1.bf16.xpose.msra.mxu0 0
      %3690 = vmatprep.subr.bf16.mxu0 0
      %3691 = vmatpush1.bf16.xpose.msra.mxu0 0
      %3692 = vmatprep.subr.bf16.mxu0 0
      %3693 = vmatpush1.bf16.xpose.msra.mxu0 0
      %3694 = vmatprep.subr.bf16.mxu0 0
      %3695 = vmatpush1.bf16.xpose.msra.mxu0 0
      %3696 = vmatprep.subr.bf16.mxu0 0
      %3697 = vmatpush1.bf16.xpose.msra.mxu0 0
      %3698 = vmatprep.subr.bf16.mxu0 0
      %3699 = vmatpush1.bf16.xpose.msra.mxu0 0
      %3700 = vmatprep.subr.bf16.mxu0 0
      %3701 = vmatpush1.bf16.xpose.msra.mxu0 0
      %3702 = vmatprep.mubr.bf16.mxu0 0
      %3703 = vmatmul.mubr.bf16.gmra.mrb[0].mxu0 %v3623
      %v3704 = vpop.f32.mrb[0].mxu0
      %v3705 = vadd.f32 0.0, %v3704
      %v3706 = vpop.f32.mrb[0].mxu0
      %v3707 = vpop.f32.mrb[0].mxu0
      %v3708 = vadd.f32 0.0, %v3707
      %v3709 = vpop.f32.mrb[0].mxu0
      %3710 = vmatprep.mubr.bf16.mxu0 0
      %3711 = vmatmul.mubr.bf16.gmra.mrb[0].mxu0 %v3626
      %v3712 = vpop.f32.mrb[0].mxu0
      %v3713 = vadd.f32 0.0, %v3712
      %v3714 = vpop.f32.mrb[0].mxu0
      %v3715 = vpop.f32.mrb[0].mxu0
      %v3716 = vadd.f32 0.0, %v3715
      %v3717 = vpop.f32.mrb[0].mxu0
      %3718 = vmatprep.mubr.bf16.mxu0 0
      %3719 = vmatmul.mubr.bf16.gmra.mrb[0].mxu0 %v3629
      %v3720 = vpop.f32.mrb[0].mxu0
      %v3721 = vadd.f32 0.0, %v3720
      %v3722 = vpop.f32.mrb[0].mxu0
      %v3723 = vpop.f32.mrb[0].mxu0
      %v3724 = vadd.f32 0.0, %v3723
      %v3725 = vpop.f32.mrb[0].mxu0
      %3726 = vmatprep.mubr.bf16.mxu0 0
      %3727 = vmatmul.mubr.bf16.gmra.mrb[0].mxu0 %v3632
      %v3728 = vpop.f32.mrb[0].mxu0
      %v3729 = vadd.f32 0.0, %v3728
      %v3730 = vpop.f32.mrb[0].mxu0
      %v3731 = vpop.f32.mrb[0].mxu0
      %v3732 = vadd.f32 0.0, %v3731
      %v3733 = vpop.f32.mrb[0].mxu0
      %3734 = vmatprep.mubr.bf16.mxu0 0
      %3735 = vmatmul.mubr.bf16.gmra.mrb[0].mxu0 %v3635
      %v3736 = vpop.f32.mrb[0].mxu0
      %v3737 = vadd.f32 0.0, %v3736
      %v3738 = vpop.f32.mrb[0].mxu0
      %v3739 = vpop.f32.mrb[0].mxu0
      %v3740 = vadd.f32 0.0, %v3739
      %v3741 = vpop.f32.mrb[0].mxu0
      %3742 = vmatprep.mubr.bf16.mxu0 0
      %3743 = vmatmul.mubr.bf16.gmra.mrb[0].mxu0 %v3638
      %v3744 = vpop.f32.mrb[0].mxu0
      %v3745 = vadd.f32 0.0, %v3744
      %v3746 = vpop.f32.mrb[0].mxu0
      %v3747 = vpop.f32.mrb[0].mxu0
      %v3748 = vadd.f32 0.0, %v3747
      %v3749 = vpop.f32.mrb[0].mxu0
      %3750 = vmatprep.mubr.bf16.mxu0 0
      %3751 = vmatmul.mubr.bf16.gmra.mrb[0].mxu0 %v3641
      %v3752 = vpop.f32.mrb[0].mxu0
      %v3753 = vadd.f32 0.0, %v3752
      %v3754 = vpop.f32.mrb[0].mxu0
      %v3755 = vpop.f32.mrb[0].mxu0
      %v3756 = vadd.f32 0.0, %v3755
      %v3757 = vpop.f32.mrb[0].mxu0
      %3758 = vmatprep.mubr.bf16.mxu0 0
      %3759 = vmatmul.mubr.bf16.gmra.mrb[0].mxu0 %v3644
      %v3760 = vpop.f32.mrb[0].mxu0
      %v3761 = vadd.f32 0.0, %v3760
      %v3762 = vpop.f32.mrb[0].mxu0
      %v3763 = vpop.f32.mrb[0].mxu0
      %v3764 = vadd.f32 0.0, %v3763
      %v3765 = vpop.f32.mrb[0].mxu0
      %3766 = vdwg.mxu0
      %v3767 = vmul.f32 %v3528, 0.35355338
      %v3768 = vmul.f32 %v3531, 0.35355338
      %v3769 = vmul.f32 %v3536, 0.35355338
      %v3770 = vmul.f32 %v3539, 0.35355338
      %v3771 = vmul.f32 %v3544, 0.35355338
      %v3772 = vmul.f32 %v3547, 0.35355338
      %v3773 = vmul.f32 %v3552, 0.35355338
      %v3774 = vmul.f32 %v3555, 0.35355338
      %v3775 = vmul.f32 %v3560, 0.35355338
      %v3776 = vmul.f32 %v3563, 0.35355338
      %v3777 = vmul.f32 %v3568, 0.35355338
      %v3778 = vmul.f32 %v3571, 0.35355338
      %v3779 = vmul.f32 %v3576, 0.35355338
      %v3780 = vmul.f32 %v3579, 0.35355338
      %v3781 = vmul.f32 %v3584, 0.35355338
      %v3782 = vmul.f32 %v3587, 0.35355338
      %v3783 = vmul.f32 %v3705, 0.35355338
      %v3784 = vmul.f32 %v3708, 0.35355338
      %v3785 = vmul.f32 %v3713, 0.35355338
      %v3786 = vmul.f32 %v3716, 0.35355338
      %v3787 = vmul.f32 %v3721, 0.35355338
      %v3788 = vmul.f32 %v3724, 0.35355338
      %v3789 = vmul.f32 %v3729, 0.35355338
      %v3790 = vmul.f32 %v3732, 0.35355338
      %v3791 = vmul.f32 %v3737, 0.35355338
      %v3792 = vmul.f32 %v3740, 0.35355338
      %v3793 = vmul.f32 %v3745, 0.35355338
      %v3794 = vmul.f32 %v3748, 0.35355338
      %v3795 = vmul.f32 %v3753, 0.35355338
      %v3796 = vmul.f32 %v3756, 0.35355338
      %v3797 = vmul.f32 %v3761, 0.35355338
      %v3798 = vmul.f32 %v3764, 0.35355338
      %v3799 = vadd.f32 %v3767, %v484
      %v3800 = vadd.f32 %v3768, %v484
      %v3801 = vadd.f32 %v3769, %v484
      %v3802 = vadd.f32 %v3770, %v484
      %v3803 = vadd.f32 %v3771, %v484
      %v3804 = vadd.f32 %v3772, %v484
      %v3805 = vadd.f32 %v3773, %v484
      %v3806 = vadd.f32 %v3774, %v484
      %v3807 = vadd.f32 %v3775, %v484
      %v3808 = vadd.f32 %v3776, %v484
      %v3809 = vadd.f32 %v3777, %v484
      %v3810 = vadd.f32 %v3778, %v484
      %v3811 = vadd.f32 %v3779, %v484
      %v3812 = vadd.f32 %v3780, %v484
      %v3813 = vadd.f32 %v3781, %v484
      %v3814 = vadd.f32 %v3782, %v484
      %v3815 = vadd.f32 %v3783, %v484
      %v3816 = vadd.f32 %v3784, %v484
      %v3817 = vadd.f32 %v3785, %v484
      %v3818 = vadd.f32 %v3786, %v484
      %v3819 = vadd.f32 %v3787, %v484
      %v3820 = vadd.f32 %v3788, %v484
      %v3821 = vadd.f32 %v3789, %v484
      %v3822 = vadd.f32 %v3790, %v484
      %v3823 = vadd.f32 %v3791, %v484
      %v3824 = vadd.f32 %v3792, %v484
      %v3825 = vadd.f32 %v3793, %v484
      %v3826 = vadd.f32 %v3794, %v484
      %v3827 = vadd.f32 %v3795, %v484
      %v3828 = vadd.f32 %v3796, %v484
      %v3829 = vadd.f32 %v3797, %v484
      %v3830 = vadd.f32 %v3798, %v484
      %3831 = vmax.xlane.f32.xlu0 %v3799
      %v3832 = vpop.xlane.xlu0 %3831
      %3833 = vmax.xlane.f32.xlu0 %v3800
      %v3834 = vpop.xlane.xlu0 %3833
      %3835 = vmax.xlane.f32.xlu0 %v3801
      %v3836 = vpop.xlane.xlu0 %3835
      %3837 = vmax.xlane.f32.xlu0 %v3802
      %v3838 = vpop.xlane.xlu0 %3837
      %3839 = vmax.xlane.f32.xlu0 %v3803
      %v3840 = vpop.xlane.xlu0 %3839
      %3841 = vmax.xlane.f32.xlu0 %v3804
      %v3842 = vpop.xlane.xlu0 %3841
      %3843 = vmax.xlane.f32.xlu0 %v3805
      %v3844 = vpop.xlane.xlu0 %3843
      %3845 = vmax.xlane.f32.xlu0 %v3806
      %v3846 = vpop.xlane.xlu0 %3845
      %3847 = vmax.xlane.f32.xlu0 %v3807
      %v3848 = vpop.xlane.xlu0 %3847
      %3849 = vmax.xlane.f32.xlu0 %v3808
      %v3850 = vpop.xlane.xlu0 %3849
      %3851 = vmax.xlane.f32.xlu0 %v3809
      %v3852 = vpop.xlane.xlu0 %3851
      %3853 = vmax.xlane.f32.xlu0 %v3810
      %v3854 = vpop.xlane.xlu0 %3853
      %3855 = vmax.xlane.f32.xlu0 %v3811
      %v3856 = vpop.xlane.xlu0 %3855
      %3857 = vmax.xlane.f32.xlu0 %v3812
      %v3858 = vpop.xlane.xlu0 %3857
      %3859 = vmax.xlane.f32.xlu0 %v3813
      %v3860 = vpop.xlane.xlu0 %3859
      %3861 = vmax.xlane.f32.xlu0 %v3814
      %v3862 = vpop.xlane.xlu0 %3861
      %3863 = vmax.xlane.f32.xlu0 %v3815
      %v3864 = vpop.xlane.xlu0 %3863
      %3865 = vmax.xlane.f32.xlu0 %v3816
      %v3866 = vpop.xlane.xlu0 %3865
      %3867 = vmax.xlane.f32.xlu0 %v3817
      %v3868 = vpop.xlane.xlu0 %3867
      %3869 = vmax.xlane.f32.xlu0 %v3818
      %v3870 = vpop.xlane.xlu0 %3869
      %3871 = vmax.xlane.f32.xlu0 %v3819
      %v3872 = vpop.xlane.xlu0 %3871
      %3873 = vmax.xlane.f32.xlu0 %v3820
      %v3874 = vpop.xlane.xlu0 %3873
      %3875 = vmax.xlane.f32.xlu0 %v3821
      %v3876 = vpop.xlane.xlu0 %3875
      %3877 = vmax.xlane.f32.xlu0 %v3822
      %v3878 = vpop.xlane.xlu0 %3877
      %3879 = vmax.xlane.f32.xlu0 %v3823
      %v3880 = vpop.xlane.xlu0 %3879
      %3881 = vmax.xlane.f32.xlu0 %v3824
      %v3882 = vpop.xlane.xlu0 %3881
      %3883 = vmax.xlane.f32.xlu0 %v3825
      %v3884 = vpop.xlane.xlu0 %3883
      %3885 = vmax.xlane.f32.xlu0 %v3826
      %v3886 = vpop.xlane.xlu0 %3885
      %3887 = vmax.xlane.f32.xlu0 %v3827
      %v3888 = vpop.xlane.xlu0 %3887
      %3889 = vmax.xlane.f32.xlu0 %v3828
      %v3890 = vpop.xlane.xlu0 %3889
      %3891 = vmax.xlane.f32.xlu0 %v3829
      %v3892 = vpop.xlane.xlu0 %3891
      %3893 = vmax.xlane.f32.xlu0 %v3830
      %v3894 = vpop.xlane.xlu0 %3893
      %v3895 = vsub.f32 %v3799, %v3832
      %v3896 = vsub.f32 %v3800, %v3834
      %v3897 = vsub.f32 %v3801, %v3836
      %v3898 = vsub.f32 %v3802, %v3838
      %v3899 = vsub.f32 %v3803, %v3840
      %v3900 = vsub.f32 %v3804, %v3842
      %v3901 = vsub.f32 %v3805, %v3844
      %v3902 = vsub.f32 %v3806, %v3846
      %v3903 = vsub.f32 %v3807, %v3848
      %v3904 = vsub.f32 %v3808, %v3850
      %v3905 = vsub.f32 %v3809, %v3852
      %v3906 = vsub.f32 %v3810, %v3854
      %v3907 = vsub.f32 %v3811, %v3856
      %v3908 = vsub.f32 %v3812, %v3858
      %v3909 = vsub.f32 %v3813, %v3860
      %v3910 = vsub.f32 %v3814, %v3862
      %v3911 = vsub.f32 %v3815, %v3864
      %v3912 = vsub.f32 %v3816, %v3866
      %v3913 = vsub.f32 %v3817, %v3868
      %v3914 = vsub.f32 %v3818, %v3870
      %v3915 = vsub.f32 %v3819, %v3872
      %v3916 = vsub.f32 %v3820, %v3874
      %v3917 = vsub.f32 %v3821, %v3876
      %v3918 = vsub.f32 %v3822, %v3878
      %v3919 = vsub.f32 %v3823, %v3880
      %v3920 = vsub.f32 %v3824, %v3882
      %v3921 = vsub.f32 %v3825, %v3884
      %v3922 = vsub.f32 %v3826, %v3886
      %v3923 = vsub.f32 %v3827, %v3888
      %v3924 = vsub.f32 %v3828, %v3890
      %v3925 = vsub.f32 %v3829, %v3892
      %v3926 = vsub.f32 %v3830, %v3894
      %v3927 = vmul.f32 %v3895, 1.442695
      %v3928 = vpow.pop %v3927
      %v3929 = vmul.f32 %v3896, 1.442695
      %v3930 = vpow.pop %v3929
      %v3931 = vmul.f32 %v3897, 1.442695
      %v3932 = vpow.pop %v3931
      %v3933 = vmul.f32 %v3898, 1.442695
      %v3934 = vpow.pop %v3933
      %v3935 = vmul.f32 %v3899, 1.442695
      %v3936 = vpow.pop %v3935
      %v3937 = vmul.f32 %v3900, 1.442695
      %v3938 = vpow.pop %v3937
      %v3939 = vmul.f32 %v3901, 1.442695
      %v3940 = vpow.pop %v3939
      %v3941 = vmul.f32 %v3902, 1.442695
      %v3942 = vpow.pop %v3941
      %v3943 = vmul.f32 %v3903, 1.442695
      %v3944 = vpow.pop %v3943
      %v3945 = vmul.f32 %v3904, 1.442695
      %v3946 = vpow.pop %v3945
      %v3947 = vmul.f32 %v3905, 1.442695
      %v3948 = vpow.pop %v3947
      %v3949 = vmul.f32 %v3906, 1.442695
      %v3950 = vpow.pop %v3949
      %v3951 = vmul.f32 %v3907, 1.442695
      %v3952 = vpow.pop %v3951
      %v3953 = vmul.f32 %v3908, 1.442695
      %v3954 = vpow.pop %v3953
      %v3955 = vmul.f32 %v3909, 1.442695
      %v3956 = vpow.pop %v3955
      %v3957 = vmul.f32 %v3910, 1.442695
      %v3958 = vpow.pop %v3957
      %v3959 = vmul.f32 %v3911, 1.442695
      %v3960 = vpow.pop %v3959
      %v3961 = vmul.f32 %v3912, 1.442695
      %v3962 = vpow.pop %v3961
      %v3963 = vmul.f32 %v3913, 1.442695
      %v3964 = vpow.pop %v3963
      %v3965 = vmul.f32 %v3914, 1.442695
      %v3966 = vpow.pop %v3965
      %v3967 = vmul.f32 %v3915, 1.442695
      %v3968 = vpow.pop %v3967
      %v3969 = vmul.f32 %v3916, 1.442695
      %v3970 = vpow.pop %v3969
      %v3971 = vmul.f32 %v3917, 1.442695
      %v3972 = vpow.pop %v3971
      %v3973 = vmul.f32 %v3918, 1.442695
      %v3974 = vpow.pop %v3973
      %v3975 = vmul.f32 %v3919, 1.442695
      %v3976 = vpow.pop %v3975
      %v3977 = vmul.f32 %v3920, 1.442695
      %v3978 = vpow.pop %v3977
      %v3979 = vmul.f32 %v3921, 1.442695
      %v3980 = vpow.pop %v3979
      %v3981 = vmul.f32 %v3922, 1.442695
      %v3982 = vpow.pop %v3981
      %v3983 = vmul.f32 %v3923, 1.442695
      %v3984 = vpow.pop %v3983
      %v3985 = vmul.f32 %v3924, 1.442695
      %v3986 = vpow.pop %v3985
      %v3987 = vmul.f32 %v3925, 1.442695
      %v3988 = vpow.pop %v3987
      %v3989 = vmul.f32 %v3926, 1.442695
      %v3990 = vpow.pop %v3989
      %3991 = vadd.xlane.f32.xlu0 %v3928
      %v3992 = vpop.xlane.xlu0 %3991
      %3993 = vadd.xlane.f32.xlu0 %v3930
      %v3994 = vpop.xlane.xlu0 %3993
      %3995 = vadd.xlane.f32.xlu0 %v3932
      %v3996 = vpop.xlane.xlu0 %3995
      %3997 = vadd.xlane.f32.xlu0 %v3934
      %v3998 = vpop.xlane.xlu0 %3997
      %3999 = vadd.xlane.f32.xlu0 %v3936
      %v4000 = vpop.xlane.xlu0 %3999
      %4001 = vadd.xlane.f32.xlu0 %v3938
      %v4002 = vpop.xlane.xlu0 %4001
      %4003 = vadd.xlane.f32.xlu0 %v3940
      %v4004 = vpop.xlane.xlu0 %4003
      %4005 = vadd.xlane.f32.xlu0 %v3942
      %v4006 = vpop.xlane.xlu0 %4005
      %4007 = vadd.xlane.f32.xlu0 %v3944
      %v4008 = vpop.xlane.xlu0 %4007
      %4009 = vadd.xlane.f32.xlu0 %v3946
      %v4010 = vpop.xlane.xlu0 %4009
      %4011 = vadd.xlane.f32.xlu0 %v3948
      %v4012 = vpop.xlane.xlu0 %4011
      %4013 = vadd.xlane.f32.xlu0 %v3950
      %v4014 = vpop.xlane.xlu0 %4013
      %4015 = vadd.xlane.f32.xlu0 %v3952
      %v4016 = vpop.xlane.xlu0 %4015
      %4017 = vadd.xlane.f32.xlu0 %v3954
      %v4018 = vpop.xlane.xlu0 %4017
      %4019 = vadd.xlane.f32.xlu0 %v3956
      %v4020 = vpop.xlane.xlu0 %4019
      %4021 = vadd.xlane.f32.xlu0 %v3958
      %v4022 = vpop.xlane.xlu0 %4021
      %4023 = vadd.xlane.f32.xlu0 %v3960
      %v4024 = vpop.xlane.xlu0 %4023
      %4025 = vadd.xlane.f32.xlu0 %v3962
      %v4026 = vpop.xlane.xlu0 %4025
      %4027 = vadd.xlane.f32.xlu0 %v3964
      %v4028 = vpop.xlane.xlu0 %4027
      %4029 = vadd.xlane.f32.xlu0 %v3966
      %v4030 = vpop.xlane.xlu0 %4029
      %4031 = vadd.xlane.f32.xlu0 %v3968
      %v4032 = vpop.xlane.xlu0 %4031
      %4033 = vadd.xlane.f32.xlu0 %v3970
      %v4034 = vpop.xlane.xlu0 %4033
      %4035 = vadd.xlane.f32.xlu0 %v3972
      %v4036 = vpop.xlane.xlu0 %4035
      %4037 = vadd.xlane.f32.xlu0 %v3974
      %v4038 = vpop.xlane.xlu0 %4037
      %4039 = vadd.xlane.f32.xlu0 %v3976
      %v4040 = vpop.xlane.xlu0 %4039
      %4041 = vadd.xlane.f32.xlu0 %v3978
      %v4042 = vpop.xlane.xlu0 %4041
      %4043 = vadd.xlane.f32.xlu0 %v3980
      %v4044 = vpop.xlane.xlu0 %4043
      %4045 = vadd.xlane.f32.xlu0 %v3982
      %v4046 = vpop.xlane.xlu0 %4045
      %4047 = vadd.xlane.f32.xlu0 %v3984
      %v4048 = vpop.xlane.xlu0 %4047
      %4049 = vadd.xlane.f32.xlu0 %v3986
      %v4050 = vpop.xlane.xlu0 %4049
      %4051 = vadd.xlane.f32.xlu0 %v3988
      %v4052 = vpop.xlane.xlu0 %4051
      %4053 = vadd.xlane.f32.xlu0 %v3990
      %v4054 = vpop.xlane.xlu0 %4053
      %v4055 = vrcp.pop %v3992
      %v4056 = vrcp.pop %v3994
      %v4057 = vrcp.pop %v3996
      %v4058 = vrcp.pop %v3998
      %v4059 = vrcp.pop %v4000
      %v4060 = vrcp.pop %v4002
      %v4061 = vrcp.pop %v4004
      %v4062 = vrcp.pop %v4006
      %v4063 = vrcp.pop %v4008
      %v4064 = vrcp.pop %v4010
      %v4065 = vrcp.pop %v4012
      %v4066 = vrcp.pop %v4014
      %v4067 = vrcp.pop %v4016
      %v4068 = vrcp.pop %v4018
      %v4069 = vrcp.pop %v4020
      %v4070 = vrcp.pop %v4022
      %v4071 = vrcp.pop %v4024
      %v4072 = vrcp.pop %v4026
      %v4073 = vrcp.pop %v4028
      %v4074 = vrcp.pop %v4030
      %v4075 = vrcp.pop %v4032
      %v4076 = vrcp.pop %v4034
      %v4077 = vrcp.pop %v4036
      %v4078 = vrcp.pop %v4038
      %v4079 = vrcp.pop %v4040
      %v4080 = vrcp.pop %v4042
      %v4081 = vrcp.pop %v4044
      %v4082 = vrcp.pop %v4046
      %v4083 = vrcp.pop %v4048
      %v4084 = vrcp.pop %v4050
      %v4085 = vrcp.pop %v4052
      %v4086 = vrcp.pop %v4054
      %v4087 = vmul.f32 %v3928, %v4055
      %v4088 = vmul.f32 %v3930, %v4056
      %v4089 = vmul.f32 %v3932, %v4057
      %v4090 = vmul.f32 %v3934, %v4058
      %v4091 = vmul.f32 %v3936, %v4059
      %v4092 = vmul.f32 %v3938, %v4060
      %v4093 = vmul.f32 %v3940, %v4061
      %v4094 = vmul.f32 %v3942, %v4062
      %v4095 = vmul.f32 %v3944, %v4063
      %v4096 = vmul.f32 %v3946, %v4064
      %v4097 = vmul.f32 %v3948, %v4065
      %v4098 = vmul.f32 %v3950, %v4066
      %v4099 = vmul.f32 %v3952, %v4067
      %v4100 = vmul.f32 %v3954, %v4068
      %v4101 = vmul.f32 %v3956, %v4069
      %v4102 = vmul.f32 %v3958, %v4070
      %v4103 = vmul.f32 %v3960, %v4071
      %v4104 = vmul.f32 %v3962, %v4072
      %v4105 = vmul.f32 %v3964, %v4073
      %v4106 = vmul.f32 %v3966, %v4074
      %v4107 = vmul.f32 %v3968, %v4075
      %v4108 = vmul.f32 %v3970, %v4076
      %v4109 = vmul.f32 %v3972, %v4077
      %v4110 = vmul.f32 %v3974, %v4078
      %v4111 = vmul.f32 %v3976, %v4079
      %v4112 = vmul.f32 %v3978, %v4080
      %v4113 = vmul.f32 %v3980, %v4081
      %v4114 = vmul.f32 %v3982, %v4082
      %v4115 = vmul.f32 %v3984, %v4083
      %v4116 = vmul.f32 %v3986, %v4084
      %v4117 = vmul.f32 %v3988, %v4085
      %v4118 = vmul.f32 %v3990, %v4086
      %v4119 = vpack.c.bf16 %v4088, %v4087
      %v4120 = vpack.c.bf16 %v4090, %v4089
      %v4121 = vpack.c.bf16 %v4092, %v4091
      %v4122 = vpack.c.bf16 %v4094, %v4093
      %v4123 = vpack.c.bf16 %v4096, %v4095
      %v4124 = vpack.c.bf16 %v4098, %v4097
      %v4125 = vpack.c.bf16 %v4100, %v4099
      %v4126 = vpack.c.bf16 %v4102, %v4101
      %v4127 = vpack.c.bf16 %v4104, %v4103
      %v4128 = vpack.c.bf16 %v4106, %v4105
      %v4129 = vpack.c.bf16 %v4108, %v4107
      %v4130 = vpack.c.bf16 %v4110, %v4109
      %v4131 = vpack.c.bf16 %v4112, %v4111
      %v4132 = vpack.c.bf16 %v4114, %v4113
      %v4133 = vpack.c.bf16 %v4116, %v4115
      %v4134 = vpack.c.bf16 %v4118, %v4117
      %4135 = vrot.lane.b32.xlu0 %v1023, 48
      %v4136 = vpop.permute.xlu0 %4135
      %4137 = vrot.lane.b32.xlu0 %v1024, 48
      %v4138 = vpop.permute.xlu0 %4137
      %4139 = vrot.lane.b32.xlu0 %v1025, 48
      %v4140 = vpop.permute.xlu0 %4139
      %4141 = vrot.lane.b32.xlu0 %v1026, 48
      %v4142 = vpop.permute.xlu0 %4141
      %4143 = vrot.lane.b32.xlu0 %v1027, 48
      %v4144 = vpop.permute.xlu0 %4143
      %4145 = vrot.lane.b32.xlu0 %v1028, 48
      %v4146 = vpop.permute.xlu0 %4145
      %4147 = vrot.lane.b32.xlu0 %v1029, 48
      %v4148 = vpop.permute.xlu0 %4147
      %4149 = vrot.lane.b32.xlu0 %v1030, 48
      %v4150 = vpop.permute.xlu0 %4149
      %4159 = vmatprep.subr.bf16.mxu0 0
      %4160 = vmatpush1.bf16.msra.mxu0 %v4136
      %4161 = vmatprep.subr.bf16.mxu0 0
      %4162 = vmatpush1.bf16.msra.mxu0 %v4138
      %4163 = vmatprep.subr.bf16.mxu0 0
      %4164 = vmatpush1.bf16.msra.mxu0 %v4140
      %4165 = vmatprep.subr.bf16.mxu0 0
      %4166 = vmatpush1.bf16.msra.mxu0 %v4142
      %4167 = vmatprep.subr.bf16.mxu0 0
      %4168 = vmatpush1.bf16.msra.mxu0 %v4144
      %4169 = vmatprep.subr.bf16.mxu0 0
      %4170 = vmatpush1.bf16.msra.mxu0 %v4146
      %4171 = vmatprep.subr.bf16.mxu0 0
      %4172 = vmatpush1.bf16.msra.mxu0 %v4148
      %4173 = vmatprep.subr.bf16.mxu0 0
      %4174 = vmatpush1.bf16.msra.mxu0 %v4150
      %4175 = vmatprep.subr.bf16.mxu0 0
      %4176 = vmatpush1.bf16.msra.mxu0 0
      %4177 = vmatprep.subr.bf16.mxu0 0
      %4178 = vmatpush1.bf16.msra.mxu0 0
      %4179 = vmatprep.subr.bf16.mxu0 0
      %4180 = vmatpush1.bf16.msra.mxu0 0
      %4181 = vmatprep.subr.bf16.mxu0 0
      %4182 = vmatpush1.bf16.msra.mxu0 0
      %4183 = vmatprep.subr.bf16.mxu0 0
      %4184 = vmatpush1.bf16.msra.mxu0 0
      %4185 = vmatprep.subr.bf16.mxu0 0
      %4186 = vmatpush1.bf16.msra.mxu0 0
      %4187 = vmatprep.subr.bf16.mxu0 0
      %4188 = vmatpush1.bf16.msra.mxu0 0
      %4189 = vmatprep.subr.bf16.mxu0 0
      %4190 = vmatpush1.bf16.msra.mxu0 0
      %4191 = vmatprep.mubr.bf16.mxu0 0
      %4192 = vmatmul.mubr.bf16.gmra.mrb[0].mxu0 %v4119
      %v4193 = vpop.f32.mrb[0].mxu0
      %v4194 = vadd.f32 0.0, %v4193
      %v4195 = vpop.f32.mrb[0].mxu0
      %v4196 = vpop.f32.mrb[0].mxu0
      %v4197 = vadd.f32 0.0, %v4196
      %v4198 = vpop.f32.mrb[0].mxu0
      %4199 = vmatprep.mubr.bf16.mxu0 0
      %4200 = vmatmul.mubr.bf16.gmra.mrb[0].mxu0 %v4120
      %v4201 = vpop.f32.mrb[0].mxu0
      %v4202 = vadd.f32 0.0, %v4201
      %v4203 = vpop.f32.mrb[0].mxu0
      %v4204 = vpop.f32.mrb[0].mxu0
      %v4205 = vadd.f32 0.0, %v4204
      %v4206 = vpop.f32.mrb[0].mxu0
      %4207 = vmatprep.mubr.bf16.mxu0 0
      %4208 = vmatmul.mubr.bf16.gmra.mrb[0].mxu0 %v4121
      %v4209 = vpop.f32.mrb[0].mxu0
      %v4210 = vadd.f32 0.0, %v4209
      %v4211 = vpop.f32.mrb[0].mxu0
      %v4212 = vpop.f32.mrb[0].mxu0
      %v4213 = vadd.f32 0.0, %v4212
      %v4214 = vpop.f32.mrb[0].mxu0
      %4215 = vmatprep.mubr.bf16.mxu0 0
      %4216 = vmatmul.mubr.bf16.gmra.mrb[0].mxu0 %v4122
      %v4217 = vpop.f32.mrb[0].mxu0
      %v4218 = vadd.f32 0.0, %v4217
      %v4219 = vpop.f32.mrb[0].mxu0
      %v4220 = vpop.f32.mrb[0].mxu0
      %v4221 = vadd.f32 0.0, %v4220
      %v4222 = vpop.f32.mrb[0].mxu0
      %4223 = vmatprep.mubr.bf16.mxu0 0
      %4224 = vmatmul.mubr.bf16.gmra.mrb[0].mxu0 %v4123
      %v4225 = vpop.f32.mrb[0].mxu0
      %v4226 = vadd.f32 0.0, %v4225
      %v4227 = vpop.f32.mrb[0].mxu0
      %v4228 = vpop.f32.mrb[0].mxu0
      %v4229 = vadd.f32 0.0, %v4228
      %v4230 = vpop.f32.mrb[0].mxu0
      %4231 = vmatprep.mubr.bf16.mxu0 0
      %4232 = vmatmul.mubr.bf16.gmra.mrb[0].mxu0 %v4124
      %v4233 = vpop.f32.mrb[0].mxu0
      %v4234 = vadd.f32 0.0, %v4233
      %v4235 = vpop.f32.mrb[0].mxu0
      %v4236 = vpop.f32.mrb[0].mxu0
      %v4237 = vadd.f32 0.0, %v4236
      %v4238 = vpop.f32.mrb[0].mxu0
      %4239 = vmatprep.mubr.bf16.mxu0 0
      %4240 = vmatmul.mubr.bf16.gmra.mrb[0].mxu0 %v4125
      %v4241 = vpop.f32.mrb[0].mxu0
      %v4242 = vadd.f32 0.0, %v4241
      %v4243 = vpop.f32.mrb[0].mxu0
      %v4244 = vpop.f32.mrb[0].mxu0
      %v4245 = vadd.f32 0.0, %v4244
      %v4246 = vpop.f32.mrb[0].mxu0
      %4247 = vmatprep.mubr.bf16.mxu0 0
      %4248 = vmatmul.mubr.bf16.gmra.mrb[0].mxu0 %v4126
      %v4249 = vpop.f32.mrb[0].mxu0
      %v4250 = vadd.f32 0.0, %v4249
      %v4251 = vpop.f32.mrb[0].mxu0
      %v4252 = vpop.f32.mrb[0].mxu0
      %v4253 = vadd.f32 0.0, %v4252
      %v4254 = vpop.f32.mrb[0].mxu0
      %4255 = vdwg.mxu0
      %4256 = vrot.lane.b32.xlu0 %v1031, 48
      %v4257 = vpop.permute.xlu0 %4256
      %4258 = vrot.lane.b32.xlu0 %v1032, 48
      %v4259 = vpop.permute.xlu0 %4258
      %4260 = vrot.lane.b32.xlu0 %v1033, 48
      %v4261 = vpop.permute.xlu0 %4260
      %4262 = vrot.lane.b32.xlu0 %v1034, 48
      %v4263 = vpop.permute.xlu0 %4262
      %4264 = vrot.lane.b32.xlu0 %v1035, 48
      %v4265 = vpop.permute.xlu0 %4264
      %4266 = vrot.lane.b32.xlu0 %v1036, 48
      %v4267 = vpop.permute.xlu0 %4266
      %4268 = vrot.lane.b32.xlu0 %v1037, 48
      %v4269 = vpop.permute.xlu0 %4268
      %4270 = vrot.lane.b32.xlu0 %v1038, 48
      %v4271 = vpop.permute.xlu0 %4270
      %4280 = vmatprep.subr.bf16.mxu0 0
      %4281 = vmatpush1.bf16.msra.mxu0 %v4257
      %4282 = vmatprep.subr.bf16.mxu0 0
      %4283 = vmatpush1.bf16.msra.mxu0 %v4259
      %4284 = vmatprep.subr.bf16.mxu0 0
      %4285 = vmatpush1.bf16.msra.mxu0 %v4261
      %4286 = vmatprep.subr.bf16.mxu0 0
      %4287 = vmatpush1.bf16.msra.mxu0 %v4263
      %4288 = vmatprep.subr.bf16.mxu0 0
      %4289 = vmatpush1.bf16.msra.mxu0 %v4265
      %4290 = vmatprep.subr.bf16.mxu0 0
      %4291 = vmatpush1.bf16.msra.mxu0 %v4267
      %4292 = vmatprep.subr.bf16.mxu0 0
      %4293 = vmatpush1.bf16.msra.mxu0 %v4269
      %4294 = vmatprep.subr.bf16.mxu0 0
      %4295 = vmatpush1.bf16.msra.mxu0 %v4271
      %4296 = vmatprep.subr.bf16.mxu0 0
      %4297 = vmatpush1.bf16.msra.mxu0 0
      %4298 = vmatprep.subr.bf16.mxu0 0
      %4299 = vmatpush1.bf16.msra.mxu0 0
      %4300 = vmatprep.subr.bf16.mxu0 0
      %4301 = vmatpush1.bf16.msra.mxu0 0
      %4302 = vmatprep.subr.bf16.mxu0 0
      %4303 = vmatpush1.bf16.msra.mxu0 0
      %4304 = vmatprep.subr.bf16.mxu0 0
      %4305 = vmatpush1.bf16.msra.mxu0 0
      %4306 = vmatprep.subr.bf16.mxu0 0
      %4307 = vmatpush1.bf16.msra.mxu0 0
      %4308 = vmatprep.subr.bf16.mxu0 0
      %4309 = vmatpush1.bf16.msra.mxu0 0
      %4310 = vmatprep.subr.bf16.mxu0 0
      %4311 = vmatpush1.bf16.msra.mxu0 0
      %4312 = vmatprep.mubr.bf16.mxu0 0
      %4313 = vmatmul.mubr.bf16.gmra.mrb[0].mxu0 %v4127
      %v4314 = vpop.f32.mrb[0].mxu0
      %v4315 = vadd.f32 0.0, %v4314
      %v4316 = vpop.f32.mrb[0].mxu0
      %v4317 = vpop.f32.mrb[0].mxu0
      %v4318 = vadd.f32 0.0, %v4317
      %v4319 = vpop.f32.mrb[0].mxu0
      %4320 = vmatprep.mubr.bf16.mxu0 0
      %4321 = vmatmul.mubr.bf16.gmra.mrb[0].mxu0 %v4128
      %v4322 = vpop.f32.mrb[0].mxu0
      %v4323 = vadd.f32 0.0, %v4322
      %v4324 = vpop.f32.mrb[0].mxu0
      %v4325 = vpop.f32.mrb[0].mxu0
      %v4326 = vadd.f32 0.0, %v4325
      %v4327 = vpop.f32.mrb[0].mxu0
      %4328 = vmatprep.mubr.bf16.mxu0 0
      %4329 = vmatmul.mubr.bf16.gmra.mrb[0].mxu0 %v4129
      %v4330 = vpop.f32.mrb[0].mxu0
      %v4331 = vadd.f32 0.0, %v4330
      %v4332 = vpop.f32.mrb[0].mxu0
      %v4333 = vpop.f32.mrb[0].mxu0
      %v4334 = vadd.f32 0.0, %v4333
      %v4335 = vpop.f32.mrb[0].mxu0
      %4336 = vmatprep.mubr.bf16.mxu0 0
      %4337 = vmatmul.mubr.bf16.gmra.mrb[0].mxu0 %v4130
      %v4338 = vpop.f32.mrb[0].mxu0
      %v4339 = vadd.f32 0.0, %v4338
      %v4340 = vpop.f32.mrb[0].mxu0
      %v4341 = vpop.f32.mrb[0].mxu0
      %v4342 = vadd.f32 0.0, %v4341
      %v4343 = vpop.f32.mrb[0].mxu0
      %4344 = vmatprep.mubr.bf16.mxu0 0
      %4345 = vmatmul.mubr.bf16.gmra.mrb[0].mxu0 %v4131
      %v4346 = vpop.f32.mrb[0].mxu0
      %v4347 = vadd.f32 0.0, %v4346
      %v4348 = vpop.f32.mrb[0].mxu0
      %v4349 = vpop.f32.mrb[0].mxu0
      %v4350 = vadd.f32 0.0, %v4349
      %v4351 = vpop.f32.mrb[0].mxu0
      %4352 = vmatprep.mubr.bf16.mxu0 0
      %4353 = vmatmul.mubr.bf16.gmra.mrb[0].mxu0 %v4132
      %v4354 = vpop.f32.mrb[0].mxu0
      %v4355 = vadd.f32 0.0, %v4354
      %v4356 = vpop.f32.mrb[0].mxu0
      %v4357 = vpop.f32.mrb[0].mxu0
      %v4358 = vadd.f32 0.0, %v4357
      %v4359 = vpop.f32.mrb[0].mxu0
      %4360 = vmatprep.mubr.bf16.mxu0 0
      %4361 = vmatmul.mubr.bf16.gmra.mrb[0].mxu0 %v4133
      %v4362 = vpop.f32.mrb[0].mxu0
      %v4363 = vadd.f32 0.0, %v4362
      %v4364 = vpop.f32.mrb[0].mxu0
      %v4365 = vpop.f32.mrb[0].mxu0
      %v4366 = vadd.f32 0.0, %v4365
      %v4367 = vpop.f32.mrb[0].mxu0
      %4368 = vmatprep.mubr.bf16.mxu0 0
      %4369 = vmatmul.mubr.bf16.gmra.mrb[0].mxu0 %v4134
      %v4370 = vpop.f32.mrb[0].mxu0
      %v4371 = vadd.f32 0.0, %v4370
      %v4372 = vpop.f32.mrb[0].mxu0
      %v4373 = vpop.f32.mrb[0].mxu0
      %v4374 = vadd.f32 0.0, %v4373
      %v4375 = vpop.f32.mrb[0].mxu0
      %4376 = vdwg.mxu0
      %v4377 = vpack.c.bf16 %v4197, %v4194
      %v4378 = vpack.c.bf16 %v4205, %v4202
      %v4379 = vpack.c.bf16 %v4213, %v4210
      %v4380 = vpack.c.bf16 %v4221, %v4218
      %v4381 = vpack.c.bf16 %v4229, %v4226
      %v4382 = vpack.c.bf16 %v4237, %v4234
      %v4383 = vpack.c.bf16 %v4245, %v4242
      %v4384 = vpack.c.bf16 %v4253, %v4250
      %v4385 = vpack.c.bf16 %v4318, %v4315
      %v4386 = vpack.c.bf16 %v4326, %v4323
      %v4387 = vpack.c.bf16 %v4334, %v4331
      %v4388 = vpack.c.bf16 %v4342, %v4339
      %v4389 = vpack.c.bf16 %v4350, %v4347
      %v4390 = vpack.c.bf16 %v4358, %v4355
      %v4391 = vpack.c.bf16 %v4366, %v4363
      %v4392 = vpack.c.bf16 %v4374, %v4371
      %v4394 = vsel %vm1067, %v4377, 0
      %v4397 = vsel %vm1067, %v4378, 0
      %v4400 = vsel %vm1067, %v4379, 0
      %v4403 = vsel %vm1067, %v4380, 0
      %v4406 = vsel %vm1067, %v4381, 0
      %v4409 = vsel %vm1067, %v4382, 0
      %v4412 = vsel %vm1067, %v4383, 0
      %v4415 = vsel %vm1067, %v4384, 0
      %v4418 = vsel %vm1067, %v4385, 0
      %v4421 = vsel %vm1067, %v4386, 0
      %v4424 = vsel %vm1067, %v4387, 0
      %v4427 = vsel %vm1067, %v4388, 0
      %v4430 = vsel %vm1067, %v4389, 0
      %v4433 = vsel %vm1067, %v4390, 0
      %v4436 = vsel %vm1067, %v4391, 0
      %v4439 = vsel %vm1067, %v4392, 0
      %v4442 = vsel %vm3036, %v1041, 0
      %4444 = vmatprep.subr.bf16.mxu0 0
      %4445 = vmatpush1.bf16.msra.mxu0 %v4442
      %4446 = vmatprep.subr.bf16.mxu0 0
      %4447 = vmatpush1.bf16.msra.mxu0 0
      %4448 = vmatprep.subr.bf16.mxu0 0
      %4449 = vmatpush1.bf16.msra.mxu0 0
      %4450 = vmatprep.subr.bf16.mxu0 0
      %4451 = vmatpush1.bf16.msra.mxu0 0
      %4452 = vmatprep.subr.bf16.mxu0 0
      %4453 = vmatpush1.bf16.msra.mxu0 0
      %4454 = vmatprep.subr.bf16.mxu0 0
      %4455 = vmatpush1.bf16.msra.mxu0 0
      %4456 = vmatprep.subr.bf16.mxu0 0
      %4457 = vmatpush1.bf16.msra.mxu0 0
      %4458 = vmatprep.subr.bf16.mxu0 0
      %4459 = vmatpush1.bf16.msra.mxu0 0
      %4460 = vmatprep.subr.bf16.mxu0 0
      %4461 = vmatpush1.bf16.msra.mxu0 0
      %4462 = vmatprep.subr.bf16.mxu0 0
      %4463 = vmatpush1.bf16.msra.mxu0 0
      %4464 = vmatprep.subr.bf16.mxu0 0
      %4465 = vmatpush1.bf16.msra.mxu0 0
      %4466 = vmatprep.subr.bf16.mxu0 0
      %4467 = vmatpush1.bf16.msra.mxu0 0
      %4468 = vmatprep.subr.bf16.mxu0 0
      %4469 = vmatpush1.bf16.msra.mxu0 0
      %4470 = vmatprep.subr.bf16.mxu0 0
      %4471 = vmatpush1.bf16.msra.mxu0 0
      %4472 = vmatprep.subr.bf16.mxu0 0
      %4473 = vmatpush1.bf16.msra.mxu0 0
      %4474 = vmatprep.subr.bf16.mxu0 0
      %4475 = vmatpush1.bf16.msra.mxu0 0
      %4476 = vmatprep.mubr.bf16.mxu0 0
      %4477 = vmatmul.mubr.bf16.gmra.mrb[0].mxu0 %v4394
      %v4478 = vpop.f32.mrb[0].mxu0
      %v4479 = vadd.f32 0.0, %v4478
      %v4480 = vpop.f32.mrb[0].mxu0
      %v4481 = vpop.f32.mrb[0].mxu0
      %v4482 = vadd.f32 0.0, %v4481
      %v4483 = vpop.f32.mrb[0].mxu0
      %4484 = vmatprep.mubr.bf16.mxu0 0
      %4485 = vmatmul.mubr.bf16.gmra.mrb[0].mxu0 %v4397
      %v4486 = vpop.f32.mrb[0].mxu0
      %v4487 = vadd.f32 0.0, %v4486
      %v4488 = vpop.f32.mrb[0].mxu0
      %v4489 = vpop.f32.mrb[0].mxu0
      %v4490 = vadd.f32 0.0, %v4489
      %v4491 = vpop.f32.mrb[0].mxu0
      %4492 = vmatprep.mubr.bf16.mxu0 0
      %4493 = vmatmul.mubr.bf16.gmra.mrb[0].mxu0 %v4400
      %v4494 = vpop.f32.mrb[0].mxu0
      %v4495 = vadd.f32 0.0, %v4494
      %v4496 = vpop.f32.mrb[0].mxu0
      %v4497 = vpop.f32.mrb[0].mxu0
      %v4498 = vadd.f32 0.0, %v4497
      %v4499 = vpop.f32.mrb[0].mxu0
      %4500 = vmatprep.mubr.bf16.mxu0 0
      %4501 = vmatmul.mubr.bf16.gmra.mrb[0].mxu0 %v4403
      %v4502 = vpop.f32.mrb[0].mxu0
      %v4503 = vadd.f32 0.0, %v4502
      %v4504 = vpop.f32.mrb[0].mxu0
      %v4505 = vpop.f32.mrb[0].mxu0
      %v4506 = vadd.f32 0.0, %v4505
      %v4507 = vpop.f32.mrb[0].mxu0
      %4508 = vmatprep.mubr.bf16.mxu0 0
      %4509 = vmatmul.mubr.bf16.gmra.mrb[0].mxu0 %v4406
      %v4510 = vpop.f32.mrb[0].mxu0
      %v4511 = vadd.f32 0.0, %v4510
      %v4512 = vpop.f32.mrb[0].mxu0
      %v4513 = vpop.f32.mrb[0].mxu0
      %v4514 = vadd.f32 0.0, %v4513
      %v4515 = vpop.f32.mrb[0].mxu0
      %4516 = vmatprep.mubr.bf16.mxu0 0
      %4517 = vmatmul.mubr.bf16.gmra.mrb[0].mxu0 %v4409
      %v4518 = vpop.f32.mrb[0].mxu0
      %v4519 = vadd.f32 0.0, %v4518
      %v4520 = vpop.f32.mrb[0].mxu0
      %v4521 = vpop.f32.mrb[0].mxu0
      %v4522 = vadd.f32 0.0, %v4521
      %v4523 = vpop.f32.mrb[0].mxu0
      %4524 = vmatprep.mubr.bf16.mxu0 0
      %4525 = vmatmul.mubr.bf16.gmra.mrb[0].mxu0 %v4412
      %v4526 = vpop.f32.mrb[0].mxu0
      %v4527 = vadd.f32 0.0, %v4526
      %v4528 = vpop.f32.mrb[0].mxu0
      %v4529 = vpop.f32.mrb[0].mxu0
      %v4530 = vadd.f32 0.0, %v4529
      %v4531 = vpop.f32.mrb[0].mxu0
      %4532 = vmatprep.mubr.bf16.mxu0 0
      %4533 = vmatmul.mubr.bf16.gmra.mrb[0].mxu0 %v4415
      %v4534 = vpop.f32.mrb[0].mxu0
      %v4535 = vadd.f32 0.0, %v4534
      %v4536 = vpop.f32.mrb[0].mxu0
      %v4537 = vpop.f32.mrb[0].mxu0
      %v4538 = vadd.f32 0.0, %v4537
      %v4539 = vpop.f32.mrb[0].mxu0
      %4540 = vmatprep.mubr.bf16.mxu0 0
      %4541 = vmatmul.mubr.bf16.gmra.mrb[0].mxu0 %v4418
      %v4542 = vpop.f32.mrb[0].mxu0
      %v4543 = vadd.f32 0.0, %v4542
      %v4544 = vpop.f32.mrb[0].mxu0
      %v4545 = vpop.f32.mrb[0].mxu0
      %v4546 = vadd.f32 0.0, %v4545
      %v4547 = vpop.f32.mrb[0].mxu0
      %4548 = vmatprep.mubr.bf16.mxu0 0
      %4549 = vmatmul.mubr.bf16.gmra.mrb[0].mxu0 %v4421
      %v4550 = vpop.f32.mrb[0].mxu0
      %v4551 = vadd.f32 0.0, %v4550
      %v4552 = vpop.f32.mrb[0].mxu0
      %v4553 = vpop.f32.mrb[0].mxu0
      %v4554 = vadd.f32 0.0, %v4553
      %v4555 = vpop.f32.mrb[0].mxu0
      %4556 = vmatprep.mubr.bf16.mxu0 0
      %4557 = vmatmul.mubr.bf16.gmra.mrb[0].mxu0 %v4424
      %v4558 = vpop.f32.mrb[0].mxu0
      %v4559 = vadd.f32 0.0, %v4558
      %v4560 = vpop.f32.mrb[0].mxu0
      %v4561 = vpop.f32.mrb[0].mxu0
      %v4562 = vadd.f32 0.0, %v4561
      %v4563 = vpop.f32.mrb[0].mxu0
      %4564 = vmatprep.mubr.bf16.mxu0 0
      %4565 = vmatmul.mubr.bf16.gmra.mrb[0].mxu0 %v4427
      %v4566 = vpop.f32.mrb[0].mxu0
      %v4567 = vadd.f32 0.0, %v4566
      %v4568 = vpop.f32.mrb[0].mxu0
      %v4569 = vpop.f32.mrb[0].mxu0
      %v4570 = vadd.f32 0.0, %v4569
      %v4571 = vpop.f32.mrb[0].mxu0
      %4572 = vmatprep.mubr.bf16.mxu0 0
      %4573 = vmatmul.mubr.bf16.gmra.mrb[0].mxu0 %v4430
      %v4574 = vpop.f32.mrb[0].mxu0
      %v4575 = vadd.f32 0.0, %v4574
      %v4576 = vpop.f32.mrb[0].mxu0
      %v4577 = vpop.f32.mrb[0].mxu0
      %v4578 = vadd.f32 0.0, %v4577
      %v4579 = vpop.f32.mrb[0].mxu0
      %4580 = vmatprep.mubr.bf16.mxu0 0
      %4581 = vmatmul.mubr.bf16.gmra.mrb[0].mxu0 %v4433
      %v4582 = vpop.f32.mrb[0].mxu0
      %v4583 = vadd.f32 0.0, %v4582
      %v4584 = vpop.f32.mrb[0].mxu0
      %v4585 = vpop.f32.mrb[0].mxu0
      %v4586 = vadd.f32 0.0, %v4585
      %v4587 = vpop.f32.mrb[0].mxu0
      %4588 = vmatprep.mubr.bf16.mxu0 0
      %4589 = vmatmul.mubr.bf16.gmra.mrb[0].mxu0 %v4436
      %v4590 = vpop.f32.mrb[0].mxu0
      %v4591 = vadd.f32 0.0, %v4590
      %v4592 = vpop.f32.mrb[0].mxu0
      %v4593 = vpop.f32.mrb[0].mxu0
      %v4594 = vadd.f32 0.0, %v4593
      %v4595 = vpop.f32.mrb[0].mxu0
      %4596 = vmatprep.mubr.bf16.mxu0 0
      %4597 = vmatmul.mubr.bf16.gmra.mrb[0].mxu0 %v4439
      %v4598 = vpop.f32.mrb[0].mxu0
      %v4599 = vadd.f32 0.0, %v4598
      %v4600 = vpop.f32.mrb[0].mxu0
      %v4601 = vpop.f32.mrb[0].mxu0
      %v4602 = vadd.f32 0.0, %v4601
      %v4603 = vpop.f32.mrb[0].mxu0
      %4604 = vdwg.mxu0
      %v4605 = vadd.f32 %v3287, %v4479
      %v4606 = vadd.f32 %v3290, %v4482
      %v4607 = vadd.f32 %v3295, %v4487
      %v4608 = vadd.f32 %v3298, %v4490
      %v4609 = vadd.f32 %v3303, %v4495
      %v4610 = vadd.f32 %v3306, %v4498
      %v4611 = vadd.f32 %v3311, %v4503
      %v4612 = vadd.f32 %v3314, %v4506
      %v4613 = vadd.f32 %v3319, %v4511
      %v4614 = vadd.f32 %v3322, %v4514
      %v4615 = vadd.f32 %v3327, %v4519
      %v4616 = vadd.f32 %v3330, %v4522
      %v4617 = vadd.f32 %v3335, %v4527
      %v4618 = vadd.f32 %v3338, %v4530
      %v4619 = vadd.f32 %v3343, %v4535
      %v4620 = vadd.f32 %v3346, %v4538
      %v4621 = vadd.f32 %v3351, %v4543
      %v4622 = vadd.f32 %v3354, %v4546
      %v4623 = vadd.f32 %v3359, %v4551
      %v4624 = vadd.f32 %v3362, %v4554
      %v4625 = vadd.f32 %v3367, %v4559
      %v4626 = vadd.f32 %v3370, %v4562
      %v4627 = vadd.f32 %v3375, %v4567
      %v4628 = vadd.f32 %v3378, %v4570
      %v4629 = vadd.f32 %v3383, %v4575
      %v4630 = vadd.f32 %v3386, %v4578
      %v4631 = vadd.f32 %v3391, %v4583
      %v4632 = vadd.f32 %v3394, %v4586
      %v4633 = vadd.f32 %v3399, %v4591
      %v4634 = vadd.f32 %v3402, %v4594
      %v4635 = vadd.f32 %v3407, %v4599
      %v4636 = vadd.f32 %v3410, %v4602
      %4637 = vrot.lane.b32.xlu0 %v1023, 104
      %v4638 = vpop.permute.xlu0 %4637
      %4639 = vrot.lane.b32.xlu0 %v1024, 104
      %v4640 = vpop.permute.xlu0 %4639
      %4641 = vrot.lane.b32.xlu0 %v1025, 104
      %v4642 = vpop.permute.xlu0 %4641
      %4643 = vrot.lane.b32.xlu0 %v1026, 104
      %v4644 = vpop.permute.xlu0 %4643
      %4645 = vrot.lane.b32.xlu0 %v1027, 104
      %v4646 = vpop.permute.xlu0 %4645
      %4647 = vrot.lane.b32.xlu0 %v1028, 104
      %v4648 = vpop.permute.xlu0 %4647
      %4649 = vrot.lane.b32.xlu0 %v1029, 104
      %v4650 = vpop.permute.xlu0 %4649
      %4651 = vrot.lane.b32.xlu0 %v1030, 104
      %v4652 = vpop.permute.xlu0 %4651
      %4653 = vrot.lane.b32.xlu0 %v1023, 72
      %v4654 = vpop.permute.xlu0 %4653
      %4655 = vrot.lane.b32.xlu0 %v1024, 72
      %v4656 = vpop.permute.xlu0 %4655
      %4657 = vrot.lane.b32.xlu0 %v1025, 72
      %v4658 = vpop.permute.xlu0 %4657
      %4659 = vrot.lane.b32.xlu0 %v1026, 72
      %v4660 = vpop.permute.xlu0 %4659
      %4661 = vrot.lane.b32.xlu0 %v1027, 72
      %v4662 = vpop.permute.xlu0 %4661
      %4663 = vrot.lane.b32.xlu0 %v1028, 72
      %v4664 = vpop.permute.xlu0 %4663
      %4665 = vrot.lane.b32.xlu0 %v1029, 72
      %v4666 = vpop.permute.xlu0 %4665
      %4667 = vrot.lane.b32.xlu0 %v1030, 72
      %v4668 = vpop.permute.xlu0 %4667
      %v4670 = vsel %vm1067, %v4638, 0
      %v4673 = vsel %vm1067, %v4640, 0
      %v4676 = vsel %vm1067, %v4642, 0
      %v4679 = vsel %vm1067, %v4644, 0
      %v4682 = vsel %vm1067, %v4646, 0
      %v4685 = vsel %vm1067, %v4648, 0
      %v4688 = vsel %vm1067, %v4650, 0
      %v4691 = vsel %vm1067, %v4652, 0
      %v4694 = vsel %vm1067, %v4654, 0
      %v4697 = vsel %vm1067, %v4656, 0
      %v4700 = vsel %vm1067, %v4658, 0
      %v4703 = vsel %vm1067, %v4660, 0
      %v4706 = vsel %vm1067, %v4662, 0
      %v4709 = vsel %vm1067, %v4664, 0
      %v4712 = vsel %vm1067, %v4666, 0
      %v4715 = vsel %vm1067, %v4668, 0
      %4717 = vmatprep.subr.bf16.mxu0 0
      %4718 = vmatpush1.bf16.xpose.msra.mxu0 %v4694
      %4719 = vmatprep.subr.bf16.mxu0 0
      %4720 = vmatpush1.bf16.xpose.msra.mxu0 %v4697
      %4721 = vmatprep.subr.bf16.mxu0 0
      %4722 = vmatpush1.bf16.xpose.msra.mxu0 %v4700
      %4723 = vmatprep.subr.bf16.mxu0 0
      %4724 = vmatpush1.bf16.xpose.msra.mxu0 %v4703
      %4725 = vmatprep.subr.bf16.mxu0 0
      %4726 = vmatpush1.bf16.xpose.msra.mxu0 %v4706
      %4727 = vmatprep.subr.bf16.mxu0 0
      %4728 = vmatpush1.bf16.xpose.msra.mxu0 %v4709
      %4729 = vmatprep.subr.bf16.mxu0 0
      %4730 = vmatpush1.bf16.xpose.msra.mxu0 %v4712
      %4731 = vmatprep.subr.bf16.mxu0 0
      %4732 = vmatpush1.bf16.xpose.msra.mxu0 %v4715
      %4733 = vmatprep.subr.bf16.mxu0 0
      %4734 = vmatpush1.bf16.xpose.msra.mxu0 0
      %4735 = vmatprep.subr.bf16.mxu0 0
      %4736 = vmatpush1.bf16.xpose.msra.mxu0 0
      %4737 = vmatprep.subr.bf16.mxu0 0
      %4738 = vmatpush1.bf16.xpose.msra.mxu0 0
      %4739 = vmatprep.subr.bf16.mxu0 0
      %4740 = vmatpush1.bf16.xpose.msra.mxu0 0
      %4741 = vmatprep.subr.bf16.mxu0 0
      %4742 = vmatpush1.bf16.xpose.msra.mxu0 0
      %4743 = vmatprep.subr.bf16.mxu0 0
      %4744 = vmatpush1.bf16.xpose.msra.mxu0 0
      %4745 = vmatprep.subr.bf16.mxu0 0
      %4746 = vmatpush1.bf16.xpose.msra.mxu0 0
      %4747 = vmatprep.subr.bf16.mxu0 0
      %4748 = vmatpush1.bf16.xpose.msra.mxu0 0
      %4749 = vmatprep.mubr.bf16.mxu0 0
      %4750 = vmatmul.mubr.bf16.gmra.mrb[0].mxu0 %v4670
      %v4751 = vpop.f32.mrb[0].mxu0
      %v4752 = vadd.f32 0.0, %v4751
      %v4753 = vpop.f32.mrb[0].mxu0
      %v4754 = vpop.f32.mrb[0].mxu0
      %v4755 = vadd.f32 0.0, %v4754
      %v4756 = vpop.f32.mrb[0].mxu0
      %4757 = vmatprep.mubr.bf16.mxu0 0
      %4758 = vmatmul.mubr.bf16.gmra.mrb[0].mxu0 %v4673
      %v4759 = vpop.f32.mrb[0].mxu0
      %v4760 = vadd.f32 0.0, %v4759
      %v4761 = vpop.f32.mrb[0].mxu0
      %v4762 = vpop.f32.mrb[0].mxu0
      %v4763 = vadd.f32 0.0, %v4762
      %v4764 = vpop.f32.mrb[0].mxu0
      %4765 = vmatprep.mubr.bf16.mxu0 0
      %4766 = vmatmul.mubr.bf16.gmra.mrb[0].mxu0 %v4676
      %v4767 = vpop.f32.mrb[0].mxu0
      %v4768 = vadd.f32 0.0, %v4767
      %v4769 = vpop.f32.mrb[0].mxu0
      %v4770 = vpop.f32.mrb[0].mxu0
      %v4771 = vadd.f32 0.0, %v4770
      %v4772 = vpop.f32.mrb[0].mxu0
      %4773 = vmatprep.mubr.bf16.mxu0 0
      %4774 = vmatmul.mubr.bf16.gmra.mrb[0].mxu0 %v4679
      %v4775 = vpop.f32.mrb[0].mxu0
      %v4776 = vadd.f32 0.0, %v4775
      %v4777 = vpop.f32.mrb[0].mxu0
      %v4778 = vpop.f32.mrb[0].mxu0
      %v4779 = vadd.f32 0.0, %v4778
      %v4780 = vpop.f32.mrb[0].mxu0
      %4781 = vmatprep.mubr.bf16.mxu0 0
      %4782 = vmatmul.mubr.bf16.gmra.mrb[0].mxu0 %v4682
      %v4783 = vpop.f32.mrb[0].mxu0
      %v4784 = vadd.f32 0.0, %v4783
      %v4785 = vpop.f32.mrb[0].mxu0
      %v4786 = vpop.f32.mrb[0].mxu0
      %v4787 = vadd.f32 0.0, %v4786
      %v4788 = vpop.f32.mrb[0].mxu0
      %4789 = vmatprep.mubr.bf16.mxu0 0
      %4790 = vmatmul.mubr.bf16.gmra.mrb[0].mxu0 %v4685
      %v4791 = vpop.f32.mrb[0].mxu0
      %v4792 = vadd.f32 0.0, %v4791
      %v4793 = vpop.f32.mrb[0].mxu0
      %v4794 = vpop.f32.mrb[0].mxu0
      %v4795 = vadd.f32 0.0, %v4794
      %v4796 = vpop.f32.mrb[0].mxu0
      %4797 = vmatprep.mubr.bf16.mxu0 0
      %4798 = vmatmul.mubr.bf16.gmra.mrb[0].mxu0 %v4688
      %v4799 = vpop.f32.mrb[0].mxu0
      %v4800 = vadd.f32 0.0, %v4799
      %v4801 = vpop.f32.mrb[0].mxu0
      %v4802 = vpop.f32.mrb[0].mxu0
      %v4803 = vadd.f32 0.0, %v4802
      %v4804 = vpop.f32.mrb[0].mxu0
      %4805 = vmatprep.mubr.bf16.mxu0 0
      %4806 = vmatmul.mubr.bf16.gmra.mrb[0].mxu0 %v4691
      %v4807 = vpop.f32.mrb[0].mxu0
      %v4808 = vadd.f32 0.0, %v4807
      %v4809 = vpop.f32.mrb[0].mxu0
      %v4810 = vpop.f32.mrb[0].mxu0
      %v4811 = vadd.f32 0.0, %v4810
      %v4812 = vpop.f32.mrb[0].mxu0
      %4813 = vdwg.mxu0
      %4814 = vrot.lane.b32.xlu0 %v1031, 104
      %v4815 = vpop.permute.xlu0 %4814
      %4816 = vrot.lane.b32.xlu0 %v1032, 104
      %v4817 = vpop.permute.xlu0 %4816
      %4818 = vrot.lane.b32.xlu0 %v1033, 104
      %v4819 = vpop.permute.xlu0 %4818
      %4820 = vrot.lane.b32.xlu0 %v1034, 104
      %v4821 = vpop.permute.xlu0 %4820
      %4822 = vrot.lane.b32.xlu0 %v1035, 104
      %v4823 = vpop.permute.xlu0 %4822
      %4824 = vrot.lane.b32.xlu0 %v1036, 104
      %v4825 = vpop.permute.xlu0 %4824
      %4826 = vrot.lane.b32.xlu0 %v1037, 104
      %v4827 = vpop.permute.xlu0 %4826
      %4828 = vrot.lane.b32.xlu0 %v1038, 104
      %v4829 = vpop.permute.xlu0 %4828
      %4830 = vrot.lane.b32.xlu0 %v1031, 72
      %v4831 = vpop.permute.xlu0 %4830
      %4832 = vrot.lane.b32.xlu0 %v1032, 72
      %v4833 = vpop.permute.xlu0 %4832
      %4834 = vrot.lane.b32.xlu0 %v1033, 72
      %v4835 = vpop.permute.xlu0 %4834
      %4836 = vrot.lane.b32.xlu0 %v1034, 72
      %v4837 = vpop.permute.xlu0 %4836
      %4838 = vrot.lane.b32.xlu0 %v1035, 72
      %v4839 = vpop.permute.xlu0 %4838
      %4840 = vrot.lane.b32.xlu0 %v1036, 72
      %v4841 = vpop.permute.xlu0 %4840
      %4842 = vrot.lane.b32.xlu0 %v1037, 72
      %v4843 = vpop.permute.xlu0 %4842
      %4844 = vrot.lane.b32.xlu0 %v1038, 72
      %v4845 = vpop.permute.xlu0 %4844
      %v4847 = vsel %vm1067, %v4815, 0
      %v4850 = vsel %vm1067, %v4817, 0
      %v4853 = vsel %vm1067, %v4819, 0
      %v4856 = vsel %vm1067, %v4821, 0
      %v4859 = vsel %vm1067, %v4823, 0
      %v4862 = vsel %vm1067, %v4825, 0
      %v4865 = vsel %vm1067, %v4827, 0
      %v4868 = vsel %vm1067, %v4829, 0
      %v4871 = vsel %vm1067, %v4831, 0
      %v4874 = vsel %vm1067, %v4833, 0
      %v4877 = vsel %vm1067, %v4835, 0
      %v4880 = vsel %vm1067, %v4837, 0
      %v4883 = vsel %vm1067, %v4839, 0
      %v4886 = vsel %vm1067, %v4841, 0
      %v4889 = vsel %vm1067, %v4843, 0
      %v4892 = vsel %vm1067, %v4845, 0
      %4894 = vmatprep.subr.bf16.mxu0 0
      %4895 = vmatpush1.bf16.xpose.msra.mxu0 %v4871
      %4896 = vmatprep.subr.bf16.mxu0 0
      %4897 = vmatpush1.bf16.xpose.msra.mxu0 %v4874
      %4898 = vmatprep.subr.bf16.mxu0 0
      %4899 = vmatpush1.bf16.xpose.msra.mxu0 %v4877
      %4900 = vmatprep.subr.bf16.mxu0 0
      %4901 = vmatpush1.bf16.xpose.msra.mxu0 %v4880
      %4902 = vmatprep.subr.bf16.mxu0 0
      %4903 = vmatpush1.bf16.xpose.msra.mxu0 %v4883
      %4904 = vmatprep.subr.bf16.mxu0 0
      %4905 = vmatpush1.bf16.xpose.msra.mxu0 %v4886
      %4906 = vmatprep.subr.bf16.mxu0 0
      %4907 = vmatpush1.bf16.xpose.msra.mxu0 %v4889
      %4908 = vmatprep.subr.bf16.mxu0 0
      %4909 = vmatpush1.bf16.xpose.msra.mxu0 %v4892
      %4910 = vmatprep.subr.bf16.mxu0 0
      %4911 = vmatpush1.bf16.xpose.msra.mxu0 0
      %4912 = vmatprep.subr.bf16.mxu0 0
      %4913 = vmatpush1.bf16.xpose.msra.mxu0 0
      %4914 = vmatprep.subr.bf16.mxu0 0
      %4915 = vmatpush1.bf16.xpose.msra.mxu0 0
      %4916 = vmatprep.subr.bf16.mxu0 0
      %4917 = vmatpush1.bf16.xpose.msra.mxu0 0
      %4918 = vmatprep.subr.bf16.mxu0 0
      %4919 = vmatpush1.bf16.xpose.msra.mxu0 0
      %4920 = vmatprep.subr.bf16.mxu0 0
      %4921 = vmatpush1.bf16.xpose.msra.mxu0 0
      %4922 = vmatprep.subr.bf16.mxu0 0
      %4923 = vmatpush1.bf16.xpose.msra.mxu0 0
      %4924 = vmatprep.subr.bf16.mxu0 0
      %4925 = vmatpush1.bf16.xpose.msra.mxu0 0
      %4926 = vmatprep.mubr.bf16.mxu0 0
      %4927 = vmatmul.mubr.bf16.gmra.mrb[0].mxu0 %v4847
      %v4928 = vpop.f32.mrb[0].mxu0
      %v4929 = vadd.f32 0.0, %v4928
      %v4930 = vpop.f32.mrb[0].mxu0
      %v4931 = vpop.f32.mrb[0].mxu0
      %v4932 = vadd.f32 0.0, %v4931
      %v4933 = vpop.f32.mrb[0].mxu0
      %4934 = vmatprep.mubr.bf16.mxu0 0
      %4935 = vmatmul.mubr.bf16.gmra.mrb[0].mxu0 %v4850
      %v4936 = vpop.f32.mrb[0].mxu0
      %v4937 = vadd.f32 0.0, %v4936
      %v4938 = vpop.f32.mrb[0].mxu0
      %v4939 = vpop.f32.mrb[0].mxu0
      %v4940 = vadd.f32 0.0, %v4939
      %v4941 = vpop.f32.mrb[0].mxu0
      %4942 = vmatprep.mubr.bf16.mxu0 0
      %4943 = vmatmul.mubr.bf16.gmra.mrb[0].mxu0 %v4853
      %v4944 = vpop.f32.mrb[0].mxu0
      %v4945 = vadd.f32 0.0, %v4944
      %v4946 = vpop.f32.mrb[0].mxu0
      %v4947 = vpop.f32.mrb[0].mxu0
      %v4948 = vadd.f32 0.0, %v4947
      %v4949 = vpop.f32.mrb[0].mxu0
      %4950 = vmatprep.mubr.bf16.mxu0 0
      %4951 = vmatmul.mubr.bf16.gmra.mrb[0].mxu0 %v4856
      %v4952 = vpop.f32.mrb[0].mxu0
      %v4953 = vadd.f32 0.0, %v4952
      %v4954 = vpop.f32.mrb[0].mxu0
      %v4955 = vpop.f32.mrb[0].mxu0
      %v4956 = vadd.f32 0.0, %v4955
      %v4957 = vpop.f32.mrb[0].mxu0
      %4958 = vmatprep.mubr.bf16.mxu0 0
      %4959 = vmatmul.mubr.bf16.gmra.mrb[0].mxu0 %v4859
      %v4960 = vpop.f32.mrb[0].mxu0
      %v4961 = vadd.f32 0.0, %v4960
      %v4962 = vpop.f32.mrb[0].mxu0
      %v4963 = vpop.f32.mrb[0].mxu0
      %v4964 = vadd.f32 0.0, %v4963
      %v4965 = vpop.f32.mrb[0].mxu0
      %4966 = vmatprep.mubr.bf16.mxu0 0
      %4967 = vmatmul.mubr.bf16.gmra.mrb[0].mxu0 %v4862
      %v4968 = vpop.f32.mrb[0].mxu0
      %v4969 = vadd.f32 0.0, %v4968
      %v4970 = vpop.f32.mrb[0].mxu0
      %v4971 = vpop.f32.mrb[0].mxu0
      %v4972 = vadd.f32 0.0, %v4971
      %v4973 = vpop.f32.mrb[0].mxu0
      %4974 = vmatprep.mubr.bf16.mxu0 0
      %4975 = vmatmul.mubr.bf16.gmra.mrb[0].mxu0 %v4865
      %v4976 = vpop.f32.mrb[0].mxu0
      %v4977 = vadd.f32 0.0, %v4976
      %v4978 = vpop.f32.mrb[0].mxu0
      %v4979 = vpop.f32.mrb[0].mxu0
      %v4980 = vadd.f32 0.0, %v4979
      %v4981 = vpop.f32.mrb[0].mxu0
      %4982 = vmatprep.mubr.bf16.mxu0 0
      %4983 = vmatmul.mubr.bf16.gmra.mrb[0].mxu0 %v4868
      %v4984 = vpop.f32.mrb[0].mxu0
      %v4985 = vadd.f32 0.0, %v4984
      %v4986 = vpop.f32.mrb[0].mxu0
      %v4987 = vpop.f32.mrb[0].mxu0
      %v4988 = vadd.f32 0.0, %v4987
      %v4989 = vpop.f32.mrb[0].mxu0
      %4990 = vdwg.mxu0
      %v4991 = vmul.f32 %v4752, 0.35355338
      %v4992 = vmul.f32 %v4755, 0.35355338
      %v4993 = vmul.f32 %v4760, 0.35355338
      %v4994 = vmul.f32 %v4763, 0.35355338
      %v4995 = vmul.f32 %v4768, 0.35355338
      %v4996 = vmul.f32 %v4771, 0.35355338
      %v4997 = vmul.f32 %v4776, 0.35355338
      %v4998 = vmul.f32 %v4779, 0.35355338
      %v4999 = vmul.f32 %v4784, 0.35355338
      %v5000 = vmul.f32 %v4787, 0.35355338
      %v5001 = vmul.f32 %v4792, 0.35355338
      %v5002 = vmul.f32 %v4795, 0.35355338
      %v5003 = vmul.f32 %v4800, 0.35355338
      %v5004 = vmul.f32 %v4803, 0.35355338
      %v5005 = vmul.f32 %v4808, 0.35355338
      %v5006 = vmul.f32 %v4811, 0.35355338
      %v5007 = vmul.f32 %v4929, 0.35355338
      %v5008 = vmul.f32 %v4932, 0.35355338
      %v5009 = vmul.f32 %v4937, 0.35355338
      %v5010 = vmul.f32 %v4940, 0.35355338
      %v5011 = vmul.f32 %v4945, 0.35355338
      %v5012 = vmul.f32 %v4948, 0.35355338
      %v5013 = vmul.f32 %v4953, 0.35355338
      %v5014 = vmul.f32 %v4956, 0.35355338
      %v5015 = vmul.f32 %v4961, 0.35355338
      %v5016 = vmul.f32 %v4964, 0.35355338
      %v5017 = vmul.f32 %v4969, 0.35355338
      %v5018 = vmul.f32 %v4972, 0.35355338
      %v5019 = vmul.f32 %v4977, 0.35355338
      %v5020 = vmul.f32 %v4980, 0.35355338
      %v5021 = vmul.f32 %v4985, 0.35355338
      %v5022 = vmul.f32 %v4988, 0.35355338
      %v5023 = vadd.f32 %v4991, %v484
      %v5024 = vadd.f32 %v4992, %v484
      %v5025 = vadd.f32 %v4993, %v484
      %v5026 = vadd.f32 %v4994, %v484
      %v5027 = vadd.f32 %v4995, %v484
      %v5028 = vadd.f32 %v4996, %v484
      %v5029 = vadd.f32 %v4997, %v484
      %v5030 = vadd.f32 %v4998, %v484
      %v5031 = vadd.f32 %v4999, %v484
      %v5032 = vadd.f32 %v5000, %v484
      %v5033 = vadd.f32 %v5001, %v484
      %v5034 = vadd.f32 %v5002, %v484
      %v5035 = vadd.f32 %v5003, %v484
      %v5036 = vadd.f32 %v5004, %v484
      %v5037 = vadd.f32 %v5005, %v484
      %v5038 = vadd.f32 %v5006, %v484
      %v5039 = vadd.f32 %v5007, %v484
      %v5040 = vadd.f32 %v5008, %v484
      %v5041 = vadd.f32 %v5009, %v484
      %v5042 = vadd.f32 %v5010, %v484
      %v5043 = vadd.f32 %v5011, %v484
      %v5044 = vadd.f32 %v5012, %v484
      %v5045 = vadd.f32 %v5013, %v484
      %v5046 = vadd.f32 %v5014, %v484
      %v5047 = vadd.f32 %v5015, %v484
      %v5048 = vadd.f32 %v5016, %v484
      %v5049 = vadd.f32 %v5017, %v484
      %v5050 = vadd.f32 %v5018, %v484
      %v5051 = vadd.f32 %v5019, %v484
      %v5052 = vadd.f32 %v5020, %v484
      %v5053 = vadd.f32 %v5021, %v484
      %v5054 = vadd.f32 %v5022, %v484
      %5055 = vmax.xlane.f32.xlu0 %v5023
      %v5056 = vpop.xlane.xlu0 %5055
      %5057 = vmax.xlane.f32.xlu0 %v5024
      %v5058 = vpop.xlane.xlu0 %5057
      %5059 = vmax.xlane.f32.xlu0 %v5025
      %v5060 = vpop.xlane.xlu0 %5059
      %5061 = vmax.xlane.f32.xlu0 %v5026
      %v5062 = vpop.xlane.xlu0 %5061
      %5063 = vmax.xlane.f32.xlu0 %v5027
      %v5064 = vpop.xlane.xlu0 %5063
      %5065 = vmax.xlane.f32.xlu0 %v5028
      %v5066 = vpop.xlane.xlu0 %5065
      %5067 = vmax.xlane.f32.xlu0 %v5029
      %v5068 = vpop.xlane.xlu0 %5067
      %5069 = vmax.xlane.f32.xlu0 %v5030
      %v5070 = vpop.xlane.xlu0 %5069
      %5071 = vmax.xlane.f32.xlu0 %v5031
      %v5072 = vpop.xlane.xlu0 %5071
      %5073 = vmax.xlane.f32.xlu0 %v5032
      %v5074 = vpop.xlane.xlu0 %5073
      %5075 = vmax.xlane.f32.xlu0 %v5033
      %v5076 = vpop.xlane.xlu0 %5075
      %5077 = vmax.xlane.f32.xlu0 %v5034
      %v5078 = vpop.xlane.xlu0 %5077
      %5079 = vmax.xlane.f32.xlu0 %v5035
      %v5080 = vpop.xlane.xlu0 %5079
      %5081 = vmax.xlane.f32.xlu0 %v5036
      %v5082 = vpop.xlane.xlu0 %5081
      %5083 = vmax.xlane.f32.xlu0 %v5037
      %v5084 = vpop.xlane.xlu0 %5083
      %5085 = vmax.xlane.f32.xlu0 %v5038
      %v5086 = vpop.xlane.xlu0 %5085
      %5087 = vmax.xlane.f32.xlu0 %v5039
      %v5088 = vpop.xlane.xlu0 %5087
      %5089 = vmax.xlane.f32.xlu0 %v5040
      %v5090 = vpop.xlane.xlu0 %5089
      %5091 = vmax.xlane.f32.xlu0 %v5041
      %v5092 = vpop.xlane.xlu0 %5091
      %5093 = vmax.xlane.f32.xlu0 %v5042
      %v5094 = vpop.xlane.xlu0 %5093
      %5095 = vmax.xlane.f32.xlu0 %v5043
      %v5096 = vpop.xlane.xlu0 %5095
      %5097 = vmax.xlane.f32.xlu0 %v5044
      %v5098 = vpop.xlane.xlu0 %5097
      %5099 = vmax.xlane.f32.xlu0 %v5045
      %v5100 = vpop.xlane.xlu0 %5099
      %5101 = vmax.xlane.f32.xlu0 %v5046
      %v5102 = vpop.xlane.xlu0 %5101
      %5103 = vmax.xlane.f32.xlu0 %v5047
      %v5104 = vpop.xlane.xlu0 %5103
      %5105 = vmax.xlane.f32.xlu0 %v5048
      %v5106 = vpop.xlane.xlu0 %5105
      %5107 = vmax.xlane.f32.xlu0 %v5049
      %v5108 = vpop.xlane.xlu0 %5107
      %5109 = vmax.xlane.f32.xlu0 %v5050
      %v5110 = vpop.xlane.xlu0 %5109
      %5111 = vmax.xlane.f32.xlu0 %v5051
      %v5112 = vpop.xlane.xlu0 %5111
      %5113 = vmax.xlane.f32.xlu0 %v5052
      %v5114 = vpop.xlane.xlu0 %5113
      %5115 = vmax.xlane.f32.xlu0 %v5053
      %v5116 = vpop.xlane.xlu0 %5115
      %5117 = vmax.xlane.f32.xlu0 %v5054
      %v5118 = vpop.xlane.xlu0 %5117
      %v5119 = vsub.f32 %v5023, %v5056
      %v5120 = vsub.f32 %v5024, %v5058
      %v5121 = vsub.f32 %v5025, %v5060
      %v5122 = vsub.f32 %v5026, %v5062
      %v5123 = vsub.f32 %v5027, %v5064
      %v5124 = vsub.f32 %v5028, %v5066
      %v5125 = vsub.f32 %v5029, %v5068
      %v5126 = vsub.f32 %v5030, %v5070
      %v5127 = vsub.f32 %v5031, %v5072
      %v5128 = vsub.f32 %v5032, %v5074
      %v5129 = vsub.f32 %v5033, %v5076
      %v5130 = vsub.f32 %v5034, %v5078
      %v5131 = vsub.f32 %v5035, %v5080
      %v5132 = vsub.f32 %v5036, %v5082
      %v5133 = vsub.f32 %v5037, %v5084
      %v5134 = vsub.f32 %v5038, %v5086
      %v5135 = vsub.f32 %v5039, %v5088
      %v5136 = vsub.f32 %v5040, %v5090
      %v5137 = vsub.f32 %v5041, %v5092
      %v5138 = vsub.f32 %v5042, %v5094
      %v5139 = vsub.f32 %v5043, %v5096
      %v5140 = vsub.f32 %v5044, %v5098
      %v5141 = vsub.f32 %v5045, %v5100
      %v5142 = vsub.f32 %v5046, %v5102
      %v5143 = vsub.f32 %v5047, %v5104
      %v5144 = vsub.f32 %v5048, %v5106
      %v5145 = vsub.f32 %v5049, %v5108
      %v5146 = vsub.f32 %v5050, %v5110
      %v5147 = vsub.f32 %v5051, %v5112
      %v5148 = vsub.f32 %v5052, %v5114
      %v5149 = vsub.f32 %v5053, %v5116
      %v5150 = vsub.f32 %v5054, %v5118
      %v5151 = vmul.f32 %v5119, 1.442695
      %v5152 = vpow.pop %v5151
      %v5153 = vmul.f32 %v5120, 1.442695
      %v5154 = vpow.pop %v5153
      %v5155 = vmul.f32 %v5121, 1.442695
      %v5156 = vpow.pop %v5155
      %v5157 = vmul.f32 %v5122, 1.442695
      %v5158 = vpow.pop %v5157
      %v5159 = vmul.f32 %v5123, 1.442695
      %v5160 = vpow.pop %v5159
      %v5161 = vmul.f32 %v5124, 1.442695
      %v5162 = vpow.pop %v5161
      %v5163 = vmul.f32 %v5125, 1.442695
      %v5164 = vpow.pop %v5163
      %v5165 = vmul.f32 %v5126, 1.442695
      %v5166 = vpow.pop %v5165
      %v5167 = vmul.f32 %v5127, 1.442695
      %v5168 = vpow.pop %v5167
      %v5169 = vmul.f32 %v5128, 1.442695
      %v5170 = vpow.pop %v5169
      %v5171 = vmul.f32 %v5129, 1.442695
      %v5172 = vpow.pop %v5171
      %v5173 = vmul.f32 %v5130, 1.442695
      %v5174 = vpow.pop %v5173
      %v5175 = vmul.f32 %v5131, 1.442695
      %v5176 = vpow.pop %v5175
      %v5177 = vmul.f32 %v5132, 1.442695
      %v5178 = vpow.pop %v5177
      %v5179 = vmul.f32 %v5133, 1.442695
      %v5180 = vpow.pop %v5179
      %v5181 = vmul.f32 %v5134, 1.442695
      %v5182 = vpow.pop %v5181
      %v5183 = vmul.f32 %v5135, 1.442695
      %v5184 = vpow.pop %v5183
      %v5185 = vmul.f32 %v5136, 1.442695
      %v5186 = vpow.pop %v5185
      %v5187 = vmul.f32 %v5137, 1.442695
      %v5188 = vpow.pop %v5187
      %v5189 = vmul.f32 %v5138, 1.442695
      %v5190 = vpow.pop %v5189
      %v5191 = vmul.f32 %v5139, 1.442695
      %v5192 = vpow.pop %v5191
      %v5193 = vmul.f32 %v5140, 1.442695
      %v5194 = vpow.pop %v5193
      %v5195 = vmul.f32 %v5141, 1.442695
      %v5196 = vpow.pop %v5195
      %v5197 = vmul.f32 %v5142, 1.442695
      %v5198 = vpow.pop %v5197
      %v5199 = vmul.f32 %v5143, 1.442695
      %v5200 = vpow.pop %v5199
      %v5201 = vmul.f32 %v5144, 1.442695
      %v5202 = vpow.pop %v5201
      %v5203 = vmul.f32 %v5145, 1.442695
      %v5204 = vpow.pop %v5203
      %v5205 = vmul.f32 %v5146, 1.442695
      %v5206 = vpow.pop %v5205
      %v5207 = vmul.f32 %v5147, 1.442695
      %v5208 = vpow.pop %v5207
      %v5209 = vmul.f32 %v5148, 1.442695
      %v5210 = vpow.pop %v5209
      %v5211 = vmul.f32 %v5149, 1.442695
      %v5212 = vpow.pop %v5211
      %v5213 = vmul.f32 %v5150, 1.442695
      %v5214 = vpow.pop %v5213
      %5215 = vadd.xlane.f32.xlu0 %v5152
      %v5216 = vpop.xlane.xlu0 %5215
      %5217 = vadd.xlane.f32.xlu0 %v5154
      %v5218 = vpop.xlane.xlu0 %5217
      %5219 = vadd.xlane.f32.xlu0 %v5156
      %v5220 = vpop.xlane.xlu0 %5219
      %5221 = vadd.xlane.f32.xlu0 %v5158
      %v5222 = vpop.xlane.xlu0 %5221
      %5223 = vadd.xlane.f32.xlu0 %v5160
      %v5224 = vpop.xlane.xlu0 %5223
      %5225 = vadd.xlane.f32.xlu0 %v5162
      %v5226 = vpop.xlane.xlu0 %5225
      %5227 = vadd.xlane.f32.xlu0 %v5164
      %v5228 = vpop.xlane.xlu0 %5227
      %5229 = vadd.xlane.f32.xlu0 %v5166
      %v5230 = vpop.xlane.xlu0 %5229
      %5231 = vadd.xlane.f32.xlu0 %v5168
      %v5232 = vpop.xlane.xlu0 %5231
      %5233 = vadd.xlane.f32.xlu0 %v5170
      %v5234 = vpop.xlane.xlu0 %5233
      %5235 = vadd.xlane.f32.xlu0 %v5172
      %v5236 = vpop.xlane.xlu0 %5235
      %5237 = vadd.xlane.f32.xlu0 %v5174
      %v5238 = vpop.xlane.xlu0 %5237
      %5239 = vadd.xlane.f32.xlu0 %v5176
      %v5240 = vpop.xlane.xlu0 %5239
      %5241 = vadd.xlane.f32.xlu0 %v5178
      %v5242 = vpop.xlane.xlu0 %5241
      %5243 = vadd.xlane.f32.xlu0 %v5180
      %v5244 = vpop.xlane.xlu0 %5243
      %5245 = vadd.xlane.f32.xlu0 %v5182
      %v5246 = vpop.xlane.xlu0 %5245
      %5247 = vadd.xlane.f32.xlu0 %v5184
      %v5248 = vpop.xlane.xlu0 %5247
      %5249 = vadd.xlane.f32.xlu0 %v5186
      %v5250 = vpop.xlane.xlu0 %5249
      %5251 = vadd.xlane.f32.xlu0 %v5188
      %v5252 = vpop.xlane.xlu0 %5251
      %5253 = vadd.xlane.f32.xlu0 %v5190
      %v5254 = vpop.xlane.xlu0 %5253
      %5255 = vadd.xlane.f32.xlu0 %v5192
      %v5256 = vpop.xlane.xlu0 %5255
      %5257 = vadd.xlane.f32.xlu0 %v5194
      %v5258 = vpop.xlane.xlu0 %5257
      %5259 = vadd.xlane.f32.xlu0 %v5196
      %v5260 = vpop.xlane.xlu0 %5259
      %5261 = vadd.xlane.f32.xlu0 %v5198
      %v5262 = vpop.xlane.xlu0 %5261
      %5263 = vadd.xlane.f32.xlu0 %v5200
      %v5264 = vpop.xlane.xlu0 %5263
      %5265 = vadd.xlane.f32.xlu0 %v5202
      %v5266 = vpop.xlane.xlu0 %5265
      %5267 = vadd.xlane.f32.xlu0 %v5204
      %v5268 = vpop.xlane.xlu0 %5267
      %5269 = vadd.xlane.f32.xlu0 %v5206
      %v5270 = vpop.xlane.xlu0 %5269
      %5271 = vadd.xlane.f32.xlu0 %v5208
      %v5272 = vpop.xlane.xlu0 %5271
      %5273 = vadd.xlane.f32.xlu0 %v5210
      %v5274 = vpop.xlane.xlu0 %5273
      %5275 = vadd.xlane.f32.xlu0 %v5212
      %v5276 = vpop.xlane.xlu0 %5275
      %5277 = vadd.xlane.f32.xlu0 %v5214
      %v5278 = vpop.xlane.xlu0 %5277
      %v5279 = vrcp.pop %v5216
      %v5280 = vrcp.pop %v5218
      %v5281 = vrcp.pop %v5220
      %v5282 = vrcp.pop %v5222
      %v5283 = vrcp.pop %v5224
      %v5284 = vrcp.pop %v5226
      %v5285 = vrcp.pop %v5228
      %v5286 = vrcp.pop %v5230
      %v5287 = vrcp.pop %v5232
      %v5288 = vrcp.pop %v5234
      %v5289 = vrcp.pop %v5236
      %v5290 = vrcp.pop %v5238
      %v5291 = vrcp.pop %v5240
      %v5292 = vrcp.pop %v5242
      %v5293 = vrcp.pop %v5244
      %v5294 = vrcp.pop %v5246
      %v5295 = vrcp.pop %v5248
      %v5296 = vrcp.pop %v5250
      %v5297 = vrcp.pop %v5252
      %v5298 = vrcp.pop %v5254
      %v5299 = vrcp.pop %v5256
      %v5300 = vrcp.pop %v5258
      %v5301 = vrcp.pop %v5260
      %v5302 = vrcp.pop %v5262
      %v5303 = vrcp.pop %v5264
      %v5304 = vrcp.pop %v5266
      %v5305 = vrcp.pop %v5268
      %v5306 = vrcp.pop %v5270
      %v5307 = vrcp.pop %v5272
      %v5308 = vrcp.pop %v5274
      %v5309 = vrcp.pop %v5276
      %v5310 = vrcp.pop %v5278
      %v5311 = vmul.f32 %v5152, %v5279
      %v5312 = vmul.f32 %v5154, %v5280
      %v5313 = vmul.f32 %v5156, %v5281
      %v5314 = vmul.f32 %v5158, %v5282
      %v5315 = vmul.f32 %v5160, %v5283
      %v5316 = vmul.f32 %v5162, %v5284
      %v5317 = vmul.f32 %v5164, %v5285
      %v5318 = vmul.f32 %v5166, %v5286
      %v5319 = vmul.f32 %v5168, %v5287
      %v5320 = vmul.f32 %v5170, %v5288
      %v5321 = vmul.f32 %v5172, %v5289
      %v5322 = vmul.f32 %v5174, %v5290
      %v5323 = vmul.f32 %v5176, %v5291
      %v5324 = vmul.f32 %v5178, %v5292
      %v5325 = vmul.f32 %v5180, %v5293
      %v5326 = vmul.f32 %v5182, %v5294
      %v5327 = vmul.f32 %v5184, %v5295
      %v5328 = vmul.f32 %v5186, %v5296
      %v5329 = vmul.f32 %v5188, %v5297
      %v5330 = vmul.f32 %v5190, %v5298
      %v5331 = vmul.f32 %v5192, %v5299
      %v5332 = vmul.f32 %v5194, %v5300
      %v5333 = vmul.f32 %v5196, %v5301
      %v5334 = vmul.f32 %v5198, %v5302
      %v5335 = vmul.f32 %v5200, %v5303
      %v5336 = vmul.f32 %v5202, %v5304
      %v5337 = vmul.f32 %v5204, %v5305
      %v5338 = vmul.f32 %v5206, %v5306
      %v5339 = vmul.f32 %v5208, %v5307
      %v5340 = vmul.f32 %v5210, %v5308
      %v5341 = vmul.f32 %v5212, %v5309
      %v5342 = vmul.f32 %v5214, %v5310
      %v5343 = vpack.c.bf16 %v5312, %v5311
      %v5344 = vpack.c.bf16 %v5314, %v5313
      %v5345 = vpack.c.bf16 %v5316, %v5315
      %v5346 = vpack.c.bf16 %v5318, %v5317
      %v5347 = vpack.c.bf16 %v5320, %v5319
      %v5348 = vpack.c.bf16 %v5322, %v5321
      %v5349 = vpack.c.bf16 %v5324, %v5323
      %v5350 = vpack.c.bf16 %v5326, %v5325
      %v5351 = vpack.c.bf16 %v5328, %v5327
      %v5352 = vpack.c.bf16 %v5330, %v5329
      %v5353 = vpack.c.bf16 %v5332, %v5331
      %v5354 = vpack.c.bf16 %v5334, %v5333
      %v5355 = vpack.c.bf16 %v5336, %v5335
      %v5356 = vpack.c.bf16 %v5338, %v5337
      %v5357 = vpack.c.bf16 %v5340, %v5339
      %v5358 = vpack.c.bf16 %v5342, %v5341
      %5359 = vrot.lane.b32.xlu0 %v1023, 40
      %v5360 = vpop.permute.xlu0 %5359
      %5361 = vrot.lane.b32.xlu0 %v1024, 40
      %v5362 = vpop.permute.xlu0 %5361
      %5363 = vrot.lane.b32.xlu0 %v1025, 40
      %v5364 = vpop.permute.xlu0 %5363
      %5365 = vrot.lane.b32.xlu0 %v1026, 40
      %v5366 = vpop.permute.xlu0 %5365
      %5367 = vrot.lane.b32.xlu0 %v1027, 40
      %v5368 = vpop.permute.xlu0 %5367
      %5369 = vrot.lane.b32.xlu0 %v1028, 40
      %v5370 = vpop.permute.xlu0 %5369
      %5371 = vrot.lane.b32.xlu0 %v1029, 40
      %v5372 = vpop.permute.xlu0 %5371
      %5373 = vrot.lane.b32.xlu0 %v1030, 40
      %v5374 = vpop.permute.xlu0 %5373
      %5383 = vmatprep.subr.bf16.mxu0 0
      %5384 = vmatpush1.bf16.msra.mxu0 %v5360
      %5385 = vmatprep.subr.bf16.mxu0 0
      %5386 = vmatpush1.bf16.msra.mxu0 %v5362
      %5387 = vmatprep.subr.bf16.mxu0 0
      %5388 = vmatpush1.bf16.msra.mxu0 %v5364
      %5389 = vmatprep.subr.bf16.mxu0 0
      %5390 = vmatpush1.bf16.msra.mxu0 %v5366
      %5391 = vmatprep.subr.bf16.mxu0 0
      %5392 = vmatpush1.bf16.msra.mxu0 %v5368
      %5393 = vmatprep.subr.bf16.mxu0 0
      %5394 = vmatpush1.bf16.msra.mxu0 %v5370
      %5395 = vmatprep.subr.bf16.mxu0 0
      %5396 = vmatpush1.bf16.msra.mxu0 %v5372
      %5397 = vmatprep.subr.bf16.mxu0 0
      %5398 = vmatpush1.bf16.msra.mxu0 %v5374
      %5399 = vmatprep.subr.bf16.mxu0 0
      %5400 = vmatpush1.bf16.msra.mxu0 0
      %5401 = vmatprep.subr.bf16.mxu0 0
      %5402 = vmatpush1.bf16.msra.mxu0 0
      %5403 = vmatprep.subr.bf16.mxu0 0
      %5404 = vmatpush1.bf16.msra.mxu0 0
      %5405 = vmatprep.subr.bf16.mxu0 0
      %5406 = vmatpush1.bf16.msra.mxu0 0
      %5407 = vmatprep.subr.bf16.mxu0 0
      %5408 = vmatpush1.bf16.msra.mxu0 0
      %5409 = vmatprep.subr.bf16.mxu0 0
      %5410 = vmatpush1.bf16.msra.mxu0 0
      %5411 = vmatprep.subr.bf16.mxu0 0
      %5412 = vmatpush1.bf16.msra.mxu0 0
      %5413 = vmatprep.subr.bf16.mxu0 0
      %5414 = vmatpush1.bf16.msra.mxu0 0
      %5415 = vmatprep.mubr.bf16.mxu0 0
      %5416 = vmatmul.mubr.bf16.gmra.mrb[0].mxu0 %v5343
      %v5417 = vpop.f32.mrb[0].mxu0
      %v5418 = vadd.f32 0.0, %v5417
      %v5419 = vpop.f32.mrb[0].mxu0
      %v5420 = vpop.f32.mrb[0].mxu0
      %v5421 = vadd.f32 0.0, %v5420
      %v5422 = vpop.f32.mrb[0].mxu0
      %5423 = vmatprep.mubr.bf16.mxu0 0
      %5424 = vmatmul.mubr.bf16.gmra.mrb[0].mxu0 %v5344
      %v5425 = vpop.f32.mrb[0].mxu0
      %v5426 = vadd.f32 0.0, %v5425
      %v5427 = vpop.f32.mrb[0].mxu0
      %v5428 = vpop.f32.mrb[0].mxu0
      %v5429 = vadd.f32 0.0, %v5428
      %v5430 = vpop.f32.mrb[0].mxu0
      %5431 = vmatprep.mubr.bf16.mxu0 0
      %5432 = vmatmul.mubr.bf16.gmra.mrb[0].mxu0 %v5345
      %v5433 = vpop.f32.mrb[0].mxu0
      %v5434 = vadd.f32 0.0, %v5433
      %v5435 = vpop.f32.mrb[0].mxu0
      %v5436 = vpop.f32.mrb[0].mxu0
      %v5437 = vadd.f32 0.0, %v5436
      %v5438 = vpop.f32.mrb[0].mxu0
      %5439 = vmatprep.mubr.bf16.mxu0 0
      %5440 = vmatmul.mubr.bf16.gmra.mrb[0].mxu0 %v5346
      %v5441 = vpop.f32.mrb[0].mxu0
      %v5442 = vadd.f32 0.0, %v5441
      %v5443 = vpop.f32.mrb[0].mxu0
      %v5444 = vpop.f32.mrb[0].mxu0
      %v5445 = vadd.f32 0.0, %v5444
      %v5446 = vpop.f32.mrb[0].mxu0
      %5447 = vmatprep.mubr.bf16.mxu0 0
      %5448 = vmatmul.mubr.bf16.gmra.mrb[0].mxu0 %v5347
      %v5449 = vpop.f32.mrb[0].mxu0
      %v5450 = vadd.f32 0.0, %v5449
      %v5451 = vpop.f32.mrb[0].mxu0
      %v5452 = vpop.f32.mrb[0].mxu0
      %v5453 = vadd.f32 0.0, %v5452
      %v5454 = vpop.f32.mrb[0].mxu0
      %5455 = vmatprep.mubr.bf16.mxu0 0
      %5456 = vmatmul.mubr.bf16.gmra.mrb[0].mxu0 %v5348
      %v5457 = vpop.f32.mrb[0].mxu0
      %v5458 = vadd.f32 0.0, %v5457
      %v5459 = vpop.f32.mrb[0].mxu0
      %v5460 = vpop.f32.mrb[0].mxu0
      %v5461 = vadd.f32 0.0, %v5460
      %v5462 = vpop.f32.mrb[0].mxu0
      %5463 = vmatprep.mubr.bf16.mxu0 0
      %5464 = vmatmul.mubr.bf16.gmra.mrb[0].mxu0 %v5349
      %v5465 = vpop.f32.mrb[0].mxu0
      %v5466 = vadd.f32 0.0, %v5465
      %v5467 = vpop.f32.mrb[0].mxu0
      %v5468 = vpop.f32.mrb[0].mxu0
      %v5469 = vadd.f32 0.0, %v5468
      %v5470 = vpop.f32.mrb[0].mxu0
      %5471 = vmatprep.mubr.bf16.mxu0 0
      %5472 = vmatmul.mubr.bf16.gmra.mrb[0].mxu0 %v5350
      %v5473 = vpop.f32.mrb[0].mxu0
      %v5474 = vadd.f32 0.0, %v5473
      %v5475 = vpop.f32.mrb[0].mxu0
      %v5476 = vpop.f32.mrb[0].mxu0
      %v5477 = vadd.f32 0.0, %v5476
      %v5478 = vpop.f32.mrb[0].mxu0
      %5479 = vdwg.mxu0
      %5480 = vrot.lane.b32.xlu0 %v1031, 40
      %v5481 = vpop.permute.xlu0 %5480
      %5482 = vrot.lane.b32.xlu0 %v1032, 40
      %v5483 = vpop.permute.xlu0 %5482
      %5484 = vrot.lane.b32.xlu0 %v1033, 40
      %v5485 = vpop.permute.xlu0 %5484
      %5486 = vrot.lane.b32.xlu0 %v1034, 40
      %v5487 = vpop.permute.xlu0 %5486
      %5488 = vrot.lane.b32.xlu0 %v1035, 40
      %v5489 = vpop.permute.xlu0 %5488
      %5490 = vrot.lane.b32.xlu0 %v1036, 40
      %v5491 = vpop.permute.xlu0 %5490
      %5492 = vrot.lane.b32.xlu0 %v1037, 40
      %v5493 = vpop.permute.xlu0 %5492
      %5494 = vrot.lane.b32.xlu0 %v1038, 40
      %v5495 = vpop.permute.xlu0 %5494
      %5504 = vmatprep.subr.bf16.mxu0 0
      %5505 = vmatpush1.bf16.msra.mxu0 %v5481
      %5506 = vmatprep.subr.bf16.mxu0 0
      %5507 = vmatpush1.bf16.msra.mxu0 %v5483
      %5508 = vmatprep.subr.bf16.mxu0 0
      %5509 = vmatpush1.bf16.msra.mxu0 %v5485
      %5510 = vmatprep.subr.bf16.mxu0 0
      %5511 = vmatpush1.bf16.msra.mxu0 %v5487
      %5512 = vmatprep.subr.bf16.mxu0 0
      %5513 = vmatpush1.bf16.msra.mxu0 %v5489
      %5514 = vmatprep.subr.bf16.mxu0 0
      %5515 = vmatpush1.bf16.msra.mxu0 %v5491
      %5516 = vmatprep.subr.bf16.mxu0 0
      %5517 = vmatpush1.bf16.msra.mxu0 %v5493
      %5518 = vmatprep.subr.bf16.mxu0 0
      %5519 = vmatpush1.bf16.msra.mxu0 %v5495
      %5520 = vmatprep.subr.bf16.mxu0 0
      %5521 = vmatpush1.bf16.msra.mxu0 0
      %5522 = vmatprep.subr.bf16.mxu0 0
      %5523 = vmatpush1.bf16.msra.mxu0 0
      %5524 = vmatprep.subr.bf16.mxu0 0
      %5525 = vmatpush1.bf16.msra.mxu0 0
      %5526 = vmatprep.subr.bf16.mxu0 0
      %5527 = vmatpush1.bf16.msra.mxu0 0
      %5528 = vmatprep.subr.bf16.mxu0 0
      %5529 = vmatpush1.bf16.msra.mxu0 0
      %5530 = vmatprep.subr.bf16.mxu0 0
      %5531 = vmatpush1.bf16.msra.mxu0 0
      %5532 = vmatprep.subr.bf16.mxu0 0
      %5533 = vmatpush1.bf16.msra.mxu0 0
      %5534 = vmatprep.subr.bf16.mxu0 0
      %5535 = vmatpush1.bf16.msra.mxu0 0
      %5536 = vmatprep.mubr.bf16.mxu0 0
      %5537 = vmatmul.mubr.bf16.gmra.mrb[0].mxu0 %v5351
      %v5538 = vpop.f32.mrb[0].mxu0
      %v5539 = vadd.f32 0.0, %v5538
      %v5540 = vpop.f32.mrb[0].mxu0
      %v5541 = vpop.f32.mrb[0].mxu0
      %v5542 = vadd.f32 0.0, %v5541
      %v5543 = vpop.f32.mrb[0].mxu0
      %5544 = vmatprep.mubr.bf16.mxu0 0
      %5545 = vmatmul.mubr.bf16.gmra.mrb[0].mxu0 %v5352
      %v5546 = vpop.f32.mrb[0].mxu0
      %v5547 = vadd.f32 0.0, %v5546
      %v5548 = vpop.f32.mrb[0].mxu0
      %v5549 = vpop.f32.mrb[0].mxu0
      %v5550 = vadd.f32 0.0, %v5549
      %v5551 = vpop.f32.mrb[0].mxu0
      %5552 = vmatprep.mubr.bf16.mxu0 0
      %5553 = vmatmul.mubr.bf16.gmra.mrb[0].mxu0 %v5353
      %v5554 = vpop.f32.mrb[0].mxu0
      %v5555 = vadd.f32 0.0, %v5554
      %v5556 = vpop.f32.mrb[0].mxu0
      %v5557 = vpop.f32.mrb[0].mxu0
      %v5558 = vadd.f32 0.0, %v5557
      %v5559 = vpop.f32.mrb[0].mxu0
      %5560 = vmatprep.mubr.bf16.mxu0 0
      %5561 = vmatmul.mubr.bf16.gmra.mrb[0].mxu0 %v5354
      %v5562 = vpop.f32.mrb[0].mxu0
      %v5563 = vadd.f32 0.0, %v5562
      %v5564 = vpop.f32.mrb[0].mxu0
      %v5565 = vpop.f32.mrb[0].mxu0
      %v5566 = vadd.f32 0.0, %v5565
      %v5567 = vpop.f32.mrb[0].mxu0
      %5568 = vmatprep.mubr.bf16.mxu0 0
      %5569 = vmatmul.mubr.bf16.gmra.mrb[0].mxu0 %v5355
      %v5570 = vpop.f32.mrb[0].mxu0
      %v5571 = vadd.f32 0.0, %v5570
      %v5572 = vpop.f32.mrb[0].mxu0
      %v5573 = vpop.f32.mrb[0].mxu0
      %v5574 = vadd.f32 0.0, %v5573
      %v5575 = vpop.f32.mrb[0].mxu0
      %5576 = vmatprep.mubr.bf16.mxu0 0
      %5577 = vmatmul.mubr.bf16.gmra.mrb[0].mxu0 %v5356
      %v5578 = vpop.f32.mrb[0].mxu0
      %v5579 = vadd.f32 0.0, %v5578
      %v5580 = vpop.f32.mrb[0].mxu0
      %v5581 = vpop.f32.mrb[0].mxu0
      %v5582 = vadd.f32 0.0, %v5581
      %v5583 = vpop.f32.mrb[0].mxu0
      %5584 = vmatprep.mubr.bf16.mxu0 0
      %5585 = vmatmul.mubr.bf16.gmra.mrb[0].mxu0 %v5357
      %v5586 = vpop.f32.mrb[0].mxu0
      %v5587 = vadd.f32 0.0, %v5586
      %v5588 = vpop.f32.mrb[0].mxu0
      %v5589 = vpop.f32.mrb[0].mxu0
      %v5590 = vadd.f32 0.0, %v5589
      %v5591 = vpop.f32.mrb[0].mxu0
      %5592 = vmatprep.mubr.bf16.mxu0 0
      %5593 = vmatmul.mubr.bf16.gmra.mrb[0].mxu0 %v5358
      %v5594 = vpop.f32.mrb[0].mxu0
      %v5595 = vadd.f32 0.0, %v5594
      %v5596 = vpop.f32.mrb[0].mxu0
      %v5597 = vpop.f32.mrb[0].mxu0
      %v5598 = vadd.f32 0.0, %v5597
      %v5599 = vpop.f32.mrb[0].mxu0
      %5600 = vdwg.mxu0
      %v5601 = vpack.c.bf16 %v5421, %v5418
      %v5602 = vpack.c.bf16 %v5429, %v5426
      %v5603 = vpack.c.bf16 %v5437, %v5434
      %v5604 = vpack.c.bf16 %v5445, %v5442
      %v5605 = vpack.c.bf16 %v5453, %v5450
      %v5606 = vpack.c.bf16 %v5461, %v5458
      %v5607 = vpack.c.bf16 %v5469, %v5466
      %v5608 = vpack.c.bf16 %v5477, %v5474
      %v5609 = vpack.c.bf16 %v5542, %v5539
      %v5610 = vpack.c.bf16 %v5550, %v5547
      %v5611 = vpack.c.bf16 %v5558, %v5555
      %v5612 = vpack.c.bf16 %v5566, %v5563
      %v5613 = vpack.c.bf16 %v5574, %v5571
      %v5614 = vpack.c.bf16 %v5582, %v5579
      %v5615 = vpack.c.bf16 %v5590, %v5587
      %v5616 = vpack.c.bf16 %v5598, %v5595
      %v5618 = vsel %vm1067, %v5601, 0
      %v5621 = vsel %vm1067, %v5602, 0
      %v5624 = vsel %vm1067, %v5603, 0
      %v5627 = vsel %vm1067, %v5604, 0
      %v5630 = vsel %vm1067, %v5605, 0
      %v5633 = vsel %vm1067, %v5606, 0
      %v5636 = vsel %vm1067, %v5607, 0
      %v5639 = vsel %vm1067, %v5608, 0
      %v5642 = vsel %vm1067, %v5609, 0
      %v5645 = vsel %vm1067, %v5610, 0
      %v5648 = vsel %vm1067, %v5611, 0
      %v5651 = vsel %vm1067, %v5612, 0
      %v5654 = vsel %vm1067, %v5613, 0
      %v5657 = vsel %vm1067, %v5614, 0
      %v5660 = vsel %vm1067, %v5615, 0
      %v5663 = vsel %vm1067, %v5616, 0
      %v5666 = vsel %vm3036, %v1042, 0
      %5668 = vmatprep.subr.bf16.mxu0 0
      %5669 = vmatpush1.bf16.msra.mxu0 %v5666
      %5670 = vmatprep.subr.bf16.mxu0 0
      %5671 = vmatpush1.bf16.msra.mxu0 0
      %5672 = vmatprep.subr.bf16.mxu0 0
      %5673 = vmatpush1.bf16.msra.mxu0 0
      %5674 = vmatprep.subr.bf16.mxu0 0
      %5675 = vmatpush1.bf16.msra.mxu0 0
      %5676 = vmatprep.subr.bf16.mxu0 0
      %5677 = vmatpush1.bf16.msra.mxu0 0
      %5678 = vmatprep.subr.bf16.mxu0 0
      %5679 = vmatpush1.bf16.msra.mxu0 0
      %5680 = vmatprep.subr.bf16.mxu0 0
      %5681 = vmatpush1.bf16.msra.mxu0 0
      %5682 = vmatprep.subr.bf16.mxu0 0
      %5683 = vmatpush1.bf16.msra.mxu0 0
      %5684 = vmatprep.subr.bf16.mxu0 0
      %5685 = vmatpush1.bf16.msra.mxu0 0
      %5686 = vmatprep.subr.bf16.mxu0 0
      %5687 = vmatpush1.bf16.msra.mxu0 0
      %5688 = vmatprep.subr.bf16.mxu0 0
      %5689 = vmatpush1.bf16.msra.mxu0 0
      %5690 = vmatprep.subr.bf16.mxu0 0
      %5691 = vmatpush1.bf16.msra.mxu0 0
      %5692 = vmatprep.subr.bf16.mxu0 0
      %5693 = vmatpush1.bf16.msra.mxu0 0
      %5694 = vmatprep.subr.bf16.mxu0 0
      %5695 = vmatpush1.bf16.msra.mxu0 0
      %5696 = vmatprep.subr.bf16.mxu0 0
      %5697 = vmatpush1.bf16.msra.mxu0 0
      %5698 = vmatprep.subr.bf16.mxu0 0
      %5699 = vmatpush1.bf16.msra.mxu0 0
      %5700 = vmatprep.mubr.bf16.mxu0 0
      %5701 = vmatmul.mubr.bf16.gmra.mrb[0].mxu0 %v5618
      %v5702 = vpop.f32.mrb[0].mxu0
      %v5703 = vadd.f32 0.0, %v5702
      %v5704 = vpop.f32.mrb[0].mxu0
      %v5705 = vpop.f32.mrb[0].mxu0
      %v5706 = vadd.f32 0.0, %v5705
      %v5707 = vpop.f32.mrb[0].mxu0
      %5708 = vmatprep.mubr.bf16.mxu0 0
      %5709 = vmatmul.mubr.bf16.gmra.mrb[0].mxu0 %v5621
      %v5710 = vpop.f32.mrb[0].mxu0
      %v5711 = vadd.f32 0.0, %v5710
      %v5712 = vpop.f32.mrb[0].mxu0
      %v5713 = vpop.f32.mrb[0].mxu0
      %v5714 = vadd.f32 0.0, %v5713
      %v5715 = vpop.f32.mrb[0].mxu0
      %5716 = vmatprep.mubr.bf16.mxu0 0
      %5717 = vmatmul.mubr.bf16.gmra.mrb[0].mxu0 %v5624
      %v5718 = vpop.f32.mrb[0].mxu0
      %v5719 = vadd.f32 0.0, %v5718
      %v5720 = vpop.f32.mrb[0].mxu0
      %v5721 = vpop.f32.mrb[0].mxu0
      %v5722 = vadd.f32 0.0, %v5721
      %v5723 = vpop.f32.mrb[0].mxu0
      %5724 = vmatprep.mubr.bf16.mxu0 0
      %5725 = vmatmul.mubr.bf16.gmra.mrb[0].mxu0 %v5627
      %v5726 = vpop.f32.mrb[0].mxu0
      %v5727 = vadd.f32 0.0, %v5726
      %v5728 = vpop.f32.mrb[0].mxu0
      %v5729 = vpop.f32.mrb[0].mxu0
      %v5730 = vadd.f32 0.0, %v5729
      %v5731 = vpop.f32.mrb[0].mxu0
      %5732 = vmatprep.mubr.bf16.mxu0 0
      %5733 = vmatmul.mubr.bf16.gmra.mrb[0].mxu0 %v5630
      %v5734 = vpop.f32.mrb[0].mxu0
      %v5735 = vadd.f32 0.0, %v5734
      %v5736 = vpop.f32.mrb[0].mxu0
      %v5737 = vpop.f32.mrb[0].mxu0
      %v5738 = vadd.f32 0.0, %v5737
      %v5739 = vpop.f32.mrb[0].mxu0
      %5740 = vmatprep.mubr.bf16.mxu0 0
      %5741 = vmatmul.mubr.bf16.gmra.mrb[0].mxu0 %v5633
      %v5742 = vpop.f32.mrb[0].mxu0
      %v5743 = vadd.f32 0.0, %v5742
      %v5744 = vpop.f32.mrb[0].mxu0
      %v5745 = vpop.f32.mrb[0].mxu0
      %v5746 = vadd.f32 0.0, %v5745
      %v5747 = vpop.f32.mrb[0].mxu0
      %5748 = vmatprep.mubr.bf16.mxu0 0
      %5749 = vmatmul.mubr.bf16.gmra.mrb[0].mxu0 %v5636
      %v5750 = vpop.f32.mrb[0].mxu0
      %v5751 = vadd.f32 0.0, %v5750
      %v5752 = vpop.f32.mrb[0].mxu0
      %v5753 = vpop.f32.mrb[0].mxu0
      %v5754 = vadd.f32 0.0, %v5753
      %v5755 = vpop.f32.mrb[0].mxu0
      %5756 = vmatprep.mubr.bf16.mxu0 0
      %5757 = vmatmul.mubr.bf16.gmra.mrb[0].mxu0 %v5639
      %v5758 = vpop.f32.mrb[0].mxu0
      %v5759 = vadd.f32 0.0, %v5758
      %v5760 = vpop.f32.mrb[0].mxu0
      %v5761 = vpop.f32.mrb[0].mxu0
      %v5762 = vadd.f32 0.0, %v5761
      %v5763 = vpop.f32.mrb[0].mxu0
      %5764 = vmatprep.mubr.bf16.mxu0 0
      %5765 = vmatmul.mubr.bf16.gmra.mrb[0].mxu0 %v5642
      %v5766 = vpop.f32.mrb[0].mxu0
      %v5767 = vadd.f32 0.0, %v5766
      %v5768 = vpop.f32.mrb[0].mxu0
      %v5769 = vpop.f32.mrb[0].mxu0
      %v5770 = vadd.f32 0.0, %v5769
      %v5771 = vpop.f32.mrb[0].mxu0
      %5772 = vmatprep.mubr.bf16.mxu0 0
      %5773 = vmatmul.mubr.bf16.gmra.mrb[0].mxu0 %v5645
      %v5774 = vpop.f32.mrb[0].mxu0
      %v5775 = vadd.f32 0.0, %v5774
      %v5776 = vpop.f32.mrb[0].mxu0
      %v5777 = vpop.f32.mrb[0].mxu0
      %v5778 = vadd.f32 0.0, %v5777
      %v5779 = vpop.f32.mrb[0].mxu0
      %5780 = vmatprep.mubr.bf16.mxu0 0
      %5781 = vmatmul.mubr.bf16.gmra.mrb[0].mxu0 %v5648
      %v5782 = vpop.f32.mrb[0].mxu0
      %v5783 = vadd.f32 0.0, %v5782
      %v5784 = vpop.f32.mrb[0].mxu0
      %v5785 = vpop.f32.mrb[0].mxu0
      %v5786 = vadd.f32 0.0, %v5785
      %v5787 = vpop.f32.mrb[0].mxu0
      %5788 = vmatprep.mubr.bf16.mxu0 0
      %5789 = vmatmul.mubr.bf16.gmra.mrb[0].mxu0 %v5651
      %v5790 = vpop.f32.mrb[0].mxu0
      %v5791 = vadd.f32 0.0, %v5790
      %v5792 = vpop.f32.mrb[0].mxu0
      %v5793 = vpop.f32.mrb[0].mxu0
      %v5794 = vadd.f32 0.0, %v5793
      %v5795 = vpop.f32.mrb[0].mxu0
      %5796 = vmatprep.mubr.bf16.mxu0 0
      %5797 = vmatmul.mubr.bf16.gmra.mrb[0].mxu0 %v5654
      %v5798 = vpop.f32.mrb[0].mxu0
      %v5799 = vadd.f32 0.0, %v5798
      %v5800 = vpop.f32.mrb[0].mxu0
      %v5801 = vpop.f32.mrb[0].mxu0
      %v5802 = vadd.f32 0.0, %v5801
      %v5803 = vpop.f32.mrb[0].mxu0
      %5804 = vmatprep.mubr.bf16.mxu0 0
      %5805 = vmatmul.mubr.bf16.gmra.mrb[0].mxu0 %v5657
      %v5806 = vpop.f32.mrb[0].mxu0
      %v5807 = vadd.f32 0.0, %v5806
      %v5808 = vpop.f32.mrb[0].mxu0
      %v5809 = vpop.f32.mrb[0].mxu0
      %v5810 = vadd.f32 0.0, %v5809
      %v5811 = vpop.f32.mrb[0].mxu0
      %5812 = vmatprep.mubr.bf16.mxu0 0
      %5813 = vmatmul.mubr.bf16.gmra.mrb[0].mxu0 %v5660
      %v5814 = vpop.f32.mrb[0].mxu0
      %v5815 = vadd.f32 0.0, %v5814
      %v5816 = vpop.f32.mrb[0].mxu0
      %v5817 = vpop.f32.mrb[0].mxu0
      %v5818 = vadd.f32 0.0, %v5817
      %v5819 = vpop.f32.mrb[0].mxu0
      %5820 = vmatprep.mubr.bf16.mxu0 0
      %5821 = vmatmul.mubr.bf16.gmra.mrb[0].mxu0 %v5663
      %v5822 = vpop.f32.mrb[0].mxu0
      %v5823 = vadd.f32 0.0, %v5822
      %v5824 = vpop.f32.mrb[0].mxu0
      %v5825 = vpop.f32.mrb[0].mxu0
      %v5826 = vadd.f32 0.0, %v5825
      %v5827 = vpop.f32.mrb[0].mxu0
      %5828 = vdwg.mxu0
      %v5829 = vadd.f32 %v4605, %v5703
      %v5830 = vadd.f32 %v4606, %v5706
      %v5831 = vadd.f32 %v4607, %v5711
      %v5832 = vadd.f32 %v4608, %v5714
      %v5833 = vadd.f32 %v4609, %v5719
      %v5834 = vadd.f32 %v4610, %v5722
      %v5835 = vadd.f32 %v4611, %v5727
      %v5836 = vadd.f32 %v4612, %v5730
      %v5837 = vadd.f32 %v4613, %v5735
      %v5838 = vadd.f32 %v4614, %v5738
      %v5839 = vadd.f32 %v4615, %v5743
      %v5840 = vadd.f32 %v4616, %v5746
      %v5841 = vadd.f32 %v4617, %v5751
      %v5842 = vadd.f32 %v4618, %v5754
      %v5843 = vadd.f32 %v4619, %v5759
      %v5844 = vadd.f32 %v4620, %v5762
      %v5845 = vadd.f32 %v4621, %v5767
      %v5846 = vadd.f32 %v4622, %v5770
      %v5847 = vadd.f32 %v4623, %v5775
      %v5848 = vadd.f32 %v4624, %v5778
      %v5849 = vadd.f32 %v4625, %v5783
      %v5850 = vadd.f32 %v4626, %v5786
      %v5851 = vadd.f32 %v4627, %v5791
      %v5852 = vadd.f32 %v4628, %v5794
      %v5853 = vadd.f32 %v4629, %v5799
      %v5854 = vadd.f32 %v4630, %v5802
      %v5855 = vadd.f32 %v4631, %v5807
      %v5856 = vadd.f32 %v4632, %v5810
      %v5857 = vadd.f32 %v4633, %v5815
      %v5858 = vadd.f32 %v4634, %v5818
      %v5859 = vadd.f32 %v4635, %v5823
      %v5860 = vadd.f32 %v4636, %v5826
      %v5861 = vadd.f32 %v449, %v5829
      %v5862 = vadd.f32 %v450, %v5830
      %v5863 = vadd.f32 %v451, %v5831
      %v5864 = vadd.f32 %v452, %v5832
      %v5865 = vadd.f32 %v453, %v5833
      %v5866 = vadd.f32 %v454, %v5834
      %v5867 = vadd.f32 %v455, %v5835
      %v5868 = vadd.f32 %v456, %v5836
      %v5869 = vadd.f32 %v457, %v5837
      %v5870 = vadd.f32 %v458, %v5838
      %v5871 = vadd.f32 %v459, %v5839
      %v5872 = vadd.f32 %v460, %v5840
      %v5873 = vadd.f32 %v461, %v5841
      %v5874 = vadd.f32 %v462, %v5842
      %v5875 = vadd.f32 %v463, %v5843
      %v5876 = vadd.f32 %v464, %v5844
      %v5877 = vadd.f32 %v465, %v5845
      %v5878 = vadd.f32 %v466, %v5846
      %v5879 = vadd.f32 %v467, %v5847
      %v5880 = vadd.f32 %v468, %v5848
      %v5881 = vadd.f32 %v469, %v5849
      %v5882 = vadd.f32 %v470, %v5850
      %v5883 = vadd.f32 %v471, %v5851
      %v5884 = vadd.f32 %v472, %v5852
      %v5885 = vadd.f32 %v473, %v5853
      %v5886 = vadd.f32 %v474, %v5854
      %v5887 = vadd.f32 %v475, %v5855
      %v5888 = vadd.f32 %v476, %v5856
      %v5889 = vadd.f32 %v477, %v5857
      %v5890 = vadd.f32 %v478, %v5858
      %v5891 = vadd.f32 %v479, %v5859
      %v5892 = vadd.f32 %v480, %v5860
      %v5893 = vld [vmem:[%s368] sm:$0x1]
      %v5894 = vmul.f32 %v5861, %v5861
      %v5895 = vmul.f32 %v5862, %v5862
      %v5896 = vmul.f32 %v5863, %v5863
      %v5897 = vmul.f32 %v5864, %v5864
      %v5898 = vmul.f32 %v5865, %v5865
      %v5899 = vmul.f32 %v5866, %v5866
      %v5900 = vmul.f32 %v5867, %v5867
      %v5901 = vmul.f32 %v5868, %v5868
      %v5902 = vmul.f32 %v5869, %v5869
      %v5903 = vmul.f32 %v5870, %v5870
      %v5904 = vmul.f32 %v5871, %v5871
      %v5905 = vmul.f32 %v5872, %v5872
      %v5906 = vmul.f32 %v5873, %v5873
      %v5907 = vmul.f32 %v5874, %v5874
      %v5908 = vmul.f32 %v5875, %v5875
      %v5909 = vmul.f32 %v5876, %v5876
      %v5910 = vmul.f32 %v5877, %v5877
      %v5911 = vmul.f32 %v5878, %v5878
      %v5912 = vmul.f32 %v5879, %v5879
      %v5913 = vmul.f32 %v5880, %v5880
      %v5914 = vmul.f32 %v5881, %v5881
      %v5915 = vmul.f32 %v5882, %v5882
      %v5916 = vmul.f32 %v5883, %v5883
      %v5917 = vmul.f32 %v5884, %v5884
      %v5918 = vmul.f32 %v5885, %v5885
      %v5919 = vmul.f32 %v5886, %v5886
      %v5920 = vmul.f32 %v5887, %v5887
      %v5921 = vmul.f32 %v5888, %v5888
      %v5922 = vmul.f32 %v5889, %v5889
      %v5923 = vmul.f32 %v5890, %v5890
      %v5924 = vmul.f32 %v5891, %v5891
      %v5925 = vmul.f32 %v5892, %v5892
      %v5926 = vsel %vm518, %v5894, 0.0
      %5927 = vadd.xlane.f32.xlu0 %v5926
      %v5928 = vpop.xlane.xlu0 %5927
      %v5929 = vsel %vm518, %v5895, 0.0
      %5930 = vadd.xlane.f32.xlu0 %v5929
      %v5931 = vpop.xlane.xlu0 %5930
      %v5932 = vsel %vm518, %v5896, 0.0
      %5933 = vadd.xlane.f32.xlu0 %v5932
      %v5934 = vpop.xlane.xlu0 %5933
      %v5935 = vsel %vm518, %v5897, 0.0
      %5936 = vadd.xlane.f32.xlu0 %v5935
      %v5937 = vpop.xlane.xlu0 %5936
      %v5938 = vsel %vm518, %v5898, 0.0
      %5939 = vadd.xlane.f32.xlu0 %v5938
      %v5940 = vpop.xlane.xlu0 %5939
      %v5941 = vsel %vm518, %v5899, 0.0
      %5942 = vadd.xlane.f32.xlu0 %v5941
      %v5943 = vpop.xlane.xlu0 %5942
      %v5944 = vsel %vm518, %v5900, 0.0
      %5945 = vadd.xlane.f32.xlu0 %v5944
      %v5946 = vpop.xlane.xlu0 %5945
      %v5947 = vsel %vm518, %v5901, 0.0
      %5948 = vadd.xlane.f32.xlu0 %v5947
      %v5949 = vpop.xlane.xlu0 %5948
      %v5950 = vsel %vm518, %v5902, 0.0
      %5951 = vadd.xlane.f32.xlu0 %v5950
      %v5952 = vpop.xlane.xlu0 %5951
      %v5953 = vsel %vm518, %v5903, 0.0
      %5954 = vadd.xlane.f32.xlu0 %v5953
      %v5955 = vpop.xlane.xlu0 %5954
      %v5956 = vsel %vm518, %v5904, 0.0
      %5957 = vadd.xlane.f32.xlu0 %v5956
      %v5958 = vpop.xlane.xlu0 %5957
      %v5959 = vsel %vm518, %v5905, 0.0
      %5960 = vadd.xlane.f32.xlu0 %v5959
      %v5961 = vpop.xlane.xlu0 %5960
      %v5962 = vsel %vm518, %v5906, 0.0
      %5963 = vadd.xlane.f32.xlu0 %v5962
      %v5964 = vpop.xlane.xlu0 %5963
      %v5965 = vsel %vm518, %v5907, 0.0
      %5966 = vadd.xlane.f32.xlu0 %v5965
      %v5967 = vpop.xlane.xlu0 %5966
      %v5968 = vsel %vm518, %v5908, 0.0
      %5969 = vadd.xlane.f32.xlu0 %v5968
      %v5970 = vpop.xlane.xlu0 %5969
      %v5971 = vsel %vm518, %v5909, 0.0
      %5972 = vadd.xlane.f32.xlu0 %v5971
      %v5973 = vpop.xlane.xlu0 %5972
      %v5974 = vsel %vm518, %v5910, 0.0
      %5975 = vadd.xlane.f32.xlu0 %v5974
      %v5976 = vpop.xlane.xlu0 %5975
      %v5977 = vsel %vm518, %v5911, 0.0
      %5978 = vadd.xlane.f32.xlu0 %v5977
      %v5979 = vpop.xlane.xlu0 %5978
      %v5980 = vsel %vm518, %v5912, 0.0
      %5981 = vadd.xlane.f32.xlu0 %v5980
      %v5982 = vpop.xlane.xlu0 %5981
      %v5983 = vsel %vm518, %v5913, 0.0
      %5984 = vadd.xlane.f32.xlu0 %v5983
      %v5985 = vpop.xlane.xlu0 %5984
      %v5986 = vsel %vm518, %v5914, 0.0
      %5987 = vadd.xlane.f32.xlu0 %v5986
      %v5988 = vpop.xlane.xlu0 %5987
      %v5989 = vsel %vm518, %v5915, 0.0
      %5990 = vadd.xlane.f32.xlu0 %v5989
      %v5991 = vpop.xlane.xlu0 %5990
      %v5992 = vsel %vm518, %v5916, 0.0
      %5993 = vadd.xlane.f32.xlu0 %v5992
      %v5994 = vpop.xlane.xlu0 %5993
      %v5995 = vsel %vm518, %v5917, 0.0
      %5996 = vadd.xlane.f32.xlu0 %v5995
      %v5997 = vpop.xlane.xlu0 %5996
      %v5998 = vsel %vm518, %v5918, 0.0
      %5999 = vadd.xlane.f32.xlu0 %v5998
      %v6000 = vpop.xlane.xlu0 %5999
      %v6001 = vsel %vm518, %v5919, 0.0
      %6002 = vadd.xlane.f32.xlu0 %v6001
      %v6003 = vpop.xlane.xlu0 %6002
      %v6004 = vsel %vm518, %v5920, 0.0
      %6005 = vadd.xlane.f32.xlu0 %v6004
      %v6006 = vpop.xlane.xlu0 %6005
      %v6007 = vsel %vm518, %v5921, 0.0
      %6008 = vadd.xlane.f32.xlu0 %v6007
      %v6009 = vpop.xlane.xlu0 %6008
      %v6010 = vsel %vm518, %v5922, 0.0
      %6011 = vadd.xlane.f32.xlu0 %v6010
      %v6012 = vpop.xlane.xlu0 %6011
      %v6013 = vsel %vm518, %v5923, 0.0
      %6014 = vadd.xlane.f32.xlu0 %v6013
      %v6015 = vpop.xlane.xlu0 %6014
      %v6016 = vsel %vm518, %v5924, 0.0
      %6017 = vadd.xlane.f32.xlu0 %v6016
      %v6018 = vpop.xlane.xlu0 %6017
      %v6019 = vsel %vm518, %v5925, 0.0
      %6020 = vadd.xlane.f32.xlu0 %v6019
      %v6021 = vpop.xlane.xlu0 %6020
      %v6022 = vmul.f32 %v5928, %v615
      %v6023 = vmul.f32 %v5931, %v615
      %v6024 = vmul.f32 %v5934, %v615
      %v6025 = vmul.f32 %v5937, %v615
      %v6026 = vmul.f32 %v5940, %v615
      %v6027 = vmul.f32 %v5943, %v615
      %v6028 = vmul.f32 %v5946, %v615
      %v6029 = vmul.f32 %v5949, %v615
      %v6030 = vmul.f32 %v5952, %v615
      %v6031 = vmul.f32 %v5955, %v615
      %v6032 = vmul.f32 %v5958, %v615
      %v6033 = vmul.f32 %v5961, %v615
      %v6034 = vmul.f32 %v5964, %v615
      %v6035 = vmul.f32 %v5967, %v615
      %v6036 = vmul.f32 %v5970, %v615
      %v6037 = vmul.f32 %v5973, %v615
      %v6038 = vmul.f32 %v5976, %v615
      %v6039 = vmul.f32 %v5979, %v615
      %v6040 = vmul.f32 %v5982, %v615
      %v6041 = vmul.f32 %v5985, %v615
      %v6042 = vmul.f32 %v5988, %v615
      %v6043 = vmul.f32 %v5991, %v615
      %v6044 = vmul.f32 %v5994, %v615
      %v6045 = vmul.f32 %v5997, %v615
      %v6046 = vmul.f32 %v6000, %v615
      %v6047 = vmul.f32 %v6003, %v615
      %v6048 = vmul.f32 %v6006, %v615
      %v6049 = vmul.f32 %v6009, %v615
      %v6050 = vmul.f32 %v6012, %v615
      %v6051 = vmul.f32 %v6015, %v615
      %v6052 = vmul.f32 %v6018, %v615
      %v6053 = vmul.f32 %v6021, %v615
      %v6054 = vadd.f32 %v6022, 1e-08
      %v6055 = vadd.f32 %v6023, 1e-08
      %v6056 = vadd.f32 %v6024, 1e-08
      %v6057 = vadd.f32 %v6025, 1e-08
      %v6058 = vadd.f32 %v6026, 1e-08
      %v6059 = vadd.f32 %v6027, 1e-08
      %v6060 = vadd.f32 %v6028, 1e-08
      %v6061 = vadd.f32 %v6029, 1e-08
      %v6062 = vadd.f32 %v6030, 1e-08
      %v6063 = vadd.f32 %v6031, 1e-08
      %v6064 = vadd.f32 %v6032, 1e-08
      %v6065 = vadd.f32 %v6033, 1e-08
      %v6066 = vadd.f32 %v6034, 1e-08
      %v6067 = vadd.f32 %v6035, 1e-08
      %v6068 = vadd.f32 %v6036, 1e-08
      %v6069 = vadd.f32 %v6037, 1e-08
      %v6070 = vadd.f32 %v6038, 1e-08
      %v6071 = vadd.f32 %v6039, 1e-08
      %v6072 = vadd.f32 %v6040, 1e-08
      %v6073 = vadd.f32 %v6041, 1e-08
      %v6074 = vadd.f32 %v6042, 1e-08
      %v6075 = vadd.f32 %v6043, 1e-08
      %v6076 = vadd.f32 %v6044, 1e-08
      %v6077 = vadd.f32 %v6045, 1e-08
      %v6078 = vadd.f32 %v6046, 1e-08
      %v6079 = vadd.f32 %v6047, 1e-08
      %v6080 = vadd.f32 %v6048, 1e-08
      %v6081 = vadd.f32 %v6049, 1e-08
      %v6082 = vadd.f32 %v6050, 1e-08
      %v6083 = vadd.f32 %v6051, 1e-08
      %v6084 = vadd.f32 %v6052, 1e-08
      %v6085 = vadd.f32 %v6053, 1e-08
      %v6086 = vrsqrt.pop %v6054
      %v6087 = vrsqrt.pop %v6055
      %v6088 = vrsqrt.pop %v6056
      %v6089 = vrsqrt.pop %v6057
      %v6090 = vrsqrt.pop %v6058
      %v6091 = vrsqrt.pop %v6059
      %v6092 = vrsqrt.pop %v6060
      %v6093 = vrsqrt.pop %v6061
      %v6094 = vrsqrt.pop %v6062
      %v6095 = vrsqrt.pop %v6063
      %v6096 = vrsqrt.pop %v6064
      %v6097 = vrsqrt.pop %v6065
      %v6098 = vrsqrt.pop %v6066
      %v6099 = vrsqrt.pop %v6067
      %v6100 = vrsqrt.pop %v6068
      %v6101 = vrsqrt.pop %v6069
      %v6102 = vrsqrt.pop %v6070
      %v6103 = vrsqrt.pop %v6071
      %v6104 = vrsqrt.pop %v6072
      %v6105 = vrsqrt.pop %v6073
      %v6106 = vrsqrt.pop %v6074
      %v6107 = vrsqrt.pop %v6075
      %v6108 = vrsqrt.pop %v6076
      %v6109 = vrsqrt.pop %v6077
      %v6110 = vrsqrt.pop %v6078
      %v6111 = vrsqrt.pop %v6079
      %v6112 = vrsqrt.pop %v6080
      %v6113 = vrsqrt.pop %v6081
      %v6114 = vrsqrt.pop %v6082
      %v6115 = vrsqrt.pop %v6083
      %v6116 = vrsqrt.pop %v6084
      %v6117 = vrsqrt.pop %v6085
      %v6118 = vmul.f32 %v5861, %v6086
      %v6119 = vmul.f32 %v5862, %v6087
      %v6120 = vmul.f32 %v5863, %v6088
      %v6121 = vmul.f32 %v5864, %v6089
      %v6122 = vmul.f32 %v5865, %v6090
      %v6123 = vmul.f32 %v5866, %v6091
      %v6124 = vmul.f32 %v5867, %v6092
      %v6125 = vmul.f32 %v5868, %v6093
      %v6126 = vmul.f32 %v5869, %v6094
      %v6127 = vmul.f32 %v5870, %v6095
      %v6128 = vmul.f32 %v5871, %v6096
      %v6129 = vmul.f32 %v5872, %v6097
      %v6130 = vmul.f32 %v5873, %v6098
      %v6131 = vmul.f32 %v5874, %v6099
      %v6132 = vmul.f32 %v5875, %v6100
      %v6133 = vmul.f32 %v5876, %v6101
      %v6134 = vmul.f32 %v5877, %v6102
      %v6135 = vmul.f32 %v5878, %v6103
      %v6136 = vmul.f32 %v5879, %v6104
      %v6137 = vmul.f32 %v5880, %v6105
      %v6138 = vmul.f32 %v5881, %v6106
      %v6139 = vmul.f32 %v5882, %v6107
      %v6140 = vmul.f32 %v5883, %v6108
      %v6141 = vmul.f32 %v5884, %v6109
      %v6142 = vmul.f32 %v5885, %v6110
      %v6143 = vmul.f32 %v5886, %v6111
      %v6144 = vmul.f32 %v5887, %v6112
      %v6145 = vmul.f32 %v5888, %v6113
      %v6146 = vmul.f32 %v5889, %v6114
      %v6147 = vmul.f32 %v5890, %v6115
      %v6148 = vmul.f32 %v5891, %v6116
      %v6149 = vmul.f32 %v5892, %v6117
      %v6151 = vlaneseq
      %v6152 = vshrl.u32 %v6151, 7
      %v6153 = vsub.s32 0, %v6152
      %v6154 = vrot.slane %v5893, %v6153
      %v6156 = vmul.f32 %v6118, %v6154
      %v6157 = vmul.f32 %v6119, %v6154
      %v6158 = vmul.f32 %v6120, %v6154
      %v6159 = vmul.f32 %v6121, %v6154
      %v6160 = vmul.f32 %v6122, %v6154
      %v6161 = vmul.f32 %v6123, %v6154
      %v6162 = vmul.f32 %v6124, %v6154
      %v6163 = vmul.f32 %v6125, %v6154
      %v6164 = vmul.f32 %v6126, %v6154
      %v6165 = vmul.f32 %v6127, %v6154
      %v6166 = vmul.f32 %v6128, %v6154
      %v6167 = vmul.f32 %v6129, %v6154
      %v6168 = vmul.f32 %v6130, %v6154
      %v6169 = vmul.f32 %v6131, %v6154
      %v6170 = vmul.f32 %v6132, %v6154
      %v6171 = vmul.f32 %v6133, %v6154
      %v6172 = vmul.f32 %v6134, %v6154
      %v6173 = vmul.f32 %v6135, %v6154
      %v6174 = vmul.f32 %v6136, %v6154
      %v6175 = vmul.f32 %v6137, %v6154
      %v6176 = vmul.f32 %v6138, %v6154
      %v6177 = vmul.f32 %v6139, %v6154
      %v6178 = vmul.f32 %v6140, %v6154
      %v6179 = vmul.f32 %v6141, %v6154
      %v6180 = vmul.f32 %v6142, %v6154
      %v6181 = vmul.f32 %v6143, %v6154
      %v6182 = vmul.f32 %v6144, %v6154
      %v6183 = vmul.f32 %v6145, %v6154
      %v6184 = vmul.f32 %v6146, %v6154
      %v6185 = vmul.f32 %v6147, %v6154
      %v6186 = vmul.f32 %v6148, %v6154
      %v6187 = vmul.f32 %v6149, %v6154
      %v6188 = vpack.c.bf16 %v6157, %v6156
      %v6189 = vpack.c.bf16 %v6159, %v6158
      %v6190 = vpack.c.bf16 %v6161, %v6160
      %v6191 = vpack.c.bf16 %v6163, %v6162
      %v6192 = vpack.c.bf16 %v6165, %v6164
      %v6193 = vpack.c.bf16 %v6167, %v6166
      %v6194 = vpack.c.bf16 %v6169, %v6168
      %v6195 = vpack.c.bf16 %v6171, %v6170
      %v6196 = vpack.c.bf16 %v6173, %v6172
      %v6197 = vpack.c.bf16 %v6175, %v6174
      %v6198 = vpack.c.bf16 %v6177, %v6176
      %v6199 = vpack.c.bf16 %v6179, %v6178
      %v6200 = vpack.c.bf16 %v6181, %v6180
      %v6201 = vpack.c.bf16 %v6183, %v6182
      %v6202 = vpack.c.bf16 %v6185, %v6184
      %v6203 = vpack.c.bf16 %v6187, %v6186
      %v6204 = vld [vmem:[%s373] sm:$0xf]
      %v6205 = vld [vmem:[%s373 + $0x4] sm:$0xf]
      %v6206 = vld [vmem:[%s373 + $0x8] sm:$0xf]
      %v6207 = vld [vmem:[%s373 + $0xc] sm:$0xf]
      %v6212 = vunpack.c.l.b16 %v6204
      %v6213 = vunpack.c.l.b16 %v6205
      %v6214 = vunpack.c.l.b16 %v6206
      %v6215 = vunpack.c.l.b16 %v6207
      %v6216 = vpack.c.b16 %v6213, %v6212
      %v6217 = vpack.c.b16 %v6215, %v6214
      %v6221 = vsel %vm518, %v6188, 0
      %v6224 = vsel %vm518, %v6189, 0
      %v6227 = vsel %vm518, %v6190, 0
      %v6230 = vsel %vm518, %v6191, 0
      %v6233 = vsel %vm518, %v6192, 0
      %v6236 = vsel %vm518, %v6193, 0
      %v6239 = vsel %vm518, %v6194, 0
      %v6242 = vsel %vm518, %v6195, 0
      %v6245 = vsel %vm518, %v6196, 0
      %v6248 = vsel %vm518, %v6197, 0
      %v6251 = vsel %vm518, %v6198, 0
      %v6254 = vsel %vm518, %v6199, 0
      %v6257 = vsel %vm518, %v6200, 0
      %v6260 = vsel %vm518, %v6201, 0
      %v6263 = vsel %vm518, %v6202, 0
      %v6266 = vsel %vm518, %v6203, 0
      %6268 = vmatprep.subr.bf16.mxu0 0
      %6269 = vmatpush1.bf16.msra.mxu0 %v6216
      %6270 = vmatprep.subr.bf16.mxu0 0
      %6271 = vmatpush1.bf16.msra.mxu0 %v6217
      %6272 = vmatprep.subr.bf16.mxu0 0
      %6273 = vmatpush1.bf16.msra.mxu0 0
      %6274 = vmatprep.subr.bf16.mxu0 0
      %6275 = vmatpush1.bf16.msra.mxu0 0
      %6276 = vmatprep.subr.bf16.mxu0 0
      %6277 = vmatpush1.bf16.msra.mxu0 0
      %6278 = vmatprep.subr.bf16.mxu0 0
      %6279 = vmatpush1.bf16.msra.mxu0 0
      %6280 = vmatprep.subr.bf16.mxu0 0
      %6281 = vmatpush1.bf16.msra.mxu0 0
      %6282 = vmatprep.subr.bf16.mxu0 0
      %6283 = vmatpush1.bf16.msra.mxu0 0
      %6284 = vmatprep.subr.bf16.mxu0 0
      %6285 = vmatpush1.bf16.msra.mxu0 0
      %6286 = vmatprep.subr.bf16.mxu0 0
      %6287 = vmatpush1.bf16.msra.mxu0 0
      %6288 = vmatprep.subr.bf16.mxu0 0
      %6289 = vmatpush1.bf16.msra.mxu0 0
      %6290 = vmatprep.subr.bf16.mxu0 0
      %6291 = vmatpush1.bf16.msra.mxu0 0
      %6292 = vmatprep.subr.bf16.mxu0 0
      %6293 = vmatpush1.bf16.msra.mxu0 0
      %6294 = vmatprep.subr.bf16.mxu0 0
      %6295 = vmatpush1.bf16.msra.mxu0 0
      %6296 = vmatprep.subr.bf16.mxu0 0
      %6297 = vmatpush1.bf16.msra.mxu0 0
      %6298 = vmatprep.subr.bf16.mxu0 0
      %6299 = vmatpush1.bf16.msra.mxu0 0
      %6300 = vmatprep.mubr.bf16.mxu0 0
      %6301 = vmatmul.mubr.bf16.gmra.mrb[0].mxu0 %v6221
      %v6302 = vpop.f32.mrb[0].mxu0
      %v6303 = vadd.f32 0.0, %v6302
      %v6304 = vpop.f32.mrb[0].mxu0
      %v6305 = vpop.f32.mrb[0].mxu0
      %v6306 = vadd.f32 0.0, %v6305
      %v6307 = vpop.f32.mrb[0].mxu0
      %6308 = vmatprep.mubr.bf16.mxu0 0
      %6309 = vmatmul.mubr.bf16.gmra.mrb[0].mxu0 %v6224
      %v6310 = vpop.f32.mrb[0].mxu0
      %v6311 = vadd.f32 0.0, %v6310
      %v6312 = vpop.f32.mrb[0].mxu0
      %v6313 = vpop.f32.mrb[0].mxu0
      %v6314 = vadd.f32 0.0, %v6313
      %v6315 = vpop.f32.mrb[0].mxu0
      %6316 = vmatprep.mubr.bf16.mxu0 0
      %6317 = vmatmul.mubr.bf16.gmra.mrb[0].mxu0 %v6227
      %v6318 = vpop.f32.mrb[0].mxu0
      %v6319 = vadd.f32 0.0, %v6318
      %v6320 = vpop.f32.mrb[0].mxu0
      %v6321 = vpop.f32.mrb[0].mxu0
      %v6322 = vadd.f32 0.0, %v6321
      %v6323 = vpop.f32.mrb[0].mxu0
      %6324 = vmatprep.mubr.bf16.mxu0 0
      %6325 = vmatmul.mubr.bf16.gmra.mrb[0].mxu0 %v6230
      %v6326 = vpop.f32.mrb[0].mxu0
      %v6327 = vadd.f32 0.0, %v6326
      %v6328 = vpop.f32.mrb[0].mxu0
      %v6329 = vpop.f32.mrb[0].mxu0
      %v6330 = vadd.f32 0.0, %v6329
      %v6331 = vpop.f32.mrb[0].mxu0
      %6332 = vmatprep.mubr.bf16.mxu0 0
      %6333 = vmatmul.mubr.bf16.gmra.mrb[0].mxu0 %v6233
      %v6334 = vpop.f32.mrb[0].mxu0
      %v6335 = vadd.f32 0.0, %v6334
      %v6336 = vpop.f32.mrb[0].mxu0
      %v6337 = vpop.f32.mrb[0].mxu0
      %v6338 = vadd.f32 0.0, %v6337
      %v6339 = vpop.f32.mrb[0].mxu0
      %6340 = vmatprep.mubr.bf16.mxu0 0
      %6341 = vmatmul.mubr.bf16.gmra.mrb[0].mxu0 %v6236
      %v6342 = vpop.f32.mrb[0].mxu0
      %v6343 = vadd.f32 0.0, %v6342
      %v6344 = vpop.f32.mrb[0].mxu0
      %v6345 = vpop.f32.mrb[0].mxu0
      %v6346 = vadd.f32 0.0, %v6345
      %v6347 = vpop.f32.mrb[0].mxu0
      %6348 = vmatprep.mubr.bf16.mxu0 0
      %6349 = vmatmul.mubr.bf16.gmra.mrb[0].mxu0 %v6239
      %v6350 = vpop.f32.mrb[0].mxu0
      %v6351 = vadd.f32 0.0, %v6350
      %v6352 = vpop.f32.mrb[0].mxu0
      %v6353 = vpop.f32.mrb[0].mxu0
      %v6354 = vadd.f32 0.0, %v6353
      %v6355 = vpop.f32.mrb[0].mxu0
      %6356 = vmatprep.mubr.bf16.mxu0 0
      %6357 = vmatmul.mubr.bf16.gmra.mrb[0].mxu0 %v6242
      %v6358 = vpop.f32.mrb[0].mxu0
      %v6359 = vadd.f32 0.0, %v6358
      %v6360 = vpop.f32.mrb[0].mxu0
      %v6361 = vpop.f32.mrb[0].mxu0
      %v6362 = vadd.f32 0.0, %v6361
      %v6363 = vpop.f32.mrb[0].mxu0
      %6364 = vmatprep.mubr.bf16.mxu0 0
      %6365 = vmatmul.mubr.bf16.gmra.mrb[0].mxu0 %v6245
      %v6366 = vpop.f32.mrb[0].mxu0
      %v6367 = vadd.f32 0.0, %v6366
      %v6368 = vpop.f32.mrb[0].mxu0
      %v6369 = vpop.f32.mrb[0].mxu0
      %v6370 = vadd.f32 0.0, %v6369
      %v6371 = vpop.f32.mrb[0].mxu0
      %6372 = vmatprep.mubr.bf16.mxu0 0
      %6373 = vmatmul.mubr.bf16.gmra.mrb[0].mxu0 %v6248
      %v6374 = vpop.f32.mrb[0].mxu0
      %v6375 = vadd.f32 0.0, %v6374
      %v6376 = vpop.f32.mrb[0].mxu0
      %v6377 = vpop.f32.mrb[0].mxu0
      %v6378 = vadd.f32 0.0, %v6377
      %v6379 = vpop.f32.mrb[0].mxu0
      %6380 = vmatprep.mubr.bf16.mxu0 0
      %6381 = vmatmul.mubr.bf16.gmra.mrb[0].mxu0 %v6251
      %v6382 = vpop.f32.mrb[0].mxu0
      %v6383 = vadd.f32 0.0, %v6382
      %v6384 = vpop.f32.mrb[0].mxu0
      %v6385 = vpop.f32.mrb[0].mxu0
      %v6386 = vadd.f32 0.0, %v6385
      %v6387 = vpop.f32.mrb[0].mxu0
      %6388 = vmatprep.mubr.bf16.mxu0 0
      %6389 = vmatmul.mubr.bf16.gmra.mrb[0].mxu0 %v6254
      %v6390 = vpop.f32.mrb[0].mxu0
      %v6391 = vadd.f32 0.0, %v6390
      %v6392 = vpop.f32.mrb[0].mxu0
      %v6393 = vpop.f32.mrb[0].mxu0
      %v6394 = vadd.f32 0.0, %v6393
      %v6395 = vpop.f32.mrb[0].mxu0
      %6396 = vmatprep.mubr.bf16.mxu0 0
      %6397 = vmatmul.mubr.bf16.gmra.mrb[0].mxu0 %v6257
      %v6398 = vpop.f32.mrb[0].mxu0
      %v6399 = vadd.f32 0.0, %v6398
      %v6400 = vpop.f32.mrb[0].mxu0
      %v6401 = vpop.f32.mrb[0].mxu0
      %v6402 = vadd.f32 0.0, %v6401
      %v6403 = vpop.f32.mrb[0].mxu0
      %6404 = vmatprep.mubr.bf16.mxu0 0
      %6405 = vmatmul.mubr.bf16.gmra.mrb[0].mxu0 %v6260
      %v6406 = vpop.f32.mrb[0].mxu0
      %v6407 = vadd.f32 0.0, %v6406
      %v6408 = vpop.f32.mrb[0].mxu0
      %v6409 = vpop.f32.mrb[0].mxu0
      %v6410 = vadd.f32 0.0, %v6409
      %v6411 = vpop.f32.mrb[0].mxu0
      %6412 = vmatprep.mubr.bf16.mxu0 0
      %6413 = vmatmul.mubr.bf16.gmra.mrb[0].mxu0 %v6263
      %v6414 = vpop.f32.mrb[0].mxu0
      %v6415 = vadd.f32 0.0, %v6414
      %v6416 = vpop.f32.mrb[0].mxu0
      %v6417 = vpop.f32.mrb[0].mxu0
      %v6418 = vadd.f32 0.0, %v6417
      %v6419 = vpop.f32.mrb[0].mxu0
      %6420 = vmatprep.mubr.bf16.mxu0 0
      %6421 = vmatmul.mubr.bf16.gmra.mrb[0].mxu0 %v6266
      %v6422 = vpop.f32.mrb[0].mxu0
      %v6423 = vadd.f32 0.0, %v6422
      %v6424 = vpop.f32.mrb[0].mxu0
      %v6425 = vpop.f32.mrb[0].mxu0
      %v6426 = vadd.f32 0.0, %v6425
      %v6427 = vpop.f32.mrb[0].mxu0
      %6428 = vdwg.mxu0
      %v6429 = vmul.f32 %v6303, %v6303
      %v6430 = vmul.f32 %v6306, %v6306
      %v6431 = vmul.f32 %v6311, %v6311
      %v6432 = vmul.f32 %v6314, %v6314
      %v6433 = vmul.f32 %v6319, %v6319
      %v6434 = vmul.f32 %v6322, %v6322
      %v6435 = vmul.f32 %v6327, %v6327
      %v6436 = vmul.f32 %v6330, %v6330
      %v6437 = vmul.f32 %v6335, %v6335
      %v6438 = vmul.f32 %v6338, %v6338
      %v6439 = vmul.f32 %v6343, %v6343
      %v6440 = vmul.f32 %v6346, %v6346
      %v6441 = vmul.f32 %v6351, %v6351
      %v6442 = vmul.f32 %v6354, %v6354
      %v6443 = vmul.f32 %v6359, %v6359
      %v6444 = vmul.f32 %v6362, %v6362
      %v6445 = vmul.f32 %v6367, %v6367
      %v6446 = vmul.f32 %v6370, %v6370
      %v6447 = vmul.f32 %v6375, %v6375
      %v6448 = vmul.f32 %v6378, %v6378
      %v6449 = vmul.f32 %v6383, %v6383
      %v6450 = vmul.f32 %v6386, %v6386
      %v6451 = vmul.f32 %v6391, %v6391
      %v6452 = vmul.f32 %v6394, %v6394
      %v6453 = vmul.f32 %v6399, %v6399
      %v6454 = vmul.f32 %v6402, %v6402
      %v6455 = vmul.f32 %v6407, %v6407
      %v6456 = vmul.f32 %v6410, %v6410
      %v6457 = vmul.f32 %v6415, %v6415
      %v6458 = vmul.f32 %v6418, %v6418
      %v6459 = vmul.f32 %v6423, %v6423
      %v6460 = vmul.f32 %v6426, %v6426
      %v6461 = vmul.f32 %v6303, %v6429
      %v6462 = vmul.f32 %v6306, %v6430
      %v6463 = vmul.f32 %v6311, %v6431
      %v6464 = vmul.f32 %v6314, %v6432
      %v6465 = vmul.f32 %v6319, %v6433
      %v6466 = vmul.f32 %v6322, %v6434
      %v6467 = vmul.f32 %v6327, %v6435
      %v6468 = vmul.f32 %v6330, %v6436
      %v6469 = vmul.f32 %v6335, %v6437
      %v6470 = vmul.f32 %v6338, %v6438
      %v6471 = vmul.f32 %v6343, %v6439
      %v6472 = vmul.f32 %v6346, %v6440
      %v6473 = vmul.f32 %v6351, %v6441
      %v6474 = vmul.f32 %v6354, %v6442
      %v6475 = vmul.f32 %v6359, %v6443
      %v6476 = vmul.f32 %v6362, %v6444
      %v6477 = vmul.f32 %v6367, %v6445
      %v6478 = vmul.f32 %v6370, %v6446
      %v6479 = vmul.f32 %v6375, %v6447
      %v6480 = vmul.f32 %v6378, %v6448
      %v6481 = vmul.f32 %v6383, %v6449
      %v6482 = vmul.f32 %v6386, %v6450
      %v6483 = vmul.f32 %v6391, %v6451
      %v6484 = vmul.f32 %v6394, %v6452
      %v6485 = vmul.f32 %v6399, %v6453
      %v6486 = vmul.f32 %v6402, %v6454
      %v6487 = vmul.f32 %v6407, %v6455
      %v6488 = vmul.f32 %v6410, %v6456
      %v6489 = vmul.f32 %v6415, %v6457
      %v6490 = vmul.f32 %v6418, %v6458
      %v6491 = vmul.f32 %v6423, %v6459
      %v6492 = vmul.f32 %v6426, %v6460
      %v6493 = vmul.f32 %v6461, 0.044715
      %v6494 = vmul.f32 %v6462, 0.044715
      %v6495 = vmul.f32 %v6463, 0.044715
      %v6496 = vmul.f32 %v6464, 0.044715
      %v6497 = vmul.f32 %v6465, 0.044715
      %v6498 = vmul.f32 %v6466, 0.044715
      %v6499 = vmul.f32 %v6467, 0.044715
      %v6500 = vmul.f32 %v6468, 0.044715
      %v6501 = vmul.f32 %v6469, 0.044715
      %v6502 = vmul.f32 %v6470, 0.044715
      %v6503 = vmul.f32 %v6471, 0.044715
      %v6504 = vmul.f32 %v6472, 0.044715
      %v6505 = vmul.f32 %v6473, 0.044715
      %v6506 = vmul.f32 %v6474, 0.044715
      %v6507 = vmul.f32 %v6475, 0.044715
      %v6508 = vmul.f32 %v6476, 0.044715
      %v6509 = vmul.f32 %v6477, 0.044715
      %v6510 = vmul.f32 %v6478, 0.044715
      %v6511 = vmul.f32 %v6479, 0.044715
      %v6512 = vmul.f32 %v6480, 0.044715
      %v6513 = vmul.f32 %v6481, 0.044715
      %v6514 = vmul.f32 %v6482, 0.044715
      %v6515 = vmul.f32 %v6483, 0.044715
      %v6516 = vmul.f32 %v6484, 0.044715
      %v6517 = vmul.f32 %v6485, 0.044715
      %v6518 = vmul.f32 %v6486, 0.044715
      %v6519 = vmul.f32 %v6487, 0.044715
      %v6520 = vmul.f32 %v6488, 0.044715
      %v6521 = vmul.f32 %v6489, 0.044715
      %v6522 = vmul.f32 %v6490, 0.044715
      %v6523 = vmul.f32 %v6491, 0.044715
      %v6524 = vmul.f32 %v6492, 0.044715
      %v6525 = vadd.f32 %v6303, %v6493
      %v6526 = vadd.f32 %v6306, %v6494
      %v6527 = vadd.f32 %v6311, %v6495
      %v6528 = vadd.f32 %v6314, %v6496
      %v6529 = vadd.f32 %v6319, %v6497
      %v6530 = vadd.f32 %v6322, %v6498
      %v6531 = vadd.f32 %v6327, %v6499
      %v6532 = vadd.f32 %v6330, %v6500
      %v6533 = vadd.f32 %v6335, %v6501
      %v6534 = vadd.f32 %v6338, %v6502
      %v6535 = vadd.f32 %v6343, %v6503
      %v6536 = vadd.f32 %v6346, %v6504
      %v6537 = vadd.f32 %v6351, %v6505
      %v6538 = vadd.f32 %v6354, %v6506
      %v6539 = vadd.f32 %v6359, %v6507
      %v6540 = vadd.f32 %v6362, %v6508
      %v6541 = vadd.f32 %v6367, %v6509
      %v6542 = vadd.f32 %v6370, %v6510
      %v6543 = vadd.f32 %v6375, %v6511
      %v6544 = vadd.f32 %v6378, %v6512
      %v6545 = vadd.f32 %v6383, %v6513
      %v6546 = vadd.f32 %v6386, %v6514
      %v6547 = vadd.f32 %v6391, %v6515
      %v6548 = vadd.f32 %v6394, %v6516
      %v6549 = vadd.f32 %v6399, %v6517
      %v6550 = vadd.f32 %v6402, %v6518
      %v6551 = vadd.f32 %v6407, %v6519
      %v6552 = vadd.f32 %v6410, %v6520
      %v6553 = vadd.f32 %v6415, %v6521
      %v6554 = vadd.f32 %v6418, %v6522
      %v6555 = vadd.f32 %v6423, %v6523
      %v6556 = vadd.f32 %v6426, %v6524
      %v6557 = vmul.f32 %v6525, 0.7978846
      %v6558 = vmul.f32 %v6526, 0.7978846
      %v6559 = vmul.f32 %v6527, 0.7978846
      %v6560 = vmul.f32 %v6528, 0.7978846
      %v6561 = vmul.f32 %v6529, 0.7978846
      %v6562 = vmul.f32 %v6530, 0.7978846
      %v6563 = vmul.f32 %v6531, 0.7978846
      %v6564 = vmul.f32 %v6532, 0.7978846
      %v6565 = vmul.f32 %v6533, 0.7978846
      %v6566 = vmul.f32 %v6534, 0.7978846
      %v6567 = vmul.f32 %v6535, 0.7978846
      %v6568 = vmul.f32 %v6536, 0.7978846
      %v6569 = vmul.f32 %v6537, 0.7978846
      %v6570 = vmul.f32 %v6538, 0.7978846
      %v6571 = vmul.f32 %v6539, 0.7978846
      %v6572 = vmul.f32 %v6540, 0.7978846
      %v6573 = vmul.f32 %v6541, 0.7978846
      %v6574 = vmul.f32 %v6542, 0.7978846
      %v6575 = vmul.f32 %v6543, 0.7978846
      %v6576 = vmul.f32 %v6544, 0.7978846
      %v6577 = vmul.f32 %v6545, 0.7978846
      %v6578 = vmul.f32 %v6546, 0.7978846
      %v6579 = vmul.f32 %v6547, 0.7978846
      %v6580 = vmul.f32 %v6548, 0.7978846
      %v6581 = vmul.f32 %v6549, 0.7978846
      %v6582 = vmul.f32 %v6550, 0.7978846
      %v6583 = vmul.f32 %v6551, 0.7978846
      %v6584 = vmul.f32 %v6552, 0.7978846
      %v6585 = vmul.f32 %v6553, 0.7978846
      %v6586 = vmul.f32 %v6554, 0.7978846
      %v6587 = vmul.f32 %v6555, 0.7978846
      %v6588 = vmul.f32 %v6556, 0.7978846
      %v6589 = vtanh.pop %v6557
      %v6590 = vtanh.pop %v6558
      %v6591 = vtanh.pop %v6559
      %v6592 = vtanh.pop %v6560
      %v6593 = vtanh.pop %v6561
      %v6594 = vtanh.pop %v6562
      %v6595 = vtanh.pop %v6563
      %v6596 = vtanh.pop %v6564
      %v6597 = vtanh.pop %v6565
      %v6598 = vtanh.pop %v6566
      %v6599 = vtanh.pop %v6567
      %v6600 = vtanh.pop %v6568
      %v6601 = vtanh.pop %v6569
      %v6602 = vtanh.pop %v6570
      %v6603 = vtanh.pop %v6571
      %v6604 = vtanh.pop %v6572
      %v6605 = vtanh.pop %v6573
      %v6606 = vtanh.pop %v6574
      %v6607 = vtanh.pop %v6575
      %v6608 = vtanh.pop %v6576
      %v6609 = vtanh.pop %v6577
      %v6610 = vtanh.pop %v6578
      %v6611 = vtanh.pop %v6579
      %v6612 = vtanh.pop %v6580
      %v6613 = vtanh.pop %v6581
      %v6614 = vtanh.pop %v6582
      %v6615 = vtanh.pop %v6583
      %v6616 = vtanh.pop %v6584
      %v6617 = vtanh.pop %v6585
      %v6618 = vtanh.pop %v6586
      %v6619 = vtanh.pop %v6587
      %v6620 = vtanh.pop %v6588
      %v6621 = vadd.f32 %v6589, 1.0
      %v6622 = vadd.f32 %v6590, 1.0
      %v6623 = vadd.f32 %v6591, 1.0
      %v6624 = vadd.f32 %v6592, 1.0
      %v6625 = vadd.f32 %v6593, 1.0
      %v6626 = vadd.f32 %v6594, 1.0
      %v6627 = vadd.f32 %v6595, 1.0
      %v6628 = vadd.f32 %v6596, 1.0
      %v6629 = vadd.f32 %v6597, 1.0
      %v6630 = vadd.f32 %v6598, 1.0
      %v6631 = vadd.f32 %v6599, 1.0
      %v6632 = vadd.f32 %v6600, 1.0
      %v6633 = vadd.f32 %v6601, 1.0
      %v6634 = vadd.f32 %v6602, 1.0
      %v6635 = vadd.f32 %v6603, 1.0
      %v6636 = vadd.f32 %v6604, 1.0
      %v6637 = vadd.f32 %v6605, 1.0
      %v6638 = vadd.f32 %v6606, 1.0
      %v6639 = vadd.f32 %v6607, 1.0
      %v6640 = vadd.f32 %v6608, 1.0
      %v6641 = vadd.f32 %v6609, 1.0
      %v6642 = vadd.f32 %v6610, 1.0
      %v6643 = vadd.f32 %v6611, 1.0
      %v6644 = vadd.f32 %v6612, 1.0
      %v6645 = vadd.f32 %v6613, 1.0
      %v6646 = vadd.f32 %v6614, 1.0
      %v6647 = vadd.f32 %v6615, 1.0
      %v6648 = vadd.f32 %v6616, 1.0
      %v6649 = vadd.f32 %v6617, 1.0
      %v6650 = vadd.f32 %v6618, 1.0
      %v6651 = vadd.f32 %v6619, 1.0
      %v6652 = vadd.f32 %v6620, 1.0
      %v6653 = vmul.f32 %v6621, 0.5
      %v6654 = vmul.f32 %v6622, 0.5
      %v6655 = vmul.f32 %v6623, 0.5
      %v6656 = vmul.f32 %v6624, 0.5
      %v6657 = vmul.f32 %v6625, 0.5
      %v6658 = vmul.f32 %v6626, 0.5
      %v6659 = vmul.f32 %v6627, 0.5
      %v6660 = vmul.f32 %v6628, 0.5
      %v6661 = vmul.f32 %v6629, 0.5
      %v6662 = vmul.f32 %v6630, 0.5
      %v6663 = vmul.f32 %v6631, 0.5
      %v6664 = vmul.f32 %v6632, 0.5
      %v6665 = vmul.f32 %v6633, 0.5
      %v6666 = vmul.f32 %v6634, 0.5
      %v6667 = vmul.f32 %v6635, 0.5
      %v6668 = vmul.f32 %v6636, 0.5
      %v6669 = vmul.f32 %v6637, 0.5
      %v6670 = vmul.f32 %v6638, 0.5
      %v6671 = vmul.f32 %v6639, 0.5
      %v6672 = vmul.f32 %v6640, 0.5
      %v6673 = vmul.f32 %v6641, 0.5
      %v6674 = vmul.f32 %v6642, 0.5
      %v6675 = vmul.f32 %v6643, 0.5
      %v6676 = vmul.f32 %v6644, 0.5
      %v6677 = vmul.f32 %v6645, 0.5
      %v6678 = vmul.f32 %v6646, 0.5
      %v6679 = vmul.f32 %v6647, 0.5
      %v6680 = vmul.f32 %v6648, 0.5
      %v6681 = vmul.f32 %v6649, 0.5
      %v6682 = vmul.f32 %v6650, 0.5
      %v6683 = vmul.f32 %v6651, 0.5
      %v6684 = vmul.f32 %v6652, 0.5
      %v6685 = vmul.f32 %v6303, %v6653
      %v6686 = vmul.f32 %v6306, %v6654
      %v6687 = vmul.f32 %v6311, %v6655
      %v6688 = vmul.f32 %v6314, %v6656
      %v6689 = vmul.f32 %v6319, %v6657
      %v6690 = vmul.f32 %v6322, %v6658
      %v6691 = vmul.f32 %v6327, %v6659
      %v6692 = vmul.f32 %v6330, %v6660
      %v6693 = vmul.f32 %v6335, %v6661
      %v6694 = vmul.f32 %v6338, %v6662
      %v6695 = vmul.f32 %v6343, %v6663
      %v6696 = vmul.f32 %v6346, %v6664
      %v6697 = vmul.f32 %v6351, %v6665
      %v6698 = vmul.f32 %v6354, %v6666
      %v6699 = vmul.f32 %v6359, %v6667
      %v6700 = vmul.f32 %v6362, %v6668
      %v6701 = vmul.f32 %v6367, %v6669
      %v6702 = vmul.f32 %v6370, %v6670
      %v6703 = vmul.f32 %v6375, %v6671
      %v6704 = vmul.f32 %v6378, %v6672
      %v6705 = vmul.f32 %v6383, %v6673
      %v6706 = vmul.f32 %v6386, %v6674
      %v6707 = vmul.f32 %v6391, %v6675
      %v6708 = vmul.f32 %v6394, %v6676
      %v6709 = vmul.f32 %v6399, %v6677
      %v6710 = vmul.f32 %v6402, %v6678
      %v6711 = vmul.f32 %v6407, %v6679
      %v6712 = vmul.f32 %v6410, %v6680
      %v6713 = vmul.f32 %v6415, %v6681
      %v6714 = vmul.f32 %v6418, %v6682
      %v6715 = vmul.f32 %v6423, %v6683
      %v6716 = vmul.f32 %v6426, %v6684
      %v6717 = vpack.c.bf16 %v6686, %v6685
      %v6718 = vpack.c.bf16 %v6688, %v6687
      %v6719 = vpack.c.bf16 %v6690, %v6689
      %v6720 = vpack.c.bf16 %v6692, %v6691
      %v6721 = vpack.c.bf16 %v6694, %v6693
      %v6722 = vpack.c.bf16 %v6696, %v6695
      %v6723 = vpack.c.bf16 %v6698, %v6697
      %v6724 = vpack.c.bf16 %v6700, %v6699
      %v6725 = vpack.c.bf16 %v6702, %v6701
      %v6726 = vpack.c.bf16 %v6704, %v6703
      %v6727 = vpack.c.bf16 %v6706, %v6705
      %v6728 = vpack.c.bf16 %v6708, %v6707
      %v6729 = vpack.c.bf16 %v6710, %v6709
      %v6730 = vpack.c.bf16 %v6712, %v6711
      %v6731 = vpack.c.bf16 %v6714, %v6713
      %v6732 = vpack.c.bf16 %v6716, %v6715
      %v6733 = vld [vmem:[%s378] sm:$0xf]
      %v6734 = vld [vmem:[%s378 + $0x4] sm:$0xf]
      %v6735 = vld [vmem:[%s378 + $0x8] sm:$0xf]
      %v6736 = vld [vmem:[%s378 + $0xc] sm:$0xf]
      %v6737 = vld [vmem:[%s378 + $0x10] sm:$0xf]
      %v6738 = vld [vmem:[%s378 + $0x14] sm:$0xf]
      %v6739 = vld [vmem:[%s378 + $0x18] sm:$0xf]
      %v6740 = vld [vmem:[%s378 + $0x1c] sm:$0xf]
      %v6741 = vld [vmem:[%s378 + $0x20] sm:$0xf]
      %v6742 = vld [vmem:[%s378 + $0x24] sm:$0xf]
      %v6743 = vld [vmem:[%s378 + $0x28] sm:$0xf]
      %v6744 = vld [vmem:[%s378 + $0x2c] sm:$0xf]
      %v6745 = vld [vmem:[%s378 + $0x30] sm:$0xf]
      %v6746 = vld [vmem:[%s378 + $0x34] sm:$0xf]
      %v6747 = vld [vmem:[%s378 + $0x38] sm:$0xf]
      %v6748 = vld [vmem:[%s378 + $0x3c] sm:$0xf]
      %v6765 = vunpack.c.l.b16 %v6733
      %v6766 = vunpack.c.l.b16 %v6734
      %v6767 = vunpack.c.l.b16 %v6735
      %v6768 = vunpack.c.l.b16 %v6736
      %v6769 = vunpack.c.l.b16 %v6737
      %v6770 = vunpack.c.l.b16 %v6738
      %v6771 = vunpack.c.l.b16 %v6739
      %v6772 = vunpack.c.l.b16 %v6740
      %v6773 = vunpack.c.l.b16 %v6741
      %v6774 = vunpack.c.l.b16 %v6742
      %v6775 = vunpack.c.l.b16 %v6743
      %v6776 = vunpack.c.l.b16 %v6744
      %v6777 = vunpack.c.l.b16 %v6745
      %v6778 = vunpack.c.l.b16 %v6746
      %v6779 = vunpack.c.l.b16 %v6747
      %v6780 = vunpack.c.l.b16 %v6748
      %v6781 = vpack.c.b16 %v6766, %v6765
      %v6782 = vpack.c.b16 %v6768, %v6767
      %v6783 = vpack.c.b16 %v6770, %v6769
      %v6784 = vpack.c.b16 %v6772, %v6771
      %v6785 = vpack.c.b16 %v6774, %v6773
      %v6786 = vpack.c.b16 %v6776, %v6775
      %v6787 = vpack.c.b16 %v6778, %v6777
      %v6788 = vpack.c.b16 %v6780, %v6779
      %6797 = vmatprep.subr.bf16.mxu0 0
      %6798 = vmatpush1.bf16.msra.mxu0 %v6781
      %6799 = vmatprep.subr.bf16.mxu0 0
      %6800 = vmatpush1.bf16.msra.mxu0 %v6782
      %6801 = vmatprep.subr.bf16.mxu0 0
      %6802 = vmatpush1.bf16.msra.mxu0 %v6783
      %6803 = vmatprep.subr.bf16.mxu0 0
      %6804 = vmatpush1.bf16.msra.mxu0 %v6784
      %6805 = vmatprep.subr.bf16.mxu0 0
      %6806 = vmatpush1.bf16.msra.mxu0 %v6785
      %6807 = vmatprep.subr.bf16.mxu0 0
      %6808 = vmatpush1.bf16.msra.mxu0 %v6786
      %6809 = vmatprep.subr.bf16.mxu0 0
      %6810 = vmatpush1.bf16.msra.mxu0 %v6787
      %6811 = vmatprep.subr.bf16.mxu0 0
      %6812 = vmatpush1.bf16.msra.mxu0 %v6788
      %6813 = vmatprep.subr.bf16.mxu0 0
      %6814 = vmatpush1.bf16.msra.mxu0 0
      %6815 = vmatprep.subr.bf16.mxu0 0
      %6816 = vmatpush1.bf16.msra.mxu0 0
      %6817 = vmatprep.subr.bf16.mxu0 0
      %6818 = vmatpush1.bf16.msra.mxu0 0
      %6819 = vmatprep.subr.bf16.mxu0 0
      %6820 = vmatpush1.bf16.msra.mxu0 0
      %6821 = vmatprep.subr.bf16.mxu0 0
      %6822 = vmatpush1.bf16.msra.mxu0 0
      %6823 = vmatprep.subr.bf16.mxu0 0
      %6824 = vmatpush1.bf16.msra.mxu0 0
      %6825 = vmatprep.subr.bf16.mxu0 0
      %6826 = vmatpush1.bf16.msra.mxu0 0
      %6827 = vmatprep.subr.bf16.mxu0 0
      %6828 = vmatpush1.bf16.msra.mxu0 0
      %6829 = vmatprep.mubr.bf16.mxu0 0
      %6830 = vmatmul.mubr.bf16.gmra.mrb[0].mxu0 %v6717
      %v6831 = vpop.f32.mrb[0].mxu0
      %v6832 = vadd.f32 0.0, %v6831
      %v6833 = vpop.f32.mrb[0].mxu0
      %v6834 = vpop.f32.mrb[0].mxu0
      %v6835 = vadd.f32 0.0, %v6834
      %v6836 = vpop.f32.mrb[0].mxu0
      %6837 = vmatprep.mubr.bf16.mxu0 0
      %6838 = vmatmul.mubr.bf16.gmra.mrb[0].mxu0 %v6718
      %v6839 = vpop.f32.mrb[0].mxu0
      %v6840 = vadd.f32 0.0, %v6839
      %v6841 = vpop.f32.mrb[0].mxu0
      %v6842 = vpop.f32.mrb[0].mxu0
      %v6843 = vadd.f32 0.0, %v6842
      %v6844 = vpop.f32.mrb[0].mxu0
      %6845 = vmatprep.mubr.bf16.mxu0 0
      %6846 = vmatmul.mubr.bf16.gmra.mrb[0].mxu0 %v6719
      %v6847 = vpop.f32.mrb[0].mxu0
      %v6848 = vadd.f32 0.0, %v6847
      %v6849 = vpop.f32.mrb[0].mxu0
      %v6850 = vpop.f32.mrb[0].mxu0
      %v6851 = vadd.f32 0.0, %v6850
      %v6852 = vpop.f32.mrb[0].mxu0
      %6853 = vmatprep.mubr.bf16.mxu0 0
      %6854 = vmatmul.mubr.bf16.gmra.mrb[0].mxu0 %v6720
      %v6855 = vpop.f32.mrb[0].mxu0
      %v6856 = vadd.f32 0.0, %v6855
      %v6857 = vpop.f32.mrb[0].mxu0
      %v6858 = vpop.f32.mrb[0].mxu0
      %v6859 = vadd.f32 0.0, %v6858
      %v6860 = vpop.f32.mrb[0].mxu0
      %6861 = vmatprep.mubr.bf16.mxu0 0
      %6862 = vmatmul.mubr.bf16.gmra.mrb[0].mxu0 %v6721
      %v6863 = vpop.f32.mrb[0].mxu0
      %v6864 = vadd.f32 0.0, %v6863
      %v6865 = vpop.f32.mrb[0].mxu0
      %v6866 = vpop.f32.mrb[0].mxu0
      %v6867 = vadd.f32 0.0, %v6866
      %v6868 = vpop.f32.mrb[0].mxu0
      %6869 = vmatprep.mubr.bf16.mxu0 0
      %6870 = vmatmul.mubr.bf16.gmra.mrb[0].mxu0 %v6722
      %v6871 = vpop.f32.mrb[0].mxu0
      %v6872 = vadd.f32 0.0, %v6871
      %v6873 = vpop.f32.mrb[0].mxu0
      %v6874 = vpop.f32.mrb[0].mxu0
      %v6875 = vadd.f32 0.0, %v6874
      %v6876 = vpop.f32.mrb[0].mxu0
      %6877 = vmatprep.mubr.bf16.mxu0 0
      %6878 = vmatmul.mubr.bf16.gmra.mrb[0].mxu0 %v6723
      %v6879 = vpop.f32.mrb[0].mxu0
      %v6880 = vadd.f32 0.0, %v6879
      %v6881 = vpop.f32.mrb[0].mxu0
      %v6882 = vpop.f32.mrb[0].mxu0
      %v6883 = vadd.f32 0.0, %v6882
      %v6884 = vpop.f32.mrb[0].mxu0
      %6885 = vmatprep.mubr.bf16.mxu0 0
      %6886 = vmatmul.mubr.bf16.gmra.mrb[0].mxu0 %v6724
      %v6887 = vpop.f32.mrb[0].mxu0
      %v6888 = vadd.f32 0.0, %v6887
      %v6889 = vpop.f32.mrb[0].mxu0
      %v6890 = vpop.f32.mrb[0].mxu0
      %v6891 = vadd.f32 0.0, %v6890
      %v6892 = vpop.f32.mrb[0].mxu0
      %6893 = vmatprep.mubr.bf16.mxu0 0
      %6894 = vmatmul.mubr.bf16.gmra.mrb[0].mxu0 %v6725
      %v6895 = vpop.f32.mrb[0].mxu0
      %v6896 = vadd.f32 0.0, %v6895
      %v6897 = vpop.f32.mrb[0].mxu0
      %v6898 = vpop.f32.mrb[0].mxu0
      %v6899 = vadd.f32 0.0, %v6898
      %v6900 = vpop.f32.mrb[0].mxu0
      %6901 = vmatprep.mubr.bf16.mxu0 0
      %6902 = vmatmul.mubr.bf16.gmra.mrb[0].mxu0 %v6726
      %v6903 = vpop.f32.mrb[0].mxu0
      %v6904 = vadd.f32 0.0, %v6903
      %v6905 = vpop.f32.mrb[0].mxu0
      %v6906 = vpop.f32.mrb[0].mxu0
      %v6907 = vadd.f32 0.0, %v6906
      %v6908 = vpop.f32.mrb[0].mxu0
      %6909 = vmatprep.mubr.bf16.mxu0 0
      %6910 = vmatmul.mubr.bf16.gmra.mrb[0].mxu0 %v6727
      %v6911 = vpop.f32.mrb[0].mxu0
      %v6912 = vadd.f32 0.0, %v6911
      %v6913 = vpop.f32.mrb[0].mxu0
      %v6914 = vpop.f32.mrb[0].mxu0
      %v6915 = vadd.f32 0.0, %v6914
      %v6916 = vpop.f32.mrb[0].mxu0
      %6917 = vmatprep.mubr.bf16.mxu0 0
      %6918 = vmatmul.mubr.bf16.gmra.mrb[0].mxu0 %v6728
      %v6919 = vpop.f32.mrb[0].mxu0
      %v6920 = vadd.f32 0.0, %v6919
      %v6921 = vpop.f32.mrb[0].mxu0
      %v6922 = vpop.f32.mrb[0].mxu0
      %v6923 = vadd.f32 0.0, %v6922
      %v6924 = vpop.f32.mrb[0].mxu0
      %6925 = vmatprep.mubr.bf16.mxu0 0
      %6926 = vmatmul.mubr.bf16.gmra.mrb[0].mxu0 %v6729
      %v6927 = vpop.f32.mrb[0].mxu0
      %v6928 = vadd.f32 0.0, %v6927
      %v6929 = vpop.f32.mrb[0].mxu0
      %v6930 = vpop.f32.mrb[0].mxu0
      %v6931 = vadd.f32 0.0, %v6930
      %v6932 = vpop.f32.mrb[0].mxu0
      %6933 = vmatprep.mubr.bf16.mxu0 0
      %6934 = vmatmul.mubr.bf16.gmra.mrb[0].mxu0 %v6730
      %v6935 = vpop.f32.mrb[0].mxu0
      %v6936 = vadd.f32 0.0, %v6935
      %v6937 = vpop.f32.mrb[0].mxu0
      %v6938 = vpop.f32.mrb[0].mxu0
      %v6939 = vadd.f32 0.0, %v6938
      %v6940 = vpop.f32.mrb[0].mxu0
      %6941 = vmatprep.mubr.bf16.mxu0 0
      %6942 = vmatmul.mubr.bf16.gmra.mrb[0].mxu0 %v6731
      %v6943 = vpop.f32.mrb[0].mxu0
      %v6944 = vadd.f32 0.0, %v6943
      %v6945 = vpop.f32.mrb[0].mxu0
      %v6946 = vpop.f32.mrb[0].mxu0
      %v6947 = vadd.f32 0.0, %v6946
      %v6948 = vpop.f32.mrb[0].mxu0
      %6949 = vmatprep.mubr.bf16.mxu0 0
      %6950 = vmatmul.mubr.bf16.gmra.mrb[0].mxu0 %v6732
      %v6951 = vpop.f32.mrb[0].mxu0
      %v6952 = vadd.f32 0.0, %v6951
      %v6953 = vpop.f32.mrb[0].mxu0
      %v6954 = vpop.f32.mrb[0].mxu0
      %v6955 = vadd.f32 0.0, %v6954
      %v6956 = vpop.f32.mrb[0].mxu0
      %6957 = vdwg.mxu0
      %v6958 = vadd.f32 %v5861, %v6832
      %v6959 = vadd.f32 %v5862, %v6835
      %v6960 = vadd.f32 %v5863, %v6840
      %v6961 = vadd.f32 %v5864, %v6843
      %v6962 = vadd.f32 %v5865, %v6848
      %v6963 = vadd.f32 %v5866, %v6851
      %v6964 = vadd.f32 %v5867, %v6856
      %v6965 = vadd.f32 %v5868, %v6859
      %v6966 = vadd.f32 %v5869, %v6864
      %v6967 = vadd.f32 %v5870, %v6867
      %v6968 = vadd.f32 %v5871, %v6872
      %v6969 = vadd.f32 %v5872, %v6875
      %v6970 = vadd.f32 %v5873, %v6880
      %v6971 = vadd.f32 %v5874, %v6883
      %v6972 = vadd.f32 %v5875, %v6888
      %v6973 = vadd.f32 %v5876, %v6891
      %v6974 = vadd.f32 %v5877, %v6896
      %v6975 = vadd.f32 %v5878, %v6899
      %v6976 = vadd.f32 %v5879, %v6904
      %v6977 = vadd.f32 %v5880, %v6907
      %v6978 = vadd.f32 %v5881, %v6912
      %v6979 = vadd.f32 %v5882, %v6915
      %v6980 = vadd.f32 %v5883, %v6920
      %v6981 = vadd.f32 %v5884, %v6923
      %v6982 = vadd.f32 %v5885, %v6928
      %v6983 = vadd.f32 %v5886, %v6931
      %v6984 = vadd.f32 %v5887, %v6936
      %v6985 = vadd.f32 %v5888, %v6939
      %v6986 = vadd.f32 %v5889, %v6944
      %v6987 = vadd.f32 %v5890, %v6947
      %v6988 = vadd.f32 %v5891, %v6952
      %v6989 = vadd.f32 %v5892, %v6955
      %6990 = vst.msk [vmem:[%s8] sm:$0xff] %vm518, %v6958
      %6991 = vst.msk [vmem:[%s8 + $0x8] sm:$0xff] %vm518, %v6959
      %6992 = vst.msk [vmem:[%s8 + $0x10] sm:$0xff] %vm518, %v6960
      %6993 = vst.msk [vmem:[%s8 + $0x18] sm:$0xff] %vm518, %v6961
      %6994 = vst.msk [vmem:[%s8 + $0x20] sm:$0xff] %vm518, %v6962
      %6995 = vst.msk [vmem:[%s8 + $0x28] sm:$0xff] %vm518, %v6963
      %6996 = vst.msk [vmem:[%s8 + $0x30] sm:$0xff] %vm518, %v6964
      %6997 = vst.msk [vmem:[%s8 + $0x38] sm:$0xff] %vm518, %v6965
      %6998 = vst.msk [vmem:[%s8 + $0x40] sm:$0xff] %vm518, %v6966
      %6999 = vst.msk [vmem:[%s8 + $0x48] sm:$0xff] %vm518, %v6967
      %7000 = vst.msk [vmem:[%s8 + $0x50] sm:$0xff] %vm518, %v6968
      %7001 = vst.msk [vmem:[%s8 + $0x58] sm:$0xff] %vm518, %v6969
      %7002 = vst.msk [vmem:[%s8 + $0x60] sm:$0xff] %vm518, %v6970
      %7003 = vst.msk [vmem:[%s8 + $0x68] sm:$0xff] %vm518, %v6971
      %7004 = vst.msk [vmem:[%s8 + $0x70] sm:$0xff] %vm518, %v6972
      %7005 = vst.msk [vmem:[%s8 + $0x78] sm:$0xff] %vm518, %v6973
      %7006 = vst.msk [vmem:[%s8 + $0x80] sm:$0xff] %vm518, %v6974
      %7007 = vst.msk [vmem:[%s8 + $0x88] sm:$0xff] %vm518, %v6975
      %7008 = vst.msk [vmem:[%s8 + $0x90] sm:$0xff] %vm518, %v6976
      %7009 = vst.msk [vmem:[%s8 + $0x98] sm:$0xff] %vm518, %v6977
      %7010 = vst.msk [vmem:[%s8 + $0xa0] sm:$0xff] %vm518, %v6978
      %7011 = vst.msk [vmem:[%s8 + $0xa8] sm:$0xff] %vm518, %v6979
      %7012 = vst.msk [vmem:[%s8 + $0xb0] sm:$0xff] %vm518, %v6980
      %7013 = vst.msk [vmem:[%s8 + $0xb8] sm:$0xff] %vm518, %v6981
      %7014 = vst.msk [vmem:[%s8 + $0xc0] sm:$0xff] %vm518, %v6982
      %7015 = vst.msk [vmem:[%s8 + $0xc8] sm:$0xff] %vm518, %v6983
      %7016 = vst.msk [vmem:[%s8 + $0xd0] sm:$0xff] %vm518, %v6984
      %7017 = vst.msk [vmem:[%s8 + $0xd8] sm:$0xff] %vm518, %v6985
      %7018 = vst.msk [vmem:[%s8 + $0xe0] sm:$0xff] %vm518, %v6986
      %7019 = vst.msk [vmem:[%s8 + $0xe8] sm:$0xff] %vm518, %v6987
      %7020 = vst.msk [vmem:[%s8 + $0xf0] sm:$0xff] %vm518, %v6988
      %7021 = vst.msk [vmem:[%s8 + $0xf8] sm:$0xff] %vm518, %v6989
      %p7022 = scmp.eq.s32.totalorder %s19, 1
      // Predicated region
      $region57: #{latent_diffusion_transformer_forward.4} parent=51 // pred_check
        %p7023 = pneg %p7022
      $region58: #{latent_diffusion_transformer_forward.4} parent=51 // pred_check_branch
        %7025 = sbr.rel (%p7023) target = $region60
      $region59: #{latent_diffusion_transformer_forward.4} parent=51 // pred_region
        %v7026 = vld [vmem:[%s7] sm:$0x1]
        %v7027 = vmul.f32 %v6958, %v6958
        %v7028 = vmul.f32 %v6959, %v6959
        %v7029 = vmul.f32 %v6960, %v6960
        %v7030 = vmul.f32 %v6961, %v6961
        %v7031 = vmul.f32 %v6962, %v6962
        %v7032 = vmul.f32 %v6963, %v6963
        %v7033 = vmul.f32 %v6964, %v6964
        %v7034 = vmul.f32 %v6965, %v6965
        %v7035 = vmul.f32 %v6966, %v6966
        %v7036 = vmul.f32 %v6967, %v6967
        %v7037 = vmul.f32 %v6968, %v6968
        %v7038 = vmul.f32 %v6969, %v6969
        %v7039 = vmul.f32 %v6970, %v6970
        %v7040 = vmul.f32 %v6971, %v6971
        %v7041 = vmul.f32 %v6972, %v6972
        %v7042 = vmul.f32 %v6973, %v6973
        %v7043 = vmul.f32 %v6974, %v6974
        %v7044 = vmul.f32 %v6975, %v6975
        %v7045 = vmul.f32 %v6976, %v6976
        %v7046 = vmul.f32 %v6977, %v6977
        %v7047 = vmul.f32 %v6978, %v6978
        %v7048 = vmul.f32 %v6979, %v6979
        %v7049 = vmul.f32 %v6980, %v6980
        %v7050 = vmul.f32 %v6981, %v6981
        %v7051 = vmul.f32 %v6982, %v6982
        %v7052 = vmul.f32 %v6983, %v6983
        %v7053 = vmul.f32 %v6984, %v6984
        %v7054 = vmul.f32 %v6985, %v6985
        %v7055 = vmul.f32 %v6986, %v6986
        %v7056 = vmul.f32 %v6987, %v6987
        %v7057 = vmul.f32 %v6988, %v6988
        %v7058 = vmul.f32 %v6989, %v6989
        %v7059 = vsel %vm518, %v7027, 0.0
        %7060 = vadd.xlane.f32.xlu0 %v7059
        %v7061 = vpop.xlane.xlu0 %7060
        %v7062 = vsel %vm518, %v7028, 0.0
        %7063 = vadd.xlane.f32.xlu0 %v7062
        %v7064 = vpop.xlane.xlu0 %7063
        %v7065 = vsel %vm518, %v7029, 0.0
        %7066 = vadd.xlane.f32.xlu0 %v7065
        %v7067 = vpop.xlane.xlu0 %7066
        %v7068 = vsel %vm518, %v7030, 0.0
        %7069 = vadd.xlane.f32.xlu0 %v7068
        %v7070 = vpop.xlane.xlu0 %7069
        %v7071 = vsel %vm518, %v7031, 0.0
        %7072 = vadd.xlane.f32.xlu0 %v7071
        %v7073 = vpop.xlane.xlu0 %7072
        %v7074 = vsel %vm518, %v7032, 0.0
        %7075 = vadd.xlane.f32.xlu0 %v7074
        %v7076 = vpop.xlane.xlu0 %7075
        %v7077 = vsel %vm518, %v7033, 0.0
        %7078 = vadd.xlane.f32.xlu0 %v7077
        %v7079 = vpop.xlane.xlu0 %7078
        %v7080 = vsel %vm518, %v7034, 0.0
        %7081 = vadd.xlane.f32.xlu0 %v7080
        %v7082 = vpop.xlane.xlu0 %7081
        %v7083 = vsel %vm518, %v7035, 0.0
        %7084 = vadd.xlane.f32.xlu0 %v7083
        %v7085 = vpop.xlane.xlu0 %7084
        %v7086 = vsel %vm518, %v7036, 0.0
        %7087 = vadd.xlane.f32.xlu0 %v7086
        %v7088 = vpop.xlane.xlu0 %7087
        %v7089 = vsel %vm518, %v7037, 0.0
        %7090 = vadd.xlane.f32.xlu0 %v7089
        %v7091 = vpop.xlane.xlu0 %7090
        %v7092 = vsel %vm518, %v7038, 0.0
        %7093 = vadd.xlane.f32.xlu0 %v7092
        %v7094 = vpop.xlane.xlu0 %7093
        %v7095 = vsel %vm518, %v7039, 0.0
        %7096 = vadd.xlane.f32.xlu0 %v7095
        %v7097 = vpop.xlane.xlu0 %7096
        %v7098 = vsel %vm518, %v7040, 0.0
        %7099 = vadd.xlane.f32.xlu0 %v7098
        %v7100 = vpop.xlane.xlu0 %7099
        %v7101 = vsel %vm518, %v7041, 0.0
        %7102 = vadd.xlane.f32.xlu0 %v7101
        %v7103 = vpop.xlane.xlu0 %7102
        %v7104 = vsel %vm518, %v7042, 0.0
        %7105 = vadd.xlane.f32.xlu0 %v7104
        %v7106 = vpop.xlane.xlu0 %7105
        %v7107 = vsel %vm518, %v7043, 0.0
        %7108 = vadd.xlane.f32.xlu0 %v7107
        %v7109 = vpop.xlane.xlu0 %7108
        %v7110 = vsel %vm518, %v7044, 0.0
        %7111 = vadd.xlane.f32.xlu0 %v7110
        %v7112 = vpop.xlane.xlu0 %7111
        %v7113 = vsel %vm518, %v7045, 0.0
        %7114 = vadd.xlane.f32.xlu0 %v7113
        %v7115 = vpop.xlane.xlu0 %7114
        %v7116 = vsel %vm518, %v7046, 0.0
        %7117 = vadd.xlane.f32.xlu0 %v7116
        %v7118 = vpop.xlane.xlu0 %7117
        %v7119 = vsel %vm518, %v7047, 0.0
        %7120 = vadd.xlane.f32.xlu0 %v7119
        %v7121 = vpop.xlane.xlu0 %7120
        %v7122 = vsel %vm518, %v7048, 0.0
        %7123 = vadd.xlane.f32.xlu0 %v7122
        %v7124 = vpop.xlane.xlu0 %7123
        %v7125 = vsel %vm518, %v7049, 0.0
        %7126 = vadd.xlane.f32.xlu0 %v7125
        %v7127 = vpop.xlane.xlu0 %7126
        %v7128 = vsel %vm518, %v7050, 0.0
        %7129 = vadd.xlane.f32.xlu0 %v7128
        %v7130 = vpop.xlane.xlu0 %7129
        %v7131 = vsel %vm518, %v7051, 0.0
        %7132 = vadd.xlane.f32.xlu0 %v7131
        %v7133 = vpop.xlane.xlu0 %7132
        %v7134 = vsel %vm518, %v7052, 0.0
        %7135 = vadd.xlane.f32.xlu0 %v7134
        %v7136 = vpop.xlane.xlu0 %7135
        %v7137 = vsel %vm518, %v7053, 0.0
        %7138 = vadd.xlane.f32.xlu0 %v7137
        %v7139 = vpop.xlane.xlu0 %7138
        %v7140 = vsel %vm518, %v7054, 0.0
        %7141 = vadd.xlane.f32.xlu0 %v7140
        %v7142 = vpop.xlane.xlu0 %7141
        %v7143 = vsel %vm518, %v7055, 0.0
        %7144 = vadd.xlane.f32.xlu0 %v7143
        %v7145 = vpop.xlane.xlu0 %7144
        %v7146 = vsel %vm518, %v7056, 0.0
        %7147 = vadd.xlane.f32.xlu0 %v7146
        %v7148 = vpop.xlane.xlu0 %7147
        %v7149 = vsel %vm518, %v7057, 0.0
        %7150 = vadd.xlane.f32.xlu0 %v7149
        %v7151 = vpop.xlane.xlu0 %7150
        %v7152 = vsel %vm518, %v7058, 0.0
        %7153 = vadd.xlane.f32.xlu0 %v7152
        %v7154 = vpop.xlane.xlu0 %7153
        %v7155 = vmul.f32 %v7061, %v615
        %v7156 = vmul.f32 %v7064, %v615
        %v7157 = vmul.f32 %v7067, %v615
        %v7158 = vmul.f32 %v7070, %v615
        %v7159 = vmul.f32 %v7073, %v615
        %v7160 = vmul.f32 %v7076, %v615
        %v7161 = vmul.f32 %v7079, %v615
        %v7162 = vmul.f32 %v7082, %v615
        %v7163 = vmul.f32 %v7085, %v615
        %v7164 = vmul.f32 %v7088, %v615
        %v7165 = vmul.f32 %v7091, %v615
        %v7166 = vmul.f32 %v7094, %v615
        %v7167 = vmul.f32 %v7097, %v615
        %v7168 = vmul.f32 %v7100, %v615
        %v7169 = vmul.f32 %v7103, %v615
        %v7170 = vmul.f32 %v7106, %v615
        %v7171 = vmul.f32 %v7109, %v615
        %v7172 = vmul.f32 %v7112, %v615
        %v7173 = vmul.f32 %v7115, %v615
        %v7174 = vmul.f32 %v7118, %v615
        %v7175 = vmul.f32 %v7121, %v615
        %v7176 = vmul.f32 %v7124, %v615
        %v7177 = vmul.f32 %v7127, %v615
        %v7178 = vmul.f32 %v7130, %v615
        %v7179 = vmul.f32 %v7133, %v615
        %v7180 = vmul.f32 %v7136, %v615
        %v7181 = vmul.f32 %v7139, %v615
        %v7182 = vmul.f32 %v7142, %v615
        %v7183 = vmul.f32 %v7145, %v615
        %v7184 = vmul.f32 %v7148, %v615
        %v7185 = vmul.f32 %v7151, %v615
        %v7186 = vmul.f32 %v7154, %v615
        %v7187 = vadd.f32 %v7155, 1e-08
        %v7188 = vadd.f32 %v7156, 1e-08
        %v7189 = vadd.f32 %v7157, 1e-08
        %v7190 = vadd.f32 %v7158, 1e-08
        %v7191 = vadd.f32 %v7159, 1e-08
        %v7192 = vadd.f32 %v7160, 1e-08
        %v7193 = vadd.f32 %v7161, 1e-08
        %v7194 = vadd.f32 %v7162, 1e-08
        %v7195 = vadd.f32 %v7163, 1e-08
        %v7196 = vadd.f32 %v7164, 1e-08
        %v7197 = vadd.f32 %v7165, 1e-08
        %v7198 = vadd.f32 %v7166, 1e-08
        %v7199 = vadd.f32 %v7167, 1e-08
        %v7200 = vadd.f32 %v7168, 1e-08
        %v7201 = vadd.f32 %v7169, 1e-08
        %v7202 = vadd.f32 %v7170, 1e-08
        %v7203 = vadd.f32 %v7171, 1e-08
        %v7204 = vadd.f32 %v7172, 1e-08
        %v7205 = vadd.f32 %v7173, 1e-08
        %v7206 = vadd.f32 %v7174, 1e-08
        %v7207 = vadd.f32 %v7175, 1e-08
        %v7208 = vadd.f32 %v7176, 1e-08
        %v7209 = vadd.f32 %v7177, 1e-08
        %v7210 = vadd.f32 %v7178, 1e-08
        %v7211 = vadd.f32 %v7179, 1e-08
        %v7212 = vadd.f32 %v7180, 1e-08
        %v7213 = vadd.f32 %v7181, 1e-08
        %v7214 = vadd.f32 %v7182, 1e-08
        %v7215 = vadd.f32 %v7183, 1e-08
        %v7216 = vadd.f32 %v7184, 1e-08
        %v7217 = vadd.f32 %v7185, 1e-08
        %v7218 = vadd.f32 %v7186, 1e-08
        %v7219 = vrsqrt.pop %v7187
        %v7220 = vrsqrt.pop %v7188
        %v7221 = vrsqrt.pop %v7189
        %v7222 = vrsqrt.pop %v7190
        %v7223 = vrsqrt.pop %v7191
        %v7224 = vrsqrt.pop %v7192
        %v7225 = vrsqrt.pop %v7193
        %v7226 = vrsqrt.pop %v7194
        %v7227 = vrsqrt.pop %v7195
        %v7228 = vrsqrt.pop %v7196
        %v7229 = vrsqrt.pop %v7197
        %v7230 = vrsqrt.pop %v7198
        %v7231 = vrsqrt.pop %v7199
        %v7232 = vrsqrt.pop %v7200
        %v7233 = vrsqrt.pop %v7201
        %v7234 = vrsqrt.pop %v7202
        %v7235 = vrsqrt.pop %v7203
        %v7236 = vrsqrt.pop %v7204
        %v7237 = vrsqrt.pop %v7205
        %v7238 = vrsqrt.pop %v7206
        %v7239 = vrsqrt.pop %v7207
        %v7240 = vrsqrt.pop %v7208
        %v7241 = vrsqrt.pop %v7209
        %v7242 = vrsqrt.pop %v7210
        %v7243 = vrsqrt.pop %v7211
        %v7244 = vrsqrt.pop %v7212
        %v7245 = vrsqrt.pop %v7213
        %v7246 = vrsqrt.pop %v7214
        %v7247 = vrsqrt.pop %v7215
        %v7248 = vrsqrt.pop %v7216
        %v7249 = vrsqrt.pop %v7217
        %v7250 = vrsqrt.pop %v7218
        %v7251 = vmul.f32 %v6958, %v7219
        %v7252 = vmul.f32 %v6959, %v7220
        %v7253 = vmul.f32 %v6960, %v7221
        %v7254 = vmul.f32 %v6961, %v7222
        %v7255 = vmul.f32 %v6962, %v7223
        %v7256 = vmul.f32 %v6963, %v7224
        %v7257 = vmul.f32 %v6964, %v7225
        %v7258 = vmul.f32 %v6965, %v7226
        %v7259 = vmul.f32 %v6966, %v7227
        %v7260 = vmul.f32 %v6967, %v7228
        %v7261 = vmul.f32 %v6968, %v7229
        %v7262 = vmul.f32 %v6969, %v7230
        %v7263 = vmul.f32 %v6970, %v7231
        %v7264 = vmul.f32 %v6971, %v7232
        %v7265 = vmul.f32 %v6972, %v7233
        %v7266 = vmul.f32 %v6973, %v7234
        %v7267 = vmul.f32 %v6974, %v7235
        %v7268 = vmul.f32 %v6975, %v7236
        %v7269 = vmul.f32 %v6976, %v7237
        %v7270 = vmul.f32 %v6977, %v7238
        %v7271 = vmul.f32 %v6978, %v7239
        %v7272 = vmul.f32 %v6979, %v7240
        %v7273 = vmul.f32 %v6980, %v7241
        %v7274 = vmul.f32 %v6981, %v7242
        %v7275 = vmul.f32 %v6982, %v7243
        %v7276 = vmul.f32 %v6983, %v7244
        %v7277 = vmul.f32 %v6984, %v7245
        %v7278 = vmul.f32 %v6985, %v7246
        %v7279 = vmul.f32 %v6986, %v7247
        %v7280 = vmul.f32 %v6987, %v7248
        %v7281 = vmul.f32 %v6988, %v7249
        %v7282 = vmul.f32 %v6989, %v7250
        %v7284 = vlaneseq
        %v7285 = vshrl.u32 %v7284, 7
        %v7286 = vsub.s32 0, %v7285
        %v7287 = vrot.slane %v7026, %v7286
        %v7289 = vmul.f32 %v7251, %v7287
        %v7290 = vmul.f32 %v7252, %v7287
        %v7291 = vmul.f32 %v7253, %v7287
        %v7292 = vmul.f32 %v7254, %v7287
        %v7293 = vmul.f32 %v7255, %v7287
        %v7294 = vmul.f32 %v7256, %v7287
        %v7295 = vmul.f32 %v7257, %v7287
        %v7296 = vmul.f32 %v7258, %v7287
        %v7297 = vmul.f32 %v7259, %v7287
        %v7298 = vmul.f32 %v7260, %v7287
        %v7299 = vmul.f32 %v7261, %v7287
        %v7300 = vmul.f32 %v7262, %v7287
        %v7301 = vmul.f32 %v7263, %v7287
        %v7302 = vmul.f32 %v7264, %v7287
        %v7303 = vmul.f32 %v7265, %v7287
        %v7304 = vmul.f32 %v7266, %v7287
        %v7305 = vmul.f32 %v7267, %v7287
        %v7306 = vmul.f32 %v7268, %v7287
        %v7307 = vmul.f32 %v7269, %v7287
        %v7308 = vmul.f32 %v7270, %v7287
        %v7309 = vmul.f32 %v7271, %v7287
        %v7310 = vmul.f32 %v7272, %v7287
        %v7311 = vmul.f32 %v7273, %v7287
        %v7312 = vmul.f32 %v7274, %v7287
        %v7313 = vmul.f32 %v7275, %v7287
        %v7314 = vmul.f32 %v7276, %v7287
        %v7315 = vmul.f32 %v7277, %v7287
        %v7316 = vmul.f32 %v7278, %v7287
        %v7317 = vmul.f32 %v7279, %v7287
        %v7318 = vmul.f32 %v7280, %v7287
        %v7319 = vmul.f32 %v7281, %v7287
        %v7320 = vmul.f32 %v7282, %v7287
        %7321 = vst.msk [vmem:[%s8] sm:$0xff] %vm518, %v7289
        %7322 = vst.msk [vmem:[%s8 + $0x8] sm:$0xff] %vm518, %v7290
        %7323 = vst.msk [vmem:[%s8 + $0x10] sm:$0xff] %vm518, %v7291
        %7324 = vst.msk [vmem:[%s8 + $0x18] sm:$0xff] %vm518, %v7292
        %7325 = vst.msk [vmem:[%s8 + $0x20] sm:$0xff] %vm518, %v7293
        %7326 = vst.msk [vmem:[%s8 + $0x28] sm:$0xff] %vm518, %v7294
        %7327 = vst.msk [vmem:[%s8 + $0x30] sm:$0xff] %vm518, %v7295
        %7328 = vst.msk [vmem:[%s8 + $0x38] sm:$0xff] %vm518, %v7296
        %7329 = vst.msk [vmem:[%s8 + $0x40] sm:$0xff] %vm518, %v7297
        %7330 = vst.msk [vmem:[%s8 + $0x48] sm:$0xff] %vm518, %v7298
        %7331 = vst.msk [vmem:[%s8 + $0x50] sm:$0xff] %vm518, %v7299
        %7332 = vst.msk [vmem:[%s8 + $0x58] sm:$0xff] %vm518, %v7300
        %7333 = vst.msk [vmem:[%s8 + $0x60] sm:$0xff] %vm518, %v7301
        %7334 = vst.msk [vmem:[%s8 + $0x68] sm:$0xff] %vm518, %v7302
        %7335 = vst.msk [vmem:[%s8 + $0x70] sm:$0xff] %vm518, %v7303
        %7336 = vst.msk [vmem:[%s8 + $0x78] sm:$0xff] %vm518, %v7304
        %7337 = vst.msk [vmem:[%s8 + $0x80] sm:$0xff] %vm518, %v7305
        %7338 = vst.msk [vmem:[%s8 + $0x88] sm:$0xff] %vm518, %v7306
        %7339 = vst.msk [vmem:[%s8 + $0x90] sm:$0xff] %vm518, %v7307
        %7340 = vst.msk [vmem:[%s8 + $0x98] sm:$0xff] %vm518, %v7308
        %7341 = vst.msk [vmem:[%s8 + $0xa0] sm:$0xff] %vm518, %v7309
        %7342 = vst.msk [vmem:[%s8 + $0xa8] sm:$0xff] %vm518, %v7310
        %7343 = vst.msk [vmem:[%s8 + $0xb0] sm:$0xff] %vm518, %v7311
        %7344 = vst.msk [vmem:[%s8 + $0xb8] sm:$0xff] %vm518, %v7312
        %7345 = vst.msk [vmem:[%s8 + $0xc0] sm:$0xff] %vm518, %v7313
        %7346 = vst.msk [vmem:[%s8 + $0xc8] sm:$0xff] %vm518, %v7314
        %7347 = vst.msk [vmem:[%s8 + $0xd0] sm:$0xff] %vm518, %v7315
        %7348 = vst.msk [vmem:[%s8 + $0xd8] sm:$0xff] %vm518, %v7316
        %7349 = vst.msk [vmem:[%s8 + $0xe0] sm:$0xff] %vm518, %v7317
        %7350 = vst.msk [vmem:[%s8 + $0xe8] sm:$0xff] %vm518, %v7318
        %7351 = vst.msk [vmem:[%s8 + $0xf0] sm:$0xff] %vm518, %v7319
        %7352 = vst.msk [vmem:[%s8 + $0xf8] sm:$0xff] %vm518, %v7320
      $region60: #{latent_diffusion_transformer_forward.4} parent=51 // pred_fallthru
        _
      // Predicated region
      $region61: #{latent_diffusion_transformer_forward.4} parent=51 // pred_check
        %p7353 = pneg %p230
      $region62: #{latent_diffusion_transformer_forward.4} parent=51 // pred_check_branch
        %7355 = sbr.rel (%p7353) target = $region64
      $region63: #{latent_diffusion_transformer_forward.4} parent=51 // pred_region
        _
      $region64: #{latent_diffusion_transformer_forward.4} parent=51 // pred_fallthru
        _
      // Predicated region
      $region65: #{latent_diffusion_transformer_forward.4} parent=51 // pred_check
        %p7356 = pneg %p230
      $region66: #{latent_diffusion_transformer_forward.4} parent=51 // pred_check_branch
        %7358 = sbr.rel (%p7356) target = $region68
      $region67: #{latent_diffusion_transformer_forward.4} parent=51 // pred_region
        _
      $region68: #{latent_diffusion_transformer_forward.4} parent=51 // pred_fallthru
        _
    $region52: #{latent_diffusion_transformer_forward.4} parent=5 // pred_fallthru
      _
    %p7359 = scmp.le.s32.totalorder 2, %s14
    // Predicated region
    $region69: #{latent_diffusion_transformer_forward.4} parent=5 // pred_check
      %p7360 = pneg %p7359
    $region70: #{latent_diffusion_transformer_forward.4} parent=5 // pred_check_branch
      %7362 = sbr.rel (%p7360) target = $region72
    $region71: #{latent_diffusion_transformer_forward.4} parent=5 // pred_region
      %s7363 = ssub.s32 %s14, 2
    $region72: #{latent_diffusion_transformer_forward.4} parent=5 // pred_fallthru
      _
  $region6: #{latent_diffusion_transformer_forward.4} parent=0 // loop_footer
    %s18 = sadd.s32 1, %s14
  $region7: #{latent_diffusion_transformer_forward.4} parent=0 // loop_footer_branch
    %13 = sbr.rel target = $region3
  $region8: #{latent_diffusion_transformer_forward.4} parent=0 // loop_exit
    _

</llo_original>
